<compile_context>
chip_gen: v5e
topology: v5e:2x2
jax: 0.10.0
libtpu: 0.0.40
codegen_flags: <defaults>
</compile_context>

<pallas_src>
import jax
import jax.numpy as jnp
from jax.experimental import pallas as pl
from jax.experimental.pallas import tpu as pltpu


Z_DIM_PAD = 128  # lane-aligned padded z dimension


def generator_kernel(z_ref, w1_ref, b1_ref, w2_ref, b2_ref, w3_ref, b3_ref,
                     out_ref):
    # Layer 1: Linear(z_dim_pad, 512) + ReLU  (bf16 MXU inputs, f32 accum)
    h1 = jnp.dot(z_ref[...].astype(jnp.bfloat16), w1_ref[...],
                 preferred_element_type=jnp.float32) + b1_ref[...]
    h1 = jnp.maximum(h1, 0.0)
    # Layer 2: Linear(512, 1024) + ReLU
    h2 = jnp.dot(h1.astype(jnp.bfloat16), w2_ref[...],
                 preferred_element_type=jnp.float32) + b2_ref[...]
    h2 = jnp.maximum(h2, 0.0)
    # Layer 3: Linear(1024, output_dim) + Tanh
    h3 = jnp.dot(h2.astype(jnp.bfloat16), w3_ref[...],
                 preferred_element_type=jnp.float32) + b3_ref[...]
    out_ref[...] = jnp.tanh(h3)


def prepare_params(params_f32, z_dim_pad=Z_DIM_PAD):
    """Pad w1's input dim to z_dim_pad and cast weights (not biases) to bf16."""
    w1, b1, w2, b2, w3, b3 = params_f32
    z_dim = w1.shape[0]
    if z_dim < z_dim_pad:
        w1 = jnp.pad(w1, ((0, z_dim_pad - z_dim), (0, 0)))
    return (w1.astype(jnp.bfloat16), b1,
            w2.astype(jnp.bfloat16), b2,
            w3.astype(jnp.bfloat16), b3)


def generator_forward(z, prepared_params):
    """z: (B, z_dim) float32 -> (B, 3, 32, 32) float32."""
    w1, b1, w2, b2, w3, b3 = prepared_params
    B, z_dim = z.shape
    zp = w1.shape[0]          # padded z dim (128)
    out_dim = w3.shape[1]     # 3072

    # Zero-pad z's feature dim to match padded w1 rows (contributes zero).
    if z_dim < zp:
        z = jnp.pad(z, ((0, 0), (0, zp - z_dim)))

    # Batch tiling: TB multiple of 8 (f32 sublane), capped at 128 so the f32
    # intermediates (TB x 512, TB x 1024) stay comfortably in vregs.
    TB = 128
    if B <= TB:
        tb = max(8, ((B + 7) // 8) * 8)
        b_pad = tb
    else:
        tb = TB
        b_pad = pl.cdiv(B, tb) * tb
    if b_pad != B:
        z = jnp.pad(z, ((0, b_pad - B), (0, 0)))

    grid = (b_pad // tb,)

    z_spec = pl.BlockSpec((tb, zp), lambda i: (i, 0))
    out_spec = pl.BlockSpec((tb, out_dim), lambda i: (i, 0))
    # Weights/biases: constant index_map -> loaded once, stay VMEM-resident.
    w_specs = [
        pl.BlockSpec(w1.shape, lambda i: (0, 0)),
        pl.BlockSpec(b1.shape, lambda i: (0, 0)),
        pl.BlockSpec(w2.shape, lambda i: (0, 0)),
        pl.BlockSpec(b2.shape, lambda i: (0, 0)),
        pl.BlockSpec(w3.shape, lambda i: (0, 0)),
        pl.BlockSpec(b3.shape, lambda i: (0, 0)),
    ]

    flat = pl.pallas_call(
        generator_kernel,
        out_shape=jax.ShapeDtypeStruct((b_pad, out_dim), jnp.float32),
        grid=grid,
        in_specs=[z_spec] + w_specs,
        out_specs=out_spec,
        compiler_params=pltpu.CompilerParams(
            dimension_semantics=("parallel",),
            vmem_limit_bytes=32 << 20,
        ),
    )(z, w1, b1, w2, b2, w3, b3)

    # Glue: drop batch padding, then same row-major reshape as .view(-1,3,32,32)
    return flat[:B].reshape(B, 3, 32, 32)


def init_params(key, z_dim=100, output_dim=3 * 32 * 32):
    """Deterministic synthetic f32 parameters (shapes match the nn.Linear's,
    stored pre-transposed as (in_features, out_features))."""
    ks = jax.random.split(key, 6)
    scale = 0.02
    w1 = scale * jax.random.normal(ks[0], (z_dim, 512), jnp.float32)
    b1 = scale * jax.random.normal(ks[1], (1, 512), jnp.float32)
    w2 = scale * jax.random.normal(ks[2], (512, 1024), jnp.float32)
    b2 = scale * jax.random.normal(ks[3], (1, 1024), jnp.float32)
    w3 = scale * jax.random.normal(ks[4], (1024, output_dim), jnp.float32)
    b3 = scale * jax.random.normal(ks[5], (1, output_dim), jnp.float32)
    return (w1, b1, w2, b2, w3, b3)


if __name__ == "__main__":
    key = jax.random.PRNGKey(0)
    pkey, zkey = jax.random.split(key)

    z_dim = 100
    batch = 2
    params_f32 = init_params(pkey, z_dim=z_dim, output_dim=3 * 32 * 32)
    prepared = prepare_params(params_f32)
    z = jax.random.normal(zkey, (batch, z_dim), jnp.float32)

    out = generator_forward(z, prepared)
    jax.block_until_ready(out)

    # Sanity: correct shape and tanh range.
    assert out.shape == (batch, 3, 32, 32), out.shape
    assert bool(jnp.all(jnp.abs(out) <= 1.0))

    # Cross-check against plain-JAX f32 reference (loose tolerance: kernel
    # feeds bf16 weights/activations to the MXU with f32 accumulation).
    w1, b1, w2, b2, w3, b3 = params_f32
    h = jnp.maximum(z @ w1 + b1, 0.0)
    h = jnp.maximum(h @ w2 + b2, 0.0)
    ref = jnp.tanh(h @ w3 + b3).reshape(batch, 3, 32, 32)
    assert bool(jnp.allclose(out, ref, atol=5e-2, rtol=5e-2))

    print("KERNEL_OK")
</pallas_src>

<mosaic_0001>
module attributes {stable_mosaic.version = 11 : i64} {
  func.func @generator_kernel(%arg0: i32, %arg1: memref<8x128xf32, #tpu.memory_space<vmem>>, %arg2: memref<128x512xbf16, #tpu.memory_space<vmem>>, %arg3: memref<1x512xf32, #tpu.memory_space<vmem>>, %arg4: memref<512x1024xbf16, #tpu.memory_space<vmem>>, %arg5: memref<1x1024xf32, #tpu.memory_space<vmem>>, %arg6: memref<1024x3072xbf16, #tpu.memory_space<vmem>>, %arg7: memref<1x3072xf32, #tpu.memory_space<vmem>>, %arg8: memref<8x3072xf32, #tpu.memory_space<vmem>>) attributes {dimension_semantics = [#tpu.dimension_semantics<parallel>], iteration_bounds = array<i64: 1>, scalar_prefetch = 0 : i64, scratch_operands = 0 : i64, tpu.core_type = #tpu.core_type<tc>, window_params = [{transform_indices = @transform_0, window_bounds = array<i64: 8, 128>}, {pipeline_mode = #tpu.pipeline_mode<synchronous>, transform_indices = @transform_1, window_bounds = array<i64: 128, 512>}, {pipeline_mode = #tpu.pipeline_mode<synchronous>, transform_indices = @transform_2, window_bounds = array<i64: 1, 512>}, {pipeline_mode = #tpu.pipeline_mode<synchronous>, transform_indices = @transform_3, window_bounds = array<i64: 512, 1024>}, {pipeline_mode = #tpu.pipeline_mode<synchronous>, transform_indices = @transform_4, window_bounds = array<i64: 1, 1024>}, {pipeline_mode = #tpu.pipeline_mode<synchronous>, transform_indices = @transform_5, window_bounds = array<i64: 1024, 3072>}, {pipeline_mode = #tpu.pipeline_mode<synchronous>, transform_indices = @transform_6, window_bounds = array<i64: 1, 3072>}, {transform_indices = @transform_7, window_bounds = array<i64: 8, 3072>}]} {
    %c0 = arith.constant 0 : index
    %c0_0 = arith.constant 0 : index
    %0 = vector.load %arg1[%c0, %c0_0] : memref<8x128xf32, #tpu.memory_space<vmem>>, vector<8x128xf32>
    %1 = arith.truncf %0 : vector<8x128xf32> to vector<8x128xbf16>
    %c0_1 = arith.constant 0 : index
    %c0_2 = arith.constant 0 : index
    %2 = vector.load %arg2[%c0_1, %c0_2] : memref<128x512xbf16, #tpu.memory_space<vmem>>, vector<128x512xbf16>
    %cst = arith.constant dense<0.000000e+00> : vector<8x512xf32>
    %3 = tpu.matmul %1, %2, %cst {dimension_numbers = #tpu.dot_dimension_numbers<[1], [0], [0], [1], [0, 0, 1, 1], [], []>} : vector<8x128xbf16>, vector<128x512xbf16>, vector<8x512xf32> -> vector<8x512xf32>
    %c0_3 = arith.constant 0 : index
    %c0_4 = arith.constant 0 : index
    %4 = vector.load %arg3[%c0_3, %c0_4] : memref<1x512xf32, #tpu.memory_space<vmem>>, vector<1x512xf32>
    %5 = vector.broadcast %4 : vector<1x512xf32> to vector<8x512xf32>
    %6 = arith.addf %3, %5 : vector<8x512xf32>
    %cst_5 = arith.constant 0.000000e+00 : f32
    %7 = vector.broadcast %cst_5 : f32 to vector<8x512xf32>
    %8 = arith.maximumf %6, %7 : vector<8x512xf32>
    %9 = arith.truncf %8 : vector<8x512xf32> to vector<8x512xbf16>
    %c0_6 = arith.constant 0 : index
    %c0_7 = arith.constant 0 : index
    %10 = vector.load %arg4[%c0_6, %c0_7] : memref<512x1024xbf16, #tpu.memory_space<vmem>>, vector<512x1024xbf16>
    %cst_8 = arith.constant dense<0.000000e+00> : vector<8x1024xf32>
    %11 = tpu.matmul %9, %10, %cst_8 {dimension_numbers = #tpu.dot_dimension_numbers<[1], [0], [0], [1], [0, 0, 1, 1], [], []>} : vector<8x512xbf16>, vector<512x1024xbf16>, vector<8x1024xf32> -> vector<8x1024xf32>
    %c0_9 = arith.constant 0 : index
    %c0_10 = arith.constant 0 : index
    %12 = vector.load %arg5[%c0_9, %c0_10] : memref<1x1024xf32, #tpu.memory_space<vmem>>, vector<1x1024xf32>
    %13 = vector.broadcast %12 : vector<1x1024xf32> to vector<8x1024xf32>
    %14 = arith.addf %11, %13 : vector<8x1024xf32>
    %cst_11 = arith.constant 0.000000e+00 : f32
    %15 = vector.broadcast %cst_11 : f32 to vector<8x1024xf32>
    %16 = arith.maximumf %14, %15 : vector<8x1024xf32>
    %17 = arith.truncf %16 : vector<8x1024xf32> to vector<8x1024xbf16>
    %c0_12 = arith.constant 0 : index
    %c0_13 = arith.constant 0 : index
    %18 = vector.load %arg6[%c0_12, %c0_13] : memref<1024x3072xbf16, #tpu.memory_space<vmem>>, vector<1024x3072xbf16>
    %cst_14 = arith.constant dense<0.000000e+00> : vector<8x3072xf32>
    %19 = tpu.matmul %17, %18, %cst_14 {dimension_numbers = #tpu.dot_dimension_numbers<[1], [0], [0], [1], [0, 0, 1, 1], [], []>} : vector<8x1024xbf16>, vector<1024x3072xbf16>, vector<8x3072xf32> -> vector<8x3072xf32>
    %c0_15 = arith.constant 0 : index
    %c0_16 = arith.constant 0 : index
    %20 = vector.load %arg7[%c0_15, %c0_16] : memref<1x3072xf32, #tpu.memory_space<vmem>>, vector<1x3072xf32>
    %21 = vector.broadcast %20 : vector<1x3072xf32> to vector<8x3072xf32>
    %22 = arith.addf %19, %21 : vector<8x3072xf32>
    %23 = math.tanh %22 : vector<8x3072xf32>
    %c0_17 = arith.constant 0 : index
    %c0_18 = arith.constant 0 : index
    %24 = vector.load %arg8[%c0_17, %c0_18] : memref<8x3072xf32, #tpu.memory_space<vmem>>, vector<8x3072xf32>
    tpu.vector_store %arg8[%c0_17, %c0_18], %23 {strides = array<i32>} : memref<8x3072xf32, #tpu.memory_space<vmem>>, vector<8x3072xf32>,
    return
  }
  func.func @transform_0(%arg0: i32) -> (i32, i32) {
    %c0_i32 = arith.constant 0 : i32
    %c0_i32_0 = arith.constant 0 : i32
    return %arg0, %c0_i32 : i32, i32
  }
  func.func @transform_1(%arg0: i32) -> (i32, i32) {
    %c0_i32 = arith.constant 0 : i32
    %c0_i32_0 = arith.constant 0 : i32
    %c0_i32_1 = arith.constant 0 : i32
    return %c0_i32, %c0_i32_0 : i32, i32
  }
  func.func @transform_2(%arg0: i32) -> (i32, i32) {
    %c0_i32 = arith.constant 0 : i32
    %c0_i32_0 = arith.constant 0 : i32
    %c0_i32_1 = arith.constant 0 : i32
    return %c0_i32, %c0_i32_0 : i32, i32
  }
  func.func @transform_3(%arg0: i32) -> (i32, i32) {
    %c0_i32 = arith.constant 0 : i32
    %c0_i32_0 = arith.constant 0 : i32
    %c0_i32_1 = arith.constant 0 : i32
    return %c0_i32, %c0_i32_0 : i32, i32
  }
  func.func @transform_4(%arg0: i32) -> (i32, i32) {
    %c0_i32 = arith.constant 0 : i32
    %c0_i32_0 = arith.constant 0 : i32
    %c0_i32_1 = arith.constant 0 : i32
    return %c0_i32, %c0_i32_0 : i32, i32
  }
  func.func @transform_5(%arg0: i32) -> (i32, i32) {
    %c0_i32 = arith.constant 0 : i32
    %c0_i32_0 = arith.constant 0 : i32
    %c0_i32_1 = arith.constant 0 : i32
    return %c0_i32, %c0_i32_0 : i32, i32
  }
  func.func @transform_6(%arg0: i32) -> (i32, i32) {
    %c0_i32 = arith.constant 0 : i32
    %c0_i32_0 = arith.constant 0 : i32
    %c0_i32_1 = arith.constant 0 : i32
    return %c0_i32, %c0_i32_0 : i32, i32
  }
  func.func @transform_7(%arg0: i32) -> (i32, i32) {
    %c0_i32 = arith.constant 0 : i32
    %c0_i32_0 = arith.constant 0 : i32
    return %arg0, %c0_i32 : i32, i32
  }
}

</mosaic_0001>

<llo_original>
// kernel: tpu_custom_call.1
$region0: #{tpu_custom_call.1}
  #allocation0 [shape = 'u32[]', space=smem, size = 0x4, offset = 0x4, fixed_abs, tag = 'smem constant byte address 0x4 - core index']
  #allocation1 [shape = 'u32[72,128]{1,0:T(1,128)}', space=vmem, size = 0x9000, scoped, tag = 'internal scratch']
  %s0 = inlined_call_operand.hbm [shape: f32[8,128], index: 0, kind: input, shape index: {}]
  %s1 = inlined_call_operand.hbm [shape: bf16[128,512], index: 1, kind: input, shape index: {}]
  %s2 = inlined_call_operand.hbm [shape: f32[1,512], index: 2, kind: input, shape index: {}]
  %s3 = inlined_call_operand.hbm [shape: bf16[512,1024], index: 3, kind: input, shape index: {}]
  %s4 = inlined_call_operand.hbm [shape: f32[1,1024], index: 4, kind: input, shape index: {}]
  %s5 = inlined_call_operand.hbm [shape: bf16[1024,3072], index: 5, kind: input, shape index: {}]
  %s6 = inlined_call_operand.hbm [shape: f32[1,3072], index: 6, kind: input, shape index: {}]
  %s7 = inlined_call_operand.hbm [shape: f32[8,3072], index: 7, kind: output, shape index: {}]
  %s8 = sld [smem:[#allocation0]]
  $region66: #{tpu_custom_call.1} parent=0
    _
  %s10 = ssub.s32 1, %s8
  %s11 = scalar_select 0, %s10, %s8
  $region1: #{tpu_custom_call.1} parent=0
    #allocation2 [shape = 'u8[4096]{0}', space=vmem, size = 0x1000, scoped, tag = 'input window, operand 0, single buffered']
    #allocation3 [shape = 's32[1]{0}', space=sflag, size = 0x4, scoped, tag = 'scoped memory for tpu_custom_call.1']
    #allocation4 [shape = 's32[1]{0}', space=sflag, size = 0x4, scoped, tag = 'scoped memory for tpu_custom_call.1']
    #allocation5 [shape = 'u8[131072]{0}', space=vmem, size = 0x20000, scoped, tag = 'input window, operand 1, single buffered']
    #allocation6 [shape = 's32[1]{0}', space=sflag, size = 0x4, scoped, tag = 'scoped memory for tpu_custom_call.1']
    #allocation7 [shape = 'u8[2048]{0}', space=vmem, size = 0x800, scoped, tag = 'input window, operand 2, single buffered']
    #allocation8 [shape = 'u8[1048576]{0}', space=vmem, size = 0x100000, scoped, tag = 'input window, operand 3, single buffered']
    #allocation9 [shape = 's32[1]{0}', space=sflag, size = 0x4, scoped, tag = 'scoped memory for tpu_custom_call.1']
    #allocation10 [shape = 'u8[4096]{0}', space=vmem, size = 0x1000, scoped, tag = 'input window, operand 4, single buffered']
    #allocation11 [shape = 'u8[6291456]{0}', space=vmem, size = 0x600000, scoped, tag = 'input window, operand 5, single buffered']
    #allocation12 [shape = 's32[1]{0}', space=sflag, size = 0x4, scoped, tag = 'scoped memory for tpu_custom_call.1']
    #allocation13 [shape = 'u8[12288]{0}', space=vmem, size = 0x3000, scoped, tag = 'input window, operand 6, single buffered']
    #allocation14 [shape = 'u8[98304]{0}', space=vmem, size = 0x18000, scoped, tag = 'output window, operand 0, single buffered']
    %12 = vsyncpa [#allocation3], 0
    %13 = vsyncpa [#allocation6], 0
    %14 = vsyncpa [#allocation9], 0
    %15 = vsyncpa [#allocation12], 0
    %16 = vsyncpa [#allocation4], 0
    // Predicated region
    $region2: #{tpu_custom_call.1} parent=1 // pred_check
      _
    $region3: #{tpu_custom_call.1} parent=1 // pred_check_branch
      %18 = sbr.rel (0) target = $region5
    $region4: #{tpu_custom_call.1} parent=1 // pred_region
      %20 = vsyncadd [#allocation3], 0
      %s22 = sshll.u32 %s0, 4
      %s23 = int_to_ptr.hbm [resolvable:$true] %s22
      %s24 = sshll.u32 [#allocation2], 4
      %s25 = int_to_ptr.vmem [resolvable:$true] %s24
      %27 = dma.hbm_to_vmem [thread:$0]  %s23, 128, %s25, [#allocation3]
    $region5: #{tpu_custom_call.1} parent=1 // pred_fallthru
      _
    // Predicated region
    $region6: #{tpu_custom_call.1} parent=1 // pred_check
      _
    $region7: #{tpu_custom_call.1} parent=1 // pred_check_branch
      %29 = sbr.rel (0) target = $region9
    $region8: #{tpu_custom_call.1} parent=1 // pred_region
      %31 = vsyncadd [#allocation6], 0
      %s32 = sshll.u32 %s1, 4
      %s33 = int_to_ptr.hbm [resolvable:$true] %s32
      %s34 = sshll.u32 [#allocation5], 4
      %s35 = int_to_ptr.vmem [resolvable:$true] %s34
      %40 = dma.hbm_to_vmem [thread:$0]  %s33, 4096, %s35, [#allocation6], 256, 256, 16
    $region9: #{tpu_custom_call.1} parent=1 // pred_fallthru
      _
    // Predicated region
    $region10: #{tpu_custom_call.1} parent=1 // pred_check
      _
    $region11: #{tpu_custom_call.1} parent=1 // pred_check_branch
      %42 = sbr.rel (0) target = $region13
    $region12: #{tpu_custom_call.1} parent=1 // pred_region
      %44 = vsyncadd [#allocation6], 0
      %s46 = sshll.u32 %s2, 4
      %s47 = int_to_ptr.hbm [resolvable:$true] %s46
      %s48 = sshll.u32 [#allocation7], 4
      %s49 = int_to_ptr.vmem [resolvable:$true] %s48
      %51 = dma.hbm_to_vmem [thread:$0]  %s47, 64, %s49, [#allocation6]
    $region13: #{tpu_custom_call.1} parent=1 // pred_fallthru
      _
    // Predicated region
    $region14: #{tpu_custom_call.1} parent=1 // pred_check
      _
    $region15: #{tpu_custom_call.1} parent=1 // pred_check_branch
      %53 = sbr.rel (0) target = $region17
    $region16: #{tpu_custom_call.1} parent=1 // pred_region
      %55 = vsyncadd [#allocation9], 0
      %s56 = sshll.u32 %s3, 4
      %s57 = int_to_ptr.hbm [resolvable:$true] %s56
      %s58 = sshll.u32 [#allocation8], 4
      %s59 = int_to_ptr.vmem [resolvable:$true] %s58
      %64 = dma.hbm_to_vmem [thread:$0]  %s57, 32768, %s59, [#allocation9], 512, 512, 32
    $region17: #{tpu_custom_call.1} parent=1 // pred_fallthru
      _
    // Predicated region
    $region18: #{tpu_custom_call.1} parent=1 // pred_check
      _
    $region19: #{tpu_custom_call.1} parent=1 // pred_check_branch
      %66 = sbr.rel (0) target = $region21
    $region20: #{tpu_custom_call.1} parent=1 // pred_region
      %68 = vsyncadd [#allocation9], 0
      %s70 = sshll.u32 %s4, 4
      %s71 = int_to_ptr.hbm [resolvable:$true] %s70
      %s72 = sshll.u32 [#allocation10], 4
      %s73 = int_to_ptr.vmem [resolvable:$true] %s72
      %75 = dma.hbm_to_vmem [thread:$0]  %s71, 128, %s73, [#allocation9]
    $region21: #{tpu_custom_call.1} parent=1 // pred_fallthru
      _
    // Predicated region
    $region22: #{tpu_custom_call.1} parent=1 // pred_check
      _
    $region23: #{tpu_custom_call.1} parent=1 // pred_check_branch
      %77 = sbr.rel (0) target = $region25
    $region24: #{tpu_custom_call.1} parent=1 // pred_region
      %79 = vsyncadd [#allocation12], 0
      %s80 = sshll.u32 %s5, 4
      %s81 = int_to_ptr.hbm [resolvable:$true] %s80
      %s82 = sshll.u32 [#allocation11], 4
      %s83 = int_to_ptr.vmem [resolvable:$true] %s82
      %88 = dma.hbm_to_vmem [thread:$0]  %s81, 196608, %s83, [#allocation12], 1536, 1536, 96
    $region25: #{tpu_custom_call.1} parent=1 // pred_fallthru
      _
    // Predicated region
    $region26: #{tpu_custom_call.1} parent=1 // pred_check
      _
    $region27: #{tpu_custom_call.1} parent=1 // pred_check_branch
      %90 = sbr.rel (0) target = $region29
    $region28: #{tpu_custom_call.1} parent=1 // pred_region
      %92 = vsyncadd [#allocation12], 0
      %s94 = sshll.u32 %s6, 4
      %s95 = int_to_ptr.hbm [resolvable:$true] %s94
      %s96 = sshll.u32 [#allocation13], 4
      %s97 = int_to_ptr.vmem [resolvable:$true] %s96
      %99 = dma.hbm_to_vmem [thread:$0]  %s95, 384, %s97, [#allocation12]
    $region29: #{tpu_custom_call.1} parent=1 // pred_fallthru
      _
    // Predicated region
    $region30: #{tpu_custom_call.1} parent=1 // pred_check
      _
    $region31: #{tpu_custom_call.1} parent=1 // pred_check_branch
      %101 = sbr.rel (0) target = $region33
    $region32: #{tpu_custom_call.1} parent=1 // pred_region
      %103 = dma.done [#allocation3], 128
    $region33: #{tpu_custom_call.1} parent=1 // pred_fallthru
      _
    // Predicated region
    $region34: #{tpu_custom_call.1} parent=1 // pred_check
      _
    $region35: #{tpu_custom_call.1} parent=1 // pred_check_branch
      %105 = sbr.rel (0) target = $region37
    $region36: #{tpu_custom_call.1} parent=1 // pred_region
      %107 = dma.done [#allocation6], 4096
    $region37: #{tpu_custom_call.1} parent=1 // pred_fallthru
      _
    // Predicated region
    $region38: #{tpu_custom_call.1} parent=1 // pred_check
      _
    $region39: #{tpu_custom_call.1} parent=1 // pred_check_branch
      %109 = sbr.rel (0) target = $region41
    $region40: #{tpu_custom_call.1} parent=1 // pred_region
      %111 = dma.done [#allocation6], 64
    $region41: #{tpu_custom_call.1} parent=1 // pred_fallthru
      _
    // Predicated region
    $region42: #{tpu_custom_call.1} parent=1 // pred_check
      _
    $region43: #{tpu_custom_call.1} parent=1 // pred_check_branch
      %113 = sbr.rel (0) target = $region45
    $region44: #{tpu_custom_call.1} parent=1 // pred_region
      %115 = dma.done [#allocation9], 32768
    $region45: #{tpu_custom_call.1} parent=1 // pred_fallthru
      _
    // Predicated region
    $region46: #{tpu_custom_call.1} parent=1 // pred_check
      _
    $region47: #{tpu_custom_call.1} parent=1 // pred_check_branch
      %117 = sbr.rel (0) target = $region49
    $region48: #{tpu_custom_call.1} parent=1 // pred_region
      %119 = dma.done [#allocation9], 128
    $region49: #{tpu_custom_call.1} parent=1 // pred_fallthru
      _
    // Predicated region
    $region50: #{tpu_custom_call.1} parent=1 // pred_check
      _
    $region51: #{tpu_custom_call.1} parent=1 // pred_check_branch
      %121 = sbr.rel (0) target = $region53
    $region52: #{tpu_custom_call.1} parent=1 // pred_region
      %123 = dma.done [#allocation12], 196608
    $region53: #{tpu_custom_call.1} parent=1 // pred_fallthru
      _
    // Predicated region
    $region54: #{tpu_custom_call.1} parent=1 // pred_check
      _
    $region55: #{tpu_custom_call.1} parent=1 // pred_check_branch
      %125 = sbr.rel (0) target = $region57
    $region56: #{tpu_custom_call.1} parent=1 // pred_region
      %127 = dma.done [#allocation12], 384
    $region57: #{tpu_custom_call.1} parent=1 // pred_fallthru
      _
    %v128 = vld [vmem:[#allocation2] sm:$0xff]
    %v129 = vpack.c.bf16 %v128, %v128
    %v130 = vld [vmem:[#allocation5] sm:$0xff]
    %v131 = vld [vmem:[#allocation5 + $0x8] sm:$0xff]
    %v132 = vld [vmem:[#allocation5 + $0x10] sm:$0xff]
    %v133 = vld [vmem:[#allocation5 + $0x18] sm:$0xff]
    %v134 = vld [vmem:[#allocation5 + $0x20] sm:$0xff]
    %v135 = vld [vmem:[#allocation5 + $0x28] sm:$0xff]
    %v136 = vld [vmem:[#allocation5 + $0x30] sm:$0xff]
    %v137 = vld [vmem:[#allocation5 + $0x38] sm:$0xff]
    %v138 = vld [vmem:[#allocation5 + $0x40] sm:$0xff]
    %v139 = vld [vmem:[#allocation5 + $0x48] sm:$0xff]
    %v140 = vld [vmem:[#allocation5 + $0x50] sm:$0xff]
    %v141 = vld [vmem:[#allocation5 + $0x58] sm:$0xff]
    %v142 = vld [vmem:[#allocation5 + $0x60] sm:$0xff]
    %v143 = vld [vmem:[#allocation5 + $0x68] sm:$0xff]
    %v144 = vld [vmem:[#allocation5 + $0x70] sm:$0xff]
    %v145 = vld [vmem:[#allocation5 + $0x78] sm:$0xff]
    %v146 = vld [vmem:[#allocation5 + $0x80] sm:$0xff]
    %v147 = vld [vmem:[#allocation5 + $0x88] sm:$0xff]
    %v148 = vld [vmem:[#allocation5 + $0x90] sm:$0xff]
    %v149 = vld [vmem:[#allocation5 + $0x98] sm:$0xff]
    %v150 = vld [vmem:[#allocation5 + $0xa0] sm:$0xff]
    %v151 = vld [vmem:[#allocation5 + $0xa8] sm:$0xff]
    %v152 = vld [vmem:[#allocation5 + $0xb0] sm:$0xff]
    %v153 = vld [vmem:[#allocation5 + $0xb8] sm:$0xff]
    %v154 = vld [vmem:[#allocation5 + $0xc0] sm:$0xff]
    %v155 = vld [vmem:[#allocation5 + $0xc8] sm:$0xff]
    %v156 = vld [vmem:[#allocation5 + $0xd0] sm:$0xff]
    %v157 = vld [vmem:[#allocation5 + $0xd8] sm:$0xff]
    %v158 = vld [vmem:[#allocation5 + $0xe0] sm:$0xff]
    %v159 = vld [vmem:[#allocation5 + $0xe8] sm:$0xff]
    %v160 = vld [vmem:[#allocation5 + $0xf0] sm:$0xff]
    %v161 = vld [vmem:[#allocation5 + $0xf8] sm:$0xff]
    %v162 = vld [vmem:[#allocation7] sm:$0xf]
    %v164 = vperm.slane %v162, 0
    %v165 = vperm.slane %v162, 1
    %v166 = vperm.slane %v162, 2
    %v167 = vperm.slane %v162, 3
    %v204 = vunpack.c.l.b16 %v130
    %v205 = vunpack.c.h.b16 %v130
    %v206 = vunpack.c.l.b16 %v131
    %v207 = vunpack.c.h.b16 %v131
    %v208 = vunpack.c.l.b16 %v132
    %v209 = vunpack.c.h.b16 %v132
    %v210 = vunpack.c.l.b16 %v133
    %v211 = vunpack.c.h.b16 %v133
    %v212 = vunpack.c.l.b16 %v134
    %v213 = vunpack.c.h.b16 %v134
    %v214 = vunpack.c.l.b16 %v135
    %v215 = vunpack.c.h.b16 %v135
    %v216 = vunpack.c.l.b16 %v136
    %v217 = vunpack.c.h.b16 %v136
    %v218 = vunpack.c.l.b16 %v137
    %v219 = vunpack.c.h.b16 %v137
    %v220 = vunpack.c.l.b16 %v138
    %v221 = vunpack.c.h.b16 %v138
    %v222 = vunpack.c.l.b16 %v139
    %v223 = vunpack.c.h.b16 %v139
    %v224 = vunpack.c.l.b16 %v140
    %v225 = vunpack.c.h.b16 %v140
    %v226 = vunpack.c.l.b16 %v141
    %v227 = vunpack.c.h.b16 %v141
    %v228 = vunpack.c.l.b16 %v142
    %v229 = vunpack.c.h.b16 %v142
    %v230 = vunpack.c.l.b16 %v143
    %v231 = vunpack.c.h.b16 %v143
    %v232 = vunpack.c.l.b16 %v144
    %v233 = vunpack.c.h.b16 %v144
    %v234 = vunpack.c.l.b16 %v145
    %v235 = vunpack.c.h.b16 %v145
    %v236 = vunpack.c.l.b16 %v146
    %v237 = vunpack.c.h.b16 %v146
    %v238 = vunpack.c.l.b16 %v147
    %v239 = vunpack.c.h.b16 %v147
    %v240 = vunpack.c.l.b16 %v148
    %v241 = vunpack.c.h.b16 %v148
    %v242 = vunpack.c.l.b16 %v149
    %v243 = vunpack.c.h.b16 %v149
    %v244 = vunpack.c.l.b16 %v150
    %v245 = vunpack.c.h.b16 %v150
    %v246 = vunpack.c.l.b16 %v151
    %v247 = vunpack.c.h.b16 %v151
    %v248 = vunpack.c.l.b16 %v152
    %v249 = vunpack.c.h.b16 %v152
    %v250 = vunpack.c.l.b16 %v153
    %v251 = vunpack.c.h.b16 %v153
    %v252 = vunpack.c.l.b16 %v154
    %v253 = vunpack.c.h.b16 %v154
    %v254 = vunpack.c.l.b16 %v155
    %v255 = vunpack.c.h.b16 %v155
    %v256 = vunpack.c.l.b16 %v156
    %v257 = vunpack.c.h.b16 %v156
    %v258 = vunpack.c.l.b16 %v157
    %v259 = vunpack.c.h.b16 %v157
    %v260 = vunpack.c.l.b16 %v158
    %v261 = vunpack.c.h.b16 %v158
    %v262 = vunpack.c.l.b16 %v159
    %v263 = vunpack.c.h.b16 %v159
    %v264 = vunpack.c.l.b16 %v160
    %v265 = vunpack.c.h.b16 %v160
    %v266 = vunpack.c.l.b16 %v161
    %v267 = vunpack.c.h.b16 %v161
    %v268 = vpack.c.b16 %v208, %v204
    %v269 = vpack.c.b16 %v209, %v205
    %v270 = vpack.c.b16 %v210, %v206
    %v271 = vpack.c.b16 %v211, %v207
    %v272 = vpack.c.b16 %v216, %v212
    %v273 = vpack.c.b16 %v217, %v213
    %v274 = vpack.c.b16 %v218, %v214
    %v275 = vpack.c.b16 %v219, %v215
    %v276 = vpack.c.b16 %v224, %v220
    %v277 = vpack.c.b16 %v225, %v221
    %v278 = vpack.c.b16 %v226, %v222
    %v279 = vpack.c.b16 %v227, %v223
    %v280 = vpack.c.b16 %v232, %v228
    %v281 = vpack.c.b16 %v233, %v229
    %v282 = vpack.c.b16 %v234, %v230
    %v283 = vpack.c.b16 %v235, %v231
    %v284 = vpack.c.b16 %v240, %v236
    %v285 = vpack.c.b16 %v241, %v237
    %v286 = vpack.c.b16 %v242, %v238
    %v287 = vpack.c.b16 %v243, %v239
    %v288 = vpack.c.b16 %v248, %v244
    %v289 = vpack.c.b16 %v249, %v245
    %v290 = vpack.c.b16 %v250, %v246
    %v291 = vpack.c.b16 %v251, %v247
    %v292 = vpack.c.b16 %v256, %v252
    %v293 = vpack.c.b16 %v257, %v253
    %v294 = vpack.c.b16 %v258, %v254
    %v295 = vpack.c.b16 %v259, %v255
    %v296 = vpack.c.b16 %v264, %v260
    %v297 = vpack.c.b16 %v265, %v261
    %v298 = vpack.c.b16 %v266, %v262
    %v299 = vpack.c.b16 %v267, %v263
    %332 = vmatpush.bf16.msra.mxu0 %v296
    %333 = vmatpush.bf16.msra.mxu0 %v292
    %334 = vmatpush.bf16.msra.mxu0 %v288
    %335 = vmatpush.bf16.msra.mxu0 %v284
    %336 = vmatpush.bf16.msra.mxu0 %v280
    %337 = vmatpush.bf16.msra.mxu0 %v276
    %338 = vmatpush.bf16.msra.mxu0 %v272
    %339 = vmatpush.bf16.msra.mxu0 %v268
    %340 = vmatmul.bf16.gmra.mxu0 %v129
    %v341 = vpop.f32.mrf.mxu0
    %v342 = vadd.f32 %v164, %v341
    %v343 = vpop.f32.mrf.mxu0
    %344 = vdwg.mxu0
    %345 = vmatpush.bf16.msra.mxu0 %v297
    %346 = vmatpush.bf16.msra.mxu0 %v293
    %347 = vmatpush.bf16.msra.mxu0 %v289
    %348 = vmatpush.bf16.msra.mxu0 %v285
    %349 = vmatpush.bf16.msra.mxu0 %v281
    %350 = vmatpush.bf16.msra.mxu0 %v277
    %351 = vmatpush.bf16.msra.mxu0 %v273
    %352 = vmatpush.bf16.msra.mxu0 %v269
    %353 = vmatmul.bf16.gmra.mxu0 %v129
    %v354 = vpop.f32.mrf.mxu0
    %v355 = vadd.f32 %v165, %v354
    %v356 = vpop.f32.mrf.mxu0
    %357 = vdwg.mxu0
    %358 = vmatpush.bf16.msra.mxu0 %v298
    %359 = vmatpush.bf16.msra.mxu0 %v294
    %360 = vmatpush.bf16.msra.mxu0 %v290
    %361 = vmatpush.bf16.msra.mxu0 %v286
    %362 = vmatpush.bf16.msra.mxu0 %v282
    %363 = vmatpush.bf16.msra.mxu0 %v278
    %364 = vmatpush.bf16.msra.mxu0 %v274
    %365 = vmatpush.bf16.msra.mxu0 %v270
    %366 = vmatmul.bf16.gmra.mxu0 %v129
    %v367 = vpop.f32.mrf.mxu0
    %v368 = vadd.f32 %v166, %v367
    %v369 = vpop.f32.mrf.mxu0
    %370 = vdwg.mxu0
    %371 = vmatpush.bf16.msra.mxu0 %v299
    %372 = vmatpush.bf16.msra.mxu0 %v295
    %373 = vmatpush.bf16.msra.mxu0 %v291
    %374 = vmatpush.bf16.msra.mxu0 %v287
    %375 = vmatpush.bf16.msra.mxu0 %v283
    %376 = vmatpush.bf16.msra.mxu0 %v279
    %377 = vmatpush.bf16.msra.mxu0 %v275
    %378 = vmatpush.bf16.msra.mxu0 %v271
    %379 = vmatmul.bf16.gmra.mxu0 %v129
    %v380 = vpop.f32.mrf.mxu0
    %v381 = vadd.f32 %v167, %v380
    %v382 = vpop.f32.mrf.mxu0
    %383 = vdwg.mxu0
    %v384 = vmax.f32 %v342, 0.0
    %v385 = vmax.f32 %v355, 0.0
    %v386 = vmax.f32 %v368, 0.0
    %v387 = vmax.f32 %v381, 0.0
    %v388 = vpack.c.bf16 %v384, %v384
    %v389 = vpack.c.bf16 %v385, %v385
    %v390 = vpack.c.bf16 %v386, %v386
    %v391 = vpack.c.bf16 %v387, %v387
    %v392 = vld [vmem:[#allocation8] sm:$0xff]
    %v393 = vld [vmem:[#allocation8 + $0x8] sm:$0xff]
    %v394 = vld [vmem:[#allocation8 + $0x10] sm:$0xff]
    %v395 = vld [vmem:[#allocation8 + $0x18] sm:$0xff]
    %v396 = vld [vmem:[#allocation8 + $0x20] sm:$0xff]
    %v397 = vld [vmem:[#allocation8 + $0x28] sm:$0xff]
    %v398 = vld [vmem:[#allocation8 + $0x30] sm:$0xff]
    %v399 = vld [vmem:[#allocation8 + $0x38] sm:$0xff]
    %v400 = vld [vmem:[#allocation8 + $0x40] sm:$0xff]
    %v401 = vld [vmem:[#allocation8 + $0x48] sm:$0xff]
    %v402 = vld [vmem:[#allocation8 + $0x50] sm:$0xff]
    %v403 = vld [vmem:[#allocation8 + $0x58] sm:$0xff]
    %v404 = vld [vmem:[#allocation8 + $0x60] sm:$0xff]
    %v405 = vld [vmem:[#allocation8 + $0x68] sm:$0xff]
    %v406 = vld [vmem:[#allocation8 + $0x70] sm:$0xff]
    %v407 = vld [vmem:[#allocation8 + $0x78] sm:$0xff]
    %v408 = vld [vmem:[#allocation8 + $0x80] sm:$0xff]
    %v409 = vld [vmem:[#allocation8 + $0x88] sm:$0xff]
    %v410 = vld [vmem:[#allocation8 + $0x90] sm:$0xff]
    %v411 = vld [vmem:[#allocation8 + $0x98] sm:$0xff]
    %v412 = vld [vmem:[#allocation8 + $0xa0] sm:$0xff]
    %v413 = vld [vmem:[#allocation8 + $0xa8] sm:$0xff]
    %v414 = vld [vmem:[#allocation8 + $0xb0] sm:$0xff]
    %v415 = vld [vmem:[#allocation8 + $0xb8] sm:$0xff]
    %v416 = vld [vmem:[#allocation8 + $0xc0] sm:$0xff]
    %v417 = vld [vmem:[#allocation8 + $0xc8] sm:$0xff]
    %v418 = vld [vmem:[#allocation8 + $0xd0] sm:$0xff]
    %v419 = vld [vmem:[#allocation8 + $0xd8] sm:$0xff]
    %v420 = vld [vmem:[#allocation8 + $0xe0] sm:$0xff]
    %v421 = vld [vmem:[#allocation8 + $0xe8] sm:$0xff]
    %v422 = vld [vmem:[#allocation8 + $0xf0] sm:$0xff]
    %v423 = vld [vmem:[#allocation8 + $0xf8] sm:$0xff]
    %v424 = vld [vmem:[#allocation8 + $0x100] sm:$0xff]
    %v425 = vld [vmem:[#allocation8 + $0x108] sm:$0xff]
    %v426 = vld [vmem:[#allocation8 + $0x110] sm:$0xff]
    %v427 = vld [vmem:[#allocation8 + $0x118] sm:$0xff]
    %v428 = vld [vmem:[#allocation8 + $0x120] sm:$0xff]
    %v429 = vld [vmem:[#allocation8 + $0x128] sm:$0xff]
    %v430 = vld [vmem:[#allocation8 + $0x130] sm:$0xff]
    %v431 = vld [vmem:[#allocation8 + $0x138] sm:$0xff]
    %v432 = vld [vmem:[#allocation8 + $0x140] sm:$0xff]
    %v433 = vld [vmem:[#allocation8 + $0x148] sm:$0xff]
    %v434 = vld [vmem:[#allocation8 + $0x150] sm:$0xff]
    %v435 = vld [vmem:[#allocation8 + $0x158] sm:$0xff]
    %v436 = vld [vmem:[#allocation8 + $0x160] sm:$0xff]
    %v437 = vld [vmem:[#allocation8 + $0x168] sm:$0xff]
    %v438 = vld [vmem:[#allocation8 + $0x170] sm:$0xff]
    %v439 = vld [vmem:[#allocation8 + $0x178] sm:$0xff]
    %v440 = vld [vmem:[#allocation8 + $0x180] sm:$0xff]
    %v441 = vld [vmem:[#allocation8 + $0x188] sm:$0xff]
    %v442 = vld [vmem:[#allocation8 + $0x190] sm:$0xff]
    %v443 = vld [vmem:[#allocation8 + $0x198] sm:$0xff]
    %v444 = vld [vmem:[#allocation8 + $0x1a0] sm:$0xff]
    %v445 = vld [vmem:[#allocation8 + $0x1a8] sm:$0xff]
    %v446 = vld [vmem:[#allocation8 + $0x1b0] sm:$0xff]
    %v447 = vld [vmem:[#allocation8 + $0x1b8] sm:$0xff]
    %v448 = vld [vmem:[#allocation8 + $0x1c0] sm:$0xff]
    %v449 = vld [vmem:[#allocation8 + $0x1c8] sm:$0xff]
    %v450 = vld [vmem:[#allocation8 + $0x1d0] sm:$0xff]
    %v451 = vld [vmem:[#allocation8 + $0x1d8] sm:$0xff]
    %v452 = vld [vmem:[#allocation8 + $0x1e0] sm:$0xff]
    %v453 = vld [vmem:[#allocation8 + $0x1e8] sm:$0xff]
    %v454 = vld [vmem:[#allocation8 + $0x1f0] sm:$0xff]
    %v455 = vld [vmem:[#allocation8 + $0x1f8] sm:$0xff]
    %v456 = vld [vmem:[#allocation8 + $0x200] sm:$0xff]
    %v457 = vld [vmem:[#allocation8 + $0x208] sm:$0xff]
    %v458 = vld [vmem:[#allocation8 + $0x210] sm:$0xff]
    %v459 = vld [vmem:[#allocation8 + $0x218] sm:$0xff]
    %v460 = vld [vmem:[#allocation8 + $0x220] sm:$0xff]
    %v461 = vld [vmem:[#allocation8 + $0x228] sm:$0xff]
    %v462 = vld [vmem:[#allocation8 + $0x230] sm:$0xff]
    %v463 = vld [vmem:[#allocation8 + $0x238] sm:$0xff]
    %v464 = vld [vmem:[#allocation8 + $0x240] sm:$0xff]
    %v465 = vld [vmem:[#allocation8 + $0x248] sm:$0xff]
    %v466 = vld [vmem:[#allocation8 + $0x250] sm:$0xff]
    %v467 = vld [vmem:[#allocation8 + $0x258] sm:$0xff]
    %v468 = vld [vmem:[#allocation8 + $0x260] sm:$0xff]
    %v469 = vld [vmem:[#allocation8 + $0x268] sm:$0xff]
    %v470 = vld [vmem:[#allocation8 + $0x270] sm:$0xff]
    %v471 = vld [vmem:[#allocation8 + $0x278] sm:$0xff]
    %v472 = vld [vmem:[#allocation8 + $0x280] sm:$0xff]
    %v473 = vld [vmem:[#allocation8 + $0x288] sm:$0xff]
    %v474 = vld [vmem:[#allocation8 + $0x290] sm:$0xff]
    %v475 = vld [vmem:[#allocation8 + $0x298] sm:$0xff]
    %v476 = vld [vmem:[#allocation8 + $0x2a0] sm:$0xff]
    %v477 = vld [vmem:[#allocation8 + $0x2a8] sm:$0xff]
    %v478 = vld [vmem:[#allocation8 + $0x2b0] sm:$0xff]
    %v479 = vld [vmem:[#allocation8 + $0x2b8] sm:$0xff]
    %v480 = vld [vmem:[#allocation8 + $0x2c0] sm:$0xff]
    %v481 = vld [vmem:[#allocation8 + $0x2c8] sm:$0xff]
    %v482 = vld [vmem:[#allocation8 + $0x2d0] sm:$0xff]
    %v483 = vld [vmem:[#allocation8 + $0x2d8] sm:$0xff]
    %v484 = vld [vmem:[#allocation8 + $0x2e0] sm:$0xff]
    %v485 = vld [vmem:[#allocation8 + $0x2e8] sm:$0xff]
    %v486 = vld [vmem:[#allocation8 + $0x2f0] sm:$0xff]
    %v487 = vld [vmem:[#allocation8 + $0x2f8] sm:$0xff]
    %v488 = vld [vmem:[#allocation8 + $0x300] sm:$0xff]
    %v489 = vld [vmem:[#allocation8 + $0x308] sm:$0xff]
    %v490 = vld [vmem:[#allocation8 + $0x310] sm:$0xff]
    %v491 = vld [vmem:[#allocation8 + $0x318] sm:$0xff]
    %v492 = vld [vmem:[#allocation8 + $0x320] sm:$0xff]
    %v493 = vld [vmem:[#allocation8 + $0x328] sm:$0xff]
    %v494 = vld [vmem:[#allocation8 + $0x330] sm:$0xff]
    %v495 = vld [vmem:[#allocation8 + $0x338] sm:$0xff]
    %v496 = vld [vmem:[#allocation8 + $0x340] sm:$0xff]
    %v497 = vld [vmem:[#allocation8 + $0x348] sm:$0xff]
    %v498 = vld [vmem:[#allocation8 + $0x350] sm:$0xff]
    %v499 = vld [vmem:[#allocation8 + $0x358] sm:$0xff]
    %v500 = vld [vmem:[#allocation8 + $0x360] sm:$0xff]
    %v501 = vld [vmem:[#allocation8 + $0x368] sm:$0xff]
    %v502 = vld [vmem:[#allocation8 + $0x370] sm:$0xff]
    %v503 = vld [vmem:[#allocation8 + $0x378] sm:$0xff]
    %v504 = vld [vmem:[#allocation8 + $0x380] sm:$0xff]
    %v505 = vld [vmem:[#allocation8 + $0x388] sm:$0xff]
    %v506 = vld [vmem:[#allocation8 + $0x390] sm:$0xff]
    %v507 = vld [vmem:[#allocation8 + $0x398] sm:$0xff]
    %v508 = vld [vmem:[#allocation8 + $0x3a0] sm:$0xff]
    %v509 = vld [vmem:[#allocation8 + $0x3a8] sm:$0xff]
    %v510 = vld [vmem:[#allocation8 + $0x3b0] sm:$0xff]
    %v511 = vld [vmem:[#allocation8 + $0x3b8] sm:$0xff]
    %v512 = vld [vmem:[#allocation8 + $0x3c0] sm:$0xff]
    %v513 = vld [vmem:[#allocation8 + $0x3c8] sm:$0xff]
    %v514 = vld [vmem:[#allocation8 + $0x3d0] sm:$0xff]
    %v515 = vld [vmem:[#allocation8 + $0x3d8] sm:$0xff]
    %v516 = vld [vmem:[#allocation8 + $0x3e0] sm:$0xff]
    %v517 = vld [vmem:[#allocation8 + $0x3e8] sm:$0xff]
    %v518 = vld [vmem:[#allocation8 + $0x3f0] sm:$0xff]
    %v519 = vld [vmem:[#allocation8 + $0x3f8] sm:$0xff]
    %v520 = vld [vmem:[#allocation8 + $0x400] sm:$0xff]
    %v521 = vld [vmem:[#allocation8 + $0x408] sm:$0xff]
    %v522 = vld [vmem:[#allocation8 + $0x410] sm:$0xff]
    %v523 = vld [vmem:[#allocation8 + $0x418] sm:$0xff]
    %v524 = vld [vmem:[#allocation8 + $0x420] sm:$0xff]
    %v525 = vld [vmem:[#allocation8 + $0x428] sm:$0xff]
    %v526 = vld [vmem:[#allocation8 + $0x430] sm:$0xff]
    %v527 = vld [vmem:[#allocation8 + $0x438] sm:$0xff]
    %v528 = vld [vmem:[#allocation8 + $0x440] sm:$0xff]
    %v529 = vld [vmem:[#allocation8 + $0x448] sm:$0xff]
    %v530 = vld [vmem:[#allocation8 + $0x450] sm:$0xff]
    %v531 = vld [vmem:[#allocation8 + $0x458] sm:$0xff]
    %v532 = vld [vmem:[#allocation8 + $0x460] sm:$0xff]
    %v533 = vld [vmem:[#allocation8 + $0x468] sm:$0xff]
    %v534 = vld [vmem:[#allocation8 + $0x470] sm:$0xff]
    %v535 = vld [vmem:[#allocation8 + $0x478] sm:$0xff]
    %v536 = vld [vmem:[#allocation8 + $0x480] sm:$0xff]
    %v537 = vld [vmem:[#allocation8 + $0x488] sm:$0xff]
    %v538 = vld [vmem:[#allocation8 + $0x490] sm:$0xff]
    %v539 = vld [vmem:[#allocation8 + $0x498] sm:$0xff]
    %v540 = vld [vmem:[#allocation8 + $0x4a0] sm:$0xff]
    %v541 = vld [vmem:[#allocation8 + $0x4a8] sm:$0xff]
    %v542 = vld [vmem:[#allocation8 + $0x4b0] sm:$0xff]
    %v543 = vld [vmem:[#allocation8 + $0x4b8] sm:$0xff]
    %v544 = vld [vmem:[#allocation8 + $0x4c0] sm:$0xff]
    %v545 = vld [vmem:[#allocation8 + $0x4c8] sm:$0xff]
    %v546 = vld [vmem:[#allocation8 + $0x4d0] sm:$0xff]
    %v547 = vld [vmem:[#allocation8 + $0x4d8] sm:$0xff]
    %v548 = vld [vmem:[#allocation8 + $0x4e0] sm:$0xff]
    %v549 = vld [vmem:[#allocation8 + $0x4e8] sm:$0xff]
    %v550 = vld [vmem:[#allocation8 + $0x4f0] sm:$0xff]
    %v551 = vld [vmem:[#allocation8 + $0x4f8] sm:$0xff]
    %v552 = vld [vmem:[#allocation8 + $0x500] sm:$0xff]
    %v553 = vld [vmem:[#allocation8 + $0x508] sm:$0xff]
    %v554 = vld [vmem:[#allocation8 + $0x510] sm:$0xff]
    %v555 = vld [vmem:[#allocation8 + $0x518] sm:$0xff]
    %v556 = vld [vmem:[#allocation8 + $0x520] sm:$0xff]
    %v557 = vld [vmem:[#allocation8 + $0x528] sm:$0xff]
    %v558 = vld [vmem:[#allocation8 + $0x530] sm:$0xff]
    %v559 = vld [vmem:[#allocation8 + $0x538] sm:$0xff]
    %v560 = vld [vmem:[#allocation8 + $0x540] sm:$0xff]
    %v561 = vld [vmem:[#allocation8 + $0x548] sm:$0xff]
    %v562 = vld [vmem:[#allocation8 + $0x550] sm:$0xff]
    %v563 = vld [vmem:[#allocation8 + $0x558] sm:$0xff]
    %v564 = vld [vmem:[#allocation8 + $0x560] sm:$0xff]
    %v565 = vld [vmem:[#allocation8 + $0x568] sm:$0xff]
    %v566 = vld [vmem:[#allocation8 + $0x570] sm:$0xff]
    %v567 = vld [vmem:[#allocation8 + $0x578] sm:$0xff]
    %v568 = vld [vmem:[#allocation8 + $0x580] sm:$0xff]
    %v569 = vld [vmem:[#allocation8 + $0x588] sm:$0xff]
    %v570 = vld [vmem:[#allocation8 + $0x590] sm:$0xff]
    %v571 = vld [vmem:[#allocation8 + $0x598] sm:$0xff]
    %v572 = vld [vmem:[#allocation8 + $0x5a0] sm:$0xff]
    %v573 = vld [vmem:[#allocation8 + $0x5a8] sm:$0xff]
    %v574 = vld [vmem:[#allocation8 + $0x5b0] sm:$0xff]
    %v575 = vld [vmem:[#allocation8 + $0x5b8] sm:$0xff]
    %v576 = vld [vmem:[#allocation8 + $0x5c0] sm:$0xff]
    %v577 = vld [vmem:[#allocation8 + $0x5c8] sm:$0xff]
    %v578 = vld [vmem:[#allocation8 + $0x5d0] sm:$0xff]
    %v579 = vld [vmem:[#allocation8 + $0x5d8] sm:$0xff]
    %v580 = vld [vmem:[#allocation8 + $0x5e0] sm:$0xff]
    %v581 = vld [vmem:[#allocation8 + $0x5e8] sm:$0xff]
    %v582 = vld [vmem:[#allocation8 + $0x5f0] sm:$0xff]
    %v583 = vld [vmem:[#allocation8 + $0x5f8] sm:$0xff]
    %v584 = vld [vmem:[#allocation8 + $0x600] sm:$0xff]
    %v585 = vld [vmem:[#allocation8 + $0x608] sm:$0xff]
    %v586 = vld [vmem:[#allocation8 + $0x610] sm:$0xff]
    %v587 = vld [vmem:[#allocation8 + $0x618] sm:$0xff]
    %v588 = vld [vmem:[#allocation8 + $0x620] sm:$0xff]
    %v589 = vld [vmem:[#allocation8 + $0x628] sm:$0xff]
    %v590 = vld [vmem:[#allocation8 + $0x630] sm:$0xff]
    %v591 = vld [vmem:[#allocation8 + $0x638] sm:$0xff]
    %v592 = vld [vmem:[#allocation8 + $0x640] sm:$0xff]
    %v593 = vld [vmem:[#allocation8 + $0x648] sm:$0xff]
    %v594 = vld [vmem:[#allocation8 + $0x650] sm:$0xff]
    %v595 = vld [vmem:[#allocation8 + $0x658] sm:$0xff]
    %v596 = vld [vmem:[#allocation8 + $0x660] sm:$0xff]
    %v597 = vld [vmem:[#allocation8 + $0x668] sm:$0xff]
    %v598 = vld [vmem:[#allocation8 + $0x670] sm:$0xff]
    %v599 = vld [vmem:[#allocation8 + $0x678] sm:$0xff]
    %v600 = vld [vmem:[#allocation8 + $0x680] sm:$0xff]
    %v601 = vld [vmem:[#allocation8 + $0x688] sm:$0xff]
    %v602 = vld [vmem:[#allocation8 + $0x690] sm:$0xff]
    %v603 = vld [vmem:[#allocation8 + $0x698] sm:$0xff]
    %v604 = vld [vmem:[#allocation8 + $0x6a0] sm:$0xff]
    %v605 = vld [vmem:[#allocation8 + $0x6a8] sm:$0xff]
    %v606 = vld [vmem:[#allocation8 + $0x6b0] sm:$0xff]
    %v607 = vld [vmem:[#allocation8 + $0x6b8] sm:$0xff]
    %v608 = vld [vmem:[#allocation8 + $0x6c0] sm:$0xff]
    %v609 = vld [vmem:[#allocation8 + $0x6c8] sm:$0xff]
    %v610 = vld [vmem:[#allocation8 + $0x6d0] sm:$0xff]
    %v611 = vld [vmem:[#allocation8 + $0x6d8] sm:$0xff]
    %v612 = vld [vmem:[#allocation8 + $0x6e0] sm:$0xff]
    %v613 = vld [vmem:[#allocation8 + $0x6e8] sm:$0xff]
    %v614 = vld [vmem:[#allocation8 + $0x6f0] sm:$0xff]
    %v615 = vld [vmem:[#allocation8 + $0x6f8] sm:$0xff]
    %v616 = vld [vmem:[#allocation8 + $0x700] sm:$0xff]
    %v617 = vld [vmem:[#allocation8 + $0x708] sm:$0xff]
    %v618 = vld [vmem:[#allocation8 + $0x710] sm:$0xff]
    %v619 = vld [vmem:[#allocation8 + $0x718] sm:$0xff]
    %v620 = vld [vmem:[#allocation8 + $0x720] sm:$0xff]
    %v621 = vld [vmem:[#allocation8 + $0x728] sm:$0xff]
    %v622 = vld [vmem:[#allocation8 + $0x730] sm:$0xff]
    %v623 = vld [vmem:[#allocation8 + $0x738] sm:$0xff]
    %v624 = vld [vmem:[#allocation8 + $0x740] sm:$0xff]
    %v625 = vld [vmem:[#allocation8 + $0x748] sm:$0xff]
    %v626 = vld [vmem:[#allocation8 + $0x750] sm:$0xff]
    %v627 = vld [vmem:[#allocation8 + $0x758] sm:$0xff]
    %v628 = vld [vmem:[#allocation8 + $0x760] sm:$0xff]
    %v629 = vld [vmem:[#allocation8 + $0x768] sm:$0xff]
    %v630 = vld [vmem:[#allocation8 + $0x770] sm:$0xff]
    %v631 = vld [vmem:[#allocation8 + $0x778] sm:$0xff]
    %v632 = vld [vmem:[#allocation8 + $0x780] sm:$0xff]
    %v633 = vld [vmem:[#allocation8 + $0x788] sm:$0xff]
    %v634 = vld [vmem:[#allocation8 + $0x790] sm:$0xff]
    %v635 = vld [vmem:[#allocation8 + $0x798] sm:$0xff]
    %v636 = vld [vmem:[#allocation8 + $0x7a0] sm:$0xff]
    %v637 = vld [vmem:[#allocation8 + $0x7a8] sm:$0xff]
    %v638 = vld [vmem:[#allocation8 + $0x7b0] sm:$0xff]
    %v639 = vld [vmem:[#allocation8 + $0x7b8] sm:$0xff]
    %v640 = vld [vmem:[#allocation8 + $0x7c0] sm:$0xff]
    %v641 = vld [vmem:[#allocation8 + $0x7c8] sm:$0xff]
    %v642 = vld [vmem:[#allocation8 + $0x7d0] sm:$0xff]
    %v643 = vld [vmem:[#allocation8 + $0x7d8] sm:$0xff]
    %v644 = vld [vmem:[#allocation8 + $0x7e0] sm:$0xff]
    %v645 = vld [vmem:[#allocation8 + $0x7e8] sm:$0xff]
    %v646 = vld [vmem:[#allocation8 + $0x7f0] sm:$0xff]
    %v647 = vld [vmem:[#allocation8 + $0x7f8] sm:$0xff]
    %v648 = vld [vmem:[#allocation10] sm:$0xff]
    %v650 = vperm.slane %v648, 0
    %v651 = vperm.slane %v648, 1
    %v652 = vperm.slane %v648, 2
    %v653 = vperm.slane %v648, 3
    %v654 = vperm.slane %v648, 4
    %v655 = vperm.slane %v648, 5
    %v656 = vperm.slane %v648, 6
    %v657 = vperm.slane %v648, 7
    %v922 = vunpack.c.l.b16 %v392
    %v923 = vunpack.c.h.b16 %v392
    %v924 = vunpack.c.l.b16 %v393
    %v925 = vunpack.c.h.b16 %v393
    %v926 = vunpack.c.l.b16 %v394
    %v927 = vunpack.c.h.b16 %v394
    %v928 = vunpack.c.l.b16 %v395
    %v929 = vunpack.c.h.b16 %v395
    %v930 = vunpack.c.l.b16 %v396
    %v931 = vunpack.c.h.b16 %v396
    %v932 = vunpack.c.l.b16 %v397
    %v933 = vunpack.c.h.b16 %v397
    %v934 = vunpack.c.l.b16 %v398
    %v935 = vunpack.c.h.b16 %v398
    %v936 = vunpack.c.l.b16 %v399
    %v937 = vunpack.c.h.b16 %v399
    %v938 = vunpack.c.l.b16 %v400
    %v939 = vunpack.c.h.b16 %v400
    %v940 = vunpack.c.l.b16 %v401
    %v941 = vunpack.c.h.b16 %v401
    %v942 = vunpack.c.l.b16 %v402
    %v943 = vunpack.c.h.b16 %v402
    %v944 = vunpack.c.l.b16 %v403
    %v945 = vunpack.c.h.b16 %v403
    %v946 = vunpack.c.l.b16 %v404
    %v947 = vunpack.c.h.b16 %v404
    %v948 = vunpack.c.l.b16 %v405
    %v949 = vunpack.c.h.b16 %v405
    %v950 = vunpack.c.l.b16 %v406
    %v951 = vunpack.c.h.b16 %v406
    %v952 = vunpack.c.l.b16 %v407
    %v953 = vunpack.c.h.b16 %v407
    %v954 = vunpack.c.l.b16 %v408
    %v955 = vunpack.c.h.b16 %v408
    %v956 = vunpack.c.l.b16 %v409
    %v957 = vunpack.c.h.b16 %v409
    %v958 = vunpack.c.l.b16 %v410
    %v959 = vunpack.c.h.b16 %v410
    %v960 = vunpack.c.l.b16 %v411
    %v961 = vunpack.c.h.b16 %v411
    %v962 = vunpack.c.l.b16 %v412
    %v963 = vunpack.c.h.b16 %v412
    %v964 = vunpack.c.l.b16 %v413
    %v965 = vunpack.c.h.b16 %v413
    %v966 = vunpack.c.l.b16 %v414
    %v967 = vunpack.c.h.b16 %v414
    %v968 = vunpack.c.l.b16 %v415
    %v969 = vunpack.c.h.b16 %v415
    %v970 = vunpack.c.l.b16 %v416
    %v971 = vunpack.c.h.b16 %v416
    %v972 = vunpack.c.l.b16 %v417
    %v973 = vunpack.c.h.b16 %v417
    %v974 = vunpack.c.l.b16 %v418
    %v975 = vunpack.c.h.b16 %v418
    %v976 = vunpack.c.l.b16 %v419
    %v977 = vunpack.c.h.b16 %v419
    %v978 = vunpack.c.l.b16 %v420
    %v979 = vunpack.c.h.b16 %v420
    %v980 = vunpack.c.l.b16 %v421
    %v981 = vunpack.c.h.b16 %v421
    %v982 = vunpack.c.l.b16 %v422
    %v983 = vunpack.c.h.b16 %v422
    %v984 = vunpack.c.l.b16 %v423
    %v985 = vunpack.c.h.b16 %v423
    %v986 = vunpack.c.l.b16 %v424
    %v987 = vunpack.c.h.b16 %v424
    %v988 = vunpack.c.l.b16 %v425
    %v989 = vunpack.c.h.b16 %v425
    %v990 = vunpack.c.l.b16 %v426
    %v991 = vunpack.c.h.b16 %v426
    %v992 = vunpack.c.l.b16 %v427
    %v993 = vunpack.c.h.b16 %v427
    %v994 = vunpack.c.l.b16 %v428
    %v995 = vunpack.c.h.b16 %v428
    %v996 = vunpack.c.l.b16 %v429
    %v997 = vunpack.c.h.b16 %v429
    %v998 = vunpack.c.l.b16 %v430
    %v999 = vunpack.c.h.b16 %v430
    %v1000 = vunpack.c.l.b16 %v431
    %v1001 = vunpack.c.h.b16 %v431
    %v1002 = vunpack.c.l.b16 %v432
    %v1003 = vunpack.c.h.b16 %v432
    %v1004 = vunpack.c.l.b16 %v433
    %v1005 = vunpack.c.h.b16 %v433
    %v1006 = vunpack.c.l.b16 %v434
    %v1007 = vunpack.c.h.b16 %v434
    %v1008 = vunpack.c.l.b16 %v435
    %v1009 = vunpack.c.h.b16 %v435
    %v1010 = vunpack.c.l.b16 %v436
    %v1011 = vunpack.c.h.b16 %v436
    %v1012 = vunpack.c.l.b16 %v437
    %v1013 = vunpack.c.h.b16 %v437
    %v1014 = vunpack.c.l.b16 %v438
    %v1015 = vunpack.c.h.b16 %v438
    %v1016 = vunpack.c.l.b16 %v439
    %v1017 = vunpack.c.h.b16 %v439
    %v1018 = vunpack.c.l.b16 %v440
    %v1019 = vunpack.c.h.b16 %v440
    %v1020 = vunpack.c.l.b16 %v441
    %v1021 = vunpack.c.h.b16 %v441
    %v1022 = vunpack.c.l.b16 %v442
    %v1023 = vunpack.c.h.b16 %v442
    %v1024 = vunpack.c.l.b16 %v443
    %v1025 = vunpack.c.h.b16 %v443
    %v1026 = vunpack.c.l.b16 %v444
    %v1027 = vunpack.c.h.b16 %v444
    %v1028 = vunpack.c.l.b16 %v445
    %v1029 = vunpack.c.h.b16 %v445
    %v1030 = vunpack.c.l.b16 %v446
    %v1031 = vunpack.c.h.b16 %v446
    %v1032 = vunpack.c.l.b16 %v447
    %v1033 = vunpack.c.h.b16 %v447
    %v1034 = vunpack.c.l.b16 %v448
    %v1035 = vunpack.c.h.b16 %v448
    %v1036 = vunpack.c.l.b16 %v449
    %v1037 = vunpack.c.h.b16 %v449
    %v1038 = vunpack.c.l.b16 %v450
    %v1039 = vunpack.c.h.b16 %v450
    %v1040 = vunpack.c.l.b16 %v451
    %v1041 = vunpack.c.h.b16 %v451
    %v1042 = vunpack.c.l.b16 %v452
    %v1043 = vunpack.c.h.b16 %v452
    %v1044 = vunpack.c.l.b16 %v453
    %v1045 = vunpack.c.h.b16 %v453
    %v1046 = vunpack.c.l.b16 %v454
    %v1047 = vunpack.c.h.b16 %v454
    %v1048 = vunpack.c.l.b16 %v455
    %v1049 = vunpack.c.h.b16 %v455
    %v1050 = vunpack.c.l.b16 %v456
    %v1051 = vunpack.c.h.b16 %v456
    %v1052 = vunpack.c.l.b16 %v457
    %v1053 = vunpack.c.h.b16 %v457
    %v1054 = vunpack.c.l.b16 %v458
    %v1055 = vunpack.c.h.b16 %v458
    %v1056 = vunpack.c.l.b16 %v459
    %v1057 = vunpack.c.h.b16 %v459
    %v1058 = vunpack.c.l.b16 %v460
    %v1059 = vunpack.c.h.b16 %v460
    %v1060 = vunpack.c.l.b16 %v461
    %v1061 = vunpack.c.h.b16 %v461
    %v1062 = vunpack.c.l.b16 %v462
    %v1063 = vunpack.c.h.b16 %v462
    %v1064 = vunpack.c.l.b16 %v463
    %v1065 = vunpack.c.h.b16 %v463
    %v1066 = vunpack.c.l.b16 %v464
    %v1067 = vunpack.c.h.b16 %v464
    %v1068 = vunpack.c.l.b16 %v465
    %v1069 = vunpack.c.h.b16 %v465
    %v1070 = vunpack.c.l.b16 %v466
    %v1071 = vunpack.c.h.b16 %v466
    %v1072 = vunpack.c.l.b16 %v467
    %v1073 = vunpack.c.h.b16 %v467
    %v1074 = vunpack.c.l.b16 %v468
    %v1075 = vunpack.c.h.b16 %v468
    %v1076 = vunpack.c.l.b16 %v469
    %v1077 = vunpack.c.h.b16 %v469
    %v1078 = vunpack.c.l.b16 %v470
    %v1079 = vunpack.c.h.b16 %v470
    %v1080 = vunpack.c.l.b16 %v471
    %v1081 = vunpack.c.h.b16 %v471
    %v1082 = vunpack.c.l.b16 %v472
    %v1083 = vunpack.c.h.b16 %v472
    %v1084 = vunpack.c.l.b16 %v473
    %v1085 = vunpack.c.h.b16 %v473
    %v1086 = vunpack.c.l.b16 %v474
    %v1087 = vunpack.c.h.b16 %v474
    %v1088 = vunpack.c.l.b16 %v475
    %v1089 = vunpack.c.h.b16 %v475
    %v1090 = vunpack.c.l.b16 %v476
    %v1091 = vunpack.c.h.b16 %v476
    %v1092 = vunpack.c.l.b16 %v477
    %v1093 = vunpack.c.h.b16 %v477
    %v1094 = vunpack.c.l.b16 %v478
    %v1095 = vunpack.c.h.b16 %v478
    %v1096 = vunpack.c.l.b16 %v479
    %v1097 = vunpack.c.h.b16 %v479
    %v1098 = vunpack.c.l.b16 %v480
    %v1099 = vunpack.c.h.b16 %v480
    %v1100 = vunpack.c.l.b16 %v481
    %v1101 = vunpack.c.h.b16 %v481
    %v1102 = vunpack.c.l.b16 %v482
    %v1103 = vunpack.c.h.b16 %v482
    %v1104 = vunpack.c.l.b16 %v483
    %v1105 = vunpack.c.h.b16 %v483
    %v1106 = vunpack.c.l.b16 %v484
    %v1107 = vunpack.c.h.b16 %v484
    %v1108 = vunpack.c.l.b16 %v485
    %v1109 = vunpack.c.h.b16 %v485
    %v1110 = vunpack.c.l.b16 %v486
    %v1111 = vunpack.c.h.b16 %v486
    %v1112 = vunpack.c.l.b16 %v487
    %v1113 = vunpack.c.h.b16 %v487
    %v1114 = vunpack.c.l.b16 %v488
    %v1115 = vunpack.c.h.b16 %v488
    %v1116 = vunpack.c.l.b16 %v489
    %v1117 = vunpack.c.h.b16 %v489
    %v1118 = vunpack.c.l.b16 %v490
    %v1119 = vunpack.c.h.b16 %v490
    %v1120 = vunpack.c.l.b16 %v491
    %v1121 = vunpack.c.h.b16 %v491
    %v1122 = vunpack.c.l.b16 %v492
    %v1123 = vunpack.c.h.b16 %v492
    %v1124 = vunpack.c.l.b16 %v493
    %v1125 = vunpack.c.h.b16 %v493
    %v1126 = vunpack.c.l.b16 %v494
    %v1127 = vunpack.c.h.b16 %v494
    %v1128 = vunpack.c.l.b16 %v495
    %v1129 = vunpack.c.h.b16 %v495
    %v1130 = vunpack.c.l.b16 %v496
    %v1131 = vunpack.c.h.b16 %v496
    %v1132 = vunpack.c.l.b16 %v497
    %v1133 = vunpack.c.h.b16 %v497
    %v1134 = vunpack.c.l.b16 %v498
    %v1135 = vunpack.c.h.b16 %v498
    %v1136 = vunpack.c.l.b16 %v499
    %v1137 = vunpack.c.h.b16 %v499
    %v1138 = vunpack.c.l.b16 %v500
    %v1139 = vunpack.c.h.b16 %v500
    %v1140 = vunpack.c.l.b16 %v501
    %v1141 = vunpack.c.h.b16 %v501
    %v1142 = vunpack.c.l.b16 %v502
    %v1143 = vunpack.c.h.b16 %v502
    %v1144 = vunpack.c.l.b16 %v503
    %v1145 = vunpack.c.h.b16 %v503
    %v1146 = vunpack.c.l.b16 %v504
    %v1147 = vunpack.c.h.b16 %v504
    %v1148 = vunpack.c.l.b16 %v505
    %v1149 = vunpack.c.h.b16 %v505
    %v1150 = vunpack.c.l.b16 %v506
    %v1151 = vunpack.c.h.b16 %v506
    %v1152 = vunpack.c.l.b16 %v507
    %v1153 = vunpack.c.h.b16 %v507
    %v1154 = vunpack.c.l.b16 %v508
    %v1155 = vunpack.c.h.b16 %v508
    %v1156 = vunpack.c.l.b16 %v509
    %v1157 = vunpack.c.h.b16 %v509
    %v1158 = vunpack.c.l.b16 %v510
    %v1159 = vunpack.c.h.b16 %v510
    %v1160 = vunpack.c.l.b16 %v511
    %v1161 = vunpack.c.h.b16 %v511
    %v1162 = vunpack.c.l.b16 %v512
    %v1163 = vunpack.c.h.b16 %v512
    %v1164 = vunpack.c.l.b16 %v513
    %v1165 = vunpack.c.h.b16 %v513
    %v1166 = vunpack.c.l.b16 %v514
    %v1167 = vunpack.c.h.b16 %v514
    %v1168 = vunpack.c.l.b16 %v515
    %v1169 = vunpack.c.h.b16 %v515
    %v1170 = vunpack.c.l.b16 %v516
    %v1171 = vunpack.c.h.b16 %v516
    %v1172 = vunpack.c.l.b16 %v517
    %v1173 = vunpack.c.h.b16 %v517
    %v1174 = vunpack.c.l.b16 %v518
    %v1175 = vunpack.c.h.b16 %v518
    %v1176 = vunpack.c.l.b16 %v519
    %v1177 = vunpack.c.h.b16 %v519
    %v1178 = vunpack.c.l.b16 %v520
    %v1179 = vunpack.c.h.b16 %v520
    %v1180 = vunpack.c.l.b16 %v521
    %v1181 = vunpack.c.h.b16 %v521
    %v1182 = vunpack.c.l.b16 %v522
    %v1183 = vunpack.c.h.b16 %v522
    %v1184 = vunpack.c.l.b16 %v523
    %v1185 = vunpack.c.h.b16 %v523
    %v1186 = vunpack.c.l.b16 %v524
    %v1187 = vunpack.c.h.b16 %v524
    %v1188 = vunpack.c.l.b16 %v525
    %v1189 = vunpack.c.h.b16 %v525
    %v1190 = vunpack.c.l.b16 %v526
    %v1191 = vunpack.c.h.b16 %v526
    %v1192 = vunpack.c.l.b16 %v527
    %v1193 = vunpack.c.h.b16 %v527
    %v1194 = vunpack.c.l.b16 %v528
    %v1195 = vunpack.c.h.b16 %v528
    %v1196 = vunpack.c.l.b16 %v529
    %v1197 = vunpack.c.h.b16 %v529
    %v1198 = vunpack.c.l.b16 %v530
    %v1199 = vunpack.c.h.b16 %v530
    %v1200 = vunpack.c.l.b16 %v531
    %v1201 = vunpack.c.h.b16 %v531
    %v1202 = vunpack.c.l.b16 %v532
    %v1203 = vunpack.c.h.b16 %v532
    %v1204 = vunpack.c.l.b16 %v533
    %v1205 = vunpack.c.h.b16 %v533
    %v1206 = vunpack.c.l.b16 %v534
    %v1207 = vunpack.c.h.b16 %v534
    %v1208 = vunpack.c.l.b16 %v535
    %v1209 = vunpack.c.h.b16 %v535
    %v1210 = vunpack.c.l.b16 %v536
    %v1211 = vunpack.c.h.b16 %v536
    %v1212 = vunpack.c.l.b16 %v537
    %v1213 = vunpack.c.h.b16 %v537
    %v1214 = vunpack.c.l.b16 %v538
    %v1215 = vunpack.c.h.b16 %v538
    %v1216 = vunpack.c.l.b16 %v539
    %v1217 = vunpack.c.h.b16 %v539
    %v1218 = vunpack.c.l.b16 %v540
    %v1219 = vunpack.c.h.b16 %v540
    %v1220 = vunpack.c.l.b16 %v541
    %v1221 = vunpack.c.h.b16 %v541
    %v1222 = vunpack.c.l.b16 %v542
    %v1223 = vunpack.c.h.b16 %v542
    %v1224 = vunpack.c.l.b16 %v543
    %v1225 = vunpack.c.h.b16 %v543
    %v1226 = vunpack.c.l.b16 %v544
    %v1227 = vunpack.c.h.b16 %v544
    %v1228 = vunpack.c.l.b16 %v545
    %v1229 = vunpack.c.h.b16 %v545
    %v1230 = vunpack.c.l.b16 %v546
    %v1231 = vunpack.c.h.b16 %v546
    %v1232 = vunpack.c.l.b16 %v547
    %v1233 = vunpack.c.h.b16 %v547
    %v1234 = vunpack.c.l.b16 %v548
    %v1235 = vunpack.c.h.b16 %v548
    %v1236 = vunpack.c.l.b16 %v549
    %v1237 = vunpack.c.h.b16 %v549
    %v1238 = vunpack.c.l.b16 %v550
    %v1239 = vunpack.c.h.b16 %v550
    %v1240 = vunpack.c.l.b16 %v551
    %v1241 = vunpack.c.h.b16 %v551
    %v1242 = vunpack.c.l.b16 %v552
    %v1243 = vunpack.c.h.b16 %v552
    %v1244 = vunpack.c.l.b16 %v553
    %v1245 = vunpack.c.h.b16 %v553
    %v1246 = vunpack.c.l.b16 %v554
    %v1247 = vunpack.c.h.b16 %v554
    %v1248 = vunpack.c.l.b16 %v555
    %v1249 = vunpack.c.h.b16 %v555
    %v1250 = vunpack.c.l.b16 %v556
    %v1251 = vunpack.c.h.b16 %v556
    %v1252 = vunpack.c.l.b16 %v557
    %v1253 = vunpack.c.h.b16 %v557
    %v1254 = vunpack.c.l.b16 %v558
    %v1255 = vunpack.c.h.b16 %v558
    %v1256 = vunpack.c.l.b16 %v559
    %v1257 = vunpack.c.h.b16 %v559
    %v1258 = vunpack.c.l.b16 %v560
    %v1259 = vunpack.c.h.b16 %v560
    %v1260 = vunpack.c.l.b16 %v561
    %v1261 = vunpack.c.h.b16 %v561
    %v1262 = vunpack.c.l.b16 %v562
    %v1263 = vunpack.c.h.b16 %v562
    %v1264 = vunpack.c.l.b16 %v563
    %v1265 = vunpack.c.h.b16 %v563
    %v1266 = vunpack.c.l.b16 %v564
    %v1267 = vunpack.c.h.b16 %v564
    %v1268 = vunpack.c.l.b16 %v565
    %v1269 = vunpack.c.h.b16 %v565
    %v1270 = vunpack.c.l.b16 %v566
    %v1271 = vunpack.c.h.b16 %v566
    %v1272 = vunpack.c.l.b16 %v567
    %v1273 = vunpack.c.h.b16 %v567
    %v1274 = vunpack.c.l.b16 %v568
    %v1275 = vunpack.c.h.b16 %v568
    %v1276 = vunpack.c.l.b16 %v569
    %v1277 = vunpack.c.h.b16 %v569
    %v1278 = vunpack.c.l.b16 %v570
    %v1279 = vunpack.c.h.b16 %v570
    %v1280 = vunpack.c.l.b16 %v571
    %v1281 = vunpack.c.h.b16 %v571
    %v1282 = vunpack.c.l.b16 %v572
    %v1283 = vunpack.c.h.b16 %v572
    %v1284 = vunpack.c.l.b16 %v573
    %v1285 = vunpack.c.h.b16 %v573
    %v1286 = vunpack.c.l.b16 %v574
    %v1287 = vunpack.c.h.b16 %v574
    %v1288 = vunpack.c.l.b16 %v575
    %v1289 = vunpack.c.h.b16 %v575
    %v1290 = vunpack.c.l.b16 %v576
    %v1291 = vunpack.c.h.b16 %v576
    %v1292 = vunpack.c.l.b16 %v577
    %v1293 = vunpack.c.h.b16 %v577
    %v1294 = vunpack.c.l.b16 %v578
    %v1295 = vunpack.c.h.b16 %v578
    %v1296 = vunpack.c.l.b16 %v579
    %v1297 = vunpack.c.h.b16 %v579
    %v1298 = vunpack.c.l.b16 %v580
    %v1299 = vunpack.c.h.b16 %v580
    %v1300 = vunpack.c.l.b16 %v581
    %v1301 = vunpack.c.h.b16 %v581
    %v1302 = vunpack.c.l.b16 %v582
    %v1303 = vunpack.c.h.b16 %v582
    %v1304 = vunpack.c.l.b16 %v583
    %v1305 = vunpack.c.h.b16 %v583
    %v1306 = vunpack.c.l.b16 %v584
    %v1307 = vunpack.c.h.b16 %v584
    %v1308 = vunpack.c.l.b16 %v585
    %v1309 = vunpack.c.h.b16 %v585
    %v1310 = vunpack.c.l.b16 %v586
    %v1311 = vunpack.c.h.b16 %v586
    %v1312 = vunpack.c.l.b16 %v587
    %v1313 = vunpack.c.h.b16 %v587
    %v1314 = vunpack.c.l.b16 %v588
    %v1315 = vunpack.c.h.b16 %v588
    %v1316 = vunpack.c.l.b16 %v589
    %v1317 = vunpack.c.h.b16 %v589
    %v1318 = vunpack.c.l.b16 %v590
    %v1319 = vunpack.c.h.b16 %v590
    %v1320 = vunpack.c.l.b16 %v591
    %v1321 = vunpack.c.h.b16 %v591
    %v1322 = vunpack.c.l.b16 %v592
    %v1323 = vunpack.c.h.b16 %v592
    %v1324 = vunpack.c.l.b16 %v593
    %v1325 = vunpack.c.h.b16 %v593
    %v1326 = vunpack.c.l.b16 %v594
    %v1327 = vunpack.c.h.b16 %v594
    %v1328 = vunpack.c.l.b16 %v595
    %v1329 = vunpack.c.h.b16 %v595
    %v1330 = vunpack.c.l.b16 %v596
    %v1331 = vunpack.c.h.b16 %v596
    %v1332 = vunpack.c.l.b16 %v597
    %v1333 = vunpack.c.h.b16 %v597
    %v1334 = vunpack.c.l.b16 %v598
    %v1335 = vunpack.c.h.b16 %v598
    %v1336 = vunpack.c.l.b16 %v599
    %v1337 = vunpack.c.h.b16 %v599
    %v1338 = vunpack.c.l.b16 %v600
    %v1339 = vunpack.c.h.b16 %v600
    %v1340 = vunpack.c.l.b16 %v601
    %v1341 = vunpack.c.h.b16 %v601
    %v1342 = vunpack.c.l.b16 %v602
    %v1343 = vunpack.c.h.b16 %v602
    %v1344 = vunpack.c.l.b16 %v603
    %v1345 = vunpack.c.h.b16 %v603
    %v1346 = vunpack.c.l.b16 %v604
    %v1347 = vunpack.c.h.b16 %v604
    %v1348 = vunpack.c.l.b16 %v605
    %v1349 = vunpack.c.h.b16 %v605
    %v1350 = vunpack.c.l.b16 %v606
    %v1351 = vunpack.c.h.b16 %v606
    %v1352 = vunpack.c.l.b16 %v607
    %v1353 = vunpack.c.h.b16 %v607
    %v1354 = vunpack.c.l.b16 %v608
    %v1355 = vunpack.c.h.b16 %v608
    %v1356 = vunpack.c.l.b16 %v609
    %v1357 = vunpack.c.h.b16 %v609
    %v1358 = vunpack.c.l.b16 %v610
    %v1359 = vunpack.c.h.b16 %v610
    %v1360 = vunpack.c.l.b16 %v611
    %v1361 = vunpack.c.h.b16 %v611
    %v1362 = vunpack.c.l.b16 %v612
    %v1363 = vunpack.c.h.b16 %v612
    %v1364 = vunpack.c.l.b16 %v613
    %v1365 = vunpack.c.h.b16 %v613
    %v1366 = vunpack.c.l.b16 %v614
    %v1367 = vunpack.c.h.b16 %v614
    %v1368 = vunpack.c.l.b16 %v615
    %v1369 = vunpack.c.h.b16 %v615
    %v1370 = vunpack.c.l.b16 %v616
    %v1371 = vunpack.c.h.b16 %v616
    %v1372 = vunpack.c.l.b16 %v617
    %v1373 = vunpack.c.h.b16 %v617
    %v1374 = vunpack.c.l.b16 %v618
    %v1375 = vunpack.c.h.b16 %v618
    %v1376 = vunpack.c.l.b16 %v619
    %v1377 = vunpack.c.h.b16 %v619
    %v1378 = vunpack.c.l.b16 %v620
    %v1379 = vunpack.c.h.b16 %v620
    %v1380 = vunpack.c.l.b16 %v621
    %v1381 = vunpack.c.h.b16 %v621
    %v1382 = vunpack.c.l.b16 %v622
    %v1383 = vunpack.c.h.b16 %v622
    %v1384 = vunpack.c.l.b16 %v623
    %v1385 = vunpack.c.h.b16 %v623
    %v1386 = vunpack.c.l.b16 %v624
    %v1387 = vunpack.c.h.b16 %v624
    %v1388 = vunpack.c.l.b16 %v625
    %v1389 = vunpack.c.h.b16 %v625
    %v1390 = vunpack.c.l.b16 %v626
    %v1391 = vunpack.c.h.b16 %v626
    %v1392 = vunpack.c.l.b16 %v627
    %v1393 = vunpack.c.h.b16 %v627
    %v1394 = vunpack.c.l.b16 %v628
    %v1395 = vunpack.c.h.b16 %v628
    %v1396 = vunpack.c.l.b16 %v629
    %v1397 = vunpack.c.h.b16 %v629
    %v1398 = vunpack.c.l.b16 %v630
    %v1399 = vunpack.c.h.b16 %v630
    %v1400 = vunpack.c.l.b16 %v631
    %v1401 = vunpack.c.h.b16 %v631
    %v1402 = vunpack.c.l.b16 %v632
    %v1403 = vunpack.c.h.b16 %v632
    %v1404 = vunpack.c.l.b16 %v633
    %v1405 = vunpack.c.h.b16 %v633
    %v1406 = vunpack.c.l.b16 %v634
    %v1407 = vunpack.c.h.b16 %v634
    %v1408 = vunpack.c.l.b16 %v635
    %v1409 = vunpack.c.h.b16 %v635
    %v1410 = vunpack.c.l.b16 %v636
    %v1411 = vunpack.c.h.b16 %v636
    %v1412 = vunpack.c.l.b16 %v637
    %v1413 = vunpack.c.h.b16 %v637
    %v1414 = vunpack.c.l.b16 %v638
    %v1415 = vunpack.c.h.b16 %v638
    %v1416 = vunpack.c.l.b16 %v639
    %v1417 = vunpack.c.h.b16 %v639
    %v1418 = vunpack.c.l.b16 %v640
    %v1419 = vunpack.c.h.b16 %v640
    %v1420 = vunpack.c.l.b16 %v641
    %v1421 = vunpack.c.h.b16 %v641
    %v1422 = vunpack.c.l.b16 %v642
    %v1423 = vunpack.c.h.b16 %v642
    %v1424 = vunpack.c.l.b16 %v643
    %v1425 = vunpack.c.h.b16 %v643
    %v1426 = vunpack.c.l.b16 %v644
    %v1427 = vunpack.c.h.b16 %v644
    %v1428 = vunpack.c.l.b16 %v645
    %v1429 = vunpack.c.h.b16 %v645
    %v1430 = vunpack.c.l.b16 %v646
    %v1431 = vunpack.c.h.b16 %v646
    %v1432 = vunpack.c.l.b16 %v647
    %v1433 = vunpack.c.h.b16 %v647
    %v1434 = vpack.c.b16 %v930, %v922
    %v1435 = vpack.c.b16 %v931, %v923
    %v1436 = vpack.c.b16 %v932, %v924
    %v1437 = vpack.c.b16 %v933, %v925
    %v1438 = vpack.c.b16 %v934, %v926
    %v1439 = vpack.c.b16 %v935, %v927
    %v1440 = vpack.c.b16 %v936, %v928
    %v1441 = vpack.c.b16 %v937, %v929
    %v1442 = vpack.c.b16 %v946, %v938
    %v1443 = vpack.c.b16 %v947, %v939
    %v1444 = vpack.c.b16 %v948, %v940
    %v1445 = vpack.c.b16 %v949, %v941
    %v1446 = vpack.c.b16 %v950, %v942
    %v1447 = vpack.c.b16 %v951, %v943
    %v1448 = vpack.c.b16 %v952, %v944
    %v1449 = vpack.c.b16 %v953, %v945
    %v1450 = vpack.c.b16 %v962, %v954
    %v1451 = vpack.c.b16 %v963, %v955
    %v1452 = vpack.c.b16 %v964, %v956
    %v1453 = vpack.c.b16 %v965, %v957
    %v1454 = vpack.c.b16 %v966, %v958
    %v1455 = vpack.c.b16 %v967, %v959
    %v1456 = vpack.c.b16 %v968, %v960
    %v1457 = vpack.c.b16 %v969, %v961
    %v1458 = vpack.c.b16 %v978, %v970
    %v1459 = vpack.c.b16 %v979, %v971
    %v1460 = vpack.c.b16 %v980, %v972
    %v1461 = vpack.c.b16 %v981, %v973
    %v1462 = vpack.c.b16 %v982, %v974
    %v1463 = vpack.c.b16 %v983, %v975
    %v1464 = vpack.c.b16 %v984, %v976
    %v1465 = vpack.c.b16 %v985, %v977
    %v1466 = vpack.c.b16 %v994, %v986
    %v1467 = vpack.c.b16 %v995, %v987
    %v1468 = vpack.c.b16 %v996, %v988
    %v1469 = vpack.c.b16 %v997, %v989
    %v1470 = vpack.c.b16 %v998, %v990
    %v1471 = vpack.c.b16 %v999, %v991
    %v1472 = vpack.c.b16 %v1000, %v992
    %v1473 = vpack.c.b16 %v1001, %v993
    %v1474 = vpack.c.b16 %v1010, %v1002
    %v1475 = vpack.c.b16 %v1011, %v1003
    %v1476 = vpack.c.b16 %v1012, %v1004
    %v1477 = vpack.c.b16 %v1013, %v1005
    %v1478 = vpack.c.b16 %v1014, %v1006
    %v1479 = vpack.c.b16 %v1015, %v1007
    %v1480 = vpack.c.b16 %v1016, %v1008
    %v1481 = vpack.c.b16 %v1017, %v1009
    %v1482 = vpack.c.b16 %v1026, %v1018
    %v1483 = vpack.c.b16 %v1027, %v1019
    %v1484 = vpack.c.b16 %v1028, %v1020
    %v1485 = vpack.c.b16 %v1029, %v1021
    %v1486 = vpack.c.b16 %v1030, %v1022
    %v1487 = vpack.c.b16 %v1031, %v1023
    %v1488 = vpack.c.b16 %v1032, %v1024
    %v1489 = vpack.c.b16 %v1033, %v1025
    %v1490 = vpack.c.b16 %v1042, %v1034
    %v1491 = vpack.c.b16 %v1043, %v1035
    %v1492 = vpack.c.b16 %v1044, %v1036
    %v1493 = vpack.c.b16 %v1045, %v1037
    %v1494 = vpack.c.b16 %v1046, %v1038
    %v1495 = vpack.c.b16 %v1047, %v1039
    %v1496 = vpack.c.b16 %v1048, %v1040
    %v1497 = vpack.c.b16 %v1049, %v1041
    %v1498 = vpack.c.b16 %v1058, %v1050
    %v1499 = vpack.c.b16 %v1059, %v1051
    %v1500 = vpack.c.b16 %v1060, %v1052
    %v1501 = vpack.c.b16 %v1061, %v1053
    %v1502 = vpack.c.b16 %v1062, %v1054
    %v1503 = vpack.c.b16 %v1063, %v1055
    %v1504 = vpack.c.b16 %v1064, %v1056
    %v1505 = vpack.c.b16 %v1065, %v1057
    %v1506 = vpack.c.b16 %v1074, %v1066
    %v1507 = vpack.c.b16 %v1075, %v1067
    %v1508 = vpack.c.b16 %v1076, %v1068
    %v1509 = vpack.c.b16 %v1077, %v1069
    %v1510 = vpack.c.b16 %v1078, %v1070
    %v1511 = vpack.c.b16 %v1079, %v1071
    %v1512 = vpack.c.b16 %v1080, %v1072
    %v1513 = vpack.c.b16 %v1081, %v1073
    %v1514 = vpack.c.b16 %v1090, %v1082
    %v1515 = vpack.c.b16 %v1091, %v1083
    %v1516 = vpack.c.b16 %v1092, %v1084
    %v1517 = vpack.c.b16 %v1093, %v1085
    %v1518 = vpack.c.b16 %v1094, %v1086
    %v1519 = vpack.c.b16 %v1095, %v1087
    %v1520 = vpack.c.b16 %v1096, %v1088
    %v1521 = vpack.c.b16 %v1097, %v1089
    %v1522 = vpack.c.b16 %v1106, %v1098
    %v1523 = vpack.c.b16 %v1107, %v1099
    %v1524 = vpack.c.b16 %v1108, %v1100
    %v1525 = vpack.c.b16 %v1109, %v1101
    %v1526 = vpack.c.b16 %v1110, %v1102
    %v1527 = vpack.c.b16 %v1111, %v1103
    %v1528 = vpack.c.b16 %v1112, %v1104
    %v1529 = vpack.c.b16 %v1113, %v1105
    %v1530 = vpack.c.b16 %v1122, %v1114
    %v1531 = vpack.c.b16 %v1123, %v1115
    %v1532 = vpack.c.b16 %v1124, %v1116
    %v1533 = vpack.c.b16 %v1125, %v1117
    %v1534 = vpack.c.b16 %v1126, %v1118
    %v1535 = vpack.c.b16 %v1127, %v1119
    %v1536 = vpack.c.b16 %v1128, %v1120
    %v1537 = vpack.c.b16 %v1129, %v1121
    %v1538 = vpack.c.b16 %v1138, %v1130
    %v1539 = vpack.c.b16 %v1139, %v1131
    %v1540 = vpack.c.b16 %v1140, %v1132
    %v1541 = vpack.c.b16 %v1141, %v1133
    %v1542 = vpack.c.b16 %v1142, %v1134
    %v1543 = vpack.c.b16 %v1143, %v1135
    %v1544 = vpack.c.b16 %v1144, %v1136
    %v1545 = vpack.c.b16 %v1145, %v1137
    %v1546 = vpack.c.b16 %v1154, %v1146
    %v1547 = vpack.c.b16 %v1155, %v1147
    %v1548 = vpack.c.b16 %v1156, %v1148
    %v1549 = vpack.c.b16 %v1157, %v1149
    %v1550 = vpack.c.b16 %v1158, %v1150
    %v1551 = vpack.c.b16 %v1159, %v1151
    %v1552 = vpack.c.b16 %v1160, %v1152
    %v1553 = vpack.c.b16 %v1161, %v1153
    %v1554 = vpack.c.b16 %v1170, %v1162
    %v1555 = vpack.c.b16 %v1171, %v1163
    %v1556 = vpack.c.b16 %v1172, %v1164
    %v1557 = vpack.c.b16 %v1173, %v1165
    %v1558 = vpack.c.b16 %v1174, %v1166
    %v1559 = vpack.c.b16 %v1175, %v1167
    %v1560 = vpack.c.b16 %v1176, %v1168
    %v1561 = vpack.c.b16 %v1177, %v1169
    %v1562 = vpack.c.b16 %v1186, %v1178
    %v1563 = vpack.c.b16 %v1187, %v1179
    %v1564 = vpack.c.b16 %v1188, %v1180
    %v1565 = vpack.c.b16 %v1189, %v1181
    %v1566 = vpack.c.b16 %v1190, %v1182
    %v1567 = vpack.c.b16 %v1191, %v1183
    %v1568 = vpack.c.b16 %v1192, %v1184
    %v1569 = vpack.c.b16 %v1193, %v1185
    %v1570 = vpack.c.b16 %v1202, %v1194
    %v1571 = vpack.c.b16 %v1203, %v1195
    %v1572 = vpack.c.b16 %v1204, %v1196
    %v1573 = vpack.c.b16 %v1205, %v1197
    %v1574 = vpack.c.b16 %v1206, %v1198
    %v1575 = vpack.c.b16 %v1207, %v1199
    %v1576 = vpack.c.b16 %v1208, %v1200
    %v1577 = vpack.c.b16 %v1209, %v1201
    %v1578 = vpack.c.b16 %v1218, %v1210
    %v1579 = vpack.c.b16 %v1219, %v1211
    %v1580 = vpack.c.b16 %v1220, %v1212
    %v1581 = vpack.c.b16 %v1221, %v1213
    %v1582 = vpack.c.b16 %v1222, %v1214
    %v1583 = vpack.c.b16 %v1223, %v1215
    %v1584 = vpack.c.b16 %v1224, %v1216
    %v1585 = vpack.c.b16 %v1225, %v1217
    %v1586 = vpack.c.b16 %v1234, %v1226
    %v1587 = vpack.c.b16 %v1235, %v1227
    %v1588 = vpack.c.b16 %v1236, %v1228
    %v1589 = vpack.c.b16 %v1237, %v1229
    %v1590 = vpack.c.b16 %v1238, %v1230
    %v1591 = vpack.c.b16 %v1239, %v1231
    %v1592 = vpack.c.b16 %v1240, %v1232
    %v1593 = vpack.c.b16 %v1241, %v1233
    %v1594 = vpack.c.b16 %v1250, %v1242
    %v1595 = vpack.c.b16 %v1251, %v1243
    %v1596 = vpack.c.b16 %v1252, %v1244
    %v1597 = vpack.c.b16 %v1253, %v1245
    %v1598 = vpack.c.b16 %v1254, %v1246
    %v1599 = vpack.c.b16 %v1255, %v1247
    %v1600 = vpack.c.b16 %v1256, %v1248
    %v1601 = vpack.c.b16 %v1257, %v1249
    %v1602 = vpack.c.b16 %v1266, %v1258
    %v1603 = vpack.c.b16 %v1267, %v1259
    %v1604 = vpack.c.b16 %v1268, %v1260
    %v1605 = vpack.c.b16 %v1269, %v1261
    %v1606 = vpack.c.b16 %v1270, %v1262
    %v1607 = vpack.c.b16 %v1271, %v1263
    %v1608 = vpack.c.b16 %v1272, %v1264
    %v1609 = vpack.c.b16 %v1273, %v1265
    %v1610 = vpack.c.b16 %v1282, %v1274
    %v1611 = vpack.c.b16 %v1283, %v1275
    %v1612 = vpack.c.b16 %v1284, %v1276
    %v1613 = vpack.c.b16 %v1285, %v1277
    %v1614 = vpack.c.b16 %v1286, %v1278
    %v1615 = vpack.c.b16 %v1287, %v1279
    %v1616 = vpack.c.b16 %v1288, %v1280
    %v1617 = vpack.c.b16 %v1289, %v1281
    %v1618 = vpack.c.b16 %v1298, %v1290
    %v1619 = vpack.c.b16 %v1299, %v1291
    %v1620 = vpack.c.b16 %v1300, %v1292
    %v1621 = vpack.c.b16 %v1301, %v1293
    %v1622 = vpack.c.b16 %v1302, %v1294
    %v1623 = vpack.c.b16 %v1303, %v1295
    %v1624 = vpack.c.b16 %v1304, %v1296
    %v1625 = vpack.c.b16 %v1305, %v1297
    %v1626 = vpack.c.b16 %v1314, %v1306
    %v1627 = vpack.c.b16 %v1315, %v1307
    %v1628 = vpack.c.b16 %v1316, %v1308
    %v1629 = vpack.c.b16 %v1317, %v1309
    %v1630 = vpack.c.b16 %v1318, %v1310
    %v1631 = vpack.c.b16 %v1319, %v1311
    %v1632 = vpack.c.b16 %v1320, %v1312
    %v1633 = vpack.c.b16 %v1321, %v1313
    %v1634 = vpack.c.b16 %v1330, %v1322
    %v1635 = vpack.c.b16 %v1331, %v1323
    %v1636 = vpack.c.b16 %v1332, %v1324
    %v1637 = vpack.c.b16 %v1333, %v1325
    %v1638 = vpack.c.b16 %v1334, %v1326
    %v1639 = vpack.c.b16 %v1335, %v1327
    %v1640 = vpack.c.b16 %v1336, %v1328
    %v1641 = vpack.c.b16 %v1337, %v1329
    %v1642 = vpack.c.b16 %v1346, %v1338
    %v1643 = vpack.c.b16 %v1347, %v1339
    %v1644 = vpack.c.b16 %v1348, %v1340
    %v1645 = vpack.c.b16 %v1349, %v1341
    %v1646 = vpack.c.b16 %v1350, %v1342
    %v1647 = vpack.c.b16 %v1351, %v1343
    %v1648 = vpack.c.b16 %v1352, %v1344
    %v1649 = vpack.c.b16 %v1353, %v1345
    %v1650 = vpack.c.b16 %v1362, %v1354
    %v1651 = vpack.c.b16 %v1363, %v1355
    %v1652 = vpack.c.b16 %v1364, %v1356
    %v1653 = vpack.c.b16 %v1365, %v1357
    %v1654 = vpack.c.b16 %v1366, %v1358
    %v1655 = vpack.c.b16 %v1367, %v1359
    %v1656 = vpack.c.b16 %v1368, %v1360
    %v1657 = vpack.c.b16 %v1369, %v1361
    %v1658 = vpack.c.b16 %v1378, %v1370
    %v1659 = vpack.c.b16 %v1379, %v1371
    %v1660 = vpack.c.b16 %v1380, %v1372
    %v1661 = vpack.c.b16 %v1381, %v1373
    %v1662 = vpack.c.b16 %v1382, %v1374
    %v1663 = vpack.c.b16 %v1383, %v1375
    %v1664 = vpack.c.b16 %v1384, %v1376
    %v1665 = vpack.c.b16 %v1385, %v1377
    %v1666 = vpack.c.b16 %v1394, %v1386
    %v1667 = vpack.c.b16 %v1395, %v1387
    %v1668 = vpack.c.b16 %v1396, %v1388
    %v1669 = vpack.c.b16 %v1397, %v1389
    %v1670 = vpack.c.b16 %v1398, %v1390
    %v1671 = vpack.c.b16 %v1399, %v1391
    %v1672 = vpack.c.b16 %v1400, %v1392
    %v1673 = vpack.c.b16 %v1401, %v1393
    %v1674 = vpack.c.b16 %v1410, %v1402
    %v1675 = vpack.c.b16 %v1411, %v1403
    %v1676 = vpack.c.b16 %v1412, %v1404
    %v1677 = vpack.c.b16 %v1413, %v1405
    %v1678 = vpack.c.b16 %v1414, %v1406
    %v1679 = vpack.c.b16 %v1415, %v1407
    %v1680 = vpack.c.b16 %v1416, %v1408
    %v1681 = vpack.c.b16 %v1417, %v1409
    %v1682 = vpack.c.b16 %v1426, %v1418
    %v1683 = vpack.c.b16 %v1427, %v1419
    %v1684 = vpack.c.b16 %v1428, %v1420
    %v1685 = vpack.c.b16 %v1429, %v1421
    %v1686 = vpack.c.b16 %v1430, %v1422
    %v1687 = vpack.c.b16 %v1431, %v1423
    %v1688 = vpack.c.b16 %v1432, %v1424
    %v1689 = vpack.c.b16 %v1433, %v1425
    %1946 = vmatpush.bf16.msra.mxu0 %v1490
    %1947 = vmatpush.bf16.msra.mxu0 %v1482
    %1948 = vmatpush.bf16.msra.mxu0 %v1474
    %1949 = vmatpush.bf16.msra.mxu0 %v1466
    %1950 = vmatpush.bf16.msra.mxu0 %v1458
    %1951 = vmatpush.bf16.msra.mxu0 %v1450
    %1952 = vmatpush.bf16.msra.mxu0 %v1442
    %1953 = vmatpush.bf16.msra.mxu0 %v1434
    %1954 = vmatmul.bf16.gmra.mxu0 %v388
    %v1955 = vpop.f32.mrf.mxu0
    %v1956 = vadd.f32 %v650, %v1955
    %v1957 = vpop.f32.mrf.mxu0
    %1958 = vdwg.mxu0
    %1959 = vmatpush.bf16.msra.mxu0 %v1554
    %1960 = vmatpush.bf16.msra.mxu0 %v1546
    %1961 = vmatpush.bf16.msra.mxu0 %v1538
    %1962 = vmatpush.bf16.msra.mxu0 %v1530
    %1963 = vmatpush.bf16.msra.mxu0 %v1522
    %1964 = vmatpush.bf16.msra.mxu0 %v1514
    %1965 = vmatpush.bf16.msra.mxu0 %v1506
    %1966 = vmatpush.bf16.msra.mxu0 %v1498
    %1967 = vmatmul.bf16.gmra.mxu0 %v389
    %v1968 = vpop.f32.mrf.mxu0
    %v1969 = vadd.f32 %v1956, %v1968
    %v1970 = vpop.f32.mrf.mxu0
    %1971 = vdwg.mxu0
    %1972 = vmatpush.bf16.msra.mxu0 %v1618
    %1973 = vmatpush.bf16.msra.mxu0 %v1610
    %1974 = vmatpush.bf16.msra.mxu0 %v1602
    %1975 = vmatpush.bf16.msra.mxu0 %v1594
    %1976 = vmatpush.bf16.msra.mxu0 %v1586
    %1977 = vmatpush.bf16.msra.mxu0 %v1578
    %1978 = vmatpush.bf16.msra.mxu0 %v1570
    %1979 = vmatpush.bf16.msra.mxu0 %v1562
    %1980 = vmatmul.bf16.gmra.mxu0 %v390
    %v1981 = vpop.f32.mrf.mxu0
    %v1982 = vadd.f32 %v1969, %v1981
    %v1983 = vpop.f32.mrf.mxu0
    %1984 = vdwg.mxu0
    %1985 = vmatpush.bf16.msra.mxu0 %v1682
    %1986 = vmatpush.bf16.msra.mxu0 %v1674
    %1987 = vmatpush.bf16.msra.mxu0 %v1666
    %1988 = vmatpush.bf16.msra.mxu0 %v1658
    %1989 = vmatpush.bf16.msra.mxu0 %v1650
    %1990 = vmatpush.bf16.msra.mxu0 %v1642
    %1991 = vmatpush.bf16.msra.mxu0 %v1634
    %1992 = vmatpush.bf16.msra.mxu0 %v1626
    %1993 = vmatmul.bf16.gmra.mxu0 %v391
    %v1994 = vpop.f32.mrf.mxu0
    %v1995 = vadd.f32 %v1982, %v1994
    %v1996 = vpop.f32.mrf.mxu0
    %1997 = vdwg.mxu0
    %1998 = vmatpush.bf16.msra.mxu0 %v1491
    %1999 = vmatpush.bf16.msra.mxu0 %v1483
    %2000 = vmatpush.bf16.msra.mxu0 %v1475
    %2001 = vmatpush.bf16.msra.mxu0 %v1467
    %2002 = vmatpush.bf16.msra.mxu0 %v1459
    %2003 = vmatpush.bf16.msra.mxu0 %v1451
    %2004 = vmatpush.bf16.msra.mxu0 %v1443
    %2005 = vmatpush.bf16.msra.mxu0 %v1435
    %2006 = vmatmul.bf16.gmra.mxu0 %v388
    %v2007 = vpop.f32.mrf.mxu0
    %v2008 = vadd.f32 %v651, %v2007
    %v2009 = vpop.f32.mrf.mxu0
    %2010 = vdwg.mxu0
    %2011 = vmatpush.bf16.msra.mxu0 %v1555
    %2012 = vmatpush.bf16.msra.mxu0 %v1547
    %2013 = vmatpush.bf16.msra.mxu0 %v1539
    %2014 = vmatpush.bf16.msra.mxu0 %v1531
    %2015 = vmatpush.bf16.msra.mxu0 %v1523
    %2016 = vmatpush.bf16.msra.mxu0 %v1515
    %2017 = vmatpush.bf16.msra.mxu0 %v1507
    %2018 = vmatpush.bf16.msra.mxu0 %v1499
    %2019 = vmatmul.bf16.gmra.mxu0 %v389
    %v2020 = vpop.f32.mrf.mxu0
    %v2021 = vadd.f32 %v2008, %v2020
    %v2022 = vpop.f32.mrf.mxu0
    %2023 = vdwg.mxu0
    %2024 = vmatpush.bf16.msra.mxu0 %v1619
    %2025 = vmatpush.bf16.msra.mxu0 %v1611
    %2026 = vmatpush.bf16.msra.mxu0 %v1603
    %2027 = vmatpush.bf16.msra.mxu0 %v1595
    %2028 = vmatpush.bf16.msra.mxu0 %v1587
    %2029 = vmatpush.bf16.msra.mxu0 %v1579
    %2030 = vmatpush.bf16.msra.mxu0 %v1571
    %2031 = vmatpush.bf16.msra.mxu0 %v1563
    %2032 = vmatmul.bf16.gmra.mxu0 %v390
    %v2033 = vpop.f32.mrf.mxu0
    %v2034 = vadd.f32 %v2021, %v2033
    %v2035 = vpop.f32.mrf.mxu0
    %2036 = vdwg.mxu0
    %2037 = vmatpush.bf16.msra.mxu0 %v1683
    %2038 = vmatpush.bf16.msra.mxu0 %v1675
    %2039 = vmatpush.bf16.msra.mxu0 %v1667
    %2040 = vmatpush.bf16.msra.mxu0 %v1659
    %2041 = vmatpush.bf16.msra.mxu0 %v1651
    %2042 = vmatpush.bf16.msra.mxu0 %v1643
    %2043 = vmatpush.bf16.msra.mxu0 %v1635
    %2044 = vmatpush.bf16.msra.mxu0 %v1627
    %2045 = vmatmul.bf16.gmra.mxu0 %v391
    %v2046 = vpop.f32.mrf.mxu0
    %v2047 = vadd.f32 %v2034, %v2046
    %v2048 = vpop.f32.mrf.mxu0
    %2049 = vdwg.mxu0
    %2050 = vmatpush.bf16.msra.mxu0 %v1492
    %2051 = vmatpush.bf16.msra.mxu0 %v1484
    %2052 = vmatpush.bf16.msra.mxu0 %v1476
    %2053 = vmatpush.bf16.msra.mxu0 %v1468
    %2054 = vmatpush.bf16.msra.mxu0 %v1460
    %2055 = vmatpush.bf16.msra.mxu0 %v1452
    %2056 = vmatpush.bf16.msra.mxu0 %v1444
    %2057 = vmatpush.bf16.msra.mxu0 %v1436
    %2058 = vmatmul.bf16.gmra.mxu0 %v388
    %v2059 = vpop.f32.mrf.mxu0
    %v2060 = vadd.f32 %v652, %v2059
    %v2061 = vpop.f32.mrf.mxu0
    %2062 = vdwg.mxu0
    %2063 = vmatpush.bf16.msra.mxu0 %v1556
    %2064 = vmatpush.bf16.msra.mxu0 %v1548
    %2065 = vmatpush.bf16.msra.mxu0 %v1540
    %2066 = vmatpush.bf16.msra.mxu0 %v1532
    %2067 = vmatpush.bf16.msra.mxu0 %v1524
    %2068 = vmatpush.bf16.msra.mxu0 %v1516
    %2069 = vmatpush.bf16.msra.mxu0 %v1508
    %2070 = vmatpush.bf16.msra.mxu0 %v1500
    %2071 = vmatmul.bf16.gmra.mxu0 %v389
    %v2072 = vpop.f32.mrf.mxu0
    %v2073 = vadd.f32 %v2060, %v2072
    %v2074 = vpop.f32.mrf.mxu0
    %2075 = vdwg.mxu0
    %2076 = vmatpush.bf16.msra.mxu0 %v1620
    %2077 = vmatpush.bf16.msra.mxu0 %v1612
    %2078 = vmatpush.bf16.msra.mxu0 %v1604
    %2079 = vmatpush.bf16.msra.mxu0 %v1596
    %2080 = vmatpush.bf16.msra.mxu0 %v1588
    %2081 = vmatpush.bf16.msra.mxu0 %v1580
    %2082 = vmatpush.bf16.msra.mxu0 %v1572
    %2083 = vmatpush.bf16.msra.mxu0 %v1564
    %2084 = vmatmul.bf16.gmra.mxu0 %v390
    %v2085 = vpop.f32.mrf.mxu0
    %v2086 = vadd.f32 %v2073, %v2085
    %v2087 = vpop.f32.mrf.mxu0
    %2088 = vdwg.mxu0
    %2089 = vmatpush.bf16.msra.mxu0 %v1684
    %2090 = vmatpush.bf16.msra.mxu0 %v1676
    %2091 = vmatpush.bf16.msra.mxu0 %v1668
    %2092 = vmatpush.bf16.msra.mxu0 %v1660
    %2093 = vmatpush.bf16.msra.mxu0 %v1652
    %2094 = vmatpush.bf16.msra.mxu0 %v1644
    %2095 = vmatpush.bf16.msra.mxu0 %v1636
    %2096 = vmatpush.bf16.msra.mxu0 %v1628
    %2097 = vmatmul.bf16.gmra.mxu0 %v391
    %v2098 = vpop.f32.mrf.mxu0
    %v2099 = vadd.f32 %v2086, %v2098
    %v2100 = vpop.f32.mrf.mxu0
    %2101 = vdwg.mxu0
    %2102 = vmatpush.bf16.msra.mxu0 %v1493
    %2103 = vmatpush.bf16.msra.mxu0 %v1485
    %2104 = vmatpush.bf16.msra.mxu0 %v1477
    %2105 = vmatpush.bf16.msra.mxu0 %v1469
    %2106 = vmatpush.bf16.msra.mxu0 %v1461
    %2107 = vmatpush.bf16.msra.mxu0 %v1453
    %2108 = vmatpush.bf16.msra.mxu0 %v1445
    %2109 = vmatpush.bf16.msra.mxu0 %v1437
    %2110 = vmatmul.bf16.gmra.mxu0 %v388
    %v2111 = vpop.f32.mrf.mxu0
    %v2112 = vadd.f32 %v653, %v2111
    %v2113 = vpop.f32.mrf.mxu0
    %2114 = vdwg.mxu0
    %2115 = vmatpush.bf16.msra.mxu0 %v1557
    %2116 = vmatpush.bf16.msra.mxu0 %v1549
    %2117 = vmatpush.bf16.msra.mxu0 %v1541
    %2118 = vmatpush.bf16.msra.mxu0 %v1533
    %2119 = vmatpush.bf16.msra.mxu0 %v1525
    %2120 = vmatpush.bf16.msra.mxu0 %v1517
    %2121 = vmatpush.bf16.msra.mxu0 %v1509
    %2122 = vmatpush.bf16.msra.mxu0 %v1501
    %2123 = vmatmul.bf16.gmra.mxu0 %v389
    %v2124 = vpop.f32.mrf.mxu0
    %v2125 = vadd.f32 %v2112, %v2124
    %v2126 = vpop.f32.mrf.mxu0
    %2127 = vdwg.mxu0
    %2128 = vmatpush.bf16.msra.mxu0 %v1621
    %2129 = vmatpush.bf16.msra.mxu0 %v1613
    %2130 = vmatpush.bf16.msra.mxu0 %v1605
    %2131 = vmatpush.bf16.msra.mxu0 %v1597
    %2132 = vmatpush.bf16.msra.mxu0 %v1589
    %2133 = vmatpush.bf16.msra.mxu0 %v1581
    %2134 = vmatpush.bf16.msra.mxu0 %v1573
    %2135 = vmatpush.bf16.msra.mxu0 %v1565
    %2136 = vmatmul.bf16.gmra.mxu0 %v390
    %v2137 = vpop.f32.mrf.mxu0
    %v2138 = vadd.f32 %v2125, %v2137
    %v2139 = vpop.f32.mrf.mxu0
    %2140 = vdwg.mxu0
    %2141 = vmatpush.bf16.msra.mxu0 %v1685
    %2142 = vmatpush.bf16.msra.mxu0 %v1677
    %2143 = vmatpush.bf16.msra.mxu0 %v1669
    %2144 = vmatpush.bf16.msra.mxu0 %v1661
    %2145 = vmatpush.bf16.msra.mxu0 %v1653
    %2146 = vmatpush.bf16.msra.mxu0 %v1645
    %2147 = vmatpush.bf16.msra.mxu0 %v1637
    %2148 = vmatpush.bf16.msra.mxu0 %v1629
    %2149 = vmatmul.bf16.gmra.mxu0 %v391
    %v2150 = vpop.f32.mrf.mxu0
    %v2151 = vadd.f32 %v2138, %v2150
    %v2152 = vpop.f32.mrf.mxu0
    %2153 = vdwg.mxu0
    %2154 = vmatpush.bf16.msra.mxu0 %v1494
    %2155 = vmatpush.bf16.msra.mxu0 %v1486
    %2156 = vmatpush.bf16.msra.mxu0 %v1478
    %2157 = vmatpush.bf16.msra.mxu0 %v1470
    %2158 = vmatpush.bf16.msra.mxu0 %v1462
    %2159 = vmatpush.bf16.msra.mxu0 %v1454
    %2160 = vmatpush.bf16.msra.mxu0 %v1446
    %2161 = vmatpush.bf16.msra.mxu0 %v1438
    %2162 = vmatmul.bf16.gmra.mxu0 %v388
    %v2163 = vpop.f32.mrf.mxu0
    %v2164 = vadd.f32 %v654, %v2163
    %v2165 = vpop.f32.mrf.mxu0
    %2166 = vdwg.mxu0
    %2167 = vmatpush.bf16.msra.mxu0 %v1558
    %2168 = vmatpush.bf16.msra.mxu0 %v1550
    %2169 = vmatpush.bf16.msra.mxu0 %v1542
    %2170 = vmatpush.bf16.msra.mxu0 %v1534
    %2171 = vmatpush.bf16.msra.mxu0 %v1526
    %2172 = vmatpush.bf16.msra.mxu0 %v1518
    %2173 = vmatpush.bf16.msra.mxu0 %v1510
    %2174 = vmatpush.bf16.msra.mxu0 %v1502
    %2175 = vmatmul.bf16.gmra.mxu0 %v389
    %v2176 = vpop.f32.mrf.mxu0
    %v2177 = vadd.f32 %v2164, %v2176
    %v2178 = vpop.f32.mrf.mxu0
    %2179 = vdwg.mxu0
    %2180 = vmatpush.bf16.msra.mxu0 %v1622
    %2181 = vmatpush.bf16.msra.mxu0 %v1614
    %2182 = vmatpush.bf16.msra.mxu0 %v1606
    %2183 = vmatpush.bf16.msra.mxu0 %v1598
    %2184 = vmatpush.bf16.msra.mxu0 %v1590
    %2185 = vmatpush.bf16.msra.mxu0 %v1582
    %2186 = vmatpush.bf16.msra.mxu0 %v1574
    %2187 = vmatpush.bf16.msra.mxu0 %v1566
    %2188 = vmatmul.bf16.gmra.mxu0 %v390
    %v2189 = vpop.f32.mrf.mxu0
    %v2190 = vadd.f32 %v2177, %v2189
    %v2191 = vpop.f32.mrf.mxu0
    %2192 = vdwg.mxu0
    %2193 = vmatpush.bf16.msra.mxu0 %v1686
    %2194 = vmatpush.bf16.msra.mxu0 %v1678
    %2195 = vmatpush.bf16.msra.mxu0 %v1670
    %2196 = vmatpush.bf16.msra.mxu0 %v1662
    %2197 = vmatpush.bf16.msra.mxu0 %v1654
    %2198 = vmatpush.bf16.msra.mxu0 %v1646
    %2199 = vmatpush.bf16.msra.mxu0 %v1638
    %2200 = vmatpush.bf16.msra.mxu0 %v1630
    %2201 = vmatmul.bf16.gmra.mxu0 %v391
    %v2202 = vpop.f32.mrf.mxu0
    %v2203 = vadd.f32 %v2190, %v2202
    %v2204 = vpop.f32.mrf.mxu0
    %2205 = vdwg.mxu0
    %2206 = vmatpush.bf16.msra.mxu0 %v1495
    %2207 = vmatpush.bf16.msra.mxu0 %v1487
    %2208 = vmatpush.bf16.msra.mxu0 %v1479
    %2209 = vmatpush.bf16.msra.mxu0 %v1471
    %2210 = vmatpush.bf16.msra.mxu0 %v1463
    %2211 = vmatpush.bf16.msra.mxu0 %v1455
    %2212 = vmatpush.bf16.msra.mxu0 %v1447
    %2213 = vmatpush.bf16.msra.mxu0 %v1439
    %2214 = vmatmul.bf16.gmra.mxu0 %v388
    %v2215 = vpop.f32.mrf.mxu0
    %v2216 = vadd.f32 %v655, %v2215
    %v2217 = vpop.f32.mrf.mxu0
    %2218 = vdwg.mxu0
    %2219 = vmatpush.bf16.msra.mxu0 %v1559
    %2220 = vmatpush.bf16.msra.mxu0 %v1551
    %2221 = vmatpush.bf16.msra.mxu0 %v1543
    %2222 = vmatpush.bf16.msra.mxu0 %v1535
    %2223 = vmatpush.bf16.msra.mxu0 %v1527
    %2224 = vmatpush.bf16.msra.mxu0 %v1519
    %2225 = vmatpush.bf16.msra.mxu0 %v1511
    %2226 = vmatpush.bf16.msra.mxu0 %v1503
    %2227 = vmatmul.bf16.gmra.mxu0 %v389
    %v2228 = vpop.f32.mrf.mxu0
    %v2229 = vadd.f32 %v2216, %v2228
    %v2230 = vpop.f32.mrf.mxu0
    %2231 = vdwg.mxu0
    %2232 = vmatpush.bf16.msra.mxu0 %v1623
    %2233 = vmatpush.bf16.msra.mxu0 %v1615
    %2234 = vmatpush.bf16.msra.mxu0 %v1607
    %2235 = vmatpush.bf16.msra.mxu0 %v1599
    %2236 = vmatpush.bf16.msra.mxu0 %v1591
    %2237 = vmatpush.bf16.msra.mxu0 %v1583
    %2238 = vmatpush.bf16.msra.mxu0 %v1575
    %2239 = vmatpush.bf16.msra.mxu0 %v1567
    %2240 = vmatmul.bf16.gmra.mxu0 %v390
    %v2241 = vpop.f32.mrf.mxu0
    %v2242 = vadd.f32 %v2229, %v2241
    %v2243 = vpop.f32.mrf.mxu0
    %2244 = vdwg.mxu0
    %2245 = vmatpush.bf16.msra.mxu0 %v1687
    %2246 = vmatpush.bf16.msra.mxu0 %v1679
    %2247 = vmatpush.bf16.msra.mxu0 %v1671
    %2248 = vmatpush.bf16.msra.mxu0 %v1663
    %2249 = vmatpush.bf16.msra.mxu0 %v1655
    %2250 = vmatpush.bf16.msra.mxu0 %v1647
    %2251 = vmatpush.bf16.msra.mxu0 %v1639
    %2252 = vmatpush.bf16.msra.mxu0 %v1631
    %2253 = vmatmul.bf16.gmra.mxu0 %v391
    %v2254 = vpop.f32.mrf.mxu0
    %v2255 = vadd.f32 %v2242, %v2254
    %v2256 = vpop.f32.mrf.mxu0
    %2257 = vdwg.mxu0
    %2258 = vmatpush.bf16.msra.mxu0 %v1496
    %2259 = vmatpush.bf16.msra.mxu0 %v1488
    %2260 = vmatpush.bf16.msra.mxu0 %v1480
    %2261 = vmatpush.bf16.msra.mxu0 %v1472
    %2262 = vmatpush.bf16.msra.mxu0 %v1464
    %2263 = vmatpush.bf16.msra.mxu0 %v1456
    %2264 = vmatpush.bf16.msra.mxu0 %v1448
    %2265 = vmatpush.bf16.msra.mxu0 %v1440
    %2266 = vmatmul.bf16.gmra.mxu0 %v388
    %v2267 = vpop.f32.mrf.mxu0
    %v2268 = vadd.f32 %v656, %v2267
    %v2269 = vpop.f32.mrf.mxu0
    %2270 = vdwg.mxu0
    %2271 = vmatpush.bf16.msra.mxu0 %v1560
    %2272 = vmatpush.bf16.msra.mxu0 %v1552
    %2273 = vmatpush.bf16.msra.mxu0 %v1544
    %2274 = vmatpush.bf16.msra.mxu0 %v1536
    %2275 = vmatpush.bf16.msra.mxu0 %v1528
    %2276 = vmatpush.bf16.msra.mxu0 %v1520
    %2277 = vmatpush.bf16.msra.mxu0 %v1512
    %2278 = vmatpush.bf16.msra.mxu0 %v1504
    %2279 = vmatmul.bf16.gmra.mxu0 %v389
    %v2280 = vpop.f32.mrf.mxu0
    %v2281 = vadd.f32 %v2268, %v2280
    %v2282 = vpop.f32.mrf.mxu0
    %2283 = vdwg.mxu0
    %2284 = vmatpush.bf16.msra.mxu0 %v1624
    %2285 = vmatpush.bf16.msra.mxu0 %v1616
    %2286 = vmatpush.bf16.msra.mxu0 %v1608
    %2287 = vmatpush.bf16.msra.mxu0 %v1600
    %2288 = vmatpush.bf16.msra.mxu0 %v1592
    %2289 = vmatpush.bf16.msra.mxu0 %v1584
    %2290 = vmatpush.bf16.msra.mxu0 %v1576
    %2291 = vmatpush.bf16.msra.mxu0 %v1568
    %2292 = vmatmul.bf16.gmra.mxu0 %v390
    %v2293 = vpop.f32.mrf.mxu0
    %v2294 = vadd.f32 %v2281, %v2293
    %v2295 = vpop.f32.mrf.mxu0
    %2296 = vdwg.mxu0
    %2297 = vmatpush.bf16.msra.mxu0 %v1688
    %2298 = vmatpush.bf16.msra.mxu0 %v1680
    %2299 = vmatpush.bf16.msra.mxu0 %v1672
    %2300 = vmatpush.bf16.msra.mxu0 %v1664
    %2301 = vmatpush.bf16.msra.mxu0 %v1656
    %2302 = vmatpush.bf16.msra.mxu0 %v1648
    %2303 = vmatpush.bf16.msra.mxu0 %v1640
    %2304 = vmatpush.bf16.msra.mxu0 %v1632
    %2305 = vmatmul.bf16.gmra.mxu0 %v391
    %v2306 = vpop.f32.mrf.mxu0
    %v2307 = vadd.f32 %v2294, %v2306
    %v2308 = vpop.f32.mrf.mxu0
    %2309 = vdwg.mxu0
    %2310 = vmatpush.bf16.msra.mxu0 %v1497
    %2311 = vmatpush.bf16.msra.mxu0 %v1489
    %2312 = vmatpush.bf16.msra.mxu0 %v1481
    %2313 = vmatpush.bf16.msra.mxu0 %v1473
    %2314 = vmatpush.bf16.msra.mxu0 %v1465
    %2315 = vmatpush.bf16.msra.mxu0 %v1457
    %2316 = vmatpush.bf16.msra.mxu0 %v1449
    %2317 = vmatpush.bf16.msra.mxu0 %v1441
    %2318 = vmatmul.bf16.gmra.mxu0 %v388
    %v2319 = vpop.f32.mrf.mxu0
    %v2320 = vadd.f32 %v657, %v2319
    %v2321 = vpop.f32.mrf.mxu0
    %2322 = vdwg.mxu0
    %2323 = vmatpush.bf16.msra.mxu0 %v1561
    %2324 = vmatpush.bf16.msra.mxu0 %v1553
    %2325 = vmatpush.bf16.msra.mxu0 %v1545
    %2326 = vmatpush.bf16.msra.mxu0 %v1537
    %2327 = vmatpush.bf16.msra.mxu0 %v1529
    %2328 = vmatpush.bf16.msra.mxu0 %v1521
    %2329 = vmatpush.bf16.msra.mxu0 %v1513
    %2330 = vmatpush.bf16.msra.mxu0 %v1505
    %2331 = vmatmul.bf16.gmra.mxu0 %v389
    %v2332 = vpop.f32.mrf.mxu0
    %v2333 = vadd.f32 %v2320, %v2332
    %v2334 = vpop.f32.mrf.mxu0
    %2335 = vdwg.mxu0
    %2336 = vmatpush.bf16.msra.mxu0 %v1625
    %2337 = vmatpush.bf16.msra.mxu0 %v1617
    %2338 = vmatpush.bf16.msra.mxu0 %v1609
    %2339 = vmatpush.bf16.msra.mxu0 %v1601
    %2340 = vmatpush.bf16.msra.mxu0 %v1593
    %2341 = vmatpush.bf16.msra.mxu0 %v1585
    %2342 = vmatpush.bf16.msra.mxu0 %v1577
    %2343 = vmatpush.bf16.msra.mxu0 %v1569
    %2344 = vmatmul.bf16.gmra.mxu0 %v390
    %v2345 = vpop.f32.mrf.mxu0
    %v2346 = vadd.f32 %v2333, %v2345
    %v2347 = vpop.f32.mrf.mxu0
    %2348 = vdwg.mxu0
    %2349 = vmatpush.bf16.msra.mxu0 %v1689
    %2350 = vmatpush.bf16.msra.mxu0 %v1681
    %2351 = vmatpush.bf16.msra.mxu0 %v1673
    %2352 = vmatpush.bf16.msra.mxu0 %v1665
    %2353 = vmatpush.bf16.msra.mxu0 %v1657
    %2354 = vmatpush.bf16.msra.mxu0 %v1649
    %2355 = vmatpush.bf16.msra.mxu0 %v1641
    %2356 = vmatpush.bf16.msra.mxu0 %v1633
    %2357 = vmatmul.bf16.gmra.mxu0 %v391
    %v2358 = vpop.f32.mrf.mxu0
    %v2359 = vadd.f32 %v2346, %v2358
    %v2360 = vpop.f32.mrf.mxu0
    %2361 = vdwg.mxu0
    %v2362 = vmax.f32 %v1995, 0.0
    %v2363 = vmax.f32 %v2047, 0.0
    %v2364 = vmax.f32 %v2099, 0.0
    %v2365 = vmax.f32 %v2151, 0.0
    %v2366 = vmax.f32 %v2203, 0.0
    %v2367 = vmax.f32 %v2255, 0.0
    %v2368 = vmax.f32 %v2307, 0.0
    %v2369 = vmax.f32 %v2359, 0.0
    %v2370 = vpack.c.bf16 %v2362, %v2362
    %v2371 = vpack.c.bf16 %v2363, %v2363
    %v2372 = vpack.c.bf16 %v2364, %v2364
    %v2373 = vpack.c.bf16 %v2365, %v2365
    %v2374 = vpack.c.bf16 %v2366, %v2366
    %v2375 = vpack.c.bf16 %v2367, %v2367
    %v2376 = vpack.c.bf16 %v2368, %v2368
    %v2377 = vpack.c.bf16 %v2369, %v2369
    %v2378 = vld [vmem:[#allocation11] sm:$0xff]
    %v2379 = vld [vmem:[#allocation11 + $0x8] sm:$0xff]
    %v2380 = vld [vmem:[#allocation11 + $0x10] sm:$0xff]
    %v2381 = vld [vmem:[#allocation11 + $0x18] sm:$0xff]
    %v2382 = vld [vmem:[#allocation11 + $0x20] sm:$0xff]
    %v2383 = vld [vmem:[#allocation11 + $0x28] sm:$0xff]
    %v2384 = vld [vmem:[#allocation11 + $0x30] sm:$0xff]
    %v2385 = vld [vmem:[#allocation11 + $0x38] sm:$0xff]
    %v2386 = vld [vmem:[#allocation11 + $0x40] sm:$0xff]
    %v2387 = vld [vmem:[#allocation11 + $0x48] sm:$0xff]
    %v2388 = vld [vmem:[#allocation11 + $0x50] sm:$0xff]
    %v2389 = vld [vmem:[#allocation11 + $0x58] sm:$0xff]
    %v2390 = vld [vmem:[#allocation11 + $0x60] sm:$0xff]
    %v2391 = vld [vmem:[#allocation11 + $0x68] sm:$0xff]
    %v2392 = vld [vmem:[#allocation11 + $0x70] sm:$0xff]
    %v2393 = vld [vmem:[#allocation11 + $0x78] sm:$0xff]
    %v2394 = vld [vmem:[#allocation11 + $0x80] sm:$0xff]
    %v2395 = vld [vmem:[#allocation11 + $0x88] sm:$0xff]
    %v2396 = vld [vmem:[#allocation11 + $0x90] sm:$0xff]
    %v2397 = vld [vmem:[#allocation11 + $0x98] sm:$0xff]
    %v2398 = vld [vmem:[#allocation11 + $0xa0] sm:$0xff]
    %v2399 = vld [vmem:[#allocation11 + $0xa8] sm:$0xff]
    %v2400 = vld [vmem:[#allocation11 + $0xb0] sm:$0xff]
    %v2401 = vld [vmem:[#allocation11 + $0xb8] sm:$0xff]
    %v2402 = vld [vmem:[#allocation11 + $0xc0] sm:$0xff]
    %v2403 = vld [vmem:[#allocation11 + $0xc8] sm:$0xff]
    %v2404 = vld [vmem:[#allocation11 + $0xd0] sm:$0xff]
    %v2405 = vld [vmem:[#allocation11 + $0xd8] sm:$0xff]
    %v2406 = vld [vmem:[#allocation11 + $0xe0] sm:$0xff]
    %v2407 = vld [vmem:[#allocation11 + $0xe8] sm:$0xff]
    %v2408 = vld [vmem:[#allocation11 + $0xf0] sm:$0xff]
    %v2409 = vld [vmem:[#allocation11 + $0xf8] sm:$0xff]
    %v2410 = vld [vmem:[#allocation11 + $0x100] sm:$0xff]
    %v2411 = vld [vmem:[#allocation11 + $0x108] sm:$0xff]
    %v2412 = vld [vmem:[#allocation11 + $0x110] sm:$0xff]
    %v2413 = vld [vmem:[#allocation11 + $0x118] sm:$0xff]
    %v2414 = vld [vmem:[#allocation11 + $0x120] sm:$0xff]
    %v2415 = vld [vmem:[#allocation11 + $0x128] sm:$0xff]
    %v2416 = vld [vmem:[#allocation11 + $0x130] sm:$0xff]
    %v2417 = vld [vmem:[#allocation11 + $0x138] sm:$0xff]
    %v2418 = vld [vmem:[#allocation11 + $0x140] sm:$0xff]
    %v2419 = vld [vmem:[#allocation11 + $0x148] sm:$0xff]
    %v2420 = vld [vmem:[#allocation11 + $0x150] sm:$0xff]
    %v2421 = vld [vmem:[#allocation11 + $0x158] sm:$0xff]
    %v2422 = vld [vmem:[#allocation11 + $0x160] sm:$0xff]
    %v2423 = vld [vmem:[#allocation11 + $0x168] sm:$0xff]
    %v2424 = vld [vmem:[#allocation11 + $0x170] sm:$0xff]
    %v2425 = vld [vmem:[#allocation11 + $0x178] sm:$0xff]
    %v2426 = vld [vmem:[#allocation11 + $0x180] sm:$0xff]
    %v2427 = vld [vmem:[#allocation11 + $0x188] sm:$0xff]
    %v2428 = vld [vmem:[#allocation11 + $0x190] sm:$0xff]
    %v2429 = vld [vmem:[#allocation11 + $0x198] sm:$0xff]
    %v2430 = vld [vmem:[#allocation11 + $0x1a0] sm:$0xff]
    %v2431 = vld [vmem:[#allocation11 + $0x1a8] sm:$0xff]
    %v2432 = vld [vmem:[#allocation11 + $0x1b0] sm:$0xff]
    %v2433 = vld [vmem:[#allocation11 + $0x1b8] sm:$0xff]
    %v2434 = vld [vmem:[#allocation11 + $0x1c0] sm:$0xff]
    %v2435 = vld [vmem:[#allocation11 + $0x1c8] sm:$0xff]
    %v2436 = vld [vmem:[#allocation11 + $0x1d0] sm:$0xff]
    %v2437 = vld [vmem:[#allocation11 + $0x1d8] sm:$0xff]
    %v2438 = vld [vmem:[#allocation11 + $0x1e0] sm:$0xff]
    %v2439 = vld [vmem:[#allocation11 + $0x1e8] sm:$0xff]
    %v2440 = vld [vmem:[#allocation11 + $0x1f0] sm:$0xff]
    %v2441 = vld [vmem:[#allocation11 + $0x1f8] sm:$0xff]
    %v2442 = vld [vmem:[#allocation11 + $0x200] sm:$0xff]
    %v2443 = vld [vmem:[#allocation11 + $0x208] sm:$0xff]
    %v2444 = vld [vmem:[#allocation11 + $0x210] sm:$0xff]
    %v2445 = vld [vmem:[#allocation11 + $0x218] sm:$0xff]
    %v2446 = vld [vmem:[#allocation11 + $0x220] sm:$0xff]
    %v2447 = vld [vmem:[#allocation11 + $0x228] sm:$0xff]
    %v2448 = vld [vmem:[#allocation11 + $0x230] sm:$0xff]
    %v2449 = vld [vmem:[#allocation11 + $0x238] sm:$0xff]
    %v2450 = vld [vmem:[#allocation11 + $0x240] sm:$0xff]
    %v2451 = vld [vmem:[#allocation11 + $0x248] sm:$0xff]
    %v2452 = vld [vmem:[#allocation11 + $0x250] sm:$0xff]
    %v2453 = vld [vmem:[#allocation11 + $0x258] sm:$0xff]
    %v2454 = vld [vmem:[#allocation11 + $0x260] sm:$0xff]
    %v2455 = vld [vmem:[#allocation11 + $0x268] sm:$0xff]
    %v2456 = vld [vmem:[#allocation11 + $0x270] sm:$0xff]
    %v2457 = vld [vmem:[#allocation11 + $0x278] sm:$0xff]
    %v2458 = vld [vmem:[#allocation11 + $0x280] sm:$0xff]
    %v2459 = vld [vmem:[#allocation11 + $0x288] sm:$0xff]
    %v2460 = vld [vmem:[#allocation11 + $0x290] sm:$0xff]
    %v2461 = vld [vmem:[#allocation11 + $0x298] sm:$0xff]
    %v2462 = vld [vmem:[#allocation11 + $0x2a0] sm:$0xff]
    %v2463 = vld [vmem:[#allocation11 + $0x2a8] sm:$0xff]
    %v2464 = vld [vmem:[#allocation11 + $0x2b0] sm:$0xff]
    %v2465 = vld [vmem:[#allocation11 + $0x2b8] sm:$0xff]
    %v2466 = vld [vmem:[#allocation11 + $0x2c0] sm:$0xff]
    %v2467 = vld [vmem:[#allocation11 + $0x2c8] sm:$0xff]
    %v2468 = vld [vmem:[#allocation11 + $0x2d0] sm:$0xff]
    %v2469 = vld [vmem:[#allocation11 + $0x2d8] sm:$0xff]
    %v2470 = vld [vmem:[#allocation11 + $0x2e0] sm:$0xff]
    %v2471 = vld [vmem:[#allocation11 + $0x2e8] sm:$0xff]
    %v2472 = vld [vmem:[#allocation11 + $0x2f0] sm:$0xff]
    %v2473 = vld [vmem:[#allocation11 + $0x2f8] sm:$0xff]
    %v2474 = vld [vmem:[#allocation11 + $0x300] sm:$0xff]
    %v2475 = vld [vmem:[#allocation11 + $0x308] sm:$0xff]
    %v2476 = vld [vmem:[#allocation11 + $0x310] sm:$0xff]
    %v2477 = vld [vmem:[#allocation11 + $0x318] sm:$0xff]
    %v2478 = vld [vmem:[#allocation11 + $0x320] sm:$0xff]
    %v2479 = vld [vmem:[#allocation11 + $0x328] sm:$0xff]
    %v2480 = vld [vmem:[#allocation11 + $0x330] sm:$0xff]
    %v2481 = vld [vmem:[#allocation11 + $0x338] sm:$0xff]
    %v2482 = vld [vmem:[#allocation11 + $0x340] sm:$0xff]
    %v2483 = vld [vmem:[#allocation11 + $0x348] sm:$0xff]
    %v2484 = vld [vmem:[#allocation11 + $0x350] sm:$0xff]
    %v2485 = vld [vmem:[#allocation11 + $0x358] sm:$0xff]
    %v2486 = vld [vmem:[#allocation11 + $0x360] sm:$0xff]
    %v2487 = vld [vmem:[#allocation11 + $0x368] sm:$0xff]
    %v2488 = vld [vmem:[#allocation11 + $0x370] sm:$0xff]
    %v2489 = vld [vmem:[#allocation11 + $0x378] sm:$0xff]
    %v2490 = vld [vmem:[#allocation11 + $0x380] sm:$0xff]
    %v2491 = vld [vmem:[#allocation11 + $0x388] sm:$0xff]
    %v2492 = vld [vmem:[#allocation11 + $0x390] sm:$0xff]
    %v2493 = vld [vmem:[#allocation11 + $0x398] sm:$0xff]
    %v2494 = vld [vmem:[#allocation11 + $0x3a0] sm:$0xff]
    %v2495 = vld [vmem:[#allocation11 + $0x3a8] sm:$0xff]
    %v2496 = vld [vmem:[#allocation11 + $0x3b0] sm:$0xff]
    %v2497 = vld [vmem:[#allocation11 + $0x3b8] sm:$0xff]
    %v2498 = vld [vmem:[#allocation11 + $0x3c0] sm:$0xff]
    %v2499 = vld [vmem:[#allocation11 + $0x3c8] sm:$0xff]
    %v2500 = vld [vmem:[#allocation11 + $0x3d0] sm:$0xff]
    %v2501 = vld [vmem:[#allocation11 + $0x3d8] sm:$0xff]
    %v2502 = vld [vmem:[#allocation11 + $0x3e0] sm:$0xff]
    %v2503 = vld [vmem:[#allocation11 + $0x3e8] sm:$0xff]
    %v2504 = vld [vmem:[#allocation11 + $0x3f0] sm:$0xff]
    %v2505 = vld [vmem:[#allocation11 + $0x3f8] sm:$0xff]
    %v2506 = vld [vmem:[#allocation11 + $0x400] sm:$0xff]
    %v2507 = vld [vmem:[#allocation11 + $0x408] sm:$0xff]
    %v2508 = vld [vmem:[#allocation11 + $0x410] sm:$0xff]
    %v2509 = vld [vmem:[#allocation11 + $0x418] sm:$0xff]
    %v2510 = vld [vmem:[#allocation11 + $0x420] sm:$0xff]
    %v2511 = vld [vmem:[#allocation11 + $0x428] sm:$0xff]
    %v2512 = vld [vmem:[#allocation11 + $0x430] sm:$0xff]
    %v2513 = vld [vmem:[#allocation11 + $0x438] sm:$0xff]
    %v2514 = vld [vmem:[#allocation11 + $0x440] sm:$0xff]
    %v2515 = vld [vmem:[#allocation11 + $0x448] sm:$0xff]
    %v2516 = vld [vmem:[#allocation11 + $0x450] sm:$0xff]
    %v2517 = vld [vmem:[#allocation11 + $0x458] sm:$0xff]
    %v2518 = vld [vmem:[#allocation11 + $0x460] sm:$0xff]
    %v2519 = vld [vmem:[#allocation11 + $0x468] sm:$0xff]
    %v2520 = vld [vmem:[#allocation11 + $0x470] sm:$0xff]
    %v2521 = vld [vmem:[#allocation11 + $0x478] sm:$0xff]
    %v2522 = vld [vmem:[#allocation11 + $0x480] sm:$0xff]
    %v2523 = vld [vmem:[#allocation11 + $0x488] sm:$0xff]
    %v2524 = vld [vmem:[#allocation11 + $0x490] sm:$0xff]
    %v2525 = vld [vmem:[#allocation11 + $0x498] sm:$0xff]
    %v2526 = vld [vmem:[#allocation11 + $0x4a0] sm:$0xff]
    %v2527 = vld [vmem:[#allocation11 + $0x4a8] sm:$0xff]
    %v2528 = vld [vmem:[#allocation11 + $0x4b0] sm:$0xff]
    %v2529 = vld [vmem:[#allocation11 + $0x4b8] sm:$0xff]
    %v2530 = vld [vmem:[#allocation11 + $0x4c0] sm:$0xff]
    %v2531 = vld [vmem:[#allocation11 + $0x4c8] sm:$0xff]
    %v2532 = vld [vmem:[#allocation11 + $0x4d0] sm:$0xff]
    %v2533 = vld [vmem:[#allocation11 + $0x4d8] sm:$0xff]
    %v2534 = vld [vmem:[#allocation11 + $0x4e0] sm:$0xff]
    %v2535 = vld [vmem:[#allocation11 + $0x4e8] sm:$0xff]
    %v2536 = vld [vmem:[#allocation11 + $0x4f0] sm:$0xff]
    %v2537 = vld [vmem:[#allocation11 + $0x4f8] sm:$0xff]
    %v2538 = vld [vmem:[#allocation11 + $0x500] sm:$0xff]
    %v2539 = vld [vmem:[#allocation11 + $0x508] sm:$0xff]
    %v2540 = vld [vmem:[#allocation11 + $0x510] sm:$0xff]
    %v2541 = vld [vmem:[#allocation11 + $0x518] sm:$0xff]
    %v2542 = vld [vmem:[#allocation11 + $0x520] sm:$0xff]
    %v2543 = vld [vmem:[#allocation11 + $0x528] sm:$0xff]
    %v2544 = vld [vmem:[#allocation11 + $0x530] sm:$0xff]
    %v2545 = vld [vmem:[#allocation11 + $0x538] sm:$0xff]
    %v2546 = vld [vmem:[#allocation11 + $0x540] sm:$0xff]
    %v2547 = vld [vmem:[#allocation11 + $0x548] sm:$0xff]
    %v2548 = vld [vmem:[#allocation11 + $0x550] sm:$0xff]
    %v2549 = vld [vmem:[#allocation11 + $0x558] sm:$0xff]
    %v2550 = vld [vmem:[#allocation11 + $0x560] sm:$0xff]
    %v2551 = vld [vmem:[#allocation11 + $0x568] sm:$0xff]
    %v2552 = vld [vmem:[#allocation11 + $0x570] sm:$0xff]
    %v2553 = vld [vmem:[#allocation11 + $0x578] sm:$0xff]
    %v2554 = vld [vmem:[#allocation11 + $0x580] sm:$0xff]
    %v2555 = vld [vmem:[#allocation11 + $0x588] sm:$0xff]
    %v2556 = vld [vmem:[#allocation11 + $0x590] sm:$0xff]
    %v2557 = vld [vmem:[#allocation11 + $0x598] sm:$0xff]
    %v2558 = vld [vmem:[#allocation11 + $0x5a0] sm:$0xff]
    %v2559 = vld [vmem:[#allocation11 + $0x5a8] sm:$0xff]
    %v2560 = vld [vmem:[#allocation11 + $0x5b0] sm:$0xff]
    %v2561 = vld [vmem:[#allocation11 + $0x5b8] sm:$0xff]
    %v2562 = vld [vmem:[#allocation11 + $0x5c0] sm:$0xff]
    %v2563 = vld [vmem:[#allocation11 + $0x5c8] sm:$0xff]
    %v2564 = vld [vmem:[#allocation11 + $0x5d0] sm:$0xff]
    %v2565 = vld [vmem:[#allocation11 + $0x5d8] sm:$0xff]
    %v2566 = vld [vmem:[#allocation11 + $0x5e0] sm:$0xff]
    %v2567 = vld [vmem:[#allocation11 + $0x5e8] sm:$0xff]
    %v2568 = vld [vmem:[#allocation11 + $0x5f0] sm:$0xff]
    %v2569 = vld [vmem:[#allocation11 + $0x5f8] sm:$0xff]
    %v2570 = vld [vmem:[#allocation11 + $0x600] sm:$0xff]
    %v2571 = vld [vmem:[#allocation11 + $0x608] sm:$0xff]
    %v2572 = vld [vmem:[#allocation11 + $0x610] sm:$0xff]
    %v2573 = vld [vmem:[#allocation11 + $0x618] sm:$0xff]
    %v2574 = vld [vmem:[#allocation11 + $0x620] sm:$0xff]
    %v2575 = vld [vmem:[#allocation11 + $0x628] sm:$0xff]
    %v2576 = vld [vmem:[#allocation11 + $0x630] sm:$0xff]
    %v2577 = vld [vmem:[#allocation11 + $0x638] sm:$0xff]
    %v2578 = vld [vmem:[#allocation11 + $0x640] sm:$0xff]
    %v2579 = vld [vmem:[#allocation11 + $0x648] sm:$0xff]
    %v2580 = vld [vmem:[#allocation11 + $0x650] sm:$0xff]
    %v2581 = vld [vmem:[#allocation11 + $0x658] sm:$0xff]
    %v2582 = vld [vmem:[#allocation11 + $0x660] sm:$0xff]
    %v2583 = vld [vmem:[#allocation11 + $0x668] sm:$0xff]
    %v2584 = vld [vmem:[#allocation11 + $0x670] sm:$0xff]
    %v2585 = vld [vmem:[#allocation11 + $0x678] sm:$0xff]
    %v2586 = vld [vmem:[#allocation11 + $0x680] sm:$0xff]
    %v2587 = vld [vmem:[#allocation11 + $0x688] sm:$0xff]
    %v2588 = vld [vmem:[#allocation11 + $0x690] sm:$0xff]
    %v2589 = vld [vmem:[#allocation11 + $0x698] sm:$0xff]
    %v2590 = vld [vmem:[#allocation11 + $0x6a0] sm:$0xff]
    %v2591 = vld [vmem:[#allocation11 + $0x6a8] sm:$0xff]
    %v2592 = vld [vmem:[#allocation11 + $0x6b0] sm:$0xff]
    %v2593 = vld [vmem:[#allocation11 + $0x6b8] sm:$0xff]
    %v2594 = vld [vmem:[#allocation11 + $0x6c0] sm:$0xff]
    %v2595 = vld [vmem:[#allocation11 + $0x6c8] sm:$0xff]
    %v2596 = vld [vmem:[#allocation11 + $0x6d0] sm:$0xff]
    %v2597 = vld [vmem:[#allocation11 + $0x6d8] sm:$0xff]
    %v2598 = vld [vmem:[#allocation11 + $0x6e0] sm:$0xff]
    %v2599 = vld [vmem:[#allocation11 + $0x6e8] sm:$0xff]
    %v2600 = vld [vmem:[#allocation11 + $0x6f0] sm:$0xff]
    %v2601 = vld [vmem:[#allocation11 + $0x6f8] sm:$0xff]
    %v2602 = vld [vmem:[#allocation11 + $0x700] sm:$0xff]
    %v2603 = vld [vmem:[#allocation11 + $0x708] sm:$0xff]
    %v2604 = vld [vmem:[#allocation11 + $0x710] sm:$0xff]
    %v2605 = vld [vmem:[#allocation11 + $0x718] sm:$0xff]
    %v2606 = vld [vmem:[#allocation11 + $0x720] sm:$0xff]
    %v2607 = vld [vmem:[#allocation11 + $0x728] sm:$0xff]
    %v2608 = vld [vmem:[#allocation11 + $0x730] sm:$0xff]
    %v2609 = vld [vmem:[#allocation11 + $0x738] sm:$0xff]
    %v2610 = vld [vmem:[#allocation11 + $0x740] sm:$0xff]
    %v2611 = vld [vmem:[#allocation11 + $0x748] sm:$0xff]
    %v2612 = vld [vmem:[#allocation11 + $0x750] sm:$0xff]
    %v2613 = vld [vmem:[#allocation11 + $0x758] sm:$0xff]
    %v2614 = vld [vmem:[#allocation11 + $0x760] sm:$0xff]
    %v2615 = vld [vmem:[#allocation11 + $0x768] sm:$0xff]
    %v2616 = vld [vmem:[#allocation11 + $0x770] sm:$0xff]
    %v2617 = vld [vmem:[#allocation11 + $0x778] sm:$0xff]
    %v2618 = vld [vmem:[#allocation11 + $0x780] sm:$0xff]
    %v2619 = vld [vmem:[#allocation11 + $0x788] sm:$0xff]
    %v2620 = vld [vmem:[#allocation11 + $0x790] sm:$0xff]
    %v2621 = vld [vmem:[#allocation11 + $0x798] sm:$0xff]
    %v2622 = vld [vmem:[#allocation11 + $0x7a0] sm:$0xff]
    %v2623 = vld [vmem:[#allocation11 + $0x7a8] sm:$0xff]
    %v2624 = vld [vmem:[#allocation11 + $0x7b0] sm:$0xff]
    %v2625 = vld [vmem:[#allocation11 + $0x7b8] sm:$0xff]
    %v2626 = vld [vmem:[#allocation11 + $0x7c0] sm:$0xff]
    %v2627 = vld [vmem:[#allocation11 + $0x7c8] sm:$0xff]
    %v2628 = vld [vmem:[#allocation11 + $0x7d0] sm:$0xff]
    %v2629 = vld [vmem:[#allocation11 + $0x7d8] sm:$0xff]
    %v2630 = vld [vmem:[#allocation11 + $0x7e0] sm:$0xff]
    %v2631 = vld [vmem:[#allocation11 + $0x7e8] sm:$0xff]
    %v2632 = vld [vmem:[#allocation11 + $0x7f0] sm:$0xff]
    %v2633 = vld [vmem:[#allocation11 + $0x7f8] sm:$0xff]
    %v2634 = vld [vmem:[#allocation11 + $0x800] sm:$0xff]
    %v2635 = vld [vmem:[#allocation11 + $0x808] sm:$0xff]
    %v2636 = vld [vmem:[#allocation11 + $0x810] sm:$0xff]
    %v2637 = vld [vmem:[#allocation11 + $0x818] sm:$0xff]
    %v2638 = vld [vmem:[#allocation11 + $0x820] sm:$0xff]
    %v2639 = vld [vmem:[#allocation11 + $0x828] sm:$0xff]
    %v2640 = vld [vmem:[#allocation11 + $0x830] sm:$0xff]
    %v2641 = vld [vmem:[#allocation11 + $0x838] sm:$0xff]
    %v2642 = vld [vmem:[#allocation11 + $0x840] sm:$0xff]
    %v2643 = vld [vmem:[#allocation11 + $0x848] sm:$0xff]
    %v2644 = vld [vmem:[#allocation11 + $0x850] sm:$0xff]
    %v2645 = vld [vmem:[#allocation11 + $0x858] sm:$0xff]
    %v2646 = vld [vmem:[#allocation11 + $0x860] sm:$0xff]
    %v2647 = vld [vmem:[#allocation11 + $0x868] sm:$0xff]
    %v2648 = vld [vmem:[#allocation11 + $0x870] sm:$0xff]
    %v2649 = vld [vmem:[#allocation11 + $0x878] sm:$0xff]
    %v2650 = vld [vmem:[#allocation11 + $0x880] sm:$0xff]
    %v2651 = vld [vmem:[#allocation11 + $0x888] sm:$0xff]
    %v2652 = vld [vmem:[#allocation11 + $0x890] sm:$0xff]
    %v2653 = vld [vmem:[#allocation11 + $0x898] sm:$0xff]
    %v2654 = vld [vmem:[#allocation11 + $0x8a0] sm:$0xff]
    %v2655 = vld [vmem:[#allocation11 + $0x8a8] sm:$0xff]
    %v2656 = vld [vmem:[#allocation11 + $0x8b0] sm:$0xff]
    %v2657 = vld [vmem:[#allocation11 + $0x8b8] sm:$0xff]
    %v2658 = vld [vmem:[#allocation11 + $0x8c0] sm:$0xff]
    %v2659 = vld [vmem:[#allocation11 + $0x8c8] sm:$0xff]
    %v2660 = vld [vmem:[#allocation11 + $0x8d0] sm:$0xff]
    %v2661 = vld [vmem:[#allocation11 + $0x8d8] sm:$0xff]
    %v2662 = vld [vmem:[#allocation11 + $0x8e0] sm:$0xff]
    %v2663 = vld [vmem:[#allocation11 + $0x8e8] sm:$0xff]
    %v2664 = vld [vmem:[#allocation11 + $0x8f0] sm:$0xff]
    %v2665 = vld [vmem:[#allocation11 + $0x8f8] sm:$0xff]
    %v2666 = vld [vmem:[#allocation11 + $0x900] sm:$0xff]
    %v2667 = vld [vmem:[#allocation11 + $0x908] sm:$0xff]
    %v2668 = vld [vmem:[#allocation11 + $0x910] sm:$0xff]
    %v2669 = vld [vmem:[#allocation11 + $0x918] sm:$0xff]
    %v2670 = vld [vmem:[#allocation11 + $0x920] sm:$0xff]
    %v2671 = vld [vmem:[#allocation11 + $0x928] sm:$0xff]
    %v2672 = vld [vmem:[#allocation11 + $0x930] sm:$0xff]
    %v2673 = vld [vmem:[#allocation11 + $0x938] sm:$0xff]
    %v2674 = vld [vmem:[#allocation11 + $0x940] sm:$0xff]
    %v2675 = vld [vmem:[#allocation11 + $0x948] sm:$0xff]
    %v2676 = vld [vmem:[#allocation11 + $0x950] sm:$0xff]
    %v2677 = vld [vmem:[#allocation11 + $0x958] sm:$0xff]
    %v2678 = vld [vmem:[#allocation11 + $0x960] sm:$0xff]
    %v2679 = vld [vmem:[#allocation11 + $0x968] sm:$0xff]
    %v2680 = vld [vmem:[#allocation11 + $0x970] sm:$0xff]
    %v2681 = vld [vmem:[#allocation11 + $0x978] sm:$0xff]
    %v2682 = vld [vmem:[#allocation11 + $0x980] sm:$0xff]
    %v2683 = vld [vmem:[#allocation11 + $0x988] sm:$0xff]
    %v2684 = vld [vmem:[#allocation11 + $0x990] sm:$0xff]
    %v2685 = vld [vmem:[#allocation11 + $0x998] sm:$0xff]
    %v2686 = vld [vmem:[#allocation11 + $0x9a0] sm:$0xff]
    %v2687 = vld [vmem:[#allocation11 + $0x9a8] sm:$0xff]
    %v2688 = vld [vmem:[#allocation11 + $0x9b0] sm:$0xff]
    %v2689 = vld [vmem:[#allocation11 + $0x9b8] sm:$0xff]
    %v2690 = vld [vmem:[#allocation11 + $0x9c0] sm:$0xff]
    %v2691 = vld [vmem:[#allocation11 + $0x9c8] sm:$0xff]
    %v2692 = vld [vmem:[#allocation11 + $0x9d0] sm:$0xff]
    %v2693 = vld [vmem:[#allocation11 + $0x9d8] sm:$0xff]
    %v2694 = vld [vmem:[#allocation11 + $0x9e0] sm:$0xff]
    %v2695 = vld [vmem:[#allocation11 + $0x9e8] sm:$0xff]
    %v2696 = vld [vmem:[#allocation11 + $0x9f0] sm:$0xff]
    %v2697 = vld [vmem:[#allocation11 + $0x9f8] sm:$0xff]
    %v2698 = vld [vmem:[#allocation11 + $0xa00] sm:$0xff]
    %v2699 = vld [vmem:[#allocation11 + $0xa08] sm:$0xff]
    %v2700 = vld [vmem:[#allocation11 + $0xa10] sm:$0xff]
    %v2701 = vld [vmem:[#allocation11 + $0xa18] sm:$0xff]
    %v2702 = vld [vmem:[#allocation11 + $0xa20] sm:$0xff]
    %v2703 = vld [vmem:[#allocation11 + $0xa28] sm:$0xff]
    %v2704 = vld [vmem:[#allocation11 + $0xa30] sm:$0xff]
    %v2705 = vld [vmem:[#allocation11 + $0xa38] sm:$0xff]
    %v2706 = vld [vmem:[#allocation11 + $0xa40] sm:$0xff]
    %v2707 = vld [vmem:[#allocation11 + $0xa48] sm:$0xff]
    %v2708 = vld [vmem:[#allocation11 + $0xa50] sm:$0xff]
    %v2709 = vld [vmem:[#allocation11 + $0xa58] sm:$0xff]
    %v2710 = vld [vmem:[#allocation11 + $0xa60] sm:$0xff]
    %v2711 = vld [vmem:[#allocation11 + $0xa68] sm:$0xff]
    %v2712 = vld [vmem:[#allocation11 + $0xa70] sm:$0xff]
    %v2713 = vld [vmem:[#allocation11 + $0xa78] sm:$0xff]
    %v2714 = vld [vmem:[#allocation11 + $0xa80] sm:$0xff]
    %v2715 = vld [vmem:[#allocation11 + $0xa88] sm:$0xff]
    %v2716 = vld [vmem:[#allocation11 + $0xa90] sm:$0xff]
    %v2717 = vld [vmem:[#allocation11 + $0xa98] sm:$0xff]
    %v2718 = vld [vmem:[#allocation11 + $0xaa0] sm:$0xff]
    %v2719 = vld [vmem:[#allocation11 + $0xaa8] sm:$0xff]
    %v2720 = vld [vmem:[#allocation11 + $0xab0] sm:$0xff]
    %v2721 = vld [vmem:[#allocation11 + $0xab8] sm:$0xff]
    %v2722 = vld [vmem:[#allocation11 + $0xac0] sm:$0xff]
    %v2723 = vld [vmem:[#allocation11 + $0xac8] sm:$0xff]
    %v2724 = vld [vmem:[#allocation11 + $0xad0] sm:$0xff]
    %v2725 = vld [vmem:[#allocation11 + $0xad8] sm:$0xff]
    %v2726 = vld [vmem:[#allocation11 + $0xae0] sm:$0xff]
    %v2727 = vld [vmem:[#allocation11 + $0xae8] sm:$0xff]
    %v2728 = vld [vmem:[#allocation11 + $0xaf0] sm:$0xff]
    %v2729 = vld [vmem:[#allocation11 + $0xaf8] sm:$0xff]
    %v2730 = vld [vmem:[#allocation11 + $0xb00] sm:$0xff]
    %v2731 = vld [vmem:[#allocation11 + $0xb08] sm:$0xff]
    %v2732 = vld [vmem:[#allocation11 + $0xb10] sm:$0xff]
    %v2733 = vld [vmem:[#allocation11 + $0xb18] sm:$0xff]
    %v2734 = vld [vmem:[#allocation11 + $0xb20] sm:$0xff]
    %v2735 = vld [vmem:[#allocation11 + $0xb28] sm:$0xff]
    %v2736 = vld [vmem:[#allocation11 + $0xb30] sm:$0xff]
    %v2737 = vld [vmem:[#allocation11 + $0xb38] sm:$0xff]
    %v2738 = vld [vmem:[#allocation11 + $0xb40] sm:$0xff]
    %v2739 = vld [vmem:[#allocation11 + $0xb48] sm:$0xff]
    %v2740 = vld [vmem:[#allocation11 + $0xb50] sm:$0xff]
    %v2741 = vld [vmem:[#allocation11 + $0xb58] sm:$0xff]
    %v2742 = vld [vmem:[#allocation11 + $0xb60] sm:$0xff]
    %v2743 = vld [vmem:[#allocation11 + $0xb68] sm:$0xff]
    %v2744 = vld [vmem:[#allocation11 + $0xb70] sm:$0xff]
    %v2745 = vld [vmem:[#allocation11 + $0xb78] sm:$0xff]
    %v2746 = vld [vmem:[#allocation11 + $0xb80] sm:$0xff]
    %v2747 = vld [vmem:[#allocation11 + $0xb88] sm:$0xff]
    %v2748 = vld [vmem:[#allocation11 + $0xb90] sm:$0xff]
    %v2749 = vld [vmem:[#allocation11 + $0xb98] sm:$0xff]
    %v2750 = vld [vmem:[#allocation11 + $0xba0] sm:$0xff]
    %v2751 = vld [vmem:[#allocation11 + $0xba8] sm:$0xff]
    %v2752 = vld [vmem:[#allocation11 + $0xbb0] sm:$0xff]
    %v2753 = vld [vmem:[#allocation11 + $0xbb8] sm:$0xff]
    %v2754 = vld [vmem:[#allocation11 + $0xbc0] sm:$0xff]
    %v2755 = vld [vmem:[#allocation11 + $0xbc8] sm:$0xff]
    %v2756 = vld [vmem:[#allocation11 + $0xbd0] sm:$0xff]
    %v2757 = vld [vmem:[#allocation11 + $0xbd8] sm:$0xff]
    %v2758 = vld [vmem:[#allocation11 + $0xbe0] sm:$0xff]
    %v2759 = vld [vmem:[#allocation11 + $0xbe8] sm:$0xff]
    %v2760 = vld [vmem:[#allocation11 + $0xbf0] sm:$0xff]
    %v2761 = vld [vmem:[#allocation11 + $0xbf8] sm:$0xff]
    %v2762 = vld [vmem:[#allocation11 + $0xc00] sm:$0xff]
    %v2763 = vld [vmem:[#allocation11 + $0xc08] sm:$0xff]
    %v2764 = vld [vmem:[#allocation11 + $0xc10] sm:$0xff]
    %v2765 = vld [vmem:[#allocation11 + $0xc18] sm:$0xff]
    %v2766 = vld [vmem:[#allocation11 + $0xc20] sm:$0xff]
    %v2767 = vld [vmem:[#allocation11 + $0xc28] sm:$0xff]
    %v2768 = vld [vmem:[#allocation11 + $0xc30] sm:$0xff]
    %v2769 = vld [vmem:[#allocation11 + $0xc38] sm:$0xff]
    %v2770 = vld [vmem:[#allocation11 + $0xc40] sm:$0xff]
    %v2771 = vld [vmem:[#allocation11 + $0xc48] sm:$0xff]
    %v2772 = vld [vmem:[#allocation11 + $0xc50] sm:$0xff]
    %v2773 = vld [vmem:[#allocation11 + $0xc58] sm:$0xff]
    %v2774 = vld [vmem:[#allocation11 + $0xc60] sm:$0xff]
    %v2775 = vld [vmem:[#allocation11 + $0xc68] sm:$0xff]
    %v2776 = vld [vmem:[#allocation11 + $0xc70] sm:$0xff]
    %v2777 = vld [vmem:[#allocation11 + $0xc78] sm:$0xff]
    %v2778 = vld [vmem:[#allocation11 + $0xc80] sm:$0xff]
    %v2779 = vld [vmem:[#allocation11 + $0xc88] sm:$0xff]
    %v2780 = vld [vmem:[#allocation11 + $0xc90] sm:$0xff]
    %v2781 = vld [vmem:[#allocation11 + $0xc98] sm:$0xff]
    %v2782 = vld [vmem:[#allocation11 + $0xca0] sm:$0xff]
    %v2783 = vld [vmem:[#allocation11 + $0xca8] sm:$0xff]
    %v2784 = vld [vmem:[#allocation11 + $0xcb0] sm:$0xff]
    %v2785 = vld [vmem:[#allocation11 + $0xcb8] sm:$0xff]
    %v2786 = vld [vmem:[#allocation11 + $0xcc0] sm:$0xff]
    %v2787 = vld [vmem:[#allocation11 + $0xcc8] sm:$0xff]
    %v2788 = vld [vmem:[#allocation11 + $0xcd0] sm:$0xff]
    %v2789 = vld [vmem:[#allocation11 + $0xcd8] sm:$0xff]
    %v2790 = vld [vmem:[#allocation11 + $0xce0] sm:$0xff]
    %v2791 = vld [vmem:[#allocation11 + $0xce8] sm:$0xff]
    %v2792 = vld [vmem:[#allocation11 + $0xcf0] sm:$0xff]
    %v2793 = vld [vmem:[#allocation11 + $0xcf8] sm:$0xff]
    %v2794 = vld [vmem:[#allocation11 + $0xd00] sm:$0xff]
    %v2795 = vld [vmem:[#allocation11 + $0xd08] sm:$0xff]
    %v2796 = vld [vmem:[#allocation11 + $0xd10] sm:$0xff]
    %v2797 = vld [vmem:[#allocation11 + $0xd18] sm:$0xff]
    %v2798 = vld [vmem:[#allocation11 + $0xd20] sm:$0xff]
    %v2799 = vld [vmem:[#allocation11 + $0xd28] sm:$0xff]
    %v2800 = vld [vmem:[#allocation11 + $0xd30] sm:$0xff]
    %v2801 = vld [vmem:[#allocation11 + $0xd38] sm:$0xff]
    %v2802 = vld [vmem:[#allocation11 + $0xd40] sm:$0xff]
    %v2803 = vld [vmem:[#allocation11 + $0xd48] sm:$0xff]
    %v2804 = vld [vmem:[#allocation11 + $0xd50] sm:$0xff]
    %v2805 = vld [vmem:[#allocation11 + $0xd58] sm:$0xff]
    %v2806 = vld [vmem:[#allocation11 + $0xd60] sm:$0xff]
    %v2807 = vld [vmem:[#allocation11 + $0xd68] sm:$0xff]
    %v2808 = vld [vmem:[#allocation11 + $0xd70] sm:$0xff]
    %v2809 = vld [vmem:[#allocation11 + $0xd78] sm:$0xff]
    %v2810 = vld [vmem:[#allocation11 + $0xd80] sm:$0xff]
    %v2811 = vld [vmem:[#allocation11 + $0xd88] sm:$0xff]
    %v2812 = vld [vmem:[#allocation11 + $0xd90] sm:$0xff]
    %v2813 = vld [vmem:[#allocation11 + $0xd98] sm:$0xff]
    %v2814 = vld [vmem:[#allocation11 + $0xda0] sm:$0xff]
    %v2815 = vld [vmem:[#allocation11 + $0xda8] sm:$0xff]
    %v2816 = vld [vmem:[#allocation11 + $0xdb0] sm:$0xff]
    %v2817 = vld [vmem:[#allocation11 + $0xdb8] sm:$0xff]
    %v2818 = vld [vmem:[#allocation11 + $0xdc0] sm:$0xff]
    %v2819 = vld [vmem:[#allocation11 + $0xdc8] sm:$0xff]
    %v2820 = vld [vmem:[#allocation11 + $0xdd0] sm:$0xff]
    %v2821 = vld [vmem:[#allocation11 + $0xdd8] sm:$0xff]
    %v2822 = vld [vmem:[#allocation11 + $0xde0] sm:$0xff]
    %v2823 = vld [vmem:[#allocation11 + $0xde8] sm:$0xff]
    %v2824 = vld [vmem:[#allocation11 + $0xdf0] sm:$0xff]
    %v2825 = vld [vmem:[#allocation11 + $0xdf8] sm:$0xff]
    %v2826 = vld [vmem:[#allocation11 + $0xe00] sm:$0xff]
    %v2827 = vld [vmem:[#allocation11 + $0xe08] sm:$0xff]
    %v2828 = vld [vmem:[#allocation11 + $0xe10] sm:$0xff]
    %v2829 = vld [vmem:[#allocation11 + $0xe18] sm:$0xff]
    %v2830 = vld [vmem:[#allocation11 + $0xe20] sm:$0xff]
    %v2831 = vld [vmem:[#allocation11 + $0xe28] sm:$0xff]
    %v2832 = vld [vmem:[#allocation11 + $0xe30] sm:$0xff]
    %v2833 = vld [vmem:[#allocation11 + $0xe38] sm:$0xff]
    %v2834 = vld [vmem:[#allocation11 + $0xe40] sm:$0xff]
    %v2835 = vld [vmem:[#allocation11 + $0xe48] sm:$0xff]
    %v2836 = vld [vmem:[#allocation11 + $0xe50] sm:$0xff]
    %v2837 = vld [vmem:[#allocation11 + $0xe58] sm:$0xff]
    %v2838 = vld [vmem:[#allocation11 + $0xe60] sm:$0xff]
    %v2839 = vld [vmem:[#allocation11 + $0xe68] sm:$0xff]
    %v2840 = vld [vmem:[#allocation11 + $0xe70] sm:$0xff]
    %v2841 = vld [vmem:[#allocation11 + $0xe78] sm:$0xff]
    %v2842 = vld [vmem:[#allocation11 + $0xe80] sm:$0xff]
    %v2843 = vld [vmem:[#allocation11 + $0xe88] sm:$0xff]
    %v2844 = vld [vmem:[#allocation11 + $0xe90] sm:$0xff]
    %v2845 = vld [vmem:[#allocation11 + $0xe98] sm:$0xff]
    %v2846 = vld [vmem:[#allocation11 + $0xea0] sm:$0xff]
    %v2847 = vld [vmem:[#allocation11 + $0xea8] sm:$0xff]
    %v2848 = vld [vmem:[#allocation11 + $0xeb0] sm:$0xff]
    %v2849 = vld [vmem:[#allocation11 + $0xeb8] sm:$0xff]
    %v2850 = vld [vmem:[#allocation11 + $0xec0] sm:$0xff]
    %v2851 = vld [vmem:[#allocation11 + $0xec8] sm:$0xff]
    %v2852 = vld [vmem:[#allocation11 + $0xed0] sm:$0xff]
    %v2853 = vld [vmem:[#allocation11 + $0xed8] sm:$0xff]
    %v2854 = vld [vmem:[#allocation11 + $0xee0] sm:$0xff]
    %v2855 = vld [vmem:[#allocation11 + $0xee8] sm:$0xff]
    %v2856 = vld [vmem:[#allocation11 + $0xef0] sm:$0xff]
    %v2857 = vld [vmem:[#allocation11 + $0xef8] sm:$0xff]
    %v2858 = vld [vmem:[#allocation11 + $0xf00] sm:$0xff]
    %v2859 = vld [vmem:[#allocation11 + $0xf08] sm:$0xff]
    %v2860 = vld [vmem:[#allocation11 + $0xf10] sm:$0xff]
    %v2861 = vld [vmem:[#allocation11 + $0xf18] sm:$0xff]
    %v2862 = vld [vmem:[#allocation11 + $0xf20] sm:$0xff]
    %v2863 = vld [vmem:[#allocation11 + $0xf28] sm:$0xff]
    %v2864 = vld [vmem:[#allocation11 + $0xf30] sm:$0xff]
    %v2865 = vld [vmem:[#allocation11 + $0xf38] sm:$0xff]
    %v2866 = vld [vmem:[#allocation11 + $0xf40] sm:$0xff]
    %v2867 = vld [vmem:[#allocation11 + $0xf48] sm:$0xff]
    %v2868 = vld [vmem:[#allocation11 + $0xf50] sm:$0xff]
    %v2869 = vld [vmem:[#allocation11 + $0xf58] sm:$0xff]
    %v2870 = vld [vmem:[#allocation11 + $0xf60] sm:$0xff]
    %v2871 = vld [vmem:[#allocation11 + $0xf68] sm:$0xff]
    %v2872 = vld [vmem:[#allocation11 + $0xf70] sm:$0xff]
    %v2873 = vld [vmem:[#allocation11 + $0xf78] sm:$0xff]
    %v2874 = vld [vmem:[#allocation11 + $0xf80] sm:$0xff]
    %v2875 = vld [vmem:[#allocation11 + $0xf88] sm:$0xff]
    %v2876 = vld [vmem:[#allocation11 + $0xf90] sm:$0xff]
    %v2877 = vld [vmem:[#allocation11 + $0xf98] sm:$0xff]
    %v2878 = vld [vmem:[#allocation11 + $0xfa0] sm:$0xff]
    %v2879 = vld [vmem:[#allocation11 + $0xfa8] sm:$0xff]
    %v2880 = vld [vmem:[#allocation11 + $0xfb0] sm:$0xff]
    %v2881 = vld [vmem:[#allocation11 + $0xfb8] sm:$0xff]
    %v2882 = vld [vmem:[#allocation11 + $0xfc0] sm:$0xff]
    %v2883 = vld [vmem:[#allocation11 + $0xfc8] sm:$0xff]
    %v2884 = vld [vmem:[#allocation11 + $0xfd0] sm:$0xff]
    %v2885 = vld [vmem:[#allocation11 + $0xfd8] sm:$0xff]
    %v2886 = vld [vmem:[#allocation11 + $0xfe0] sm:$0xff]
    %v2887 = vld [vmem:[#allocation11 + $0xfe8] sm:$0xff]
    %v2888 = vld [vmem:[#allocation11 + $0xff0] sm:$0xff]
    %v2889 = vld [vmem:[#allocation11 + $0xff8] sm:$0xff]
    %v2890 = vld [vmem:[#allocation11 + $0x1000] sm:$0xff]
    %v2891 = vld [vmem:[#allocation11 + $0x1008] sm:$0xff]
    %v2892 = vld [vmem:[#allocation11 + $0x1010] sm:$0xff]
    %v2893 = vld [vmem:[#allocation11 + $0x1018] sm:$0xff]
    %v2894 = vld [vmem:[#allocation11 + $0x1020] sm:$0xff]
    %v2895 = vld [vmem:[#allocation11 + $0x1028] sm:$0xff]
    %v2896 = vld [vmem:[#allocation11 + $0x1030] sm:$0xff]
    %v2897 = vld [vmem:[#allocation11 + $0x1038] sm:$0xff]
    %v2898 = vld [vmem:[#allocation11 + $0x1040] sm:$0xff]
    %v2899 = vld [vmem:[#allocation11 + $0x1048] sm:$0xff]
    %v2900 = vld [vmem:[#allocation11 + $0x1050] sm:$0xff]
    %v2901 = vld [vmem:[#allocation11 + $0x1058] sm:$0xff]
    %v2902 = vld [vmem:[#allocation11 + $0x1060] sm:$0xff]
    %v2903 = vld [vmem:[#allocation11 + $0x1068] sm:$0xff]
    %v2904 = vld [vmem:[#allocation11 + $0x1070] sm:$0xff]
    %v2905 = vld [vmem:[#allocation11 + $0x1078] sm:$0xff]
    %v2906 = vld [vmem:[#allocation11 + $0x1080] sm:$0xff]
    %v2907 = vld [vmem:[#allocation11 + $0x1088] sm:$0xff]
    %v2908 = vld [vmem:[#allocation11 + $0x1090] sm:$0xff]
    %v2909 = vld [vmem:[#allocation11 + $0x1098] sm:$0xff]
    %v2910 = vld [vmem:[#allocation11 + $0x10a0] sm:$0xff]
    %v2911 = vld [vmem:[#allocation11 + $0x10a8] sm:$0xff]
    %v2912 = vld [vmem:[#allocation11 + $0x10b0] sm:$0xff]
    %v2913 = vld [vmem:[#allocation11 + $0x10b8] sm:$0xff]
    %v2914 = vld [vmem:[#allocation11 + $0x10c0] sm:$0xff]
    %v2915 = vld [vmem:[#allocation11 + $0x10c8] sm:$0xff]
    %v2916 = vld [vmem:[#allocation11 + $0x10d0] sm:$0xff]
    %v2917 = vld [vmem:[#allocation11 + $0x10d8] sm:$0xff]
    %v2918 = vld [vmem:[#allocation11 + $0x10e0] sm:$0xff]
    %v2919 = vld [vmem:[#allocation11 + $0x10e8] sm:$0xff]
    %v2920 = vld [vmem:[#allocation11 + $0x10f0] sm:$0xff]
    %v2921 = vld [vmem:[#allocation11 + $0x10f8] sm:$0xff]
    %v2922 = vld [vmem:[#allocation11 + $0x1100] sm:$0xff]
    %v2923 = vld [vmem:[#allocation11 + $0x1108] sm:$0xff]
    %v2924 = vld [vmem:[#allocation11 + $0x1110] sm:$0xff]
    %v2925 = vld [vmem:[#allocation11 + $0x1118] sm:$0xff]
    %v2926 = vld [vmem:[#allocation11 + $0x1120] sm:$0xff]
    %v2927 = vld [vmem:[#allocation11 + $0x1128] sm:$0xff]
    %v2928 = vld [vmem:[#allocation11 + $0x1130] sm:$0xff]
    %v2929 = vld [vmem:[#allocation11 + $0x1138] sm:$0xff]
    %v2930 = vld [vmem:[#allocation11 + $0x1140] sm:$0xff]
    %v2931 = vld [vmem:[#allocation11 + $0x1148] sm:$0xff]
    %v2932 = vld [vmem:[#allocation11 + $0x1150] sm:$0xff]
    %v2933 = vld [vmem:[#allocation11 + $0x1158] sm:$0xff]
    %v2934 = vld [vmem:[#allocation11 + $0x1160] sm:$0xff]
    %v2935 = vld [vmem:[#allocation11 + $0x1168] sm:$0xff]
    %v2936 = vld [vmem:[#allocation11 + $0x1170] sm:$0xff]
    %v2937 = vld [vmem:[#allocation11 + $0x1178] sm:$0xff]
    %v2938 = vld [vmem:[#allocation11 + $0x1180] sm:$0xff]
    %v2939 = vld [vmem:[#allocation11 + $0x1188] sm:$0xff]
    %v2940 = vld [vmem:[#allocation11 + $0x1190] sm:$0xff]
    %v2941 = vld [vmem:[#allocation11 + $0x1198] sm:$0xff]
    %v2942 = vld [vmem:[#allocation11 + $0x11a0] sm:$0xff]
    %v2943 = vld [vmem:[#allocation11 + $0x11a8] sm:$0xff]
    %v2944 = vld [vmem:[#allocation11 + $0x11b0] sm:$0xff]
    %v2945 = vld [vmem:[#allocation11 + $0x11b8] sm:$0xff]
    %v2946 = vld [vmem:[#allocation11 + $0x11c0] sm:$0xff]
    %v2947 = vld [vmem:[#allocation11 + $0x11c8] sm:$0xff]
    %v2948 = vld [vmem:[#allocation11 + $0x11d0] sm:$0xff]
    %v2949 = vld [vmem:[#allocation11 + $0x11d8] sm:$0xff]
    %v2950 = vld [vmem:[#allocation11 + $0x11e0] sm:$0xff]
    %v2951 = vld [vmem:[#allocation11 + $0x11e8] sm:$0xff]
    %v2952 = vld [vmem:[#allocation11 + $0x11f0] sm:$0xff]
    %v2953 = vld [vmem:[#allocation11 + $0x11f8] sm:$0xff]
    %v2954 = vld [vmem:[#allocation11 + $0x1200] sm:$0xff]
    %v2955 = vld [vmem:[#allocation11 + $0x1208] sm:$0xff]
    %v2956 = vld [vmem:[#allocation11 + $0x1210] sm:$0xff]
    %v2957 = vld [vmem:[#allocation11 + $0x1218] sm:$0xff]
    %v2958 = vld [vmem:[#allocation11 + $0x1220] sm:$0xff]
    %v2959 = vld [vmem:[#allocation11 + $0x1228] sm:$0xff]
    %v2960 = vld [vmem:[#allocation11 + $0x1230] sm:$0xff]
    %v2961 = vld [vmem:[#allocation11 + $0x1238] sm:$0xff]
    %v2962 = vld [vmem:[#allocation11 + $0x1240] sm:$0xff]
    %v2963 = vld [vmem:[#allocation11 + $0x1248] sm:$0xff]
    %v2964 = vld [vmem:[#allocation11 + $0x1250] sm:$0xff]
    %v2965 = vld [vmem:[#allocation11 + $0x1258] sm:$0xff]
    %v2966 = vld [vmem:[#allocation11 + $0x1260] sm:$0xff]
    %v2967 = vld [vmem:[#allocation11 + $0x1268] sm:$0xff]
    %v2968 = vld [vmem:[#allocation11 + $0x1270] sm:$0xff]
    %v2969 = vld [vmem:[#allocation11 + $0x1278] sm:$0xff]
    %v2970 = vld [vmem:[#allocation11 + $0x1280] sm:$0xff]
    %v2971 = vld [vmem:[#allocation11 + $0x1288] sm:$0xff]
    %v2972 = vld [vmem:[#allocation11 + $0x1290] sm:$0xff]
    %v2973 = vld [vmem:[#allocation11 + $0x1298] sm:$0xff]
    %v2974 = vld [vmem:[#allocation11 + $0x12a0] sm:$0xff]
    %v2975 = vld [vmem:[#allocation11 + $0x12a8] sm:$0xff]
    %v2976 = vld [vmem:[#allocation11 + $0x12b0] sm:$0xff]
    %v2977 = vld [vmem:[#allocation11 + $0x12b8] sm:$0xff]
    %v2978 = vld [vmem:[#allocation11 + $0x12c0] sm:$0xff]
    %v2979 = vld [vmem:[#allocation11 + $0x12c8] sm:$0xff]
    %v2980 = vld [vmem:[#allocation11 + $0x12d0] sm:$0xff]
    %v2981 = vld [vmem:[#allocation11 + $0x12d8] sm:$0xff]
    %v2982 = vld [vmem:[#allocation11 + $0x12e0] sm:$0xff]
    %v2983 = vld [vmem:[#allocation11 + $0x12e8] sm:$0xff]
    %v2984 = vld [vmem:[#allocation11 + $0x12f0] sm:$0xff]
    %v2985 = vld [vmem:[#allocation11 + $0x12f8] sm:$0xff]
    %v2986 = vld [vmem:[#allocation11 + $0x1300] sm:$0xff]
    %v2987 = vld [vmem:[#allocation11 + $0x1308] sm:$0xff]
    %v2988 = vld [vmem:[#allocation11 + $0x1310] sm:$0xff]
    %v2989 = vld [vmem:[#allocation11 + $0x1318] sm:$0xff]
    %v2990 = vld [vmem:[#allocation11 + $0x1320] sm:$0xff]
    %v2991 = vld [vmem:[#allocation11 + $0x1328] sm:$0xff]
    %v2992 = vld [vmem:[#allocation11 + $0x1330] sm:$0xff]
    %v2993 = vld [vmem:[#allocation11 + $0x1338] sm:$0xff]
    %v2994 = vld [vmem:[#allocation11 + $0x1340] sm:$0xff]
    %v2995 = vld [vmem:[#allocation11 + $0x1348] sm:$0xff]
    %v2996 = vld [vmem:[#allocation11 + $0x1350] sm:$0xff]
    %v2997 = vld [vmem:[#allocation11 + $0x1358] sm:$0xff]
    %v2998 = vld [vmem:[#allocation11 + $0x1360] sm:$0xff]
    %v2999 = vld [vmem:[#allocation11 + $0x1368] sm:$0xff]
    %v3000 = vld [vmem:[#allocation11 + $0x1370] sm:$0xff]
    %v3001 = vld [vmem:[#allocation11 + $0x1378] sm:$0xff]
    %v3002 = vld [vmem:[#allocation11 + $0x1380] sm:$0xff]
    %v3003 = vld [vmem:[#allocation11 + $0x1388] sm:$0xff]
    %v3004 = vld [vmem:[#allocation11 + $0x1390] sm:$0xff]
    %v3005 = vld [vmem:[#allocation11 + $0x1398] sm:$0xff]
    %v3006 = vld [vmem:[#allocation11 + $0x13a0] sm:$0xff]
    %v3007 = vld [vmem:[#allocation11 + $0x13a8] sm:$0xff]
    %v3008 = vld [vmem:[#allocation11 + $0x13b0] sm:$0xff]
    %v3009 = vld [vmem:[#allocation11 + $0x13b8] sm:$0xff]
    %v3010 = vld [vmem:[#allocation11 + $0x13c0] sm:$0xff]
    %v3011 = vld [vmem:[#allocation11 + $0x13c8] sm:$0xff]
    %v3012 = vld [vmem:[#allocation11 + $0x13d0] sm:$0xff]
    %v3013 = vld [vmem:[#allocation11 + $0x13d8] sm:$0xff]
    %v3014 = vld [vmem:[#allocation11 + $0x13e0] sm:$0xff]
    %v3015 = vld [vmem:[#allocation11 + $0x13e8] sm:$0xff]
    %v3016 = vld [vmem:[#allocation11 + $0x13f0] sm:$0xff]
    %v3017 = vld [vmem:[#allocation11 + $0x13f8] sm:$0xff]
    %v3018 = vld [vmem:[#allocation11 + $0x1400] sm:$0xff]
    %v3019 = vld [vmem:[#allocation11 + $0x1408] sm:$0xff]
    %v3020 = vld [vmem:[#allocation11 + $0x1410] sm:$0xff]
    %v3021 = vld [vmem:[#allocation11 + $0x1418] sm:$0xff]
    %v3022 = vld [vmem:[#allocation11 + $0x1420] sm:$0xff]
    %v3023 = vld [vmem:[#allocation11 + $0x1428] sm:$0xff]
    %v3024 = vld [vmem:[#allocation11 + $0x1430] sm:$0xff]
    %v3025 = vld [vmem:[#allocation11 + $0x1438] sm:$0xff]
    %v3026 = vld [vmem:[#allocation11 + $0x1440] sm:$0xff]
    %v3027 = vld [vmem:[#allocation11 + $0x1448] sm:$0xff]
    %v3028 = vld [vmem:[#allocation11 + $0x1450] sm:$0xff]
    %v3029 = vld [vmem:[#allocation11 + $0x1458] sm:$0xff]
    %v3030 = vld [vmem:[#allocation11 + $0x1460] sm:$0xff]
    %v3031 = vld [vmem:[#allocation11 + $0x1468] sm:$0xff]
    %v3032 = vld [vmem:[#allocation11 + $0x1470] sm:$0xff]
    %v3033 = vld [vmem:[#allocation11 + $0x1478] sm:$0xff]
    %v3034 = vld [vmem:[#allocation11 + $0x1480] sm:$0xff]
    %v3035 = vld [vmem:[#allocation11 + $0x1488] sm:$0xff]
    %v3036 = vld [vmem:[#allocation11 + $0x1490] sm:$0xff]
    %v3037 = vld [vmem:[#allocation11 + $0x1498] sm:$0xff]
    %v3038 = vld [vmem:[#allocation11 + $0x14a0] sm:$0xff]
    %v3039 = vld [vmem:[#allocation11 + $0x14a8] sm:$0xff]
    %v3040 = vld [vmem:[#allocation11 + $0x14b0] sm:$0xff]
    %v3041 = vld [vmem:[#allocation11 + $0x14b8] sm:$0xff]
    %v3042 = vld [vmem:[#allocation11 + $0x14c0] sm:$0xff]
    %v3043 = vld [vmem:[#allocation11 + $0x14c8] sm:$0xff]
    %v3044 = vld [vmem:[#allocation11 + $0x14d0] sm:$0xff]
    %v3045 = vld [vmem:[#allocation11 + $0x14d8] sm:$0xff]
    %v3046 = vld [vmem:[#allocation11 + $0x14e0] sm:$0xff]
    %v3047 = vld [vmem:[#allocation11 + $0x14e8] sm:$0xff]
    %v3048 = vld [vmem:[#allocation11 + $0x14f0] sm:$0xff]
    %v3049 = vld [vmem:[#allocation11 + $0x14f8] sm:$0xff]
    %v3050 = vld [vmem:[#allocation11 + $0x1500] sm:$0xff]
    %v3051 = vld [vmem:[#allocation11 + $0x1508] sm:$0xff]
    %v3052 = vld [vmem:[#allocation11 + $0x1510] sm:$0xff]
    %v3053 = vld [vmem:[#allocation11 + $0x1518] sm:$0xff]
    %v3054 = vld [vmem:[#allocation11 + $0x1520] sm:$0xff]
    %v3055 = vld [vmem:[#allocation11 + $0x1528] sm:$0xff]
    %v3056 = vld [vmem:[#allocation11 + $0x1530] sm:$0xff]
    %v3057 = vld [vmem:[#allocation11 + $0x1538] sm:$0xff]
    %v3058 = vld [vmem:[#allocation11 + $0x1540] sm:$0xff]
    %v3059 = vld [vmem:[#allocation11 + $0x1548] sm:$0xff]
    %v3060 = vld [vmem:[#allocation11 + $0x1550] sm:$0xff]
    %v3061 = vld [vmem:[#allocation11 + $0x1558] sm:$0xff]
    %v3062 = vld [vmem:[#allocation11 + $0x1560] sm:$0xff]
    %v3063 = vld [vmem:[#allocation11 + $0x1568] sm:$0xff]
    %v3064 = vld [vmem:[#allocation11 + $0x1570] sm:$0xff]
    %v3065 = vld [vmem:[#allocation11 + $0x1578] sm:$0xff]
    %v3066 = vld [vmem:[#allocation11 + $0x1580] sm:$0xff]
    %v3067 = vld [vmem:[#allocation11 + $0x1588] sm:$0xff]
    %v3068 = vld [vmem:[#allocation11 + $0x1590] sm:$0xff]
    %v3069 = vld [vmem:[#allocation11 + $0x1598] sm:$0xff]
    %v3070 = vld [vmem:[#allocation11 + $0x15a0] sm:$0xff]
    %v3071 = vld [vmem:[#allocation11 + $0x15a8] sm:$0xff]
    %v3072 = vld [vmem:[#allocation11 + $0x15b0] sm:$0xff]
    %v3073 = vld [vmem:[#allocation11 + $0x15b8] sm:$0xff]
    %v3074 = vld [vmem:[#allocation11 + $0x15c0] sm:$0xff]
    %v3075 = vld [vmem:[#allocation11 + $0x15c8] sm:$0xff]
    %v3076 = vld [vmem:[#allocation11 + $0x15d0] sm:$0xff]
    %v3077 = vld [vmem:[#allocation11 + $0x15d8] sm:$0xff]
    %v3078 = vld [vmem:[#allocation11 + $0x15e0] sm:$0xff]
    %v3079 = vld [vmem:[#allocation11 + $0x15e8] sm:$0xff]
    %v3080 = vld [vmem:[#allocation11 + $0x15f0] sm:$0xff]
    %v3081 = vld [vmem:[#allocation11 + $0x15f8] sm:$0xff]
    %v3082 = vld [vmem:[#allocation11 + $0x1600] sm:$0xff]
    %v3083 = vld [vmem:[#allocation11 + $0x1608] sm:$0xff]
    %v3084 = vld [vmem:[#allocation11 + $0x1610] sm:$0xff]
    %v3085 = vld [vmem:[#allocation11 + $0x1618] sm:$0xff]
    %v3086 = vld [vmem:[#allocation11 + $0x1620] sm:$0xff]
    %v3087 = vld [vmem:[#allocation11 + $0x1628] sm:$0xff]
    %v3088 = vld [vmem:[#allocation11 + $0x1630] sm:$0xff]
    %v3089 = vld [vmem:[#allocation11 + $0x1638] sm:$0xff]
    %v3090 = vld [vmem:[#allocation11 + $0x1640] sm:$0xff]
    %v3091 = vld [vmem:[#allocation11 + $0x1648] sm:$0xff]
    %v3092 = vld [vmem:[#allocation11 + $0x1650] sm:$0xff]
    %v3093 = vld [vmem:[#allocation11 + $0x1658] sm:$0xff]
    %v3094 = vld [vmem:[#allocation11 + $0x1660] sm:$0xff]
    %v3095 = vld [vmem:[#allocation11 + $0x1668] sm:$0xff]
    %v3096 = vld [vmem:[#allocation11 + $0x1670] sm:$0xff]
    %v3097 = vld [vmem:[#allocation11 + $0x1678] sm:$0xff]
    %v3098 = vld [vmem:[#allocation11 + $0x1680] sm:$0xff]
    %v3099 = vld [vmem:[#allocation11 + $0x1688] sm:$0xff]
    %v3100 = vld [vmem:[#allocation11 + $0x1690] sm:$0xff]
    %v3101 = vld [vmem:[#allocation11 + $0x1698] sm:$0xff]
    %v3102 = vld [vmem:[#allocation11 + $0x16a0] sm:$0xff]
    %v3103 = vld [vmem:[#allocation11 + $0x16a8] sm:$0xff]
    %v3104 = vld [vmem:[#allocation11 + $0x16b0] sm:$0xff]
    %v3105 = vld [vmem:[#allocation11 + $0x16b8] sm:$0xff]
    %v3106 = vld [vmem:[#allocation11 + $0x16c0] sm:$0xff]
    %v3107 = vld [vmem:[#allocation11 + $0x16c8] sm:$0xff]
    %v3108 = vld [vmem:[#allocation11 + $0x16d0] sm:$0xff]
    %v3109 = vld [vmem:[#allocation11 + $0x16d8] sm:$0xff]
    %v3110 = vld [vmem:[#allocation11 + $0x16e0] sm:$0xff]
    %v3111 = vld [vmem:[#allocation11 + $0x16e8] sm:$0xff]
    %v3112 = vld [vmem:[#allocation11 + $0x16f0] sm:$0xff]
    %v3113 = vld [vmem:[#allocation11 + $0x16f8] sm:$0xff]
    %v3114 = vld [vmem:[#allocation11 + $0x1700] sm:$0xff]
    %v3115 = vld [vmem:[#allocation11 + $0x1708] sm:$0xff]
    %v3116 = vld [vmem:[#allocation11 + $0x1710] sm:$0xff]
    %v3117 = vld [vmem:[#allocation11 + $0x1718] sm:$0xff]
    %v3118 = vld [vmem:[#allocation11 + $0x1720] sm:$0xff]
    %v3119 = vld [vmem:[#allocation11 + $0x1728] sm:$0xff]
    %v3120 = vld [vmem:[#allocation11 + $0x1730] sm:$0xff]
    %v3121 = vld [vmem:[#allocation11 + $0x1738] sm:$0xff]
    %v3122 = vld [vmem:[#allocation11 + $0x1740] sm:$0xff]
    %v3123 = vld [vmem:[#allocation11 + $0x1748] sm:$0xff]
    %v3124 = vld [vmem:[#allocation11 + $0x1750] sm:$0xff]
    %v3125 = vld [vmem:[#allocation11 + $0x1758] sm:$0xff]
    %v3126 = vld [vmem:[#allocation11 + $0x1760] sm:$0xff]
    %v3127 = vld [vmem:[#allocation11 + $0x1768] sm:$0xff]
    %v3128 = vld [vmem:[#allocation11 + $0x1770] sm:$0xff]
    %v3129 = vld [vmem:[#allocation11 + $0x1778] sm:$0xff]
    %v3130 = vld [vmem:[#allocation11 + $0x1780] sm:$0xff]
    %v3131 = vld [vmem:[#allocation11 + $0x1788] sm:$0xff]
    %v3132 = vld [vmem:[#allocation11 + $0x1790] sm:$0xff]
    %v3133 = vld [vmem:[#allocation11 + $0x1798] sm:$0xff]
    %v3134 = vld [vmem:[#allocation11 + $0x17a0] sm:$0xff]
    %v3135 = vld [vmem:[#allocation11 + $0x17a8] sm:$0xff]
    %v3136 = vld [vmem:[#allocation11 + $0x17b0] sm:$0xff]
    %v3137 = vld [vmem:[#allocation11 + $0x17b8] sm:$0xff]
    %v3138 = vld [vmem:[#allocation11 + $0x17c0] sm:$0xff]
    %v3139 = vld [vmem:[#allocation11 + $0x17c8] sm:$0xff]
    %v3140 = vld [vmem:[#allocation11 + $0x17d0] sm:$0xff]
    %v3141 = vld [vmem:[#allocation11 + $0x17d8] sm:$0xff]
    %v3142 = vld [vmem:[#allocation11 + $0x17e0] sm:$0xff]
    %v3143 = vld [vmem:[#allocation11 + $0x17e8] sm:$0xff]
    %v3144 = vld [vmem:[#allocation11 + $0x17f0] sm:$0xff]
    %v3145 = vld [vmem:[#allocation11 + $0x17f8] sm:$0xff]
    %v3146 = vld [vmem:[#allocation11 + $0x1800] sm:$0xff]
    %v3147 = vld [vmem:[#allocation11 + $0x1808] sm:$0xff]
    %v3148 = vld [vmem:[#allocation11 + $0x1810] sm:$0xff]
    %v3149 = vld [vmem:[#allocation11 + $0x1818] sm:$0xff]
    %v3150 = vld [vmem:[#allocation11 + $0x1820] sm:$0xff]
    %v3151 = vld [vmem:[#allocation11 + $0x1828] sm:$0xff]
    %v3152 = vld [vmem:[#allocation11 + $0x1830] sm:$0xff]
    %v3153 = vld [vmem:[#allocation11 + $0x1838] sm:$0xff]
    %v3154 = vld [vmem:[#allocation11 + $0x1840] sm:$0xff]
    %v3155 = vld [vmem:[#allocation11 + $0x1848] sm:$0xff]
    %v3156 = vld [vmem:[#allocation11 + $0x1850] sm:$0xff]
    %v3157 = vld [vmem:[#allocation11 + $0x1858] sm:$0xff]
    %v3158 = vld [vmem:[#allocation11 + $0x1860] sm:$0xff]
    %v3159 = vld [vmem:[#allocation11 + $0x1868] sm:$0xff]
    %v3160 = vld [vmem:[#allocation11 + $0x1870] sm:$0xff]
    %v3161 = vld [vmem:[#allocation11 + $0x1878] sm:$0xff]
    %v3162 = vld [vmem:[#allocation11 + $0x1880] sm:$0xff]
    %v3163 = vld [vmem:[#allocation11 + $0x1888] sm:$0xff]
    %v3164 = vld [vmem:[#allocation11 + $0x1890] sm:$0xff]
    %v3165 = vld [vmem:[#allocation11 + $0x1898] sm:$0xff]
    %v3166 = vld [vmem:[#allocation11 + $0x18a0] sm:$0xff]
    %v3167 = vld [vmem:[#allocation11 + $0x18a8] sm:$0xff]
    %v3168 = vld [vmem:[#allocation11 + $0x18b0] sm:$0xff]
    %v3169 = vld [vmem:[#allocation11 + $0x18b8] sm:$0xff]
    %v3170 = vld [vmem:[#allocation11 + $0x18c0] sm:$0xff]
    %v3171 = vld [vmem:[#allocation11 + $0x18c8] sm:$0xff]
    %v3172 = vld [vmem:[#allocation11 + $0x18d0] sm:$0xff]
    %v3173 = vld [vmem:[#allocation11 + $0x18d8] sm:$0xff]
    %v3174 = vld [vmem:[#allocation11 + $0x18e0] sm:$0xff]
    %v3175 = vld [vmem:[#allocation11 + $0x18e8] sm:$0xff]
    %v3176 = vld [vmem:[#allocation11 + $0x18f0] sm:$0xff]
    %v3177 = vld [vmem:[#allocation11 + $0x18f8] sm:$0xff]
    %v3178 = vld [vmem:[#allocation11 + $0x1900] sm:$0xff]
    %v3179 = vld [vmem:[#allocation11 + $0x1908] sm:$0xff]
    %v3180 = vld [vmem:[#allocation11 + $0x1910] sm:$0xff]
    %v3181 = vld [vmem:[#allocation11 + $0x1918] sm:$0xff]
    %v3182 = vld [vmem:[#allocation11 + $0x1920] sm:$0xff]
    %v3183 = vld [vmem:[#allocation11 + $0x1928] sm:$0xff]
    %v3184 = vld [vmem:[#allocation11 + $0x1930] sm:$0xff]
    %v3185 = vld [vmem:[#allocation11 + $0x1938] sm:$0xff]
    %v3186 = vld [vmem:[#allocation11 + $0x1940] sm:$0xff]
    %v3187 = vld [vmem:[#allocation11 + $0x1948] sm:$0xff]
    %v3188 = vld [vmem:[#allocation11 + $0x1950] sm:$0xff]
    %v3189 = vld [vmem:[#allocation11 + $0x1958] sm:$0xff]
    %v3190 = vld [vmem:[#allocation11 + $0x1960] sm:$0xff]
    %v3191 = vld [vmem:[#allocation11 + $0x1968] sm:$0xff]
    %v3192 = vld [vmem:[#allocation11 + $0x1970] sm:$0xff]
    %v3193 = vld [vmem:[#allocation11 + $0x1978] sm:$0xff]
    %v3194 = vld [vmem:[#allocation11 + $0x1980] sm:$0xff]
    %v3195 = vld [vmem:[#allocation11 + $0x1988] sm:$0xff]
    %v3196 = vld [vmem:[#allocation11 + $0x1990] sm:$0xff]
    %v3197 = vld [vmem:[#allocation11 + $0x1998] sm:$0xff]
    %v3198 = vld [vmem:[#allocation11 + $0x19a0] sm:$0xff]
    %v3199 = vld [vmem:[#allocation11 + $0x19a8] sm:$0xff]
    %v3200 = vld [vmem:[#allocation11 + $0x19b0] sm:$0xff]
    %v3201 = vld [vmem:[#allocation11 + $0x19b8] sm:$0xff]
    %v3202 = vld [vmem:[#allocation11 + $0x19c0] sm:$0xff]
    %v3203 = vld [vmem:[#allocation11 + $0x19c8] sm:$0xff]
    %v3204 = vld [vmem:[#allocation11 + $0x19d0] sm:$0xff]
    %v3205 = vld [vmem:[#allocation11 + $0x19d8] sm:$0xff]
    %v3206 = vld [vmem:[#allocation11 + $0x19e0] sm:$0xff]
    %v3207 = vld [vmem:[#allocation11 + $0x19e8] sm:$0xff]
    %v3208 = vld [vmem:[#allocation11 + $0x19f0] sm:$0xff]
    %v3209 = vld [vmem:[#allocation11 + $0x19f8] sm:$0xff]
    %v3210 = vld [vmem:[#allocation11 + $0x1a00] sm:$0xff]
    %v3211 = vld [vmem:[#allocation11 + $0x1a08] sm:$0xff]
    %v3212 = vld [vmem:[#allocation11 + $0x1a10] sm:$0xff]
    %v3213 = vld [vmem:[#allocation11 + $0x1a18] sm:$0xff]
    %v3214 = vld [vmem:[#allocation11 + $0x1a20] sm:$0xff]
    %v3215 = vld [vmem:[#allocation11 + $0x1a28] sm:$0xff]
    %v3216 = vld [vmem:[#allocation11 + $0x1a30] sm:$0xff]
    %v3217 = vld [vmem:[#allocation11 + $0x1a38] sm:$0xff]
    %v3218 = vld [vmem:[#allocation11 + $0x1a40] sm:$0xff]
    %v3219 = vld [vmem:[#allocation11 + $0x1a48] sm:$0xff]
    %v3220 = vld [vmem:[#allocation11 + $0x1a50] sm:$0xff]
    %v3221 = vld [vmem:[#allocation11 + $0x1a58] sm:$0xff]
    %v3222 = vld [vmem:[#allocation11 + $0x1a60] sm:$0xff]
    %v3223 = vld [vmem:[#allocation11 + $0x1a68] sm:$0xff]
    %v3224 = vld [vmem:[#allocation11 + $0x1a70] sm:$0xff]
    %v3225 = vld [vmem:[#allocation11 + $0x1a78] sm:$0xff]
    %v3226 = vld [vmem:[#allocation11 + $0x1a80] sm:$0xff]
    %v3227 = vld [vmem:[#allocation11 + $0x1a88] sm:$0xff]
    %v3228 = vld [vmem:[#allocation11 + $0x1a90] sm:$0xff]
    %v3229 = vld [vmem:[#allocation11 + $0x1a98] sm:$0xff]
    %v3230 = vld [vmem:[#allocation11 + $0x1aa0] sm:$0xff]
    %v3231 = vld [vmem:[#allocation11 + $0x1aa8] sm:$0xff]
    %v3232 = vld [vmem:[#allocation11 + $0x1ab0] sm:$0xff]
    %v3233 = vld [vmem:[#allocation11 + $0x1ab8] sm:$0xff]
    %v3234 = vld [vmem:[#allocation11 + $0x1ac0] sm:$0xff]
    %v3235 = vld [vmem:[#allocation11 + $0x1ac8] sm:$0xff]
    %v3236 = vld [vmem:[#allocation11 + $0x1ad0] sm:$0xff]
    %v3237 = vld [vmem:[#allocation11 + $0x1ad8] sm:$0xff]
    %v3238 = vld [vmem:[#allocation11 + $0x1ae0] sm:$0xff]
    %v3239 = vld [vmem:[#allocation11 + $0x1ae8] sm:$0xff]
    %v3240 = vld [vmem:[#allocation11 + $0x1af0] sm:$0xff]
    %v3241 = vld [vmem:[#allocation11 + $0x1af8] sm:$0xff]
    %v3242 = vld [vmem:[#allocation11 + $0x1b00] sm:$0xff]
    %v3243 = vld [vmem:[#allocation11 + $0x1b08] sm:$0xff]
    %v3244 = vld [vmem:[#allocation11 + $0x1b10] sm:$0xff]
    %v3245 = vld [vmem:[#allocation11 + $0x1b18] sm:$0xff]
    %v3246 = vld [vmem:[#allocation11 + $0x1b20] sm:$0xff]
    %v3247 = vld [vmem:[#allocation11 + $0x1b28] sm:$0xff]
    %v3248 = vld [vmem:[#allocation11 + $0x1b30] sm:$0xff]
    %v3249 = vld [vmem:[#allocation11 + $0x1b38] sm:$0xff]
    %v3250 = vld [vmem:[#allocation11 + $0x1b40] sm:$0xff]
    %v3251 = vld [vmem:[#allocation11 + $0x1b48] sm:$0xff]
    %v3252 = vld [vmem:[#allocation11 + $0x1b50] sm:$0xff]
    %v3253 = vld [vmem:[#allocation11 + $0x1b58] sm:$0xff]
    %v3254 = vld [vmem:[#allocation11 + $0x1b60] sm:$0xff]
    %v3255 = vld [vmem:[#allocation11 + $0x1b68] sm:$0xff]
    %v3256 = vld [vmem:[#allocation11 + $0x1b70] sm:$0xff]
    %v3257 = vld [vmem:[#allocation11 + $0x1b78] sm:$0xff]
    %v3258 = vld [vmem:[#allocation11 + $0x1b80] sm:$0xff]
    %v3259 = vld [vmem:[#allocation11 + $0x1b88] sm:$0xff]
    %v3260 = vld [vmem:[#allocation11 + $0x1b90] sm:$0xff]
    %v3261 = vld [vmem:[#allocation11 + $0x1b98] sm:$0xff]
    %v3262 = vld [vmem:[#allocation11 + $0x1ba0] sm:$0xff]
    %v3263 = vld [vmem:[#allocation11 + $0x1ba8] sm:$0xff]
    %v3264 = vld [vmem:[#allocation11 + $0x1bb0] sm:$0xff]
    %v3265 = vld [vmem:[#allocation11 + $0x1bb8] sm:$0xff]
    %v3266 = vld [vmem:[#allocation11 + $0x1bc0] sm:$0xff]
    %v3267 = vld [vmem:[#allocation11 + $0x1bc8] sm:$0xff]
    %v3268 = vld [vmem:[#allocation11 + $0x1bd0] sm:$0xff]
    %v3269 = vld [vmem:[#allocation11 + $0x1bd8] sm:$0xff]
    %v3270 = vld [vmem:[#allocation11 + $0x1be0] sm:$0xff]
    %v3271 = vld [vmem:[#allocation11 + $0x1be8] sm:$0xff]
    %v3272 = vld [vmem:[#allocation11 + $0x1bf0] sm:$0xff]
    %v3273 = vld [vmem:[#allocation11 + $0x1bf8] sm:$0xff]
    %v3274 = vld [vmem:[#allocation11 + $0x1c00] sm:$0xff]
    %v3275 = vld [vmem:[#allocation11 + $0x1c08] sm:$0xff]
    %v3276 = vld [vmem:[#allocation11 + $0x1c10] sm:$0xff]
    %v3277 = vld [vmem:[#allocation11 + $0x1c18] sm:$0xff]
    %v3278 = vld [vmem:[#allocation11 + $0x1c20] sm:$0xff]
    %v3279 = vld [vmem:[#allocation11 + $0x1c28] sm:$0xff]
    %v3280 = vld [vmem:[#allocation11 + $0x1c30] sm:$0xff]
    %v3281 = vld [vmem:[#allocation11 + $0x1c38] sm:$0xff]
    %v3282 = vld [vmem:[#allocation11 + $0x1c40] sm:$0xff]
    %v3283 = vld [vmem:[#allocation11 + $0x1c48] sm:$0xff]
    %v3284 = vld [vmem:[#allocation11 + $0x1c50] sm:$0xff]
    %v3285 = vld [vmem:[#allocation11 + $0x1c58] sm:$0xff]
    %v3286 = vld [vmem:[#allocation11 + $0x1c60] sm:$0xff]
    %v3287 = vld [vmem:[#allocation11 + $0x1c68] sm:$0xff]
    %v3288 = vld [vmem:[#allocation11 + $0x1c70] sm:$0xff]
    %v3289 = vld [vmem:[#allocation11 + $0x1c78] sm:$0xff]
    %v3290 = vld [vmem:[#allocation11 + $0x1c80] sm:$0xff]
    %v3291 = vld [vmem:[#allocation11 + $0x1c88] sm:$0xff]
    %v3292 = vld [vmem:[#allocation11 + $0x1c90] sm:$0xff]
    %v3293 = vld [vmem:[#allocation11 + $0x1c98] sm:$0xff]
    %v3294 = vld [vmem:[#allocation11 + $0x1ca0] sm:$0xff]
    %v3295 = vld [vmem:[#allocation11 + $0x1ca8] sm:$0xff]
    %v3296 = vld [vmem:[#allocation11 + $0x1cb0] sm:$0xff]
    %v3297 = vld [vmem:[#allocation11 + $0x1cb8] sm:$0xff]
    %v3298 = vld [vmem:[#allocation11 + $0x1cc0] sm:$0xff]
    %v3299 = vld [vmem:[#allocation11 + $0x1cc8] sm:$0xff]
    %v3300 = vld [vmem:[#allocation11 + $0x1cd0] sm:$0xff]
    %v3301 = vld [vmem:[#allocation11 + $0x1cd8] sm:$0xff]
    %v3302 = vld [vmem:[#allocation11 + $0x1ce0] sm:$0xff]
    %v3303 = vld [vmem:[#allocation11 + $0x1ce8] sm:$0xff]
    %v3304 = vld [vmem:[#allocation11 + $0x1cf0] sm:$0xff]
    %v3305 = vld [vmem:[#allocation11 + $0x1cf8] sm:$0xff]
    %v3306 = vld [vmem:[#allocation11 + $0x1d00] sm:$0xff]
    %v3307 = vld [vmem:[#allocation11 + $0x1d08] sm:$0xff]
    %v3308 = vld [vmem:[#allocation11 + $0x1d10] sm:$0xff]
    %v3309 = vld [vmem:[#allocation11 + $0x1d18] sm:$0xff]
    %v3310 = vld [vmem:[#allocation11 + $0x1d20] sm:$0xff]
    %v3311 = vld [vmem:[#allocation11 + $0x1d28] sm:$0xff]
    %v3312 = vld [vmem:[#allocation11 + $0x1d30] sm:$0xff]
    %v3313 = vld [vmem:[#allocation11 + $0x1d38] sm:$0xff]
    %v3314 = vld [vmem:[#allocation11 + $0x1d40] sm:$0xff]
    %v3315 = vld [vmem:[#allocation11 + $0x1d48] sm:$0xff]
    %v3316 = vld [vmem:[#allocation11 + $0x1d50] sm:$0xff]
    %v3317 = vld [vmem:[#allocation11 + $0x1d58] sm:$0xff]
    %v3318 = vld [vmem:[#allocation11 + $0x1d60] sm:$0xff]
    %v3319 = vld [vmem:[#allocation11 + $0x1d68] sm:$0xff]
    %v3320 = vld [vmem:[#allocation11 + $0x1d70] sm:$0xff]
    %v3321 = vld [vmem:[#allocation11 + $0x1d78] sm:$0xff]
    %v3322 = vld [vmem:[#allocation11 + $0x1d80] sm:$0xff]
    %v3323 = vld [vmem:[#allocation11 + $0x1d88] sm:$0xff]
    %v3324 = vld [vmem:[#allocation11 + $0x1d90] sm:$0xff]
    %v3325 = vld [vmem:[#allocation11 + $0x1d98] sm:$0xff]
    %v3326 = vld [vmem:[#allocation11 + $0x1da0] sm:$0xff]
    %v3327 = vld [vmem:[#allocation11 + $0x1da8] sm:$0xff]
    %v3328 = vld [vmem:[#allocation11 + $0x1db0] sm:$0xff]
    %v3329 = vld [vmem:[#allocation11 + $0x1db8] sm:$0xff]
    %v3330 = vld [vmem:[#allocation11 + $0x1dc0] sm:$0xff]
    %v3331 = vld [vmem:[#allocation11 + $0x1dc8] sm:$0xff]
    %v3332 = vld [vmem:[#allocation11 + $0x1dd0] sm:$0xff]
    %v3333 = vld [vmem:[#allocation11 + $0x1dd8] sm:$0xff]
    %v3334 = vld [vmem:[#allocation11 + $0x1de0] sm:$0xff]
    %v3335 = vld [vmem:[#allocation11 + $0x1de8] sm:$0xff]
    %v3336 = vld [vmem:[#allocation11 + $0x1df0] sm:$0xff]
    %v3337 = vld [vmem:[#allocation11 + $0x1df8] sm:$0xff]
    %v3338 = vld [vmem:[#allocation11 + $0x1e00] sm:$0xff]
    %v3339 = vld [vmem:[#allocation11 + $0x1e08] sm:$0xff]
    %v3340 = vld [vmem:[#allocation11 + $0x1e10] sm:$0xff]
    %v3341 = vld [vmem:[#allocation11 + $0x1e18] sm:$0xff]
    %v3342 = vld [vmem:[#allocation11 + $0x1e20] sm:$0xff]
    %v3343 = vld [vmem:[#allocation11 + $0x1e28] sm:$0xff]
    %v3344 = vld [vmem:[#allocation11 + $0x1e30] sm:$0xff]
    %v3345 = vld [vmem:[#allocation11 + $0x1e38] sm:$0xff]
    %v3346 = vld [vmem:[#allocation11 + $0x1e40] sm:$0xff]
    %v3347 = vld [vmem:[#allocation11 + $0x1e48] sm:$0xff]
    %v3348 = vld [vmem:[#allocation11 + $0x1e50] sm:$0xff]
    %v3349 = vld [vmem:[#allocation11 + $0x1e58] sm:$0xff]
    %v3350 = vld [vmem:[#allocation11 + $0x1e60] sm:$0xff]
    %v3351 = vld [vmem:[#allocation11 + $0x1e68] sm:$0xff]
    %v3352 = vld [vmem:[#allocation11 + $0x1e70] sm:$0xff]
    %v3353 = vld [vmem:[#allocation11 + $0x1e78] sm:$0xff]
    %v3354 = vld [vmem:[#allocation11 + $0x1e80] sm:$0xff]
    %v3355 = vld [vmem:[#allocation11 + $0x1e88] sm:$0xff]
    %v3356 = vld [vmem:[#allocation11 + $0x1e90] sm:$0xff]
    %v3357 = vld [vmem:[#allocation11 + $0x1e98] sm:$0xff]
    %v3358 = vld [vmem:[#allocation11 + $0x1ea0] sm:$0xff]
    %v3359 = vld [vmem:[#allocation11 + $0x1ea8] sm:$0xff]
    %v3360 = vld [vmem:[#allocation11 + $0x1eb0] sm:$0xff]
    %v3361 = vld [vmem:[#allocation11 + $0x1eb8] sm:$0xff]
    %v3362 = vld [vmem:[#allocation11 + $0x1ec0] sm:$0xff]
    %v3363 = vld [vmem:[#allocation11 + $0x1ec8] sm:$0xff]
    %v3364 = vld [vmem:[#allocation11 + $0x1ed0] sm:$0xff]
    %v3365 = vld [vmem:[#allocation11 + $0x1ed8] sm:$0xff]
    %v3366 = vld [vmem:[#allocation11 + $0x1ee0] sm:$0xff]
    %v3367 = vld [vmem:[#allocation11 + $0x1ee8] sm:$0xff]
    %v3368 = vld [vmem:[#allocation11 + $0x1ef0] sm:$0xff]
    %v3369 = vld [vmem:[#allocation11 + $0x1ef8] sm:$0xff]
    %v3370 = vld [vmem:[#allocation11 + $0x1f00] sm:$0xff]
    %v3371 = vld [vmem:[#allocation11 + $0x1f08] sm:$0xff]
    %v3372 = vld [vmem:[#allocation11 + $0x1f10] sm:$0xff]
    %v3373 = vld [vmem:[#allocation11 + $0x1f18] sm:$0xff]
    %v3374 = vld [vmem:[#allocation11 + $0x1f20] sm:$0xff]
    %v3375 = vld [vmem:[#allocation11 + $0x1f28] sm:$0xff]
    %v3376 = vld [vmem:[#allocation11 + $0x1f30] sm:$0xff]
    %v3377 = vld [vmem:[#allocation11 + $0x1f38] sm:$0xff]
    %v3378 = vld [vmem:[#allocation11 + $0x1f40] sm:$0xff]
    %v3379 = vld [vmem:[#allocation11 + $0x1f48] sm:$0xff]
    %v3380 = vld [vmem:[#allocation11 + $0x1f50] sm:$0xff]
    %v3381 = vld [vmem:[#allocation11 + $0x1f58] sm:$0xff]
    %v3382 = vld [vmem:[#allocation11 + $0x1f60] sm:$0xff]
    %v3383 = vld [vmem:[#allocation11 + $0x1f68] sm:$0xff]
    %v3384 = vld [vmem:[#allocation11 + $0x1f70] sm:$0xff]
    %v3385 = vld [vmem:[#allocation11 + $0x1f78] sm:$0xff]
    %v3386 = vld [vmem:[#allocation11 + $0x1f80] sm:$0xff]
    %v3387 = vld [vmem:[#allocation11 + $0x1f88] sm:$0xff]
    %v3388 = vld [vmem:[#allocation11 + $0x1f90] sm:$0xff]
    %v3389 = vld [vmem:[#allocation11 + $0x1f98] sm:$0xff]
    %v3390 = vld [vmem:[#allocation11 + $0x1fa0] sm:$0xff]
    %v3391 = vld [vmem:[#allocation11 + $0x1fa8] sm:$0xff]
    %v3392 = vld [vmem:[#allocation11 + $0x1fb0] sm:$0xff]
    %v3393 = vld [vmem:[#allocation11 + $0x1fb8] sm:$0xff]
    %v3394 = vld [vmem:[#allocation11 + $0x1fc0] sm:$0xff]
    %v3395 = vld [vmem:[#allocation11 + $0x1fc8] sm:$0xff]
    %v3396 = vld [vmem:[#allocation11 + $0x1fd0] sm:$0xff]
    %v3397 = vld [vmem:[#allocation11 + $0x1fd8] sm:$0xff]
    %v3398 = vld [vmem:[#allocation11 + $0x1fe0] sm:$0xff]
    %v3399 = vld [vmem:[#allocation11 + $0x1fe8] sm:$0xff]
    %v3400 = vld [vmem:[#allocation11 + $0x1ff0] sm:$0xff]
    %v3401 = vld [vmem:[#allocation11 + $0x1ff8] sm:$0xff]
    %v3402 = vld [vmem:[#allocation11 + $0x2000] sm:$0xff]
    %v3403 = vld [vmem:[#allocation11 + $0x2008] sm:$0xff]
    %v3404 = vld [vmem:[#allocation11 + $0x2010] sm:$0xff]
    %v3405 = vld [vmem:[#allocation11 + $0x2018] sm:$0xff]
    %v3406 = vld [vmem:[#allocation11 + $0x2020] sm:$0xff]
    %v3407 = vld [vmem:[#allocation11 + $0x2028] sm:$0xff]
    %v3408 = vld [vmem:[#allocation11 + $0x2030] sm:$0xff]
    %v3409 = vld [vmem:[#allocation11 + $0x2038] sm:$0xff]
    %v3410 = vld [vmem:[#allocation11 + $0x2040] sm:$0xff]
    %v3411 = vld [vmem:[#allocation11 + $0x2048] sm:$0xff]
    %v3412 = vld [vmem:[#allocation11 + $0x2050] sm:$0xff]
    %v3413 = vld [vmem:[#allocation11 + $0x2058] sm:$0xff]
    %v3414 = vld [vmem:[#allocation11 + $0x2060] sm:$0xff]
    %v3415 = vld [vmem:[#allocation11 + $0x2068] sm:$0xff]
    %v3416 = vld [vmem:[#allocation11 + $0x2070] sm:$0xff]
    %v3417 = vld [vmem:[#allocation11 + $0x2078] sm:$0xff]
    %v3418 = vld [vmem:[#allocation11 + $0x2080] sm:$0xff]
    %v3419 = vld [vmem:[#allocation11 + $0x2088] sm:$0xff]
    %v3420 = vld [vmem:[#allocation11 + $0x2090] sm:$0xff]
    %v3421 = vld [vmem:[#allocation11 + $0x2098] sm:$0xff]
    %v3422 = vld [vmem:[#allocation11 + $0x20a0] sm:$0xff]
    %v3423 = vld [vmem:[#allocation11 + $0x20a8] sm:$0xff]
    %v3424 = vld [vmem:[#allocation11 + $0x20b0] sm:$0xff]
    %v3425 = vld [vmem:[#allocation11 + $0x20b8] sm:$0xff]
    %v3426 = vld [vmem:[#allocation11 + $0x20c0] sm:$0xff]
    %v3427 = vld [vmem:[#allocation11 + $0x20c8] sm:$0xff]
    %v3428 = vld [vmem:[#allocation11 + $0x20d0] sm:$0xff]
    %v3429 = vld [vmem:[#allocation11 + $0x20d8] sm:$0xff]
    %v3430 = vld [vmem:[#allocation11 + $0x20e0] sm:$0xff]
    %v3431 = vld [vmem:[#allocation11 + $0x20e8] sm:$0xff]
    %v3432 = vld [vmem:[#allocation11 + $0x20f0] sm:$0xff]
    %v3433 = vld [vmem:[#allocation11 + $0x20f8] sm:$0xff]
    %v3434 = vld [vmem:[#allocation11 + $0x2100] sm:$0xff]
    %v3435 = vld [vmem:[#allocation11 + $0x2108] sm:$0xff]
    %v3436 = vld [vmem:[#allocation11 + $0x2110] sm:$0xff]
    %v3437 = vld [vmem:[#allocation11 + $0x2118] sm:$0xff]
    %v3438 = vld [vmem:[#allocation11 + $0x2120] sm:$0xff]
    %v3439 = vld [vmem:[#allocation11 + $0x2128] sm:$0xff]
    %v3440 = vld [vmem:[#allocation11 + $0x2130] sm:$0xff]
    %v3441 = vld [vmem:[#allocation11 + $0x2138] sm:$0xff]
    %v3442 = vld [vmem:[#allocation11 + $0x2140] sm:$0xff]
    %v3443 = vld [vmem:[#allocation11 + $0x2148] sm:$0xff]
    %v3444 = vld [vmem:[#allocation11 + $0x2150] sm:$0xff]
    %v3445 = vld [vmem:[#allocation11 + $0x2158] sm:$0xff]
    %v3446 = vld [vmem:[#allocation11 + $0x2160] sm:$0xff]
    %v3447 = vld [vmem:[#allocation11 + $0x2168] sm:$0xff]
    %v3448 = vld [vmem:[#allocation11 + $0x2170] sm:$0xff]
    %v3449 = vld [vmem:[#allocation11 + $0x2178] sm:$0xff]
    %v3450 = vld [vmem:[#allocation11 + $0x2180] sm:$0xff]
    %v3451 = vld [vmem:[#allocation11 + $0x2188] sm:$0xff]
    %v3452 = vld [vmem:[#allocation11 + $0x2190] sm:$0xff]
    %v3453 = vld [vmem:[#allocation11 + $0x2198] sm:$0xff]
    %v3454 = vld [vmem:[#allocation11 + $0x21a0] sm:$0xff]
    %v3455 = vld [vmem:[#allocation11 + $0x21a8] sm:$0xff]
    %v3456 = vld [vmem:[#allocation11 + $0x21b0] sm:$0xff]
    %v3457 = vld [vmem:[#allocation11 + $0x21b8] sm:$0xff]
    %v3458 = vld [vmem:[#allocation11 + $0x21c0] sm:$0xff]
    %v3459 = vld [vmem:[#allocation11 + $0x21c8] sm:$0xff]
    %v3460 = vld [vmem:[#allocation11 + $0x21d0] sm:$0xff]
    %v3461 = vld [vmem:[#allocation11 + $0x21d8] sm:$0xff]
    %v3462 = vld [vmem:[#allocation11 + $0x21e0] sm:$0xff]
    %v3463 = vld [vmem:[#allocation11 + $0x21e8] sm:$0xff]
    %v3464 = vld [vmem:[#allocation11 + $0x21f0] sm:$0xff]
    %v3465 = vld [vmem:[#allocation11 + $0x21f8] sm:$0xff]
    %v3466 = vld [vmem:[#allocation11 + $0x2200] sm:$0xff]
    %v3467 = vld [vmem:[#allocation11 + $0x2208] sm:$0xff]
    %v3468 = vld [vmem:[#allocation11 + $0x2210] sm:$0xff]
    %v3469 = vld [vmem:[#allocation11 + $0x2218] sm:$0xff]
    %v3470 = vld [vmem:[#allocation11 + $0x2220] sm:$0xff]
    %v3471 = vld [vmem:[#allocation11 + $0x2228] sm:$0xff]
    %v3472 = vld [vmem:[#allocation11 + $0x2230] sm:$0xff]
    %v3473 = vld [vmem:[#allocation11 + $0x2238] sm:$0xff]
    %v3474 = vld [vmem:[#allocation11 + $0x2240] sm:$0xff]
    %v3475 = vld [vmem:[#allocation11 + $0x2248] sm:$0xff]
    %v3476 = vld [vmem:[#allocation11 + $0x2250] sm:$0xff]
    %v3477 = vld [vmem:[#allocation11 + $0x2258] sm:$0xff]
    %v3478 = vld [vmem:[#allocation11 + $0x2260] sm:$0xff]
    %v3479 = vld [vmem:[#allocation11 + $0x2268] sm:$0xff]
    %v3480 = vld [vmem:[#allocation11 + $0x2270] sm:$0xff]
    %v3481 = vld [vmem:[#allocation11 + $0x2278] sm:$0xff]
    %v3482 = vld [vmem:[#allocation11 + $0x2280] sm:$0xff]
    %v3483 = vld [vmem:[#allocation11 + $0x2288] sm:$0xff]
    %v3484 = vld [vmem:[#allocation11 + $0x2290] sm:$0xff]
    %v3485 = vld [vmem:[#allocation11 + $0x2298] sm:$0xff]
    %v3486 = vld [vmem:[#allocation11 + $0x22a0] sm:$0xff]
    %v3487 = vld [vmem:[#allocation11 + $0x22a8] sm:$0xff]
    %v3488 = vld [vmem:[#allocation11 + $0x22b0] sm:$0xff]
    %v3489 = vld [vmem:[#allocation11 + $0x22b8] sm:$0xff]
    %v3490 = vld [vmem:[#allocation11 + $0x22c0] sm:$0xff]
    %v3491 = vld [vmem:[#allocation11 + $0x22c8] sm:$0xff]
    %v3492 = vld [vmem:[#allocation11 + $0x22d0] sm:$0xff]
    %v3493 = vld [vmem:[#allocation11 + $0x22d8] sm:$0xff]
    %v3494 = vld [vmem:[#allocation11 + $0x22e0] sm:$0xff]
    %v3495 = vld [vmem:[#allocation11 + $0x22e8] sm:$0xff]
    %v3496 = vld [vmem:[#allocation11 + $0x22f0] sm:$0xff]
    %v3497 = vld [vmem:[#allocation11 + $0x22f8] sm:$0xff]
    %v3498 = vld [vmem:[#allocation11 + $0x2300] sm:$0xff]
    %v3499 = vld [vmem:[#allocation11 + $0x2308] sm:$0xff]
    %v3500 = vld [vmem:[#allocation11 + $0x2310] sm:$0xff]
    %v3501 = vld [vmem:[#allocation11 + $0x2318] sm:$0xff]
    %v3502 = vld [vmem:[#allocation11 + $0x2320] sm:$0xff]
    %v3503 = vld [vmem:[#allocation11 + $0x2328] sm:$0xff]
    %v3504 = vld [vmem:[#allocation11 + $0x2330] sm:$0xff]
    %v3505 = vld [vmem:[#allocation11 + $0x2338] sm:$0xff]
    %v3506 = vld [vmem:[#allocation11 + $0x2340] sm:$0xff]
    %v3507 = vld [vmem:[#allocation11 + $0x2348] sm:$0xff]
    %v3508 = vld [vmem:[#allocation11 + $0x2350] sm:$0xff]
    %v3509 = vld [vmem:[#allocation11 + $0x2358] sm:$0xff]
    %v3510 = vld [vmem:[#allocation11 + $0x2360] sm:$0xff]
    %v3511 = vld [vmem:[#allocation11 + $0x2368] sm:$0xff]
    %v3512 = vld [vmem:[#allocation11 + $0x2370] sm:$0xff]
    %v3513 = vld [vmem:[#allocation11 + $0x2378] sm:$0xff]
    %v3514 = vld [vmem:[#allocation11 + $0x2380] sm:$0xff]
    %v3515 = vld [vmem:[#allocation11 + $0x2388] sm:$0xff]
    %v3516 = vld [vmem:[#allocation11 + $0x2390] sm:$0xff]
    %v3517 = vld [vmem:[#allocation11 + $0x2398] sm:$0xff]
    %v3518 = vld [vmem:[#allocation11 + $0x23a0] sm:$0xff]
    %v3519 = vld [vmem:[#allocation11 + $0x23a8] sm:$0xff]
    %v3520 = vld [vmem:[#allocation11 + $0x23b0] sm:$0xff]
    %v3521 = vld [vmem:[#allocation11 + $0x23b8] sm:$0xff]
    %v3522 = vld [vmem:[#allocation11 + $0x23c0] sm:$0xff]
    %v3523 = vld [vmem:[#allocation11 + $0x23c8] sm:$0xff]
    %v3524 = vld [vmem:[#allocation11 + $0x23d0] sm:$0xff]
    %v3525 = vld [vmem:[#allocation11 + $0x23d8] sm:$0xff]
    %v3526 = vld [vmem:[#allocation11 + $0x23e0] sm:$0xff]
    %v3527 = vld [vmem:[#allocation11 + $0x23e8] sm:$0xff]
    %v3528 = vld [vmem:[#allocation11 + $0x23f0] sm:$0xff]
    %v3529 = vld [vmem:[#allocation11 + $0x23f8] sm:$0xff]
    %v3530 = vld [vmem:[#allocation11 + $0x2400] sm:$0xff]
    %v3531 = vld [vmem:[#allocation11 + $0x2408] sm:$0xff]
    %v3532 = vld [vmem:[#allocation11 + $0x2410] sm:$0xff]
    %v3533 = vld [vmem:[#allocation11 + $0x2418] sm:$0xff]
    %v3534 = vld [vmem:[#allocation11 + $0x2420] sm:$0xff]
    %v3535 = vld [vmem:[#allocation11 + $0x2428] sm:$0xff]
    %v3536 = vld [vmem:[#allocation11 + $0x2430] sm:$0xff]
    %v3537 = vld [vmem:[#allocation11 + $0x2438] sm:$0xff]
    %v3538 = vld [vmem:[#allocation11 + $0x2440] sm:$0xff]
    %v3539 = vld [vmem:[#allocation11 + $0x2448] sm:$0xff]
    %v3540 = vld [vmem:[#allocation11 + $0x2450] sm:$0xff]
    %v3541 = vld [vmem:[#allocation11 + $0x2458] sm:$0xff]
    %v3542 = vld [vmem:[#allocation11 + $0x2460] sm:$0xff]
    %v3543 = vld [vmem:[#allocation11 + $0x2468] sm:$0xff]
    %v3544 = vld [vmem:[#allocation11 + $0x2470] sm:$0xff]
    %v3545 = vld [vmem:[#allocation11 + $0x2478] sm:$0xff]
    %v3546 = vld [vmem:[#allocation11 + $0x2480] sm:$0xff]
    %v3547 = vld [vmem:[#allocation11 + $0x2488] sm:$0xff]
    %v3548 = vld [vmem:[#allocation11 + $0x2490] sm:$0xff]
    %v3549 = vld [vmem:[#allocation11 + $0x2498] sm:$0xff]
    %v3550 = vld [vmem:[#allocation11 + $0x24a0] sm:$0xff]
    %v3551 = vld [vmem:[#allocation11 + $0x24a8] sm:$0xff]
    %v3552 = vld [vmem:[#allocation11 + $0x24b0] sm:$0xff]
    %v3553 = vld [vmem:[#allocation11 + $0x24b8] sm:$0xff]
    %v3554 = vld [vmem:[#allocation11 + $0x24c0] sm:$0xff]
    %v3555 = vld [vmem:[#allocation11 + $0x24c8] sm:$0xff]
    %v3556 = vld [vmem:[#allocation11 + $0x24d0] sm:$0xff]
    %v3557 = vld [vmem:[#allocation11 + $0x24d8] sm:$0xff]
    %v3558 = vld [vmem:[#allocation11 + $0x24e0] sm:$0xff]
    %v3559 = vld [vmem:[#allocation11 + $0x24e8] sm:$0xff]
    %v3560 = vld [vmem:[#allocation11 + $0x24f0] sm:$0xff]
    %v3561 = vld [vmem:[#allocation11 + $0x24f8] sm:$0xff]
    %v3562 = vld [vmem:[#allocation11 + $0x2500] sm:$0xff]
    %v3563 = vld [vmem:[#allocation11 + $0x2508] sm:$0xff]
    %v3564 = vld [vmem:[#allocation11 + $0x2510] sm:$0xff]
    %v3565 = vld [vmem:[#allocation11 + $0x2518] sm:$0xff]
    %v3566 = vld [vmem:[#allocation11 + $0x2520] sm:$0xff]
    %v3567 = vld [vmem:[#allocation11 + $0x2528] sm:$0xff]
    %v3568 = vld [vmem:[#allocation11 + $0x2530] sm:$0xff]
    %v3569 = vld [vmem:[#allocation11 + $0x2538] sm:$0xff]
    %v3570 = vld [vmem:[#allocation11 + $0x2540] sm:$0xff]
    %v3571 = vld [vmem:[#allocation11 + $0x2548] sm:$0xff]
    %v3572 = vld [vmem:[#allocation11 + $0x2550] sm:$0xff]
    %v3573 = vld [vmem:[#allocation11 + $0x2558] sm:$0xff]
    %v3574 = vld [vmem:[#allocation11 + $0x2560] sm:$0xff]
    %v3575 = vld [vmem:[#allocation11 + $0x2568] sm:$0xff]
    %v3576 = vld [vmem:[#allocation11 + $0x2570] sm:$0xff]
    %v3577 = vld [vmem:[#allocation11 + $0x2578] sm:$0xff]
    %v3578 = vld [vmem:[#allocation11 + $0x2580] sm:$0xff]
    %v3579 = vld [vmem:[#allocation11 + $0x2588] sm:$0xff]
    %v3580 = vld [vmem:[#allocation11 + $0x2590] sm:$0xff]
    %v3581 = vld [vmem:[#allocation11 + $0x2598] sm:$0xff]
    %v3582 = vld [vmem:[#allocation11 + $0x25a0] sm:$0xff]
    %v3583 = vld [vmem:[#allocation11 + $0x25a8] sm:$0xff]
    %v3584 = vld [vmem:[#allocation11 + $0x25b0] sm:$0xff]
    %v3585 = vld [vmem:[#allocation11 + $0x25b8] sm:$0xff]
    %v3586 = vld [vmem:[#allocation11 + $0x25c0] sm:$0xff]
    %v3587 = vld [vmem:[#allocation11 + $0x25c8] sm:$0xff]
    %v3588 = vld [vmem:[#allocation11 + $0x25d0] sm:$0xff]
    %v3589 = vld [vmem:[#allocation11 + $0x25d8] sm:$0xff]
    %v3590 = vld [vmem:[#allocation11 + $0x25e0] sm:$0xff]
    %v3591 = vld [vmem:[#allocation11 + $0x25e8] sm:$0xff]
    %v3592 = vld [vmem:[#allocation11 + $0x25f0] sm:$0xff]
    %v3593 = vld [vmem:[#allocation11 + $0x25f8] sm:$0xff]
    %v3594 = vld [vmem:[#allocation11 + $0x2600] sm:$0xff]
    %v3595 = vld [vmem:[#allocation11 + $0x2608] sm:$0xff]
    %v3596 = vld [vmem:[#allocation11 + $0x2610] sm:$0xff]
    %v3597 = vld [vmem:[#allocation11 + $0x2618] sm:$0xff]
    %v3598 = vld [vmem:[#allocation11 + $0x2620] sm:$0xff]
    %v3599 = vld [vmem:[#allocation11 + $0x2628] sm:$0xff]
    %v3600 = vld [vmem:[#allocation11 + $0x2630] sm:$0xff]
    %v3601 = vld [vmem:[#allocation11 + $0x2638] sm:$0xff]
    %v3602 = vld [vmem:[#allocation11 + $0x2640] sm:$0xff]
    %v3603 = vld [vmem:[#allocation11 + $0x2648] sm:$0xff]
    %v3604 = vld [vmem:[#allocation11 + $0x2650] sm:$0xff]
    %v3605 = vld [vmem:[#allocation11 + $0x2658] sm:$0xff]
    %v3606 = vld [vmem:[#allocation11 + $0x2660] sm:$0xff]
    %v3607 = vld [vmem:[#allocation11 + $0x2668] sm:$0xff]
    %v3608 = vld [vmem:[#allocation11 + $0x2670] sm:$0xff]
    %v3609 = vld [vmem:[#allocation11 + $0x2678] sm:$0xff]
    %v3610 = vld [vmem:[#allocation11 + $0x2680] sm:$0xff]
    %v3611 = vld [vmem:[#allocation11 + $0x2688] sm:$0xff]
    %v3612 = vld [vmem:[#allocation11 + $0x2690] sm:$0xff]
    %v3613 = vld [vmem:[#allocation11 + $0x2698] sm:$0xff]
    %v3614 = vld [vmem:[#allocation11 + $0x26a0] sm:$0xff]
    %v3615 = vld [vmem:[#allocation11 + $0x26a8] sm:$0xff]
    %v3616 = vld [vmem:[#allocation11 + $0x26b0] sm:$0xff]
    %v3617 = vld [vmem:[#allocation11 + $0x26b8] sm:$0xff]
    %v3618 = vld [vmem:[#allocation11 + $0x26c0] sm:$0xff]
    %v3619 = vld [vmem:[#allocation11 + $0x26c8] sm:$0xff]
    %v3620 = vld [vmem:[#allocation11 + $0x26d0] sm:$0xff]
    %v3621 = vld [vmem:[#allocation11 + $0x26d8] sm:$0xff]
    %v3622 = vld [vmem:[#allocation11 + $0x26e0] sm:$0xff]
    %v3623 = vld [vmem:[#allocation11 + $0x26e8] sm:$0xff]
    %v3624 = vld [vmem:[#allocation11 + $0x26f0] sm:$0xff]
    %v3625 = vld [vmem:[#allocation11 + $0x26f8] sm:$0xff]
    %v3626 = vld [vmem:[#allocation11 + $0x2700] sm:$0xff]
    %v3627 = vld [vmem:[#allocation11 + $0x2708] sm:$0xff]
    %v3628 = vld [vmem:[#allocation11 + $0x2710] sm:$0xff]
    %v3629 = vld [vmem:[#allocation11 + $0x2718] sm:$0xff]
    %v3630 = vld [vmem:[#allocation11 + $0x2720] sm:$0xff]
    %v3631 = vld [vmem:[#allocation11 + $0x2728] sm:$0xff]
    %v3632 = vld [vmem:[#allocation11 + $0x2730] sm:$0xff]
    %v3633 = vld [vmem:[#allocation11 + $0x2738] sm:$0xff]
    %v3634 = vld [vmem:[#allocation11 + $0x2740] sm:$0xff]
    %v3635 = vld [vmem:[#allocation11 + $0x2748] sm:$0xff]
    %v3636 = vld [vmem:[#allocation11 + $0x2750] sm:$0xff]
    %v3637 = vld [vmem:[#allocation11 + $0x2758] sm:$0xff]
    %v3638 = vld [vmem:[#allocation11 + $0x2760] sm:$0xff]
    %v3639 = vld [vmem:[#allocation11 + $0x2768] sm:$0xff]
    %v3640 = vld [vmem:[#allocation11 + $0x2770] sm:$0xff]
    %v3641 = vld [vmem:[#allocation11 + $0x2778] sm:$0xff]
    %v3642 = vld [vmem:[#allocation11 + $0x2780] sm:$0xff]
    %v3643 = vld [vmem:[#allocation11 + $0x2788] sm:$0xff]
    %v3644 = vld [vmem:[#allocation11 + $0x2790] sm:$0xff]
    %v3645 = vld [vmem:[#allocation11 + $0x2798] sm:$0xff]
    %v3646 = vld [vmem:[#allocation11 + $0x27a0] sm:$0xff]
    %v3647 = vld [vmem:[#allocation11 + $0x27a8] sm:$0xff]
    %v3648 = vld [vmem:[#allocation11 + $0x27b0] sm:$0xff]
    %v3649 = vld [vmem:[#allocation11 + $0x27b8] sm:$0xff]
    %v3650 = vld [vmem:[#allocation11 + $0x27c0] sm:$0xff]
    %v3651 = vld [vmem:[#allocation11 + $0x27c8] sm:$0xff]
    %v3652 = vld [vmem:[#allocation11 + $0x27d0] sm:$0xff]
    %v3653 = vld [vmem:[#allocation11 + $0x27d8] sm:$0xff]
    %v3654 = vld [vmem:[#allocation11 + $0x27e0] sm:$0xff]
    %v3655 = vld [vmem:[#allocation11 + $0x27e8] sm:$0xff]
    %v3656 = vld [vmem:[#allocation11 + $0x27f0] sm:$0xff]
    %v3657 = vld [vmem:[#allocation11 + $0x27f8] sm:$0xff]
    %v3658 = vld [vmem:[#allocation11 + $0x2800] sm:$0xff]
    %v3659 = vld [vmem:[#allocation11 + $0x2808] sm:$0xff]
    %v3660 = vld [vmem:[#allocation11 + $0x2810] sm:$0xff]
    %v3661 = vld [vmem:[#allocation11 + $0x2818] sm:$0xff]
    %v3662 = vld [vmem:[#allocation11 + $0x2820] sm:$0xff]
    %v3663 = vld [vmem:[#allocation11 + $0x2828] sm:$0xff]
    %v3664 = vld [vmem:[#allocation11 + $0x2830] sm:$0xff]
    %v3665 = vld [vmem:[#allocation11 + $0x2838] sm:$0xff]
    %v3666 = vld [vmem:[#allocation11 + $0x2840] sm:$0xff]
    %v3667 = vld [vmem:[#allocation11 + $0x2848] sm:$0xff]
    %v3668 = vld [vmem:[#allocation11 + $0x2850] sm:$0xff]
    %v3669 = vld [vmem:[#allocation11 + $0x2858] sm:$0xff]
    %v3670 = vld [vmem:[#allocation11 + $0x2860] sm:$0xff]
    %v3671 = vld [vmem:[#allocation11 + $0x2868] sm:$0xff]
    %v3672 = vld [vmem:[#allocation11 + $0x2870] sm:$0xff]
    %v3673 = vld [vmem:[#allocation11 + $0x2878] sm:$0xff]
    %v3674 = vld [vmem:[#allocation11 + $0x2880] sm:$0xff]
    %v3675 = vld [vmem:[#allocation11 + $0x2888] sm:$0xff]
    %v3676 = vld [vmem:[#allocation11 + $0x2890] sm:$0xff]
    %v3677 = vld [vmem:[#allocation11 + $0x2898] sm:$0xff]
    %v3678 = vld [vmem:[#allocation11 + $0x28a0] sm:$0xff]
    %v3679 = vld [vmem:[#allocation11 + $0x28a8] sm:$0xff]
    %v3680 = vld [vmem:[#allocation11 + $0x28b0] sm:$0xff]
    %v3681 = vld [vmem:[#allocation11 + $0x28b8] sm:$0xff]
    %v3682 = vld [vmem:[#allocation11 + $0x28c0] sm:$0xff]
    %v3683 = vld [vmem:[#allocation11 + $0x28c8] sm:$0xff]
    %v3684 = vld [vmem:[#allocation11 + $0x28d0] sm:$0xff]
    %v3685 = vld [vmem:[#allocation11 + $0x28d8] sm:$0xff]
    %v3686 = vld [vmem:[#allocation11 + $0x28e0] sm:$0xff]
    %v3687 = vld [vmem:[#allocation11 + $0x28e8] sm:$0xff]
    %v3688 = vld [vmem:[#allocation11 + $0x28f0] sm:$0xff]
    %v3689 = vld [vmem:[#allocation11 + $0x28f8] sm:$0xff]
    %v3690 = vld [vmem:[#allocation11 + $0x2900] sm:$0xff]
    %v3691 = vld [vmem:[#allocation11 + $0x2908] sm:$0xff]
    %v3692 = vld [vmem:[#allocation11 + $0x2910] sm:$0xff]
    %v3693 = vld [vmem:[#allocation11 + $0x2918] sm:$0xff]
    %v3694 = vld [vmem:[#allocation11 + $0x2920] sm:$0xff]
    %v3695 = vld [vmem:[#allocation11 + $0x2928] sm:$0xff]
    %v3696 = vld [vmem:[#allocation11 + $0x2930] sm:$0xff]
    %v3697 = vld [vmem:[#allocation11 + $0x2938] sm:$0xff]
    %v3698 = vld [vmem:[#allocation11 + $0x2940] sm:$0xff]
    %v3699 = vld [vmem:[#allocation11 + $0x2948] sm:$0xff]
    %v3700 = vld [vmem:[#allocation11 + $0x2950] sm:$0xff]
    %v3701 = vld [vmem:[#allocation11 + $0x2958] sm:$0xff]
    %v3702 = vld [vmem:[#allocation11 + $0x2960] sm:$0xff]
    %v3703 = vld [vmem:[#allocation11 + $0x2968] sm:$0xff]
    %v3704 = vld [vmem:[#allocation11 + $0x2970] sm:$0xff]
    %v3705 = vld [vmem:[#allocation11 + $0x2978] sm:$0xff]
    %v3706 = vld [vmem:[#allocation11 + $0x2980] sm:$0xff]
    %v3707 = vld [vmem:[#allocation11 + $0x2988] sm:$0xff]
    %v3708 = vld [vmem:[#allocation11 + $0x2990] sm:$0xff]
    %v3709 = vld [vmem:[#allocation11 + $0x2998] sm:$0xff]
    %v3710 = vld [vmem:[#allocation11 + $0x29a0] sm:$0xff]
    %v3711 = vld [vmem:[#allocation11 + $0x29a8] sm:$0xff]
    %v3712 = vld [vmem:[#allocation11 + $0x29b0] sm:$0xff]
    %v3713 = vld [vmem:[#allocation11 + $0x29b8] sm:$0xff]
    %v3714 = vld [vmem:[#allocation11 + $0x29c0] sm:$0xff]
    %v3715 = vld [vmem:[#allocation11 + $0x29c8] sm:$0xff]
    %v3716 = vld [vmem:[#allocation11 + $0x29d0] sm:$0xff]
    %v3717 = vld [vmem:[#allocation11 + $0x29d8] sm:$0xff]
    %v3718 = vld [vmem:[#allocation11 + $0x29e0] sm:$0xff]
    %v3719 = vld [vmem:[#allocation11 + $0x29e8] sm:$0xff]
    %v3720 = vld [vmem:[#allocation11 + $0x29f0] sm:$0xff]
    %v3721 = vld [vmem:[#allocation11 + $0x29f8] sm:$0xff]
    %v3722 = vld [vmem:[#allocation11 + $0x2a00] sm:$0xff]
    %v3723 = vld [vmem:[#allocation11 + $0x2a08] sm:$0xff]
    %v3724 = vld [vmem:[#allocation11 + $0x2a10] sm:$0xff]
    %v3725 = vld [vmem:[#allocation11 + $0x2a18] sm:$0xff]
    %v3726 = vld [vmem:[#allocation11 + $0x2a20] sm:$0xff]
    %v3727 = vld [vmem:[#allocation11 + $0x2a28] sm:$0xff]
    %v3728 = vld [vmem:[#allocation11 + $0x2a30] sm:$0xff]
    %v3729 = vld [vmem:[#allocation11 + $0x2a38] sm:$0xff]
    %v3730 = vld [vmem:[#allocation11 + $0x2a40] sm:$0xff]
    %v3731 = vld [vmem:[#allocation11 + $0x2a48] sm:$0xff]
    %v3732 = vld [vmem:[#allocation11 + $0x2a50] sm:$0xff]
    %v3733 = vld [vmem:[#allocation11 + $0x2a58] sm:$0xff]
    %v3734 = vld [vmem:[#allocation11 + $0x2a60] sm:$0xff]
    %v3735 = vld [vmem:[#allocation11 + $0x2a68] sm:$0xff]
    %v3736 = vld [vmem:[#allocation11 + $0x2a70] sm:$0xff]
    %v3737 = vld [vmem:[#allocation11 + $0x2a78] sm:$0xff]
    %v3738 = vld [vmem:[#allocation11 + $0x2a80] sm:$0xff]
    %v3739 = vld [vmem:[#allocation11 + $0x2a88] sm:$0xff]
    %v3740 = vld [vmem:[#allocation11 + $0x2a90] sm:$0xff]
    %v3741 = vld [vmem:[#allocation11 + $0x2a98] sm:$0xff]
    %v3742 = vld [vmem:[#allocation11 + $0x2aa0] sm:$0xff]
    %v3743 = vld [vmem:[#allocation11 + $0x2aa8] sm:$0xff]
    %v3744 = vld [vmem:[#allocation11 + $0x2ab0] sm:$0xff]
    %v3745 = vld [vmem:[#allocation11 + $0x2ab8] sm:$0xff]
    %v3746 = vld [vmem:[#allocation11 + $0x2ac0] sm:$0xff]
    %v3747 = vld [vmem:[#allocation11 + $0x2ac8] sm:$0xff]
    %v3748 = vld [vmem:[#allocation11 + $0x2ad0] sm:$0xff]
    %v3749 = vld [vmem:[#allocation11 + $0x2ad8] sm:$0xff]
    %v3750 = vld [vmem:[#allocation11 + $0x2ae0] sm:$0xff]
    %v3751 = vld [vmem:[#allocation11 + $0x2ae8] sm:$0xff]
    %v3752 = vld [vmem:[#allocation11 + $0x2af0] sm:$0xff]
    %v3753 = vld [vmem:[#allocation11 + $0x2af8] sm:$0xff]
    %v3754 = vld [vmem:[#allocation11 + $0x2b00] sm:$0xff]
    %v3755 = vld [vmem:[#allocation11 + $0x2b08] sm:$0xff]
    %v3756 = vld [vmem:[#allocation11 + $0x2b10] sm:$0xff]
    %v3757 = vld [vmem:[#allocation11 + $0x2b18] sm:$0xff]
    %v3758 = vld [vmem:[#allocation11 + $0x2b20] sm:$0xff]
    %v3759 = vld [vmem:[#allocation11 + $0x2b28] sm:$0xff]
    %v3760 = vld [vmem:[#allocation11 + $0x2b30] sm:$0xff]
    %v3761 = vld [vmem:[#allocation11 + $0x2b38] sm:$0xff]
    %v3762 = vld [vmem:[#allocation11 + $0x2b40] sm:$0xff]
    %v3763 = vld [vmem:[#allocation11 + $0x2b48] sm:$0xff]
    %v3764 = vld [vmem:[#allocation11 + $0x2b50] sm:$0xff]
    %v3765 = vld [vmem:[#allocation11 + $0x2b58] sm:$0xff]
    %v3766 = vld [vmem:[#allocation11 + $0x2b60] sm:$0xff]
    %v3767 = vld [vmem:[#allocation11 + $0x2b68] sm:$0xff]
    %v3768 = vld [vmem:[#allocation11 + $0x2b70] sm:$0xff]
    %v3769 = vld [vmem:[#allocation11 + $0x2b78] sm:$0xff]
    %v3770 = vld [vmem:[#allocation11 + $0x2b80] sm:$0xff]
    %v3771 = vld [vmem:[#allocation11 + $0x2b88] sm:$0xff]
    %v3772 = vld [vmem:[#allocation11 + $0x2b90] sm:$0xff]
    %v3773 = vld [vmem:[#allocation11 + $0x2b98] sm:$0xff]
    %v3774 = vld [vmem:[#allocation11 + $0x2ba0] sm:$0xff]
    %v3775 = vld [vmem:[#allocation11 + $0x2ba8] sm:$0xff]
    %v3776 = vld [vmem:[#allocation11 + $0x2bb0] sm:$0xff]
    %v3777 = vld [vmem:[#allocation11 + $0x2bb8] sm:$0xff]
    %v3778 = vld [vmem:[#allocation11 + $0x2bc0] sm:$0xff]
    %v3779 = vld [vmem:[#allocation11 + $0x2bc8] sm:$0xff]
    %v3780 = vld [vmem:[#allocation11 + $0x2bd0] sm:$0xff]
    %v3781 = vld [vmem:[#allocation11 + $0x2bd8] sm:$0xff]
    %v3782 = vld [vmem:[#allocation11 + $0x2be0] sm:$0xff]
    %v3783 = vld [vmem:[#allocation11 + $0x2be8] sm:$0xff]
    %v3784 = vld [vmem:[#allocation11 + $0x2bf0] sm:$0xff]
    %v3785 = vld [vmem:[#allocation11 + $0x2bf8] sm:$0xff]
    %v3786 = vld [vmem:[#allocation11 + $0x2c00] sm:$0xff]
    %v3787 = vld [vmem:[#allocation11 + $0x2c08] sm:$0xff]
    %v3788 = vld [vmem:[#allocation11 + $0x2c10] sm:$0xff]
    %v3789 = vld [vmem:[#allocation11 + $0x2c18] sm:$0xff]
    %v3790 = vld [vmem:[#allocation11 + $0x2c20] sm:$0xff]
    %v3791 = vld [vmem:[#allocation11 + $0x2c28] sm:$0xff]
    %v3792 = vld [vmem:[#allocation11 + $0x2c30] sm:$0xff]
    %v3793 = vld [vmem:[#allocation11 + $0x2c38] sm:$0xff]
    %v3794 = vld [vmem:[#allocation11 + $0x2c40] sm:$0xff]
    %v3795 = vld [vmem:[#allocation11 + $0x2c48] sm:$0xff]
    %v3796 = vld [vmem:[#allocation11 + $0x2c50] sm:$0xff]
    %v3797 = vld [vmem:[#allocation11 + $0x2c58] sm:$0xff]
    %v3798 = vld [vmem:[#allocation11 + $0x2c60] sm:$0xff]
    %v3799 = vld [vmem:[#allocation11 + $0x2c68] sm:$0xff]
    %v3800 = vld [vmem:[#allocation11 + $0x2c70] sm:$0xff]
    %v3801 = vld [vmem:[#allocation11 + $0x2c78] sm:$0xff]
    %v3802 = vld [vmem:[#allocation11 + $0x2c80] sm:$0xff]
    %v3803 = vld [vmem:[#allocation11 + $0x2c88] sm:$0xff]
    %v3804 = vld [vmem:[#allocation11 + $0x2c90] sm:$0xff]
    %v3805 = vld [vmem:[#allocation11 + $0x2c98] sm:$0xff]
    %v3806 = vld [vmem:[#allocation11 + $0x2ca0] sm:$0xff]
    %v3807 = vld [vmem:[#allocation11 + $0x2ca8] sm:$0xff]
    %v3808 = vld [vmem:[#allocation11 + $0x2cb0] sm:$0xff]
    %v3809 = vld [vmem:[#allocation11 + $0x2cb8] sm:$0xff]
    %v3810 = vld [vmem:[#allocation11 + $0x2cc0] sm:$0xff]
    %v3811 = vld [vmem:[#allocation11 + $0x2cc8] sm:$0xff]
    %v3812 = vld [vmem:[#allocation11 + $0x2cd0] sm:$0xff]
    %v3813 = vld [vmem:[#allocation11 + $0x2cd8] sm:$0xff]
    %v3814 = vld [vmem:[#allocation11 + $0x2ce0] sm:$0xff]
    %v3815 = vld [vmem:[#allocation11 + $0x2ce8] sm:$0xff]
    %v3816 = vld [vmem:[#allocation11 + $0x2cf0] sm:$0xff]
    %v3817 = vld [vmem:[#allocation11 + $0x2cf8] sm:$0xff]
    %v3818 = vld [vmem:[#allocation11 + $0x2d00] sm:$0xff]
    %v3819 = vld [vmem:[#allocation11 + $0x2d08] sm:$0xff]
    %v3820 = vld [vmem:[#allocation11 + $0x2d10] sm:$0xff]
    %v3821 = vld [vmem:[#allocation11 + $0x2d18] sm:$0xff]
    %v3822 = vld [vmem:[#allocation11 + $0x2d20] sm:$0xff]
    %v3823 = vld [vmem:[#allocation11 + $0x2d28] sm:$0xff]
    %v3824 = vld [vmem:[#allocation11 + $0x2d30] sm:$0xff]
    %v3825 = vld [vmem:[#allocation11 + $0x2d38] sm:$0xff]
    %v3826 = vld [vmem:[#allocation11 + $0x2d40] sm:$0xff]
    %v3827 = vld [vmem:[#allocation11 + $0x2d48] sm:$0xff]
    %v3828 = vld [vmem:[#allocation11 + $0x2d50] sm:$0xff]
    %v3829 = vld [vmem:[#allocation11 + $0x2d58] sm:$0xff]
    %v3830 = vld [vmem:[#allocation11 + $0x2d60] sm:$0xff]
    %v3831 = vld [vmem:[#allocation11 + $0x2d68] sm:$0xff]
    %v3832 = vld [vmem:[#allocation11 + $0x2d70] sm:$0xff]
    %v3833 = vld [vmem:[#allocation11 + $0x2d78] sm:$0xff]
    %v3834 = vld [vmem:[#allocation11 + $0x2d80] sm:$0xff]
    %v3835 = vld [vmem:[#allocation11 + $0x2d88] sm:$0xff]
    %v3836 = vld [vmem:[#allocation11 + $0x2d90] sm:$0xff]
    %v3837 = vld [vmem:[#allocation11 + $0x2d98] sm:$0xff]
    %v3838 = vld [vmem:[#allocation11 + $0x2da0] sm:$0xff]
    %v3839 = vld [vmem:[#allocation11 + $0x2da8] sm:$0xff]
    %v3840 = vld [vmem:[#allocation11 + $0x2db0] sm:$0xff]
    %v3841 = vld [vmem:[#allocation11 + $0x2db8] sm:$0xff]
    %v3842 = vld [vmem:[#allocation11 + $0x2dc0] sm:$0xff]
    %v3843 = vld [vmem:[#allocation11 + $0x2dc8] sm:$0xff]
    %v3844 = vld [vmem:[#allocation11 + $0x2dd0] sm:$0xff]
    %v3845 = vld [vmem:[#allocation11 + $0x2dd8] sm:$0xff]
    %v3846 = vld [vmem:[#allocation11 + $0x2de0] sm:$0xff]
    %v3847 = vld [vmem:[#allocation11 + $0x2de8] sm:$0xff]
    %v3848 = vld [vmem:[#allocation11 + $0x2df0] sm:$0xff]
    %v3849 = vld [vmem:[#allocation11 + $0x2df8] sm:$0xff]
    %v3850 = vld [vmem:[#allocation11 + $0x2e00] sm:$0xff]
    %v3851 = vld [vmem:[#allocation11 + $0x2e08] sm:$0xff]
    %v3852 = vld [vmem:[#allocation11 + $0x2e10] sm:$0xff]
    %v3853 = vld [vmem:[#allocation11 + $0x2e18] sm:$0xff]
    %v3854 = vld [vmem:[#allocation11 + $0x2e20] sm:$0xff]
    %v3855 = vld [vmem:[#allocation11 + $0x2e28] sm:$0xff]
    %v3856 = vld [vmem:[#allocation11 + $0x2e30] sm:$0xff]
    %v3857 = vld [vmem:[#allocation11 + $0x2e38] sm:$0xff]
    %v3858 = vld [vmem:[#allocation11 + $0x2e40] sm:$0xff]
    %v3859 = vld [vmem:[#allocation11 + $0x2e48] sm:$0xff]
    %v3860 = vld [vmem:[#allocation11 + $0x2e50] sm:$0xff]
    %v3861 = vld [vmem:[#allocation11 + $0x2e58] sm:$0xff]
    %v3862 = vld [vmem:[#allocation11 + $0x2e60] sm:$0xff]
    %v3863 = vld [vmem:[#allocation11 + $0x2e68] sm:$0xff]
    %v3864 = vld [vmem:[#allocation11 + $0x2e70] sm:$0xff]
    %v3865 = vld [vmem:[#allocation11 + $0x2e78] sm:$0xff]
    %v3866 = vld [vmem:[#allocation11 + $0x2e80] sm:$0xff]
    %v3867 = vld [vmem:[#allocation11 + $0x2e88] sm:$0xff]
    %v3868 = vld [vmem:[#allocation11 + $0x2e90] sm:$0xff]
    %v3869 = vld [vmem:[#allocation11 + $0x2e98] sm:$0xff]
    %v3870 = vld [vmem:[#allocation11 + $0x2ea0] sm:$0xff]
    %v3871 = vld [vmem:[#allocation11 + $0x2ea8] sm:$0xff]
    %v3872 = vld [vmem:[#allocation11 + $0x2eb0] sm:$0xff]
    %v3873 = vld [vmem:[#allocation11 + $0x2eb8] sm:$0xff]
    %v3874 = vld [vmem:[#allocation11 + $0x2ec0] sm:$0xff]
    %v3875 = vld [vmem:[#allocation11 + $0x2ec8] sm:$0xff]
    %v3876 = vld [vmem:[#allocation11 + $0x2ed0] sm:$0xff]
    %v3877 = vld [vmem:[#allocation11 + $0x2ed8] sm:$0xff]
    %v3878 = vld [vmem:[#allocation11 + $0x2ee0] sm:$0xff]
    %v3879 = vld [vmem:[#allocation11 + $0x2ee8] sm:$0xff]
    %v3880 = vld [vmem:[#allocation11 + $0x2ef0] sm:$0xff]
    %v3881 = vld [vmem:[#allocation11 + $0x2ef8] sm:$0xff]
    %v3882 = vld [vmem:[#allocation11 + $0x2f00] sm:$0xff]
    %v3883 = vld [vmem:[#allocation11 + $0x2f08] sm:$0xff]
    %v3884 = vld [vmem:[#allocation11 + $0x2f10] sm:$0xff]
    %v3885 = vld [vmem:[#allocation11 + $0x2f18] sm:$0xff]
    %v3886 = vld [vmem:[#allocation11 + $0x2f20] sm:$0xff]
    %v3887 = vld [vmem:[#allocation11 + $0x2f28] sm:$0xff]
    %v3888 = vld [vmem:[#allocation11 + $0x2f30] sm:$0xff]
    %v3889 = vld [vmem:[#allocation11 + $0x2f38] sm:$0xff]
    %v3890 = vld [vmem:[#allocation11 + $0x2f40] sm:$0xff]
    %v3891 = vld [vmem:[#allocation11 + $0x2f48] sm:$0xff]
    %v3892 = vld [vmem:[#allocation11 + $0x2f50] sm:$0xff]
    %v3893 = vld [vmem:[#allocation11 + $0x2f58] sm:$0xff]
    %v3894 = vld [vmem:[#allocation11 + $0x2f60] sm:$0xff]
    %v3895 = vld [vmem:[#allocation11 + $0x2f68] sm:$0xff]
    %v3896 = vld [vmem:[#allocation11 + $0x2f70] sm:$0xff]
    %v3897 = vld [vmem:[#allocation11 + $0x2f78] sm:$0xff]
    %v3898 = vld [vmem:[#allocation11 + $0x2f80] sm:$0xff]
    %v3899 = vld [vmem:[#allocation11 + $0x2f88] sm:$0xff]
    %v3900 = vld [vmem:[#allocation11 + $0x2f90] sm:$0xff]
    %v3901 = vld [vmem:[#allocation11 + $0x2f98] sm:$0xff]
    %v3902 = vld [vmem:[#allocation11 + $0x2fa0] sm:$0xff]
    %v3903 = vld [vmem:[#allocation11 + $0x2fa8] sm:$0xff]
    %v3904 = vld [vmem:[#allocation11 + $0x2fb0] sm:$0xff]
    %v3905 = vld [vmem:[#allocation11 + $0x2fb8] sm:$0xff]
    %v3906 = vld [vmem:[#allocation11 + $0x2fc0] sm:$0xff]
    %v3907 = vld [vmem:[#allocation11 + $0x2fc8] sm:$0xff]
    %v3908 = vld [vmem:[#allocation11 + $0x2fd0] sm:$0xff]
    %v3909 = vld [vmem:[#allocation11 + $0x2fd8] sm:$0xff]
    %v3910 = vld [vmem:[#allocation11 + $0x2fe0] sm:$0xff]
    %v3911 = vld [vmem:[#allocation11 + $0x2fe8] sm:$0xff]
    %v3912 = vld [vmem:[#allocation11 + $0x2ff0] sm:$0xff]
    %v3913 = vld [vmem:[#allocation11 + $0x2ff8] sm:$0xff]
    %v3914 = vld [vmem:[#allocation13] sm:$0xff]
    %v3915 = vld [vmem:[#allocation13 + $0x8] sm:$0xff]
    %v3916 = vld [vmem:[#allocation13 + $0x10] sm:$0xff]
    %v3920 = vperm.slane %v3914, 0
    %v3921 = vperm.slane %v3914, 1
    %v3922 = vperm.slane %v3914, 2
    %v3923 = vperm.slane %v3914, 3
    %v3924 = vperm.slane %v3914, 4
    %v3925 = vperm.slane %v3914, 5
    %v3926 = vperm.slane %v3914, 6
    %v3927 = vperm.slane %v3914, 7
    %v3928 = vperm.slane %v3915, 0
    %v3929 = vperm.slane %v3915, 1
    %v3930 = vperm.slane %v3915, 2
    %v3931 = vperm.slane %v3915, 3
    %v3932 = vperm.slane %v3915, 4
    %v3933 = vperm.slane %v3915, 5
    %v3934 = vperm.slane %v3915, 6
    %v3935 = vperm.slane %v3915, 7
    %v3936 = vperm.slane %v3916, 0
    %v3937 = vperm.slane %v3916, 1
    %v3938 = vperm.slane %v3916, 2
    %v3939 = vperm.slane %v3916, 3
    %v3940 = vperm.slane %v3916, 4
    %v3941 = vperm.slane %v3916, 5
    %v3942 = vperm.slane %v3916, 6
    %v3943 = vperm.slane %v3916, 7
    %v5504 = vunpack.c.l.b16 %v2378
    %v5505 = vunpack.c.h.b16 %v2378
    %v5506 = vunpack.c.l.b16 %v2379
    %v5507 = vunpack.c.h.b16 %v2379
    %v5508 = vunpack.c.l.b16 %v2380
    %v5509 = vunpack.c.h.b16 %v2380
    %v5510 = vunpack.c.l.b16 %v2381
    %v5511 = vunpack.c.h.b16 %v2381
    %v5512 = vunpack.c.l.b16 %v2382
    %v5513 = vunpack.c.h.b16 %v2382
    %v5514 = vunpack.c.l.b16 %v2383
    %v5515 = vunpack.c.h.b16 %v2383
    %v5516 = vunpack.c.l.b16 %v2384
    %v5517 = vunpack.c.h.b16 %v2384
    %v5518 = vunpack.c.l.b16 %v2385
    %v5519 = vunpack.c.h.b16 %v2385
    %v5520 = vunpack.c.l.b16 %v2386
    %v5521 = vunpack.c.h.b16 %v2386
    %v5522 = vunpack.c.l.b16 %v2387
    %v5523 = vunpack.c.h.b16 %v2387
    %v5524 = vunpack.c.l.b16 %v2388
    %v5525 = vunpack.c.h.b16 %v2388
    %v5526 = vunpack.c.l.b16 %v2389
    %v5527 = vunpack.c.h.b16 %v2389
    %v5528 = vunpack.c.l.b16 %v2390
    %v5529 = vunpack.c.h.b16 %v2390
    %v5530 = vunpack.c.l.b16 %v2391
    %v5531 = vunpack.c.h.b16 %v2391
    %v5532 = vunpack.c.l.b16 %v2392
    %v5533 = vunpack.c.h.b16 %v2392
    %v5534 = vunpack.c.l.b16 %v2393
    %v5535 = vunpack.c.h.b16 %v2393
    %v5536 = vunpack.c.l.b16 %v2394
    %v5537 = vunpack.c.h.b16 %v2394
    %v5538 = vunpack.c.l.b16 %v2395
    %v5539 = vunpack.c.h.b16 %v2395
    %v5540 = vunpack.c.l.b16 %v2396
    %v5541 = vunpack.c.h.b16 %v2396
    %v5542 = vunpack.c.l.b16 %v2397
    %v5543 = vunpack.c.h.b16 %v2397
    %v5544 = vunpack.c.l.b16 %v2398
    %v5545 = vunpack.c.h.b16 %v2398
    %v5546 = vunpack.c.l.b16 %v2399
    %v5547 = vunpack.c.h.b16 %v2399
    %v5548 = vunpack.c.l.b16 %v2400
    %v5549 = vunpack.c.h.b16 %v2400
    %v5550 = vunpack.c.l.b16 %v2401
    %v5551 = vunpack.c.h.b16 %v2401
    %v5552 = vunpack.c.l.b16 %v2402
    %v5553 = vunpack.c.h.b16 %v2402
    %v5554 = vunpack.c.l.b16 %v2403
    %v5555 = vunpack.c.h.b16 %v2403
    %v5556 = vunpack.c.l.b16 %v2404
    %v5557 = vunpack.c.h.b16 %v2404
    %v5558 = vunpack.c.l.b16 %v2405
    %v5559 = vunpack.c.h.b16 %v2405
    %v5560 = vunpack.c.l.b16 %v2406
    %v5561 = vunpack.c.h.b16 %v2406
    %v5562 = vunpack.c.l.b16 %v2407
    %v5563 = vunpack.c.h.b16 %v2407
    %v5564 = vunpack.c.l.b16 %v2408
    %v5565 = vunpack.c.h.b16 %v2408
    %v5566 = vunpack.c.l.b16 %v2409
    %v5567 = vunpack.c.h.b16 %v2409
    %v5568 = vunpack.c.l.b16 %v2410
    %v5569 = vunpack.c.h.b16 %v2410
    %v5570 = vunpack.c.l.b16 %v2411
    %v5571 = vunpack.c.h.b16 %v2411
    %v5572 = vunpack.c.l.b16 %v2412
    %v5573 = vunpack.c.h.b16 %v2412
    %v5574 = vunpack.c.l.b16 %v2413
    %v5575 = vunpack.c.h.b16 %v2413
    %v5576 = vunpack.c.l.b16 %v2414
    %v5577 = vunpack.c.h.b16 %v2414
    %v5578 = vunpack.c.l.b16 %v2415
    %v5579 = vunpack.c.h.b16 %v2415
    %v5580 = vunpack.c.l.b16 %v2416
    %v5581 = vunpack.c.h.b16 %v2416
    %v5582 = vunpack.c.l.b16 %v2417
    %v5583 = vunpack.c.h.b16 %v2417
    %v5584 = vunpack.c.l.b16 %v2418
    %v5585 = vunpack.c.h.b16 %v2418
    %v5586 = vunpack.c.l.b16 %v2419
    %v5587 = vunpack.c.h.b16 %v2419
    %v5588 = vunpack.c.l.b16 %v2420
    %v5589 = vunpack.c.h.b16 %v2420
    %v5590 = vunpack.c.l.b16 %v2421
    %v5591 = vunpack.c.h.b16 %v2421
    %v5592 = vunpack.c.l.b16 %v2422
    %v5593 = vunpack.c.h.b16 %v2422
    %v5594 = vunpack.c.l.b16 %v2423
    %v5595 = vunpack.c.h.b16 %v2423
    %v5596 = vunpack.c.l.b16 %v2424
    %v5597 = vunpack.c.h.b16 %v2424
    %v5598 = vunpack.c.l.b16 %v2425
    %v5599 = vunpack.c.h.b16 %v2425
    %v5600 = vunpack.c.l.b16 %v2426
    %v5601 = vunpack.c.h.b16 %v2426
    %v5602 = vunpack.c.l.b16 %v2427
    %v5603 = vunpack.c.h.b16 %v2427
    %v5604 = vunpack.c.l.b16 %v2428
    %v5605 = vunpack.c.h.b16 %v2428
    %v5606 = vunpack.c.l.b16 %v2429
    %v5607 = vunpack.c.h.b16 %v2429
    %v5608 = vunpack.c.l.b16 %v2430
    %v5609 = vunpack.c.h.b16 %v2430
    %v5610 = vunpack.c.l.b16 %v2431
    %v5611 = vunpack.c.h.b16 %v2431
    %v5612 = vunpack.c.l.b16 %v2432
    %v5613 = vunpack.c.h.b16 %v2432
    %v5614 = vunpack.c.l.b16 %v2433
    %v5615 = vunpack.c.h.b16 %v2433
    %v5616 = vunpack.c.l.b16 %v2434
    %v5617 = vunpack.c.h.b16 %v2434
    %v5618 = vunpack.c.l.b16 %v2435
    %v5619 = vunpack.c.h.b16 %v2435
    %v5620 = vunpack.c.l.b16 %v2436
    %v5621 = vunpack.c.h.b16 %v2436
    %v5622 = vunpack.c.l.b16 %v2437
    %v5623 = vunpack.c.h.b16 %v2437
    %v5624 = vunpack.c.l.b16 %v2438
    %v5625 = vunpack.c.h.b16 %v2438
    %v5626 = vunpack.c.l.b16 %v2439
    %v5627 = vunpack.c.h.b16 %v2439
    %v5628 = vunpack.c.l.b16 %v2440
    %v5629 = vunpack.c.h.b16 %v2440
    %v5630 = vunpack.c.l.b16 %v2441
    %v5631 = vunpack.c.h.b16 %v2441
    %v5632 = vunpack.c.l.b16 %v2442
    %v5633 = vunpack.c.h.b16 %v2442
    %v5634 = vunpack.c.l.b16 %v2443
    %v5635 = vunpack.c.h.b16 %v2443
    %v5636 = vunpack.c.l.b16 %v2444
    %v5637 = vunpack.c.h.b16 %v2444
    %v5638 = vunpack.c.l.b16 %v2445
    %v5639 = vunpack.c.h.b16 %v2445
    %v5640 = vunpack.c.l.b16 %v2446
    %v5641 = vunpack.c.h.b16 %v2446
    %v5642 = vunpack.c.l.b16 %v2447
    %v5643 = vunpack.c.h.b16 %v2447
    %v5644 = vunpack.c.l.b16 %v2448
    %v5645 = vunpack.c.h.b16 %v2448
    %v5646 = vunpack.c.l.b16 %v2449
    %v5647 = vunpack.c.h.b16 %v2449
    %v5648 = vunpack.c.l.b16 %v2450
    %v5649 = vunpack.c.h.b16 %v2450
    %v5650 = vunpack.c.l.b16 %v2451
    %v5651 = vunpack.c.h.b16 %v2451
    %v5652 = vunpack.c.l.b16 %v2452
    %v5653 = vunpack.c.h.b16 %v2452
    %v5654 = vunpack.c.l.b16 %v2453
    %v5655 = vunpack.c.h.b16 %v2453
    %v5656 = vunpack.c.l.b16 %v2454
    %v5657 = vunpack.c.h.b16 %v2454
    %v5658 = vunpack.c.l.b16 %v2455
    %v5659 = vunpack.c.h.b16 %v2455
    %v5660 = vunpack.c.l.b16 %v2456
    %v5661 = vunpack.c.h.b16 %v2456
    %v5662 = vunpack.c.l.b16 %v2457
    %v5663 = vunpack.c.h.b16 %v2457
    %v5664 = vunpack.c.l.b16 %v2458
    %v5665 = vunpack.c.h.b16 %v2458
    %v5666 = vunpack.c.l.b16 %v2459
    %v5667 = vunpack.c.h.b16 %v2459
    %v5668 = vunpack.c.l.b16 %v2460
    %v5669 = vunpack.c.h.b16 %v2460
    %v5670 = vunpack.c.l.b16 %v2461
    %v5671 = vunpack.c.h.b16 %v2461
    %v5672 = vunpack.c.l.b16 %v2462
    %v5673 = vunpack.c.h.b16 %v2462
    %v5674 = vunpack.c.l.b16 %v2463
    %v5675 = vunpack.c.h.b16 %v2463
    %v5676 = vunpack.c.l.b16 %v2464
    %v5677 = vunpack.c.h.b16 %v2464
    %v5678 = vunpack.c.l.b16 %v2465
    %v5679 = vunpack.c.h.b16 %v2465
    %v5680 = vunpack.c.l.b16 %v2466
    %v5681 = vunpack.c.h.b16 %v2466
    %v5682 = vunpack.c.l.b16 %v2467
    %v5683 = vunpack.c.h.b16 %v2467
    %v5684 = vunpack.c.l.b16 %v2468
    %v5685 = vunpack.c.h.b16 %v2468
    %v5686 = vunpack.c.l.b16 %v2469
    %v5687 = vunpack.c.h.b16 %v2469
    %v5688 = vunpack.c.l.b16 %v2470
    %v5689 = vunpack.c.h.b16 %v2470
    %v5690 = vunpack.c.l.b16 %v2471
    %v5691 = vunpack.c.h.b16 %v2471
    %v5692 = vunpack.c.l.b16 %v2472
    %v5693 = vunpack.c.h.b16 %v2472
    %v5694 = vunpack.c.l.b16 %v2473
    %v5695 = vunpack.c.h.b16 %v2473
    %v5696 = vunpack.c.l.b16 %v2474
    %v5697 = vunpack.c.h.b16 %v2474
    %v5698 = vunpack.c.l.b16 %v2475
    %v5699 = vunpack.c.h.b16 %v2475
    %v5700 = vunpack.c.l.b16 %v2476
    %v5701 = vunpack.c.h.b16 %v2476
    %v5702 = vunpack.c.l.b16 %v2477
    %v5703 = vunpack.c.h.b16 %v2477
    %v5704 = vunpack.c.l.b16 %v2478
    %v5705 = vunpack.c.h.b16 %v2478
    %v5706 = vunpack.c.l.b16 %v2479
    %v5707 = vunpack.c.h.b16 %v2479
    %v5708 = vunpack.c.l.b16 %v2480
    %v5709 = vunpack.c.h.b16 %v2480
    %v5710 = vunpack.c.l.b16 %v2481
    %v5711 = vunpack.c.h.b16 %v2481
    %v5712 = vunpack.c.l.b16 %v2482
    %v5713 = vunpack.c.h.b16 %v2482
    %v5714 = vunpack.c.l.b16 %v2483
    %v5715 = vunpack.c.h.b16 %v2483
    %v5716 = vunpack.c.l.b16 %v2484
    %v5717 = vunpack.c.h.b16 %v2484
    %v5718 = vunpack.c.l.b16 %v2485
    %v5719 = vunpack.c.h.b16 %v2485
    %v5720 = vunpack.c.l.b16 %v2486
    %v5721 = vunpack.c.h.b16 %v2486
    %v5722 = vunpack.c.l.b16 %v2487
    %v5723 = vunpack.c.h.b16 %v2487
    %v5724 = vunpack.c.l.b16 %v2488
    %v5725 = vunpack.c.h.b16 %v2488
    %v5726 = vunpack.c.l.b16 %v2489
    %v5727 = vunpack.c.h.b16 %v2489
    %v5728 = vunpack.c.l.b16 %v2490
    %v5729 = vunpack.c.h.b16 %v2490
    %v5730 = vunpack.c.l.b16 %v2491
    %v5731 = vunpack.c.h.b16 %v2491
    %v5732 = vunpack.c.l.b16 %v2492
    %v5733 = vunpack.c.h.b16 %v2492
    %v5734 = vunpack.c.l.b16 %v2493
    %v5735 = vunpack.c.h.b16 %v2493
    %v5736 = vunpack.c.l.b16 %v2494
    %v5737 = vunpack.c.h.b16 %v2494
    %v5738 = vunpack.c.l.b16 %v2495
    %v5739 = vunpack.c.h.b16 %v2495
    %v5740 = vunpack.c.l.b16 %v2496
    %v5741 = vunpack.c.h.b16 %v2496
    %v5742 = vunpack.c.l.b16 %v2497
    %v5743 = vunpack.c.h.b16 %v2497
    %v5744 = vunpack.c.l.b16 %v2498
    %v5745 = vunpack.c.h.b16 %v2498
    %v5746 = vunpack.c.l.b16 %v2499
    %v5747 = vunpack.c.h.b16 %v2499
    %v5748 = vunpack.c.l.b16 %v2500
    %v5749 = vunpack.c.h.b16 %v2500
    %v5750 = vunpack.c.l.b16 %v2501
    %v5751 = vunpack.c.h.b16 %v2501
    %v5752 = vunpack.c.l.b16 %v2502
    %v5753 = vunpack.c.h.b16 %v2502
    %v5754 = vunpack.c.l.b16 %v2503
    %v5755 = vunpack.c.h.b16 %v2503
    %v5756 = vunpack.c.l.b16 %v2504
    %v5757 = vunpack.c.h.b16 %v2504
    %v5758 = vunpack.c.l.b16 %v2505
    %v5759 = vunpack.c.h.b16 %v2505
    %v5760 = vunpack.c.l.b16 %v2506
    %v5761 = vunpack.c.h.b16 %v2506
    %v5762 = vunpack.c.l.b16 %v2507
    %v5763 = vunpack.c.h.b16 %v2507
    %v5764 = vunpack.c.l.b16 %v2508
    %v5765 = vunpack.c.h.b16 %v2508
    %v5766 = vunpack.c.l.b16 %v2509
    %v5767 = vunpack.c.h.b16 %v2509
    %v5768 = vunpack.c.l.b16 %v2510
    %v5769 = vunpack.c.h.b16 %v2510
    %v5770 = vunpack.c.l.b16 %v2511
    %v5771 = vunpack.c.h.b16 %v2511
    %v5772 = vunpack.c.l.b16 %v2512
    %v5773 = vunpack.c.h.b16 %v2512
    %v5774 = vunpack.c.l.b16 %v2513
    %v5775 = vunpack.c.h.b16 %v2513
    %v5776 = vunpack.c.l.b16 %v2514
    %v5777 = vunpack.c.h.b16 %v2514
    %v5778 = vunpack.c.l.b16 %v2515
    %v5779 = vunpack.c.h.b16 %v2515
    %v5780 = vunpack.c.l.b16 %v2516
    %v5781 = vunpack.c.h.b16 %v2516
    %v5782 = vunpack.c.l.b16 %v2517
    %v5783 = vunpack.c.h.b16 %v2517
    %v5784 = vunpack.c.l.b16 %v2518
    %v5785 = vunpack.c.h.b16 %v2518
    %v5786 = vunpack.c.l.b16 %v2519
    %v5787 = vunpack.c.h.b16 %v2519
    %v5788 = vunpack.c.l.b16 %v2520
    %v5789 = vunpack.c.h.b16 %v2520
    %v5790 = vunpack.c.l.b16 %v2521
    %v5791 = vunpack.c.h.b16 %v2521
    %v5792 = vunpack.c.l.b16 %v2522
    %v5793 = vunpack.c.h.b16 %v2522
    %v5794 = vunpack.c.l.b16 %v2523
    %v5795 = vunpack.c.h.b16 %v2523
    %v5796 = vunpack.c.l.b16 %v2524
    %v5797 = vunpack.c.h.b16 %v2524
    %v5798 = vunpack.c.l.b16 %v2525
    %v5799 = vunpack.c.h.b16 %v2525
    %v5800 = vunpack.c.l.b16 %v2526
    %v5801 = vunpack.c.h.b16 %v2526
    %v5802 = vunpack.c.l.b16 %v2527
    %v5803 = vunpack.c.h.b16 %v2527
    %v5804 = vunpack.c.l.b16 %v2528
    %v5805 = vunpack.c.h.b16 %v2528
    %v5806 = vunpack.c.l.b16 %v2529
    %v5807 = vunpack.c.h.b16 %v2529
    %v5808 = vunpack.c.l.b16 %v2530
    %v5809 = vunpack.c.h.b16 %v2530
    %v5810 = vunpack.c.l.b16 %v2531
    %v5811 = vunpack.c.h.b16 %v2531
    %v5812 = vunpack.c.l.b16 %v2532
    %v5813 = vunpack.c.h.b16 %v2532
    %v5814 = vunpack.c.l.b16 %v2533
    %v5815 = vunpack.c.h.b16 %v2533
    %v5816 = vunpack.c.l.b16 %v2534
    %v5817 = vunpack.c.h.b16 %v2534
    %v5818 = vunpack.c.l.b16 %v2535
    %v5819 = vunpack.c.h.b16 %v2535
    %v5820 = vunpack.c.l.b16 %v2536
    %v5821 = vunpack.c.h.b16 %v2536
    %v5822 = vunpack.c.l.b16 %v2537
    %v5823 = vunpack.c.h.b16 %v2537
    %v5824 = vunpack.c.l.b16 %v2538
    %v5825 = vunpack.c.h.b16 %v2538
    %v5826 = vunpack.c.l.b16 %v2539
    %v5827 = vunpack.c.h.b16 %v2539
    %v5828 = vunpack.c.l.b16 %v2540
    %v5829 = vunpack.c.h.b16 %v2540
    %v5830 = vunpack.c.l.b16 %v2541
    %v5831 = vunpack.c.h.b16 %v2541
    %v5832 = vunpack.c.l.b16 %v2542
    %v5833 = vunpack.c.h.b16 %v2542
    %v5834 = vunpack.c.l.b16 %v2543
    %v5835 = vunpack.c.h.b16 %v2543
    %v5836 = vunpack.c.l.b16 %v2544
    %v5837 = vunpack.c.h.b16 %v2544
    %v5838 = vunpack.c.l.b16 %v2545
    %v5839 = vunpack.c.h.b16 %v2545
    %v5840 = vunpack.c.l.b16 %v2546
    %v5841 = vunpack.c.h.b16 %v2546
    %v5842 = vunpack.c.l.b16 %v2547
    %v5843 = vunpack.c.h.b16 %v2547
    %v5844 = vunpack.c.l.b16 %v2548
    %v5845 = vunpack.c.h.b16 %v2548
    %v5846 = vunpack.c.l.b16 %v2549
    %v5847 = vunpack.c.h.b16 %v2549
    %v5848 = vunpack.c.l.b16 %v2550
    %v5849 = vunpack.c.h.b16 %v2550
    %v5850 = vunpack.c.l.b16 %v2551
    %v5851 = vunpack.c.h.b16 %v2551
    %v5852 = vunpack.c.l.b16 %v2552
    %v5853 = vunpack.c.h.b16 %v2552
    %v5854 = vunpack.c.l.b16 %v2553
    %v5855 = vunpack.c.h.b16 %v2553
    %v5856 = vunpack.c.l.b16 %v2554
    %v5857 = vunpack.c.h.b16 %v2554
    %v5858 = vunpack.c.l.b16 %v2555
    %v5859 = vunpack.c.h.b16 %v2555
    %v5860 = vunpack.c.l.b16 %v2556
    %v5861 = vunpack.c.h.b16 %v2556
    %v5862 = vunpack.c.l.b16 %v2557
    %v5863 = vunpack.c.h.b16 %v2557
    %v5864 = vunpack.c.l.b16 %v2558
    %v5865 = vunpack.c.h.b16 %v2558
    %v5866 = vunpack.c.l.b16 %v2559
    %v5867 = vunpack.c.h.b16 %v2559
    %v5868 = vunpack.c.l.b16 %v2560
    %v5869 = vunpack.c.h.b16 %v2560
    %v5870 = vunpack.c.l.b16 %v2561
    %v5871 = vunpack.c.h.b16 %v2561
    %v5872 = vunpack.c.l.b16 %v2562
    %v5873 = vunpack.c.h.b16 %v2562
    %v5874 = vunpack.c.l.b16 %v2563
    %v5875 = vunpack.c.h.b16 %v2563
    %v5876 = vunpack.c.l.b16 %v2564
    %v5877 = vunpack.c.h.b16 %v2564
    %v5878 = vunpack.c.l.b16 %v2565
    %v5879 = vunpack.c.h.b16 %v2565
    %v5880 = vunpack.c.l.b16 %v2566
    %v5881 = vunpack.c.h.b16 %v2566
    %v5882 = vunpack.c.l.b16 %v2567
    %v5883 = vunpack.c.h.b16 %v2567
    %v5884 = vunpack.c.l.b16 %v2568
    %v5885 = vunpack.c.h.b16 %v2568
    %v5886 = vunpack.c.l.b16 %v2569
    %v5887 = vunpack.c.h.b16 %v2569
    %v5888 = vunpack.c.l.b16 %v2570
    %v5889 = vunpack.c.h.b16 %v2570
    %v5890 = vunpack.c.l.b16 %v2571
    %v5891 = vunpack.c.h.b16 %v2571
    %v5892 = vunpack.c.l.b16 %v2572
    %v5893 = vunpack.c.h.b16 %v2572
    %v5894 = vunpack.c.l.b16 %v2573
    %v5895 = vunpack.c.h.b16 %v2573
    %v5896 = vunpack.c.l.b16 %v2574
    %v5897 = vunpack.c.h.b16 %v2574
    %v5898 = vunpack.c.l.b16 %v2575
    %v5899 = vunpack.c.h.b16 %v2575
    %v5900 = vunpack.c.l.b16 %v2576
    %v5901 = vunpack.c.h.b16 %v2576
    %v5902 = vunpack.c.l.b16 %v2577
    %v5903 = vunpack.c.h.b16 %v2577
    %v5904 = vunpack.c.l.b16 %v2578
    %v5905 = vunpack.c.h.b16 %v2578
    %v5906 = vunpack.c.l.b16 %v2579
    %v5907 = vunpack.c.h.b16 %v2579
    %v5908 = vunpack.c.l.b16 %v2580
    %v5909 = vunpack.c.h.b16 %v2580
    %v5910 = vunpack.c.l.b16 %v2581
    %v5911 = vunpack.c.h.b16 %v2581
    %v5912 = vunpack.c.l.b16 %v2582
    %v5913 = vunpack.c.h.b16 %v2582
    %v5914 = vunpack.c.l.b16 %v2583
    %v5915 = vunpack.c.h.b16 %v2583
    %v5916 = vunpack.c.l.b16 %v2584
    %v5917 = vunpack.c.h.b16 %v2584
    %v5918 = vunpack.c.l.b16 %v2585
    %v5919 = vunpack.c.h.b16 %v2585
    %v5920 = vunpack.c.l.b16 %v2586
    %v5921 = vunpack.c.h.b16 %v2586
    %v5922 = vunpack.c.l.b16 %v2587
    %v5923 = vunpack.c.h.b16 %v2587
    %v5924 = vunpack.c.l.b16 %v2588
    %v5925 = vunpack.c.h.b16 %v2588
    %v5926 = vunpack.c.l.b16 %v2589
    %v5927 = vunpack.c.h.b16 %v2589
    %v5928 = vunpack.c.l.b16 %v2590
    %v5929 = vunpack.c.h.b16 %v2590
    %v5930 = vunpack.c.l.b16 %v2591
    %v5931 = vunpack.c.h.b16 %v2591
    %v5932 = vunpack.c.l.b16 %v2592
    %v5933 = vunpack.c.h.b16 %v2592
    %v5934 = vunpack.c.l.b16 %v2593
    %v5935 = vunpack.c.h.b16 %v2593
    %v5936 = vunpack.c.l.b16 %v2594
    %v5937 = vunpack.c.h.b16 %v2594
    %v5938 = vunpack.c.l.b16 %v2595
    %v5939 = vunpack.c.h.b16 %v2595
    %v5940 = vunpack.c.l.b16 %v2596
    %v5941 = vunpack.c.h.b16 %v2596
    %v5942 = vunpack.c.l.b16 %v2597
    %v5943 = vunpack.c.h.b16 %v2597
    %v5944 = vunpack.c.l.b16 %v2598
    %v5945 = vunpack.c.h.b16 %v2598
    %v5946 = vunpack.c.l.b16 %v2599
    %v5947 = vunpack.c.h.b16 %v2599
    %v5948 = vunpack.c.l.b16 %v2600
    %v5949 = vunpack.c.h.b16 %v2600
    %v5950 = vunpack.c.l.b16 %v2601
    %v5951 = vunpack.c.h.b16 %v2601
    %v5952 = vunpack.c.l.b16 %v2602
    %v5953 = vunpack.c.h.b16 %v2602
    %v5954 = vunpack.c.l.b16 %v2603
    %v5955 = vunpack.c.h.b16 %v2603
    %v5956 = vunpack.c.l.b16 %v2604
    %v5957 = vunpack.c.h.b16 %v2604
    %v5958 = vunpack.c.l.b16 %v2605
    %v5959 = vunpack.c.h.b16 %v2605
    %v5960 = vunpack.c.l.b16 %v2606
    %v5961 = vunpack.c.h.b16 %v2606
    %v5962 = vunpack.c.l.b16 %v2607
    %v5963 = vunpack.c.h.b16 %v2607
    %v5964 = vunpack.c.l.b16 %v2608
    %v5965 = vunpack.c.h.b16 %v2608
    %v5966 = vunpack.c.l.b16 %v2609
    %v5967 = vunpack.c.h.b16 %v2609
    %v5968 = vunpack.c.l.b16 %v2610
    %v5969 = vunpack.c.h.b16 %v2610
    %v5970 = vunpack.c.l.b16 %v2611
    %v5971 = vunpack.c.h.b16 %v2611
    %v5972 = vunpack.c.l.b16 %v2612
    %v5973 = vunpack.c.h.b16 %v2612
    %v5974 = vunpack.c.l.b16 %v2613
    %v5975 = vunpack.c.h.b16 %v2613
    %v5976 = vunpack.c.l.b16 %v2614
    %v5977 = vunpack.c.h.b16 %v2614
    %v5978 = vunpack.c.l.b16 %v2615
    %v5979 = vunpack.c.h.b16 %v2615
    %v5980 = vunpack.c.l.b16 %v2616
    %v5981 = vunpack.c.h.b16 %v2616
    %v5982 = vunpack.c.l.b16 %v2617
    %v5983 = vunpack.c.h.b16 %v2617
    %v5984 = vunpack.c.l.b16 %v2618
    %v5985 = vunpack.c.h.b16 %v2618
    %v5986 = vunpack.c.l.b16 %v2619
    %v5987 = vunpack.c.h.b16 %v2619
    %v5988 = vunpack.c.l.b16 %v2620
    %v5989 = vunpack.c.h.b16 %v2620
    %v5990 = vunpack.c.l.b16 %v2621
    %v5991 = vunpack.c.h.b16 %v2621
    %v5992 = vunpack.c.l.b16 %v2622
    %v5993 = vunpack.c.h.b16 %v2622
    %v5994 = vunpack.c.l.b16 %v2623
    %v5995 = vunpack.c.h.b16 %v2623
    %v5996 = vunpack.c.l.b16 %v2624
    %v5997 = vunpack.c.h.b16 %v2624
    %v5998 = vunpack.c.l.b16 %v2625
    %v5999 = vunpack.c.h.b16 %v2625
    %v6000 = vunpack.c.l.b16 %v2626
    %v6001 = vunpack.c.h.b16 %v2626
    %v6002 = vunpack.c.l.b16 %v2627
    %v6003 = vunpack.c.h.b16 %v2627
    %v6004 = vunpack.c.l.b16 %v2628
    %v6005 = vunpack.c.h.b16 %v2628
    %v6006 = vunpack.c.l.b16 %v2629
    %v6007 = vunpack.c.h.b16 %v2629
    %v6008 = vunpack.c.l.b16 %v2630
    %v6009 = vunpack.c.h.b16 %v2630
    %v6010 = vunpack.c.l.b16 %v2631
    %v6011 = vunpack.c.h.b16 %v2631
    %v6012 = vunpack.c.l.b16 %v2632
    %v6013 = vunpack.c.h.b16 %v2632
    %v6014 = vunpack.c.l.b16 %v2633
    %v6015 = vunpack.c.h.b16 %v2633
    %v6016 = vunpack.c.l.b16 %v2634
    %v6017 = vunpack.c.h.b16 %v2634
    %v6018 = vunpack.c.l.b16 %v2635
    %v6019 = vunpack.c.h.b16 %v2635
    %v6020 = vunpack.c.l.b16 %v2636
    %v6021 = vunpack.c.h.b16 %v2636
    %v6022 = vunpack.c.l.b16 %v2637
    %v6023 = vunpack.c.h.b16 %v2637
    %v6024 = vunpack.c.l.b16 %v2638
    %v6025 = vunpack.c.h.b16 %v2638
    %v6026 = vunpack.c.l.b16 %v2639
    %v6027 = vunpack.c.h.b16 %v2639
    %v6028 = vunpack.c.l.b16 %v2640
    %v6029 = vunpack.c.h.b16 %v2640
    %v6030 = vunpack.c.l.b16 %v2641
    %v6031 = vunpack.c.h.b16 %v2641
    %v6032 = vunpack.c.l.b16 %v2642
    %v6033 = vunpack.c.h.b16 %v2642
    %v6034 = vunpack.c.l.b16 %v2643
    %v6035 = vunpack.c.h.b16 %v2643
    %v6036 = vunpack.c.l.b16 %v2644
    %v6037 = vunpack.c.h.b16 %v2644
    %v6038 = vunpack.c.l.b16 %v2645
    %v6039 = vunpack.c.h.b16 %v2645
    %v6040 = vunpack.c.l.b16 %v2646
    %v6041 = vunpack.c.h.b16 %v2646
    %v6042 = vunpack.c.l.b16 %v2647
    %v6043 = vunpack.c.h.b16 %v2647
    %v6044 = vunpack.c.l.b16 %v2648
    %v6045 = vunpack.c.h.b16 %v2648
    %v6046 = vunpack.c.l.b16 %v2649
    %v6047 = vunpack.c.h.b16 %v2649
    %v6048 = vunpack.c.l.b16 %v2650
    %v6049 = vunpack.c.h.b16 %v2650
    %v6050 = vunpack.c.l.b16 %v2651
    %v6051 = vunpack.c.h.b16 %v2651
    %v6052 = vunpack.c.l.b16 %v2652
    %v6053 = vunpack.c.h.b16 %v2652
    %v6054 = vunpack.c.l.b16 %v2653
    %v6055 = vunpack.c.h.b16 %v2653
    %v6056 = vunpack.c.l.b16 %v2654
    %v6057 = vunpack.c.h.b16 %v2654
    %v6058 = vunpack.c.l.b16 %v2655
    %v6059 = vunpack.c.h.b16 %v2655
    %v6060 = vunpack.c.l.b16 %v2656
    %v6061 = vunpack.c.h.b16 %v2656
    %v6062 = vunpack.c.l.b16 %v2657
    %v6063 = vunpack.c.h.b16 %v2657
    %v6064 = vunpack.c.l.b16 %v2658
    %v6065 = vunpack.c.h.b16 %v2658
    %v6066 = vunpack.c.l.b16 %v2659
    %v6067 = vunpack.c.h.b16 %v2659
    %v6068 = vunpack.c.l.b16 %v2660
    %v6069 = vunpack.c.h.b16 %v2660
    %v6070 = vunpack.c.l.b16 %v2661
    %v6071 = vunpack.c.h.b16 %v2661
    %v6072 = vunpack.c.l.b16 %v2662
    %v6073 = vunpack.c.h.b16 %v2662
    %v6074 = vunpack.c.l.b16 %v2663
    %v6075 = vunpack.c.h.b16 %v2663
    %v6076 = vunpack.c.l.b16 %v2664
    %v6077 = vunpack.c.h.b16 %v2664
    %v6078 = vunpack.c.l.b16 %v2665
    %v6079 = vunpack.c.h.b16 %v2665
    %v6080 = vunpack.c.l.b16 %v2666
    %v6081 = vunpack.c.h.b16 %v2666
    %v6082 = vunpack.c.l.b16 %v2667
    %v6083 = vunpack.c.h.b16 %v2667
    %v6084 = vunpack.c.l.b16 %v2668
    %v6085 = vunpack.c.h.b16 %v2668
    %v6086 = vunpack.c.l.b16 %v2669
    %v6087 = vunpack.c.h.b16 %v2669
    %v6088 = vunpack.c.l.b16 %v2670
    %v6089 = vunpack.c.h.b16 %v2670
    %v6090 = vunpack.c.l.b16 %v2671
    %v6091 = vunpack.c.h.b16 %v2671
    %v6092 = vunpack.c.l.b16 %v2672
    %v6093 = vunpack.c.h.b16 %v2672
    %v6094 = vunpack.c.l.b16 %v2673
    %v6095 = vunpack.c.h.b16 %v2673
    %v6096 = vunpack.c.l.b16 %v2674
    %v6097 = vunpack.c.h.b16 %v2674
    %v6098 = vunpack.c.l.b16 %v2675
    %v6099 = vunpack.c.h.b16 %v2675
    %v6100 = vunpack.c.l.b16 %v2676
    %v6101 = vunpack.c.h.b16 %v2676
    %v6102 = vunpack.c.l.b16 %v2677
    %v6103 = vunpack.c.h.b16 %v2677
    %v6104 = vunpack.c.l.b16 %v2678
    %v6105 = vunpack.c.h.b16 %v2678
    %v6106 = vunpack.c.l.b16 %v2679
    %v6107 = vunpack.c.h.b16 %v2679
    %v6108 = vunpack.c.l.b16 %v2680
    %v6109 = vunpack.c.h.b16 %v2680
    %v6110 = vunpack.c.l.b16 %v2681
    %v6111 = vunpack.c.h.b16 %v2681
    %v6112 = vunpack.c.l.b16 %v2682
    %v6113 = vunpack.c.h.b16 %v2682
    %v6114 = vunpack.c.l.b16 %v2683
    %v6115 = vunpack.c.h.b16 %v2683
    %v6116 = vunpack.c.l.b16 %v2684
    %v6117 = vunpack.c.h.b16 %v2684
    %v6118 = vunpack.c.l.b16 %v2685
    %v6119 = vunpack.c.h.b16 %v2685
    %v6120 = vunpack.c.l.b16 %v2686
    %v6121 = vunpack.c.h.b16 %v2686
    %v6122 = vunpack.c.l.b16 %v2687
    %v6123 = vunpack.c.h.b16 %v2687
    %v6124 = vunpack.c.l.b16 %v2688
    %v6125 = vunpack.c.h.b16 %v2688
    %v6126 = vunpack.c.l.b16 %v2689
    %v6127 = vunpack.c.h.b16 %v2689
    %v6128 = vunpack.c.l.b16 %v2690
    %v6129 = vunpack.c.h.b16 %v2690
    %v6130 = vunpack.c.l.b16 %v2691
    %v6131 = vunpack.c.h.b16 %v2691
    %v6132 = vunpack.c.l.b16 %v2692
    %v6133 = vunpack.c.h.b16 %v2692
    %v6134 = vunpack.c.l.b16 %v2693
    %v6135 = vunpack.c.h.b16 %v2693
    %v6136 = vunpack.c.l.b16 %v2694
    %v6137 = vunpack.c.h.b16 %v2694
    %v6138 = vunpack.c.l.b16 %v2695
    %v6139 = vunpack.c.h.b16 %v2695
    %v6140 = vunpack.c.l.b16 %v2696
    %v6141 = vunpack.c.h.b16 %v2696
    %v6142 = vunpack.c.l.b16 %v2697
    %v6143 = vunpack.c.h.b16 %v2697
    %v6144 = vunpack.c.l.b16 %v2698
    %v6145 = vunpack.c.h.b16 %v2698
    %v6146 = vunpack.c.l.b16 %v2699
    %v6147 = vunpack.c.h.b16 %v2699
    %v6148 = vunpack.c.l.b16 %v2700
    %v6149 = vunpack.c.h.b16 %v2700
    %v6150 = vunpack.c.l.b16 %v2701
    %v6151 = vunpack.c.h.b16 %v2701
    %v6152 = vunpack.c.l.b16 %v2702
    %v6153 = vunpack.c.h.b16 %v2702
    %v6154 = vunpack.c.l.b16 %v2703
    %v6155 = vunpack.c.h.b16 %v2703
    %v6156 = vunpack.c.l.b16 %v2704
    %v6157 = vunpack.c.h.b16 %v2704
    %v6158 = vunpack.c.l.b16 %v2705
    %v6159 = vunpack.c.h.b16 %v2705
    %v6160 = vunpack.c.l.b16 %v2706
    %v6161 = vunpack.c.h.b16 %v2706
    %v6162 = vunpack.c.l.b16 %v2707
    %v6163 = vunpack.c.h.b16 %v2707
    %v6164 = vunpack.c.l.b16 %v2708
    %v6165 = vunpack.c.h.b16 %v2708
    %v6166 = vunpack.c.l.b16 %v2709
    %v6167 = vunpack.c.h.b16 %v2709
    %v6168 = vunpack.c.l.b16 %v2710
    %v6169 = vunpack.c.h.b16 %v2710
    %v6170 = vunpack.c.l.b16 %v2711
    %v6171 = vunpack.c.h.b16 %v2711
    %v6172 = vunpack.c.l.b16 %v2712
    %v6173 = vunpack.c.h.b16 %v2712
    %v6174 = vunpack.c.l.b16 %v2713
    %v6175 = vunpack.c.h.b16 %v2713
    %v6176 = vunpack.c.l.b16 %v2714
    %v6177 = vunpack.c.h.b16 %v2714
    %v6178 = vunpack.c.l.b16 %v2715
    %v6179 = vunpack.c.h.b16 %v2715
    %v6180 = vunpack.c.l.b16 %v2716
    %v6181 = vunpack.c.h.b16 %v2716
    %v6182 = vunpack.c.l.b16 %v2717
    %v6183 = vunpack.c.h.b16 %v2717
    %v6184 = vunpack.c.l.b16 %v2718
    %v6185 = vunpack.c.h.b16 %v2718
    %v6186 = vunpack.c.l.b16 %v2719
    %v6187 = vunpack.c.h.b16 %v2719
    %v6188 = vunpack.c.l.b16 %v2720
    %v6189 = vunpack.c.h.b16 %v2720
    %v6190 = vunpack.c.l.b16 %v2721
    %v6191 = vunpack.c.h.b16 %v2721
    %v6192 = vunpack.c.l.b16 %v2722
    %v6193 = vunpack.c.h.b16 %v2722
    %v6194 = vunpack.c.l.b16 %v2723
    %v6195 = vunpack.c.h.b16 %v2723
    %v6196 = vunpack.c.l.b16 %v2724
    %v6197 = vunpack.c.h.b16 %v2724
    %v6198 = vunpack.c.l.b16 %v2725
    %v6199 = vunpack.c.h.b16 %v2725
    %v6200 = vunpack.c.l.b16 %v2726
    %v6201 = vunpack.c.h.b16 %v2726
    %v6202 = vunpack.c.l.b16 %v2727
    %v6203 = vunpack.c.h.b16 %v2727
    %v6204 = vunpack.c.l.b16 %v2728
    %v6205 = vunpack.c.h.b16 %v2728
    %v6206 = vunpack.c.l.b16 %v2729
    %v6207 = vunpack.c.h.b16 %v2729
    %v6208 = vunpack.c.l.b16 %v2730
    %v6209 = vunpack.c.h.b16 %v2730
    %v6210 = vunpack.c.l.b16 %v2731
    %v6211 = vunpack.c.h.b16 %v2731
    %v6212 = vunpack.c.l.b16 %v2732
    %v6213 = vunpack.c.h.b16 %v2732
    %v6214 = vunpack.c.l.b16 %v2733
    %v6215 = vunpack.c.h.b16 %v2733
    %v6216 = vunpack.c.l.b16 %v2734
    %v6217 = vunpack.c.h.b16 %v2734
    %v6218 = vunpack.c.l.b16 %v2735
    %v6219 = vunpack.c.h.b16 %v2735
    %v6220 = vunpack.c.l.b16 %v2736
    %v6221 = vunpack.c.h.b16 %v2736
    %v6222 = vunpack.c.l.b16 %v2737
    %v6223 = vunpack.c.h.b16 %v2737
    %v6224 = vunpack.c.l.b16 %v2738
    %v6225 = vunpack.c.h.b16 %v2738
    %v6226 = vunpack.c.l.b16 %v2739
    %v6227 = vunpack.c.h.b16 %v2739
    %v6228 = vunpack.c.l.b16 %v2740
    %v6229 = vunpack.c.h.b16 %v2740
    %v6230 = vunpack.c.l.b16 %v2741
    %v6231 = vunpack.c.h.b16 %v2741
    %v6232 = vunpack.c.l.b16 %v2742
    %v6233 = vunpack.c.h.b16 %v2742
    %v6234 = vunpack.c.l.b16 %v2743
    %v6235 = vunpack.c.h.b16 %v2743
    %v6236 = vunpack.c.l.b16 %v2744
    %v6237 = vunpack.c.h.b16 %v2744
    %v6238 = vunpack.c.l.b16 %v2745
    %v6239 = vunpack.c.h.b16 %v2745
    %v6240 = vunpack.c.l.b16 %v2746
    %v6241 = vunpack.c.h.b16 %v2746
    %v6242 = vunpack.c.l.b16 %v2747
    %v6243 = vunpack.c.h.b16 %v2747
    %v6244 = vunpack.c.l.b16 %v2748
    %v6245 = vunpack.c.h.b16 %v2748
    %v6246 = vunpack.c.l.b16 %v2749
    %v6247 = vunpack.c.h.b16 %v2749
    %v6248 = vunpack.c.l.b16 %v2750
    %v6249 = vunpack.c.h.b16 %v2750
    %v6250 = vunpack.c.l.b16 %v2751
    %v6251 = vunpack.c.h.b16 %v2751
    %v6252 = vunpack.c.l.b16 %v2752
    %v6253 = vunpack.c.h.b16 %v2752
    %v6254 = vunpack.c.l.b16 %v2753
    %v6255 = vunpack.c.h.b16 %v2753
    %v6256 = vunpack.c.l.b16 %v2754
    %v6257 = vunpack.c.h.b16 %v2754
    %v6258 = vunpack.c.l.b16 %v2755
    %v6259 = vunpack.c.h.b16 %v2755
    %v6260 = vunpack.c.l.b16 %v2756
    %v6261 = vunpack.c.h.b16 %v2756
    %v6262 = vunpack.c.l.b16 %v2757
    %v6263 = vunpack.c.h.b16 %v2757
    %v6264 = vunpack.c.l.b16 %v2758
    %v6265 = vunpack.c.h.b16 %v2758
    %v6266 = vunpack.c.l.b16 %v2759
    %v6267 = vunpack.c.h.b16 %v2759
    %v6268 = vunpack.c.l.b16 %v2760
    %v6269 = vunpack.c.h.b16 %v2760
    %v6270 = vunpack.c.l.b16 %v2761
    %v6271 = vunpack.c.h.b16 %v2761
    %v6272 = vunpack.c.l.b16 %v2762
    %v6273 = vunpack.c.h.b16 %v2762
    %v6274 = vunpack.c.l.b16 %v2763
    %v6275 = vunpack.c.h.b16 %v2763
    %v6276 = vunpack.c.l.b16 %v2764
    %v6277 = vunpack.c.h.b16 %v2764
    %v6278 = vunpack.c.l.b16 %v2765
    %v6279 = vunpack.c.h.b16 %v2765
    %v6280 = vunpack.c.l.b16 %v2766
    %v6281 = vunpack.c.h.b16 %v2766
    %v6282 = vunpack.c.l.b16 %v2767
    %v6283 = vunpack.c.h.b16 %v2767
    %v6284 = vunpack.c.l.b16 %v2768
    %v6285 = vunpack.c.h.b16 %v2768
    %v6286 = vunpack.c.l.b16 %v2769
    %v6287 = vunpack.c.h.b16 %v2769
    %v6288 = vunpack.c.l.b16 %v2770
    %v6289 = vunpack.c.h.b16 %v2770
    %v6290 = vunpack.c.l.b16 %v2771
    %v6291 = vunpack.c.h.b16 %v2771
    %v6292 = vunpack.c.l.b16 %v2772
    %v6293 = vunpack.c.h.b16 %v2772
    %v6294 = vunpack.c.l.b16 %v2773
    %v6295 = vunpack.c.h.b16 %v2773
    %v6296 = vunpack.c.l.b16 %v2774
    %v6297 = vunpack.c.h.b16 %v2774
    %v6298 = vunpack.c.l.b16 %v2775
    %v6299 = vunpack.c.h.b16 %v2775
    %v6300 = vunpack.c.l.b16 %v2776
    %v6301 = vunpack.c.h.b16 %v2776
    %v6302 = vunpack.c.l.b16 %v2777
    %v6303 = vunpack.c.h.b16 %v2777
    %v6304 = vunpack.c.l.b16 %v2778
    %v6305 = vunpack.c.h.b16 %v2778
    %v6306 = vunpack.c.l.b16 %v2779
    %v6307 = vunpack.c.h.b16 %v2779
    %v6308 = vunpack.c.l.b16 %v2780
    %v6309 = vunpack.c.h.b16 %v2780
    %v6310 = vunpack.c.l.b16 %v2781
    %v6311 = vunpack.c.h.b16 %v2781
    %v6312 = vunpack.c.l.b16 %v2782
    %v6313 = vunpack.c.h.b16 %v2782
    %v6314 = vunpack.c.l.b16 %v2783
    %v6315 = vunpack.c.h.b16 %v2783
    %v6316 = vunpack.c.l.b16 %v2784
    %v6317 = vunpack.c.h.b16 %v2784
    %v6318 = vunpack.c.l.b16 %v2785
    %v6319 = vunpack.c.h.b16 %v2785
    %v6320 = vunpack.c.l.b16 %v2786
    %v6321 = vunpack.c.h.b16 %v2786
    %v6322 = vunpack.c.l.b16 %v2787
    %v6323 = vunpack.c.h.b16 %v2787
    %v6324 = vunpack.c.l.b16 %v2788
    %v6325 = vunpack.c.h.b16 %v2788
    %v6326 = vunpack.c.l.b16 %v2789
    %v6327 = vunpack.c.h.b16 %v2789
    %v6328 = vunpack.c.l.b16 %v2790
    %v6329 = vunpack.c.h.b16 %v2790
    %v6330 = vunpack.c.l.b16 %v2791
    %v6331 = vunpack.c.h.b16 %v2791
    %v6332 = vunpack.c.l.b16 %v2792
    %v6333 = vunpack.c.h.b16 %v2792
    %v6334 = vunpack.c.l.b16 %v2793
    %v6335 = vunpack.c.h.b16 %v2793
    %v6336 = vunpack.c.l.b16 %v2794
    %v6337 = vunpack.c.h.b16 %v2794
    %v6338 = vunpack.c.l.b16 %v2795
    %v6339 = vunpack.c.h.b16 %v2795
    %v6340 = vunpack.c.l.b16 %v2796
    %v6341 = vunpack.c.h.b16 %v2796
    %v6342 = vunpack.c.l.b16 %v2797
    %v6343 = vunpack.c.h.b16 %v2797
    %v6344 = vunpack.c.l.b16 %v2798
    %v6345 = vunpack.c.h.b16 %v2798
    %v6346 = vunpack.c.l.b16 %v2799
    %v6347 = vunpack.c.h.b16 %v2799
    %v6348 = vunpack.c.l.b16 %v2800
    %v6349 = vunpack.c.h.b16 %v2800
    %v6350 = vunpack.c.l.b16 %v2801
    %v6351 = vunpack.c.h.b16 %v2801
    %v6352 = vunpack.c.l.b16 %v2802
    %v6353 = vunpack.c.h.b16 %v2802
    %v6354 = vunpack.c.l.b16 %v2803
    %v6355 = vunpack.c.h.b16 %v2803
    %v6356 = vunpack.c.l.b16 %v2804
    %v6357 = vunpack.c.h.b16 %v2804
    %v6358 = vunpack.c.l.b16 %v2805
    %v6359 = vunpack.c.h.b16 %v2805
    %v6360 = vunpack.c.l.b16 %v2806
    %v6361 = vunpack.c.h.b16 %v2806
    %v6362 = vunpack.c.l.b16 %v2807
    %v6363 = vunpack.c.h.b16 %v2807
    %v6364 = vunpack.c.l.b16 %v2808
    %v6365 = vunpack.c.h.b16 %v2808
    %v6366 = vunpack.c.l.b16 %v2809
    %v6367 = vunpack.c.h.b16 %v2809
    %v6368 = vunpack.c.l.b16 %v2810
    %v6369 = vunpack.c.h.b16 %v2810
    %v6370 = vunpack.c.l.b16 %v2811
    %v6371 = vunpack.c.h.b16 %v2811
    %v6372 = vunpack.c.l.b16 %v2812
    %v6373 = vunpack.c.h.b16 %v2812
    %v6374 = vunpack.c.l.b16 %v2813
    %v6375 = vunpack.c.h.b16 %v2813
    %v6376 = vunpack.c.l.b16 %v2814
    %v6377 = vunpack.c.h.b16 %v2814
    %v6378 = vunpack.c.l.b16 %v2815
    %v6379 = vunpack.c.h.b16 %v2815
    %v6380 = vunpack.c.l.b16 %v2816
    %v6381 = vunpack.c.h.b16 %v2816
    %v6382 = vunpack.c.l.b16 %v2817
    %v6383 = vunpack.c.h.b16 %v2817
    %v6384 = vunpack.c.l.b16 %v2818
    %v6385 = vunpack.c.h.b16 %v2818
    %v6386 = vunpack.c.l.b16 %v2819
    %v6387 = vunpack.c.h.b16 %v2819
    %v6388 = vunpack.c.l.b16 %v2820
    %v6389 = vunpack.c.h.b16 %v2820
    %v6390 = vunpack.c.l.b16 %v2821
    %v6391 = vunpack.c.h.b16 %v2821
    %v6392 = vunpack.c.l.b16 %v2822
    %v6393 = vunpack.c.h.b16 %v2822
    %v6394 = vunpack.c.l.b16 %v2823
    %v6395 = vunpack.c.h.b16 %v2823
    %v6396 = vunpack.c.l.b16 %v2824
    %v6397 = vunpack.c.h.b16 %v2824
    %v6398 = vunpack.c.l.b16 %v2825
    %v6399 = vunpack.c.h.b16 %v2825
    %v6400 = vunpack.c.l.b16 %v2826
    %v6401 = vunpack.c.h.b16 %v2826
    %v6402 = vunpack.c.l.b16 %v2827
    %v6403 = vunpack.c.h.b16 %v2827
    %v6404 = vunpack.c.l.b16 %v2828
    %v6405 = vunpack.c.h.b16 %v2828
    %v6406 = vunpack.c.l.b16 %v2829
    %v6407 = vunpack.c.h.b16 %v2829
    %v6408 = vunpack.c.l.b16 %v2830
    %v6409 = vunpack.c.h.b16 %v2830
    %v6410 = vunpack.c.l.b16 %v2831
    %v6411 = vunpack.c.h.b16 %v2831
    %v6412 = vunpack.c.l.b16 %v2832
    %v6413 = vunpack.c.h.b16 %v2832
    %v6414 = vunpack.c.l.b16 %v2833
    %v6415 = vunpack.c.h.b16 %v2833
    %v6416 = vunpack.c.l.b16 %v2834
    %v6417 = vunpack.c.h.b16 %v2834
    %v6418 = vunpack.c.l.b16 %v2835
    %v6419 = vunpack.c.h.b16 %v2835
    %v6420 = vunpack.c.l.b16 %v2836
    %v6421 = vunpack.c.h.b16 %v2836
    %v6422 = vunpack.c.l.b16 %v2837
    %v6423 = vunpack.c.h.b16 %v2837
    %v6424 = vunpack.c.l.b16 %v2838
    %v6425 = vunpack.c.h.b16 %v2838
    %v6426 = vunpack.c.l.b16 %v2839
    %v6427 = vunpack.c.h.b16 %v2839
    %v6428 = vunpack.c.l.b16 %v2840
    %v6429 = vunpack.c.h.b16 %v2840
    %v6430 = vunpack.c.l.b16 %v2841
    %v6431 = vunpack.c.h.b16 %v2841
    %v6432 = vunpack.c.l.b16 %v2842
    %v6433 = vunpack.c.h.b16 %v2842
    %v6434 = vunpack.c.l.b16 %v2843
    %v6435 = vunpack.c.h.b16 %v2843
    %v6436 = vunpack.c.l.b16 %v2844
    %v6437 = vunpack.c.h.b16 %v2844
    %v6438 = vunpack.c.l.b16 %v2845
    %v6439 = vunpack.c.h.b16 %v2845
    %v6440 = vunpack.c.l.b16 %v2846
    %v6441 = vunpack.c.h.b16 %v2846
    %v6442 = vunpack.c.l.b16 %v2847
    %v6443 = vunpack.c.h.b16 %v2847
    %v6444 = vunpack.c.l.b16 %v2848
    %v6445 = vunpack.c.h.b16 %v2848
    %v6446 = vunpack.c.l.b16 %v2849
    %v6447 = vunpack.c.h.b16 %v2849
    %v6448 = vunpack.c.l.b16 %v2850
    %v6449 = vunpack.c.h.b16 %v2850
    %v6450 = vunpack.c.l.b16 %v2851
    %v6451 = vunpack.c.h.b16 %v2851
    %v6452 = vunpack.c.l.b16 %v2852
    %v6453 = vunpack.c.h.b16 %v2852
    %v6454 = vunpack.c.l.b16 %v2853
    %v6455 = vunpack.c.h.b16 %v2853
    %v6456 = vunpack.c.l.b16 %v2854
    %v6457 = vunpack.c.h.b16 %v2854
    %v6458 = vunpack.c.l.b16 %v2855
    %v6459 = vunpack.c.h.b16 %v2855
    %v6460 = vunpack.c.l.b16 %v2856
    %v6461 = vunpack.c.h.b16 %v2856
    %v6462 = vunpack.c.l.b16 %v2857
    %v6463 = vunpack.c.h.b16 %v2857
    %v6464 = vunpack.c.l.b16 %v2858
    %v6465 = vunpack.c.h.b16 %v2858
    %v6466 = vunpack.c.l.b16 %v2859
    %v6467 = vunpack.c.h.b16 %v2859
    %v6468 = vunpack.c.l.b16 %v2860
    %v6469 = vunpack.c.h.b16 %v2860
    %v6470 = vunpack.c.l.b16 %v2861
    %v6471 = vunpack.c.h.b16 %v2861
    %v6472 = vunpack.c.l.b16 %v2862
    %v6473 = vunpack.c.h.b16 %v2862
    %v6474 = vunpack.c.l.b16 %v2863
    %v6475 = vunpack.c.h.b16 %v2863
    %v6476 = vunpack.c.l.b16 %v2864
    %v6477 = vunpack.c.h.b16 %v2864
    %v6478 = vunpack.c.l.b16 %v2865
    %v6479 = vunpack.c.h.b16 %v2865
    %v6480 = vunpack.c.l.b16 %v2866
    %v6481 = vunpack.c.h.b16 %v2866
    %v6482 = vunpack.c.l.b16 %v2867
    %v6483 = vunpack.c.h.b16 %v2867
    %v6484 = vunpack.c.l.b16 %v2868
    %v6485 = vunpack.c.h.b16 %v2868
    %v6486 = vunpack.c.l.b16 %v2869
    %v6487 = vunpack.c.h.b16 %v2869
    %v6488 = vunpack.c.l.b16 %v2870
    %v6489 = vunpack.c.h.b16 %v2870
    %v6490 = vunpack.c.l.b16 %v2871
    %v6491 = vunpack.c.h.b16 %v2871
    %v6492 = vunpack.c.l.b16 %v2872
    %v6493 = vunpack.c.h.b16 %v2872
    %v6494 = vunpack.c.l.b16 %v2873
    %v6495 = vunpack.c.h.b16 %v2873
    %v6496 = vunpack.c.l.b16 %v2874
    %v6497 = vunpack.c.h.b16 %v2874
    %v6498 = vunpack.c.l.b16 %v2875
    %v6499 = vunpack.c.h.b16 %v2875
    %v6500 = vunpack.c.l.b16 %v2876
    %v6501 = vunpack.c.h.b16 %v2876
    %v6502 = vunpack.c.l.b16 %v2877
    %v6503 = vunpack.c.h.b16 %v2877
    %v6504 = vunpack.c.l.b16 %v2878
    %v6505 = vunpack.c.h.b16 %v2878
    %v6506 = vunpack.c.l.b16 %v2879
    %v6507 = vunpack.c.h.b16 %v2879
    %v6508 = vunpack.c.l.b16 %v2880
    %v6509 = vunpack.c.h.b16 %v2880
    %v6510 = vunpack.c.l.b16 %v2881
    %v6511 = vunpack.c.h.b16 %v2881
    %v6512 = vunpack.c.l.b16 %v2882
    %v6513 = vunpack.c.h.b16 %v2882
    %v6514 = vunpack.c.l.b16 %v2883
    %v6515 = vunpack.c.h.b16 %v2883
    %v6516 = vunpack.c.l.b16 %v2884
    %v6517 = vunpack.c.h.b16 %v2884
    %v6518 = vunpack.c.l.b16 %v2885
    %v6519 = vunpack.c.h.b16 %v2885
    %v6520 = vunpack.c.l.b16 %v2886
    %v6521 = vunpack.c.h.b16 %v2886
    %v6522 = vunpack.c.l.b16 %v2887
    %v6523 = vunpack.c.h.b16 %v2887
    %v6524 = vunpack.c.l.b16 %v2888
    %v6525 = vunpack.c.h.b16 %v2888
    %v6526 = vunpack.c.l.b16 %v2889
    %v6527 = vunpack.c.h.b16 %v2889
    %v6528 = vunpack.c.l.b16 %v2890
    %v6529 = vunpack.c.h.b16 %v2890
    %v6530 = vunpack.c.l.b16 %v2891
    %v6531 = vunpack.c.h.b16 %v2891
    %v6532 = vunpack.c.l.b16 %v2892
    %v6533 = vunpack.c.h.b16 %v2892
    %v6534 = vunpack.c.l.b16 %v2893
    %v6535 = vunpack.c.h.b16 %v2893
    %v6536 = vunpack.c.l.b16 %v2894
    %v6537 = vunpack.c.h.b16 %v2894
    %v6538 = vunpack.c.l.b16 %v2895
    %v6539 = vunpack.c.h.b16 %v2895
    %v6540 = vunpack.c.l.b16 %v2896
    %v6541 = vunpack.c.h.b16 %v2896
    %v6542 = vunpack.c.l.b16 %v2897
    %v6543 = vunpack.c.h.b16 %v2897
    %v6544 = vunpack.c.l.b16 %v2898
    %v6545 = vunpack.c.h.b16 %v2898
    %v6546 = vunpack.c.l.b16 %v2899
    %v6547 = vunpack.c.h.b16 %v2899
    %v6548 = vunpack.c.l.b16 %v2900
    %v6549 = vunpack.c.h.b16 %v2900
    %v6550 = vunpack.c.l.b16 %v2901
    %v6551 = vunpack.c.h.b16 %v2901
    %v6552 = vunpack.c.l.b16 %v2902
    %v6553 = vunpack.c.h.b16 %v2902
    %v6554 = vunpack.c.l.b16 %v2903
    %v6555 = vunpack.c.h.b16 %v2903
    %v6556 = vunpack.c.l.b16 %v2904
    %v6557 = vunpack.c.h.b16 %v2904
    %v6558 = vunpack.c.l.b16 %v2905
    %v6559 = vunpack.c.h.b16 %v2905
    %v6560 = vunpack.c.l.b16 %v2906
    %v6561 = vunpack.c.h.b16 %v2906
    %v6562 = vunpack.c.l.b16 %v2907
    %v6563 = vunpack.c.h.b16 %v2907
    %v6564 = vunpack.c.l.b16 %v2908
    %v6565 = vunpack.c.h.b16 %v2908
    %v6566 = vunpack.c.l.b16 %v2909
    %v6567 = vunpack.c.h.b16 %v2909
    %v6568 = vunpack.c.l.b16 %v2910
    %v6569 = vunpack.c.h.b16 %v2910
    %v6570 = vunpack.c.l.b16 %v2911
    %v6571 = vunpack.c.h.b16 %v2911
    %v6572 = vunpack.c.l.b16 %v2912
    %v6573 = vunpack.c.h.b16 %v2912
    %v6574 = vunpack.c.l.b16 %v2913
    %v6575 = vunpack.c.h.b16 %v2913
    %v6576 = vunpack.c.l.b16 %v2914
    %v6577 = vunpack.c.h.b16 %v2914
    %v6578 = vunpack.c.l.b16 %v2915
    %v6579 = vunpack.c.h.b16 %v2915
    %v6580 = vunpack.c.l.b16 %v2916
    %v6581 = vunpack.c.h.b16 %v2916
    %v6582 = vunpack.c.l.b16 %v2917
    %v6583 = vunpack.c.h.b16 %v2917
    %v6584 = vunpack.c.l.b16 %v2918
    %v6585 = vunpack.c.h.b16 %v2918
    %v6586 = vunpack.c.l.b16 %v2919
    %v6587 = vunpack.c.h.b16 %v2919
    %v6588 = vunpack.c.l.b16 %v2920
    %v6589 = vunpack.c.h.b16 %v2920
    %v6590 = vunpack.c.l.b16 %v2921
    %v6591 = vunpack.c.h.b16 %v2921
    %v6592 = vunpack.c.l.b16 %v2922
    %v6593 = vunpack.c.h.b16 %v2922
    %v6594 = vunpack.c.l.b16 %v2923
    %v6595 = vunpack.c.h.b16 %v2923
    %v6596 = vunpack.c.l.b16 %v2924
    %v6597 = vunpack.c.h.b16 %v2924
    %v6598 = vunpack.c.l.b16 %v2925
    %v6599 = vunpack.c.h.b16 %v2925
    %v6600 = vunpack.c.l.b16 %v2926
    %v6601 = vunpack.c.h.b16 %v2926
    %v6602 = vunpack.c.l.b16 %v2927
    %v6603 = vunpack.c.h.b16 %v2927
    %v6604 = vunpack.c.l.b16 %v2928
    %v6605 = vunpack.c.h.b16 %v2928
    %v6606 = vunpack.c.l.b16 %v2929
    %v6607 = vunpack.c.h.b16 %v2929
    %v6608 = vunpack.c.l.b16 %v2930
    %v6609 = vunpack.c.h.b16 %v2930
    %v6610 = vunpack.c.l.b16 %v2931
    %v6611 = vunpack.c.h.b16 %v2931
    %v6612 = vunpack.c.l.b16 %v2932
    %v6613 = vunpack.c.h.b16 %v2932
    %v6614 = vunpack.c.l.b16 %v2933
    %v6615 = vunpack.c.h.b16 %v2933
    %v6616 = vunpack.c.l.b16 %v2934
    %v6617 = vunpack.c.h.b16 %v2934
    %v6618 = vunpack.c.l.b16 %v2935
    %v6619 = vunpack.c.h.b16 %v2935
    %v6620 = vunpack.c.l.b16 %v2936
    %v6621 = vunpack.c.h.b16 %v2936
    %v6622 = vunpack.c.l.b16 %v2937
    %v6623 = vunpack.c.h.b16 %v2937
    %v6624 = vunpack.c.l.b16 %v2938
    %v6625 = vunpack.c.h.b16 %v2938
    %v6626 = vunpack.c.l.b16 %v2939
    %v6627 = vunpack.c.h.b16 %v2939
    %v6628 = vunpack.c.l.b16 %v2940
    %v6629 = vunpack.c.h.b16 %v2940
    %v6630 = vunpack.c.l.b16 %v2941
    %v6631 = vunpack.c.h.b16 %v2941
    %v6632 = vunpack.c.l.b16 %v2942
    %v6633 = vunpack.c.h.b16 %v2942
    %v6634 = vunpack.c.l.b16 %v2943
    %v6635 = vunpack.c.h.b16 %v2943
    %v6636 = vunpack.c.l.b16 %v2944
    %v6637 = vunpack.c.h.b16 %v2944
    %v6638 = vunpack.c.l.b16 %v2945
    %v6639 = vunpack.c.h.b16 %v2945
    %v6640 = vunpack.c.l.b16 %v2946
    %v6641 = vunpack.c.h.b16 %v2946
    %v6642 = vunpack.c.l.b16 %v2947
    %v6643 = vunpack.c.h.b16 %v2947
    %v6644 = vunpack.c.l.b16 %v2948
    %v6645 = vunpack.c.h.b16 %v2948
    %v6646 = vunpack.c.l.b16 %v2949
    %v6647 = vunpack.c.h.b16 %v2949
    %v6648 = vunpack.c.l.b16 %v2950
    %v6649 = vunpack.c.h.b16 %v2950
    %v6650 = vunpack.c.l.b16 %v2951
    %v6651 = vunpack.c.h.b16 %v2951
    %v6652 = vunpack.c.l.b16 %v2952
    %v6653 = vunpack.c.h.b16 %v2952
    %v6654 = vunpack.c.l.b16 %v2953
    %v6655 = vunpack.c.h.b16 %v2953
    %v6656 = vunpack.c.l.b16 %v2954
    %v6657 = vunpack.c.h.b16 %v2954
    %v6658 = vunpack.c.l.b16 %v2955
    %v6659 = vunpack.c.h.b16 %v2955
    %v6660 = vunpack.c.l.b16 %v2956
    %v6661 = vunpack.c.h.b16 %v2956
    %v6662 = vunpack.c.l.b16 %v2957
    %v6663 = vunpack.c.h.b16 %v2957
    %v6664 = vunpack.c.l.b16 %v2958
    %v6665 = vunpack.c.h.b16 %v2958
    %v6666 = vunpack.c.l.b16 %v2959
    %v6667 = vunpack.c.h.b16 %v2959
    %v6668 = vunpack.c.l.b16 %v2960
    %v6669 = vunpack.c.h.b16 %v2960
    %v6670 = vunpack.c.l.b16 %v2961
    %v6671 = vunpack.c.h.b16 %v2961
    %v6672 = vunpack.c.l.b16 %v2962
    %v6673 = vunpack.c.h.b16 %v2962
    %v6674 = vunpack.c.l.b16 %v2963
    %v6675 = vunpack.c.h.b16 %v2963
    %v6676 = vunpack.c.l.b16 %v2964
    %v6677 = vunpack.c.h.b16 %v2964
    %v6678 = vunpack.c.l.b16 %v2965
    %v6679 = vunpack.c.h.b16 %v2965
    %v6680 = vunpack.c.l.b16 %v2966
    %v6681 = vunpack.c.h.b16 %v2966
    %v6682 = vunpack.c.l.b16 %v2967
    %v6683 = vunpack.c.h.b16 %v2967
    %v6684 = vunpack.c.l.b16 %v2968
    %v6685 = vunpack.c.h.b16 %v2968
    %v6686 = vunpack.c.l.b16 %v2969
    %v6687 = vunpack.c.h.b16 %v2969
    %v6688 = vunpack.c.l.b16 %v2970
    %v6689 = vunpack.c.h.b16 %v2970
    %v6690 = vunpack.c.l.b16 %v2971
    %v6691 = vunpack.c.h.b16 %v2971
    %v6692 = vunpack.c.l.b16 %v2972
    %v6693 = vunpack.c.h.b16 %v2972
    %v6694 = vunpack.c.l.b16 %v2973
    %v6695 = vunpack.c.h.b16 %v2973
    %v6696 = vunpack.c.l.b16 %v2974
    %v6697 = vunpack.c.h.b16 %v2974
    %v6698 = vunpack.c.l.b16 %v2975
    %v6699 = vunpack.c.h.b16 %v2975
    %v6700 = vunpack.c.l.b16 %v2976
    %v6701 = vunpack.c.h.b16 %v2976
    %v6702 = vunpack.c.l.b16 %v2977
    %v6703 = vunpack.c.h.b16 %v2977
    %v6704 = vunpack.c.l.b16 %v2978
    %v6705 = vunpack.c.h.b16 %v2978
    %v6706 = vunpack.c.l.b16 %v2979
    %v6707 = vunpack.c.h.b16 %v2979
    %v6708 = vunpack.c.l.b16 %v2980
    %v6709 = vunpack.c.h.b16 %v2980
    %v6710 = vunpack.c.l.b16 %v2981
    %v6711 = vunpack.c.h.b16 %v2981
    %v6712 = vunpack.c.l.b16 %v2982
    %v6713 = vunpack.c.h.b16 %v2982
    %v6714 = vunpack.c.l.b16 %v2983
    %v6715 = vunpack.c.h.b16 %v2983
    %v6716 = vunpack.c.l.b16 %v2984
    %v6717 = vunpack.c.h.b16 %v2984
    %v6718 = vunpack.c.l.b16 %v2985
    %v6719 = vunpack.c.h.b16 %v2985
    %v6720 = vunpack.c.l.b16 %v2986
    %v6721 = vunpack.c.h.b16 %v2986
    %v6722 = vunpack.c.l.b16 %v2987
    %v6723 = vunpack.c.h.b16 %v2987
    %v6724 = vunpack.c.l.b16 %v2988
    %v6725 = vunpack.c.h.b16 %v2988
    %v6726 = vunpack.c.l.b16 %v2989
    %v6727 = vunpack.c.h.b16 %v2989
    %v6728 = vunpack.c.l.b16 %v2990
    %v6729 = vunpack.c.h.b16 %v2990
    %v6730 = vunpack.c.l.b16 %v2991
    %v6731 = vunpack.c.h.b16 %v2991
    %v6732 = vunpack.c.l.b16 %v2992
    %v6733 = vunpack.c.h.b16 %v2992
    %v6734 = vunpack.c.l.b16 %v2993
    %v6735 = vunpack.c.h.b16 %v2993
    %v6736 = vunpack.c.l.b16 %v2994
    %v6737 = vunpack.c.h.b16 %v2994
    %v6738 = vunpack.c.l.b16 %v2995
    %v6739 = vunpack.c.h.b16 %v2995
    %v6740 = vunpack.c.l.b16 %v2996
    %v6741 = vunpack.c.h.b16 %v2996
    %v6742 = vunpack.c.l.b16 %v2997
    %v6743 = vunpack.c.h.b16 %v2997
    %v6744 = vunpack.c.l.b16 %v2998
    %v6745 = vunpack.c.h.b16 %v2998
    %v6746 = vunpack.c.l.b16 %v2999
    %v6747 = vunpack.c.h.b16 %v2999
    %v6748 = vunpack.c.l.b16 %v3000
    %v6749 = vunpack.c.h.b16 %v3000
    %v6750 = vunpack.c.l.b16 %v3001
    %v6751 = vunpack.c.h.b16 %v3001
    %v6752 = vunpack.c.l.b16 %v3002
    %v6753 = vunpack.c.h.b16 %v3002
    %v6754 = vunpack.c.l.b16 %v3003
    %v6755 = vunpack.c.h.b16 %v3003
    %v6756 = vunpack.c.l.b16 %v3004
    %v6757 = vunpack.c.h.b16 %v3004
    %v6758 = vunpack.c.l.b16 %v3005
    %v6759 = vunpack.c.h.b16 %v3005
    %v6760 = vunpack.c.l.b16 %v3006
    %v6761 = vunpack.c.h.b16 %v3006
    %v6762 = vunpack.c.l.b16 %v3007
    %v6763 = vunpack.c.h.b16 %v3007
    %v6764 = vunpack.c.l.b16 %v3008
    %v6765 = vunpack.c.h.b16 %v3008
    %v6766 = vunpack.c.l.b16 %v3009
    %v6767 = vunpack.c.h.b16 %v3009
    %v6768 = vunpack.c.l.b16 %v3010
    %v6769 = vunpack.c.h.b16 %v3010
    %v6770 = vunpack.c.l.b16 %v3011
    %v6771 = vunpack.c.h.b16 %v3011
    %v6772 = vunpack.c.l.b16 %v3012
    %v6773 = vunpack.c.h.b16 %v3012
    %v6774 = vunpack.c.l.b16 %v3013
    %v6775 = vunpack.c.h.b16 %v3013
    %v6776 = vunpack.c.l.b16 %v3014
    %v6777 = vunpack.c.h.b16 %v3014
    %v6778 = vunpack.c.l.b16 %v3015
    %v6779 = vunpack.c.h.b16 %v3015
    %v6780 = vunpack.c.l.b16 %v3016
    %v6781 = vunpack.c.h.b16 %v3016
    %v6782 = vunpack.c.l.b16 %v3017
    %v6783 = vunpack.c.h.b16 %v3017
    %v6784 = vunpack.c.l.b16 %v3018
    %v6785 = vunpack.c.h.b16 %v3018
    %v6786 = vunpack.c.l.b16 %v3019
    %v6787 = vunpack.c.h.b16 %v3019
    %v6788 = vunpack.c.l.b16 %v3020
    %v6789 = vunpack.c.h.b16 %v3020
    %v6790 = vunpack.c.l.b16 %v3021
    %v6791 = vunpack.c.h.b16 %v3021
    %v6792 = vunpack.c.l.b16 %v3022
    %v6793 = vunpack.c.h.b16 %v3022
    %v6794 = vunpack.c.l.b16 %v3023
    %v6795 = vunpack.c.h.b16 %v3023
    %v6796 = vunpack.c.l.b16 %v3024
    %v6797 = vunpack.c.h.b16 %v3024
    %v6798 = vunpack.c.l.b16 %v3025
    %v6799 = vunpack.c.h.b16 %v3025
    %v6800 = vunpack.c.l.b16 %v3026
    %v6801 = vunpack.c.h.b16 %v3026
    %v6802 = vunpack.c.l.b16 %v3027
    %v6803 = vunpack.c.h.b16 %v3027
    %v6804 = vunpack.c.l.b16 %v3028
    %v6805 = vunpack.c.h.b16 %v3028
    %v6806 = vunpack.c.l.b16 %v3029
    %v6807 = vunpack.c.h.b16 %v3029
    %v6808 = vunpack.c.l.b16 %v3030
    %v6809 = vunpack.c.h.b16 %v3030
    %v6810 = vunpack.c.l.b16 %v3031
    %v6811 = vunpack.c.h.b16 %v3031
    %v6812 = vunpack.c.l.b16 %v3032
    %v6813 = vunpack.c.h.b16 %v3032
    %v6814 = vunpack.c.l.b16 %v3033
    %v6815 = vunpack.c.h.b16 %v3033
    %v6816 = vunpack.c.l.b16 %v3034
    %v6817 = vunpack.c.h.b16 %v3034
    %v6818 = vunpack.c.l.b16 %v3035
    %v6819 = vunpack.c.h.b16 %v3035
    %v6820 = vunpack.c.l.b16 %v3036
    %v6821 = vunpack.c.h.b16 %v3036
    %v6822 = vunpack.c.l.b16 %v3037
    %v6823 = vunpack.c.h.b16 %v3037
    %v6824 = vunpack.c.l.b16 %v3038
    %v6825 = vunpack.c.h.b16 %v3038
    %v6826 = vunpack.c.l.b16 %v3039
    %v6827 = vunpack.c.h.b16 %v3039
    %v6828 = vunpack.c.l.b16 %v3040
    %v6829 = vunpack.c.h.b16 %v3040
    %v6830 = vunpack.c.l.b16 %v3041
    %v6831 = vunpack.c.h.b16 %v3041
    %v6832 = vunpack.c.l.b16 %v3042
    %v6833 = vunpack.c.h.b16 %v3042
    %v6834 = vunpack.c.l.b16 %v3043
    %v6835 = vunpack.c.h.b16 %v3043
    %v6836 = vunpack.c.l.b16 %v3044
    %v6837 = vunpack.c.h.b16 %v3044
    %v6838 = vunpack.c.l.b16 %v3045
    %v6839 = vunpack.c.h.b16 %v3045
    %v6840 = vunpack.c.l.b16 %v3046
    %v6841 = vunpack.c.h.b16 %v3046
    %v6842 = vunpack.c.l.b16 %v3047
    %v6843 = vunpack.c.h.b16 %v3047
    %v6844 = vunpack.c.l.b16 %v3048
    %v6845 = vunpack.c.h.b16 %v3048
    %v6846 = vunpack.c.l.b16 %v3049
    %v6847 = vunpack.c.h.b16 %v3049
    %v6848 = vunpack.c.l.b16 %v3050
    %v6849 = vunpack.c.h.b16 %v3050
    %v6850 = vunpack.c.l.b16 %v3051
    %v6851 = vunpack.c.h.b16 %v3051
    %v6852 = vunpack.c.l.b16 %v3052
    %v6853 = vunpack.c.h.b16 %v3052
    %v6854 = vunpack.c.l.b16 %v3053
    %v6855 = vunpack.c.h.b16 %v3053
    %v6856 = vunpack.c.l.b16 %v3054
    %v6857 = vunpack.c.h.b16 %v3054
    %v6858 = vunpack.c.l.b16 %v3055
    %v6859 = vunpack.c.h.b16 %v3055
    %v6860 = vunpack.c.l.b16 %v3056
    %v6861 = vunpack.c.h.b16 %v3056
    %v6862 = vunpack.c.l.b16 %v3057
    %v6863 = vunpack.c.h.b16 %v3057
    %v6864 = vunpack.c.l.b16 %v3058
    %v6865 = vunpack.c.h.b16 %v3058
    %v6866 = vunpack.c.l.b16 %v3059
    %v6867 = vunpack.c.h.b16 %v3059
    %v6868 = vunpack.c.l.b16 %v3060
    %v6869 = vunpack.c.h.b16 %v3060
    %v6870 = vunpack.c.l.b16 %v3061
    %v6871 = vunpack.c.h.b16 %v3061
    %v6872 = vunpack.c.l.b16 %v3062
    %v6873 = vunpack.c.h.b16 %v3062
    %v6874 = vunpack.c.l.b16 %v3063
    %v6875 = vunpack.c.h.b16 %v3063
    %v6876 = vunpack.c.l.b16 %v3064
    %v6877 = vunpack.c.h.b16 %v3064
    %v6878 = vunpack.c.l.b16 %v3065
    %v6879 = vunpack.c.h.b16 %v3065
    %v6880 = vunpack.c.l.b16 %v3066
    %v6881 = vunpack.c.h.b16 %v3066
    %v6882 = vunpack.c.l.b16 %v3067
    %v6883 = vunpack.c.h.b16 %v3067
    %v6884 = vunpack.c.l.b16 %v3068
    %v6885 = vunpack.c.h.b16 %v3068
    %v6886 = vunpack.c.l.b16 %v3069
    %v6887 = vunpack.c.h.b16 %v3069
    %v6888 = vunpack.c.l.b16 %v3070
    %v6889 = vunpack.c.h.b16 %v3070
    %v6890 = vunpack.c.l.b16 %v3071
    %v6891 = vunpack.c.h.b16 %v3071
    %v6892 = vunpack.c.l.b16 %v3072
    %v6893 = vunpack.c.h.b16 %v3072
    %v6894 = vunpack.c.l.b16 %v3073
    %v6895 = vunpack.c.h.b16 %v3073
    %v6896 = vunpack.c.l.b16 %v3074
    %v6897 = vunpack.c.h.b16 %v3074
    %v6898 = vunpack.c.l.b16 %v3075
    %v6899 = vunpack.c.h.b16 %v3075
    %v6900 = vunpack.c.l.b16 %v3076
    %v6901 = vunpack.c.h.b16 %v3076
    %v6902 = vunpack.c.l.b16 %v3077
    %v6903 = vunpack.c.h.b16 %v3077
    %v6904 = vunpack.c.l.b16 %v3078
    %v6905 = vunpack.c.h.b16 %v3078
    %v6906 = vunpack.c.l.b16 %v3079
    %v6907 = vunpack.c.h.b16 %v3079
    %v6908 = vunpack.c.l.b16 %v3080
    %v6909 = vunpack.c.h.b16 %v3080
    %v6910 = vunpack.c.l.b16 %v3081
    %v6911 = vunpack.c.h.b16 %v3081
    %v6912 = vunpack.c.l.b16 %v3082
    %v6913 = vunpack.c.h.b16 %v3082
    %v6914 = vunpack.c.l.b16 %v3083
    %v6915 = vunpack.c.h.b16 %v3083
    %v6916 = vunpack.c.l.b16 %v3084
    %v6917 = vunpack.c.h.b16 %v3084
    %v6918 = vunpack.c.l.b16 %v3085
    %v6919 = vunpack.c.h.b16 %v3085
    %v6920 = vunpack.c.l.b16 %v3086
    %v6921 = vunpack.c.h.b16 %v3086
    %v6922 = vunpack.c.l.b16 %v3087
    %v6923 = vunpack.c.h.b16 %v3087
    %v6924 = vunpack.c.l.b16 %v3088
    %v6925 = vunpack.c.h.b16 %v3088
    %v6926 = vunpack.c.l.b16 %v3089
    %v6927 = vunpack.c.h.b16 %v3089
    %v6928 = vunpack.c.l.b16 %v3090
    %v6929 = vunpack.c.h.b16 %v3090
    %v6930 = vunpack.c.l.b16 %v3091
    %v6931 = vunpack.c.h.b16 %v3091
    %v6932 = vunpack.c.l.b16 %v3092
    %v6933 = vunpack.c.h.b16 %v3092
    %v6934 = vunpack.c.l.b16 %v3093
    %v6935 = vunpack.c.h.b16 %v3093
    %v6936 = vunpack.c.l.b16 %v3094
    %v6937 = vunpack.c.h.b16 %v3094
    %v6938 = vunpack.c.l.b16 %v3095
    %v6939 = vunpack.c.h.b16 %v3095
    %v6940 = vunpack.c.l.b16 %v3096
    %v6941 = vunpack.c.h.b16 %v3096
    %v6942 = vunpack.c.l.b16 %v3097
    %v6943 = vunpack.c.h.b16 %v3097
    %v6944 = vunpack.c.l.b16 %v3098
    %v6945 = vunpack.c.h.b16 %v3098
    %v6946 = vunpack.c.l.b16 %v3099
    %v6947 = vunpack.c.h.b16 %v3099
    %v6948 = vunpack.c.l.b16 %v3100
    %v6949 = vunpack.c.h.b16 %v3100
    %v6950 = vunpack.c.l.b16 %v3101
    %v6951 = vunpack.c.h.b16 %v3101
    %v6952 = vunpack.c.l.b16 %v3102
    %v6953 = vunpack.c.h.b16 %v3102
    %v6954 = vunpack.c.l.b16 %v3103
    %v6955 = vunpack.c.h.b16 %v3103
    %v6956 = vunpack.c.l.b16 %v3104
    %v6957 = vunpack.c.h.b16 %v3104
    %v6958 = vunpack.c.l.b16 %v3105
    %v6959 = vunpack.c.h.b16 %v3105
    %v6960 = vunpack.c.l.b16 %v3106
    %v6961 = vunpack.c.h.b16 %v3106
    %v6962 = vunpack.c.l.b16 %v3107
    %v6963 = vunpack.c.h.b16 %v3107
    %v6964 = vunpack.c.l.b16 %v3108
    %v6965 = vunpack.c.h.b16 %v3108
    %v6966 = vunpack.c.l.b16 %v3109
    %v6967 = vunpack.c.h.b16 %v3109
    %v6968 = vunpack.c.l.b16 %v3110
    %v6969 = vunpack.c.h.b16 %v3110
    %v6970 = vunpack.c.l.b16 %v3111
    %v6971 = vunpack.c.h.b16 %v3111
    %v6972 = vunpack.c.l.b16 %v3112
    %v6973 = vunpack.c.h.b16 %v3112
    %v6974 = vunpack.c.l.b16 %v3113
    %v6975 = vunpack.c.h.b16 %v3113
    %v6976 = vunpack.c.l.b16 %v3114
    %v6977 = vunpack.c.h.b16 %v3114
    %v6978 = vunpack.c.l.b16 %v3115
    %v6979 = vunpack.c.h.b16 %v3115
    %v6980 = vunpack.c.l.b16 %v3116
    %v6981 = vunpack.c.h.b16 %v3116
    %v6982 = vunpack.c.l.b16 %v3117
    %v6983 = vunpack.c.h.b16 %v3117
    %v6984 = vunpack.c.l.b16 %v3118
    %v6985 = vunpack.c.h.b16 %v3118
    %v6986 = vunpack.c.l.b16 %v3119
    %v6987 = vunpack.c.h.b16 %v3119
    %v6988 = vunpack.c.l.b16 %v3120
    %v6989 = vunpack.c.h.b16 %v3120
    %v6990 = vunpack.c.l.b16 %v3121
    %v6991 = vunpack.c.h.b16 %v3121
    %v6992 = vunpack.c.l.b16 %v3122
    %v6993 = vunpack.c.h.b16 %v3122
    %v6994 = vunpack.c.l.b16 %v3123
    %v6995 = vunpack.c.h.b16 %v3123
    %v6996 = vunpack.c.l.b16 %v3124
    %v6997 = vunpack.c.h.b16 %v3124
    %v6998 = vunpack.c.l.b16 %v3125
    %v6999 = vunpack.c.h.b16 %v3125
    %v7000 = vunpack.c.l.b16 %v3126
    %v7001 = vunpack.c.h.b16 %v3126
    %v7002 = vunpack.c.l.b16 %v3127
    %v7003 = vunpack.c.h.b16 %v3127
    %v7004 = vunpack.c.l.b16 %v3128
    %v7005 = vunpack.c.h.b16 %v3128
    %v7006 = vunpack.c.l.b16 %v3129
    %v7007 = vunpack.c.h.b16 %v3129
    %v7008 = vunpack.c.l.b16 %v3130
    %v7009 = vunpack.c.h.b16 %v3130
    %v7010 = vunpack.c.l.b16 %v3131
    %v7011 = vunpack.c.h.b16 %v3131
    %v7012 = vunpack.c.l.b16 %v3132
    %v7013 = vunpack.c.h.b16 %v3132
    %v7014 = vunpack.c.l.b16 %v3133
    %v7015 = vunpack.c.h.b16 %v3133
    %v7016 = vunpack.c.l.b16 %v3134
    %v7017 = vunpack.c.h.b16 %v3134
    %v7018 = vunpack.c.l.b16 %v3135
    %v7019 = vunpack.c.h.b16 %v3135
    %v7020 = vunpack.c.l.b16 %v3136
    %v7021 = vunpack.c.h.b16 %v3136
    %v7022 = vunpack.c.l.b16 %v3137
    %v7023 = vunpack.c.h.b16 %v3137
    %v7024 = vunpack.c.l.b16 %v3138
    %v7025 = vunpack.c.h.b16 %v3138
    %v7026 = vunpack.c.l.b16 %v3139
    %v7027 = vunpack.c.h.b16 %v3139
    %v7028 = vunpack.c.l.b16 %v3140
    %v7029 = vunpack.c.h.b16 %v3140
    %v7030 = vunpack.c.l.b16 %v3141
    %v7031 = vunpack.c.h.b16 %v3141
    %v7032 = vunpack.c.l.b16 %v3142
    %v7033 = vunpack.c.h.b16 %v3142
    %v7034 = vunpack.c.l.b16 %v3143
    %v7035 = vunpack.c.h.b16 %v3143
    %v7036 = vunpack.c.l.b16 %v3144
    %v7037 = vunpack.c.h.b16 %v3144
    %v7038 = vunpack.c.l.b16 %v3145
    %v7039 = vunpack.c.h.b16 %v3145
    %v7040 = vunpack.c.l.b16 %v3146
    %v7041 = vunpack.c.h.b16 %v3146
    %v7042 = vunpack.c.l.b16 %v3147
    %v7043 = vunpack.c.h.b16 %v3147
    %v7044 = vunpack.c.l.b16 %v3148
    %v7045 = vunpack.c.h.b16 %v3148
    %v7046 = vunpack.c.l.b16 %v3149
    %v7047 = vunpack.c.h.b16 %v3149
    %v7048 = vunpack.c.l.b16 %v3150
    %v7049 = vunpack.c.h.b16 %v3150
    %v7050 = vunpack.c.l.b16 %v3151
    %v7051 = vunpack.c.h.b16 %v3151
    %v7052 = vunpack.c.l.b16 %v3152
    %v7053 = vunpack.c.h.b16 %v3152
    %v7054 = vunpack.c.l.b16 %v3153
    %v7055 = vunpack.c.h.b16 %v3153
    %v7056 = vunpack.c.l.b16 %v3154
    %v7057 = vunpack.c.h.b16 %v3154
    %v7058 = vunpack.c.l.b16 %v3155
    %v7059 = vunpack.c.h.b16 %v3155
    %v7060 = vunpack.c.l.b16 %v3156
    %v7061 = vunpack.c.h.b16 %v3156
    %v7062 = vunpack.c.l.b16 %v3157
    %v7063 = vunpack.c.h.b16 %v3157
    %v7064 = vunpack.c.l.b16 %v3158
    %v7065 = vunpack.c.h.b16 %v3158
    %v7066 = vunpack.c.l.b16 %v3159
    %v7067 = vunpack.c.h.b16 %v3159
    %v7068 = vunpack.c.l.b16 %v3160
    %v7069 = vunpack.c.h.b16 %v3160
    %v7070 = vunpack.c.l.b16 %v3161
    %v7071 = vunpack.c.h.b16 %v3161
    %v7072 = vunpack.c.l.b16 %v3162
    %v7073 = vunpack.c.h.b16 %v3162
    %v7074 = vunpack.c.l.b16 %v3163
    %v7075 = vunpack.c.h.b16 %v3163
    %v7076 = vunpack.c.l.b16 %v3164
    %v7077 = vunpack.c.h.b16 %v3164
    %v7078 = vunpack.c.l.b16 %v3165
    %v7079 = vunpack.c.h.b16 %v3165
    %v7080 = vunpack.c.l.b16 %v3166
    %v7081 = vunpack.c.h.b16 %v3166
    %v7082 = vunpack.c.l.b16 %v3167
    %v7083 = vunpack.c.h.b16 %v3167
    %v7084 = vunpack.c.l.b16 %v3168
    %v7085 = vunpack.c.h.b16 %v3168
    %v7086 = vunpack.c.l.b16 %v3169
    %v7087 = vunpack.c.h.b16 %v3169
    %v7088 = vunpack.c.l.b16 %v3170
    %v7089 = vunpack.c.h.b16 %v3170
    %v7090 = vunpack.c.l.b16 %v3171
    %v7091 = vunpack.c.h.b16 %v3171
    %v7092 = vunpack.c.l.b16 %v3172
    %v7093 = vunpack.c.h.b16 %v3172
    %v7094 = vunpack.c.l.b16 %v3173
    %v7095 = vunpack.c.h.b16 %v3173
    %v7096 = vunpack.c.l.b16 %v3174
    %v7097 = vunpack.c.h.b16 %v3174
    %v7098 = vunpack.c.l.b16 %v3175
    %v7099 = vunpack.c.h.b16 %v3175
    %v7100 = vunpack.c.l.b16 %v3176
    %v7101 = vunpack.c.h.b16 %v3176
    %v7102 = vunpack.c.l.b16 %v3177
    %v7103 = vunpack.c.h.b16 %v3177
    %v7104 = vunpack.c.l.b16 %v3178
    %v7105 = vunpack.c.h.b16 %v3178
    %v7106 = vunpack.c.l.b16 %v3179
    %v7107 = vunpack.c.h.b16 %v3179
    %v7108 = vunpack.c.l.b16 %v3180
    %v7109 = vunpack.c.h.b16 %v3180
    %v7110 = vunpack.c.l.b16 %v3181
    %v7111 = vunpack.c.h.b16 %v3181
    %v7112 = vunpack.c.l.b16 %v3182
    %v7113 = vunpack.c.h.b16 %v3182
    %v7114 = vunpack.c.l.b16 %v3183
    %v7115 = vunpack.c.h.b16 %v3183
    %v7116 = vunpack.c.l.b16 %v3184
    %v7117 = vunpack.c.h.b16 %v3184
    %v7118 = vunpack.c.l.b16 %v3185
    %v7119 = vunpack.c.h.b16 %v3185
    %v7120 = vunpack.c.l.b16 %v3186
    %v7121 = vunpack.c.h.b16 %v3186
    %v7122 = vunpack.c.l.b16 %v3187
    %v7123 = vunpack.c.h.b16 %v3187
    %v7124 = vunpack.c.l.b16 %v3188
    %v7125 = vunpack.c.h.b16 %v3188
    %v7126 = vunpack.c.l.b16 %v3189
    %v7127 = vunpack.c.h.b16 %v3189
    %v7128 = vunpack.c.l.b16 %v3190
    %v7129 = vunpack.c.h.b16 %v3190
    %v7130 = vunpack.c.l.b16 %v3191
    %v7131 = vunpack.c.h.b16 %v3191
    %v7132 = vunpack.c.l.b16 %v3192
    %v7133 = vunpack.c.h.b16 %v3192
    %v7134 = vunpack.c.l.b16 %v3193
    %v7135 = vunpack.c.h.b16 %v3193
    %v7136 = vunpack.c.l.b16 %v3194
    %v7137 = vunpack.c.h.b16 %v3194
    %v7138 = vunpack.c.l.b16 %v3195
    %v7139 = vunpack.c.h.b16 %v3195
    %v7140 = vunpack.c.l.b16 %v3196
    %v7141 = vunpack.c.h.b16 %v3196
    %v7142 = vunpack.c.l.b16 %v3197
    %v7143 = vunpack.c.h.b16 %v3197
    %v7144 = vunpack.c.l.b16 %v3198
    %v7145 = vunpack.c.h.b16 %v3198
    %v7146 = vunpack.c.l.b16 %v3199
    %v7147 = vunpack.c.h.b16 %v3199
    %v7148 = vunpack.c.l.b16 %v3200
    %v7149 = vunpack.c.h.b16 %v3200
    %v7150 = vunpack.c.l.b16 %v3201
    %v7151 = vunpack.c.h.b16 %v3201
    %v7152 = vunpack.c.l.b16 %v3202
    %v7153 = vunpack.c.h.b16 %v3202
    %v7154 = vunpack.c.l.b16 %v3203
    %v7155 = vunpack.c.h.b16 %v3203
    %v7156 = vunpack.c.l.b16 %v3204
    %v7157 = vunpack.c.h.b16 %v3204
    %v7158 = vunpack.c.l.b16 %v3205
    %v7159 = vunpack.c.h.b16 %v3205
    %v7160 = vunpack.c.l.b16 %v3206
    %v7161 = vunpack.c.h.b16 %v3206
    %v7162 = vunpack.c.l.b16 %v3207
    %v7163 = vunpack.c.h.b16 %v3207
    %v7164 = vunpack.c.l.b16 %v3208
    %v7165 = vunpack.c.h.b16 %v3208
    %v7166 = vunpack.c.l.b16 %v3209
    %v7167 = vunpack.c.h.b16 %v3209
    %v7168 = vunpack.c.l.b16 %v3210
    %v7169 = vunpack.c.h.b16 %v3210
    %v7170 = vunpack.c.l.b16 %v3211
    %v7171 = vunpack.c.h.b16 %v3211
    %v7172 = vunpack.c.l.b16 %v3212
    %v7173 = vunpack.c.h.b16 %v3212
    %v7174 = vunpack.c.l.b16 %v3213
    %v7175 = vunpack.c.h.b16 %v3213
    %v7176 = vunpack.c.l.b16 %v3214
    %v7177 = vunpack.c.h.b16 %v3214
    %v7178 = vunpack.c.l.b16 %v3215
    %v7179 = vunpack.c.h.b16 %v3215
    %v7180 = vunpack.c.l.b16 %v3216
    %v7181 = vunpack.c.h.b16 %v3216
    %v7182 = vunpack.c.l.b16 %v3217
    %v7183 = vunpack.c.h.b16 %v3217
    %v7184 = vunpack.c.l.b16 %v3218
    %v7185 = vunpack.c.h.b16 %v3218
    %v7186 = vunpack.c.l.b16 %v3219
    %v7187 = vunpack.c.h.b16 %v3219
    %v7188 = vunpack.c.l.b16 %v3220
    %v7189 = vunpack.c.h.b16 %v3220
    %v7190 = vunpack.c.l.b16 %v3221
    %v7191 = vunpack.c.h.b16 %v3221
    %v7192 = vunpack.c.l.b16 %v3222
    %v7193 = vunpack.c.h.b16 %v3222
    %v7194 = vunpack.c.l.b16 %v3223
    %v7195 = vunpack.c.h.b16 %v3223
    %v7196 = vunpack.c.l.b16 %v3224
    %v7197 = vunpack.c.h.b16 %v3224
    %v7198 = vunpack.c.l.b16 %v3225
    %v7199 = vunpack.c.h.b16 %v3225
    %v7200 = vunpack.c.l.b16 %v3226
    %v7201 = vunpack.c.h.b16 %v3226
    %v7202 = vunpack.c.l.b16 %v3227
    %v7203 = vunpack.c.h.b16 %v3227
    %v7204 = vunpack.c.l.b16 %v3228
    %v7205 = vunpack.c.h.b16 %v3228
    %v7206 = vunpack.c.l.b16 %v3229
    %v7207 = vunpack.c.h.b16 %v3229
    %v7208 = vunpack.c.l.b16 %v3230
    %v7209 = vunpack.c.h.b16 %v3230
    %v7210 = vunpack.c.l.b16 %v3231
    %v7211 = vunpack.c.h.b16 %v3231
    %v7212 = vunpack.c.l.b16 %v3232
    %v7213 = vunpack.c.h.b16 %v3232
    %v7214 = vunpack.c.l.b16 %v3233
    %v7215 = vunpack.c.h.b16 %v3233
    %v7216 = vunpack.c.l.b16 %v3234
    %v7217 = vunpack.c.h.b16 %v3234
    %v7218 = vunpack.c.l.b16 %v3235
    %v7219 = vunpack.c.h.b16 %v3235
    %v7220 = vunpack.c.l.b16 %v3236
    %v7221 = vunpack.c.h.b16 %v3236
    %v7222 = vunpack.c.l.b16 %v3237
    %v7223 = vunpack.c.h.b16 %v3237
    %v7224 = vunpack.c.l.b16 %v3238
    %v7225 = vunpack.c.h.b16 %v3238
    %v7226 = vunpack.c.l.b16 %v3239
    %v7227 = vunpack.c.h.b16 %v3239
    %v7228 = vunpack.c.l.b16 %v3240
    %v7229 = vunpack.c.h.b16 %v3240
    %v7230 = vunpack.c.l.b16 %v3241
    %v7231 = vunpack.c.h.b16 %v3241
    %v7232 = vunpack.c.l.b16 %v3242
    %v7233 = vunpack.c.h.b16 %v3242
    %v7234 = vunpack.c.l.b16 %v3243
    %v7235 = vunpack.c.h.b16 %v3243
    %v7236 = vunpack.c.l.b16 %v3244
    %v7237 = vunpack.c.h.b16 %v3244
    %v7238 = vunpack.c.l.b16 %v3245
    %v7239 = vunpack.c.h.b16 %v3245
    %v7240 = vunpack.c.l.b16 %v3246
    %v7241 = vunpack.c.h.b16 %v3246
    %v7242 = vunpack.c.l.b16 %v3247
    %v7243 = vunpack.c.h.b16 %v3247
    %v7244 = vunpack.c.l.b16 %v3248
    %v7245 = vunpack.c.h.b16 %v3248
    %v7246 = vunpack.c.l.b16 %v3249
    %v7247 = vunpack.c.h.b16 %v3249
    %v7248 = vunpack.c.l.b16 %v3250
    %v7249 = vunpack.c.h.b16 %v3250
    %v7250 = vunpack.c.l.b16 %v3251
    %v7251 = vunpack.c.h.b16 %v3251
    %v7252 = vunpack.c.l.b16 %v3252
    %v7253 = vunpack.c.h.b16 %v3252
    %v7254 = vunpack.c.l.b16 %v3253
    %v7255 = vunpack.c.h.b16 %v3253
    %v7256 = vunpack.c.l.b16 %v3254
    %v7257 = vunpack.c.h.b16 %v3254
    %v7258 = vunpack.c.l.b16 %v3255
    %v7259 = vunpack.c.h.b16 %v3255
    %v7260 = vunpack.c.l.b16 %v3256
    %v7261 = vunpack.c.h.b16 %v3256
    %v7262 = vunpack.c.l.b16 %v3257
    %v7263 = vunpack.c.h.b16 %v3257
    %v7264 = vunpack.c.l.b16 %v3258
    %v7265 = vunpack.c.h.b16 %v3258
    %v7266 = vunpack.c.l.b16 %v3259
    %v7267 = vunpack.c.h.b16 %v3259
    %v7268 = vunpack.c.l.b16 %v3260
    %v7269 = vunpack.c.h.b16 %v3260
    %v7270 = vunpack.c.l.b16 %v3261
    %v7271 = vunpack.c.h.b16 %v3261
    %v7272 = vunpack.c.l.b16 %v3262
    %v7273 = vunpack.c.h.b16 %v3262
    %v7274 = vunpack.c.l.b16 %v3263
    %v7275 = vunpack.c.h.b16 %v3263
    %v7276 = vunpack.c.l.b16 %v3264
    %v7277 = vunpack.c.h.b16 %v3264
    %v7278 = vunpack.c.l.b16 %v3265
    %v7279 = vunpack.c.h.b16 %v3265
    %v7280 = vunpack.c.l.b16 %v3266
    %v7281 = vunpack.c.h.b16 %v3266
    %v7282 = vunpack.c.l.b16 %v3267
    %v7283 = vunpack.c.h.b16 %v3267
    %v7284 = vunpack.c.l.b16 %v3268
    %v7285 = vunpack.c.h.b16 %v3268
    %v7286 = vunpack.c.l.b16 %v3269
    %v7287 = vunpack.c.h.b16 %v3269
    %v7288 = vunpack.c.l.b16 %v3270
    %v7289 = vunpack.c.h.b16 %v3270
    %v7290 = vunpack.c.l.b16 %v3271
    %v7291 = vunpack.c.h.b16 %v3271
    %v7292 = vunpack.c.l.b16 %v3272
    %v7293 = vunpack.c.h.b16 %v3272
    %v7294 = vunpack.c.l.b16 %v3273
    %v7295 = vunpack.c.h.b16 %v3273
    %v7296 = vunpack.c.l.b16 %v3274
    %v7297 = vunpack.c.h.b16 %v3274
    %v7298 = vunpack.c.l.b16 %v3275
    %v7299 = vunpack.c.h.b16 %v3275
    %v7300 = vunpack.c.l.b16 %v3276
    %v7301 = vunpack.c.h.b16 %v3276
    %v7302 = vunpack.c.l.b16 %v3277
    %v7303 = vunpack.c.h.b16 %v3277
    %v7304 = vunpack.c.l.b16 %v3278
    %v7305 = vunpack.c.h.b16 %v3278
    %v7306 = vunpack.c.l.b16 %v3279
    %v7307 = vunpack.c.h.b16 %v3279
    %v7308 = vunpack.c.l.b16 %v3280
    %v7309 = vunpack.c.h.b16 %v3280
    %v7310 = vunpack.c.l.b16 %v3281
    %v7311 = vunpack.c.h.b16 %v3281
    %v7312 = vunpack.c.l.b16 %v3282
    %v7313 = vunpack.c.h.b16 %v3282
    %v7314 = vunpack.c.l.b16 %v3283
    %v7315 = vunpack.c.h.b16 %v3283
    %v7316 = vunpack.c.l.b16 %v3284
    %v7317 = vunpack.c.h.b16 %v3284
    %v7318 = vunpack.c.l.b16 %v3285
    %v7319 = vunpack.c.h.b16 %v3285
    %v7320 = vunpack.c.l.b16 %v3286
    %v7321 = vunpack.c.h.b16 %v3286
    %v7322 = vunpack.c.l.b16 %v3287
    %v7323 = vunpack.c.h.b16 %v3287
    %v7324 = vunpack.c.l.b16 %v3288
    %v7325 = vunpack.c.h.b16 %v3288
    %v7326 = vunpack.c.l.b16 %v3289
    %v7327 = vunpack.c.h.b16 %v3289
    %v7328 = vunpack.c.l.b16 %v3290
    %v7329 = vunpack.c.h.b16 %v3290
    %v7330 = vunpack.c.l.b16 %v3291
    %v7331 = vunpack.c.h.b16 %v3291
    %v7332 = vunpack.c.l.b16 %v3292
    %v7333 = vunpack.c.h.b16 %v3292
    %v7334 = vunpack.c.l.b16 %v3293
    %v7335 = vunpack.c.h.b16 %v3293
    %v7336 = vunpack.c.l.b16 %v3294
    %v7337 = vunpack.c.h.b16 %v3294
    %v7338 = vunpack.c.l.b16 %v3295
    %v7339 = vunpack.c.h.b16 %v3295
    %v7340 = vunpack.c.l.b16 %v3296
    %v7341 = vunpack.c.h.b16 %v3296
    %v7342 = vunpack.c.l.b16 %v3297
    %v7343 = vunpack.c.h.b16 %v3297
    %v7344 = vunpack.c.l.b16 %v3298
    %v7345 = vunpack.c.h.b16 %v3298
    %v7346 = vunpack.c.l.b16 %v3299
    %v7347 = vunpack.c.h.b16 %v3299
    %v7348 = vunpack.c.l.b16 %v3300
    %v7349 = vunpack.c.h.b16 %v3300
    %v7350 = vunpack.c.l.b16 %v3301
    %v7351 = vunpack.c.h.b16 %v3301
    %v7352 = vunpack.c.l.b16 %v3302
    %v7353 = vunpack.c.h.b16 %v3302
    %v7354 = vunpack.c.l.b16 %v3303
    %v7355 = vunpack.c.h.b16 %v3303
    %v7356 = vunpack.c.l.b16 %v3304
    %v7357 = vunpack.c.h.b16 %v3304
    %v7358 = vunpack.c.l.b16 %v3305
    %v7359 = vunpack.c.h.b16 %v3305
    %v7360 = vunpack.c.l.b16 %v3306
    %v7361 = vunpack.c.h.b16 %v3306
    %v7362 = vunpack.c.l.b16 %v3307
    %v7363 = vunpack.c.h.b16 %v3307
    %v7364 = vunpack.c.l.b16 %v3308
    %v7365 = vunpack.c.h.b16 %v3308
    %v7366 = vunpack.c.l.b16 %v3309
    %v7367 = vunpack.c.h.b16 %v3309
    %v7368 = vunpack.c.l.b16 %v3310
    %v7369 = vunpack.c.h.b16 %v3310
    %v7370 = vunpack.c.l.b16 %v3311
    %v7371 = vunpack.c.h.b16 %v3311
    %v7372 = vunpack.c.l.b16 %v3312
    %v7373 = vunpack.c.h.b16 %v3312
    %v7374 = vunpack.c.l.b16 %v3313
    %v7375 = vunpack.c.h.b16 %v3313
    %v7376 = vunpack.c.l.b16 %v3314
    %v7377 = vunpack.c.h.b16 %v3314
    %v7378 = vunpack.c.l.b16 %v3315
    %v7379 = vunpack.c.h.b16 %v3315
    %v7380 = vunpack.c.l.b16 %v3316
    %v7381 = vunpack.c.h.b16 %v3316
    %v7382 = vunpack.c.l.b16 %v3317
    %v7383 = vunpack.c.h.b16 %v3317
    %v7384 = vunpack.c.l.b16 %v3318
    %v7385 = vunpack.c.h.b16 %v3318
    %v7386 = vunpack.c.l.b16 %v3319
    %v7387 = vunpack.c.h.b16 %v3319
    %v7388 = vunpack.c.l.b16 %v3320
    %v7389 = vunpack.c.h.b16 %v3320
    %v7390 = vunpack.c.l.b16 %v3321
    %v7391 = vunpack.c.h.b16 %v3321
    %v7392 = vunpack.c.l.b16 %v3322
    %v7393 = vunpack.c.h.b16 %v3322
    %v7394 = vunpack.c.l.b16 %v3323
    %v7395 = vunpack.c.h.b16 %v3323
    %v7396 = vunpack.c.l.b16 %v3324
    %v7397 = vunpack.c.h.b16 %v3324
    %v7398 = vunpack.c.l.b16 %v3325
    %v7399 = vunpack.c.h.b16 %v3325
    %v7400 = vunpack.c.l.b16 %v3326
    %v7401 = vunpack.c.h.b16 %v3326
    %v7402 = vunpack.c.l.b16 %v3327
    %v7403 = vunpack.c.h.b16 %v3327
    %v7404 = vunpack.c.l.b16 %v3328
    %v7405 = vunpack.c.h.b16 %v3328
    %v7406 = vunpack.c.l.b16 %v3329
    %v7407 = vunpack.c.h.b16 %v3329
    %v7408 = vunpack.c.l.b16 %v3330
    %v7409 = vunpack.c.h.b16 %v3330
    %v7410 = vunpack.c.l.b16 %v3331
    %v7411 = vunpack.c.h.b16 %v3331
    %v7412 = vunpack.c.l.b16 %v3332
    %v7413 = vunpack.c.h.b16 %v3332
    %v7414 = vunpack.c.l.b16 %v3333
    %v7415 = vunpack.c.h.b16 %v3333
    %v7416 = vunpack.c.l.b16 %v3334
    %v7417 = vunpack.c.h.b16 %v3334
    %v7418 = vunpack.c.l.b16 %v3335
    %v7419 = vunpack.c.h.b16 %v3335
    %v7420 = vunpack.c.l.b16 %v3336
    %v7421 = vunpack.c.h.b16 %v3336
    %v7422 = vunpack.c.l.b16 %v3337
    %v7423 = vunpack.c.h.b16 %v3337
    %v7424 = vunpack.c.l.b16 %v3338
    %v7425 = vunpack.c.h.b16 %v3338
    %v7426 = vunpack.c.l.b16 %v3339
    %v7427 = vunpack.c.h.b16 %v3339
    %v7428 = vunpack.c.l.b16 %v3340
    %v7429 = vunpack.c.h.b16 %v3340
    %v7430 = vunpack.c.l.b16 %v3341
    %v7431 = vunpack.c.h.b16 %v3341
    %v7432 = vunpack.c.l.b16 %v3342
    %v7433 = vunpack.c.h.b16 %v3342
    %v7434 = vunpack.c.l.b16 %v3343
    %v7435 = vunpack.c.h.b16 %v3343
    %v7436 = vunpack.c.l.b16 %v3344
    %v7437 = vunpack.c.h.b16 %v3344
    %v7438 = vunpack.c.l.b16 %v3345
    %v7439 = vunpack.c.h.b16 %v3345
    %v7440 = vunpack.c.l.b16 %v3346
    %v7441 = vunpack.c.h.b16 %v3346
    %v7442 = vunpack.c.l.b16 %v3347
    %v7443 = vunpack.c.h.b16 %v3347
    %v7444 = vunpack.c.l.b16 %v3348
    %v7445 = vunpack.c.h.b16 %v3348
    %v7446 = vunpack.c.l.b16 %v3349
    %v7447 = vunpack.c.h.b16 %v3349
    %v7448 = vunpack.c.l.b16 %v3350
    %v7449 = vunpack.c.h.b16 %v3350
    %v7450 = vunpack.c.l.b16 %v3351
    %v7451 = vunpack.c.h.b16 %v3351
    %v7452 = vunpack.c.l.b16 %v3352
    %v7453 = vunpack.c.h.b16 %v3352
    %v7454 = vunpack.c.l.b16 %v3353
    %v7455 = vunpack.c.h.b16 %v3353
    %v7456 = vunpack.c.l.b16 %v3354
    %v7457 = vunpack.c.h.b16 %v3354
    %v7458 = vunpack.c.l.b16 %v3355
    %v7459 = vunpack.c.h.b16 %v3355
    %v7460 = vunpack.c.l.b16 %v3356
    %v7461 = vunpack.c.h.b16 %v3356
    %v7462 = vunpack.c.l.b16 %v3357
    %v7463 = vunpack.c.h.b16 %v3357
    %v7464 = vunpack.c.l.b16 %v3358
    %v7465 = vunpack.c.h.b16 %v3358
    %v7466 = vunpack.c.l.b16 %v3359
    %v7467 = vunpack.c.h.b16 %v3359
    %v7468 = vunpack.c.l.b16 %v3360
    %v7469 = vunpack.c.h.b16 %v3360
    %v7470 = vunpack.c.l.b16 %v3361
    %v7471 = vunpack.c.h.b16 %v3361
    %v7472 = vunpack.c.l.b16 %v3362
    %v7473 = vunpack.c.h.b16 %v3362
    %v7474 = vunpack.c.l.b16 %v3363
    %v7475 = vunpack.c.h.b16 %v3363
    %v7476 = vunpack.c.l.b16 %v3364
    %v7477 = vunpack.c.h.b16 %v3364
    %v7478 = vunpack.c.l.b16 %v3365
    %v7479 = vunpack.c.h.b16 %v3365
    %v7480 = vunpack.c.l.b16 %v3366
    %v7481 = vunpack.c.h.b16 %v3366
    %v7482 = vunpack.c.l.b16 %v3367
    %v7483 = vunpack.c.h.b16 %v3367
    %v7484 = vunpack.c.l.b16 %v3368
    %v7485 = vunpack.c.h.b16 %v3368
    %v7486 = vunpack.c.l.b16 %v3369
    %v7487 = vunpack.c.h.b16 %v3369
    %v7488 = vunpack.c.l.b16 %v3370
    %v7489 = vunpack.c.h.b16 %v3370
    %v7490 = vunpack.c.l.b16 %v3371
    %v7491 = vunpack.c.h.b16 %v3371
    %v7492 = vunpack.c.l.b16 %v3372
    %v7493 = vunpack.c.h.b16 %v3372
    %v7494 = vunpack.c.l.b16 %v3373
    %v7495 = vunpack.c.h.b16 %v3373
    %v7496 = vunpack.c.l.b16 %v3374
    %v7497 = vunpack.c.h.b16 %v3374
    %v7498 = vunpack.c.l.b16 %v3375
    %v7499 = vunpack.c.h.b16 %v3375
    %v7500 = vunpack.c.l.b16 %v3376
    %v7501 = vunpack.c.h.b16 %v3376
    %v7502 = vunpack.c.l.b16 %v3377
    %v7503 = vunpack.c.h.b16 %v3377
    %v7504 = vunpack.c.l.b16 %v3378
    %v7505 = vunpack.c.h.b16 %v3378
    %v7506 = vunpack.c.l.b16 %v3379
    %v7507 = vunpack.c.h.b16 %v3379
    %v7508 = vunpack.c.l.b16 %v3380
    %v7509 = vunpack.c.h.b16 %v3380
    %v7510 = vunpack.c.l.b16 %v3381
    %v7511 = vunpack.c.h.b16 %v3381
    %v7512 = vunpack.c.l.b16 %v3382
    %v7513 = vunpack.c.h.b16 %v3382
    %v7514 = vunpack.c.l.b16 %v3383
    %v7515 = vunpack.c.h.b16 %v3383
    %v7516 = vunpack.c.l.b16 %v3384
    %v7517 = vunpack.c.h.b16 %v3384
    %v7518 = vunpack.c.l.b16 %v3385
    %v7519 = vunpack.c.h.b16 %v3385
    %v7520 = vunpack.c.l.b16 %v3386
    %v7521 = vunpack.c.h.b16 %v3386
    %v7522 = vunpack.c.l.b16 %v3387
    %v7523 = vunpack.c.h.b16 %v3387
    %v7524 = vunpack.c.l.b16 %v3388
    %v7525 = vunpack.c.h.b16 %v3388
    %v7526 = vunpack.c.l.b16 %v3389
    %v7527 = vunpack.c.h.b16 %v3389
    %v7528 = vunpack.c.l.b16 %v3390
    %v7529 = vunpack.c.h.b16 %v3390
    %v7530 = vunpack.c.l.b16 %v3391
    %v7531 = vunpack.c.h.b16 %v3391
    %v7532 = vunpack.c.l.b16 %v3392
    %v7533 = vunpack.c.h.b16 %v3392
    %v7534 = vunpack.c.l.b16 %v3393
    %v7535 = vunpack.c.h.b16 %v3393
    %v7536 = vunpack.c.l.b16 %v3394
    %v7537 = vunpack.c.h.b16 %v3394
    %v7538 = vunpack.c.l.b16 %v3395
    %v7539 = vunpack.c.h.b16 %v3395
    %v7540 = vunpack.c.l.b16 %v3396
    %v7541 = vunpack.c.h.b16 %v3396
    %v7542 = vunpack.c.l.b16 %v3397
    %v7543 = vunpack.c.h.b16 %v3397
    %v7544 = vunpack.c.l.b16 %v3398
    %v7545 = vunpack.c.h.b16 %v3398
    %v7546 = vunpack.c.l.b16 %v3399
    %v7547 = vunpack.c.h.b16 %v3399
    %v7548 = vunpack.c.l.b16 %v3400
    %v7549 = vunpack.c.h.b16 %v3400
    %v7550 = vunpack.c.l.b16 %v3401
    %v7551 = vunpack.c.h.b16 %v3401
    %v7552 = vunpack.c.l.b16 %v3402
    %v7553 = vunpack.c.h.b16 %v3402
    %v7554 = vunpack.c.l.b16 %v3403
    %v7555 = vunpack.c.h.b16 %v3403
    %v7556 = vunpack.c.l.b16 %v3404
    %v7557 = vunpack.c.h.b16 %v3404
    %v7558 = vunpack.c.l.b16 %v3405
    %v7559 = vunpack.c.h.b16 %v3405
    %v7560 = vunpack.c.l.b16 %v3406
    %v7561 = vunpack.c.h.b16 %v3406
    %v7562 = vunpack.c.l.b16 %v3407
    %v7563 = vunpack.c.h.b16 %v3407
    %v7564 = vunpack.c.l.b16 %v3408
    %v7565 = vunpack.c.h.b16 %v3408
    %v7566 = vunpack.c.l.b16 %v3409
    %v7567 = vunpack.c.h.b16 %v3409
    %v7568 = vunpack.c.l.b16 %v3410
    %v7569 = vunpack.c.h.b16 %v3410
    %v7570 = vunpack.c.l.b16 %v3411
    %v7571 = vunpack.c.h.b16 %v3411
    %v7572 = vunpack.c.l.b16 %v3412
    %v7573 = vunpack.c.h.b16 %v3412
    %v7574 = vunpack.c.l.b16 %v3413
    %v7575 = vunpack.c.h.b16 %v3413
    %v7576 = vunpack.c.l.b16 %v3414
    %v7577 = vunpack.c.h.b16 %v3414
    %v7578 = vunpack.c.l.b16 %v3415
    %v7579 = vunpack.c.h.b16 %v3415
    %v7580 = vunpack.c.l.b16 %v3416
    %v7581 = vunpack.c.h.b16 %v3416
    %v7582 = vunpack.c.l.b16 %v3417
    %v7583 = vunpack.c.h.b16 %v3417
    %v7584 = vunpack.c.l.b16 %v3418
    %v7585 = vunpack.c.h.b16 %v3418
    %v7586 = vunpack.c.l.b16 %v3419
    %v7587 = vunpack.c.h.b16 %v3419
    %v7588 = vunpack.c.l.b16 %v3420
    %v7589 = vunpack.c.h.b16 %v3420
    %v7590 = vunpack.c.l.b16 %v3421
    %v7591 = vunpack.c.h.b16 %v3421
    %v7592 = vunpack.c.l.b16 %v3422
    %v7593 = vunpack.c.h.b16 %v3422
    %v7594 = vunpack.c.l.b16 %v3423
    %v7595 = vunpack.c.h.b16 %v3423
    %v7596 = vunpack.c.l.b16 %v3424
    %v7597 = vunpack.c.h.b16 %v3424
    %v7598 = vunpack.c.l.b16 %v3425
    %v7599 = vunpack.c.h.b16 %v3425
    %v7600 = vunpack.c.l.b16 %v3426
    %v7601 = vunpack.c.h.b16 %v3426
    %v7602 = vunpack.c.l.b16 %v3427
    %v7603 = vunpack.c.h.b16 %v3427
    %v7604 = vunpack.c.l.b16 %v3428
    %v7605 = vunpack.c.h.b16 %v3428
    %v7606 = vunpack.c.l.b16 %v3429
    %v7607 = vunpack.c.h.b16 %v3429
    %v7608 = vunpack.c.l.b16 %v3430
    %v7609 = vunpack.c.h.b16 %v3430
    %v7610 = vunpack.c.l.b16 %v3431
    %v7611 = vunpack.c.h.b16 %v3431
    %v7612 = vunpack.c.l.b16 %v3432
    %v7613 = vunpack.c.h.b16 %v3432
    %v7614 = vunpack.c.l.b16 %v3433
    %v7615 = vunpack.c.h.b16 %v3433
    %v7616 = vunpack.c.l.b16 %v3434
    %v7617 = vunpack.c.h.b16 %v3434
    %v7618 = vunpack.c.l.b16 %v3435
    %v7619 = vunpack.c.h.b16 %v3435
    %v7620 = vunpack.c.l.b16 %v3436
    %v7621 = vunpack.c.h.b16 %v3436
    %v7622 = vunpack.c.l.b16 %v3437
    %v7623 = vunpack.c.h.b16 %v3437
    %v7624 = vunpack.c.l.b16 %v3438
    %v7625 = vunpack.c.h.b16 %v3438
    %v7626 = vunpack.c.l.b16 %v3439
    %v7627 = vunpack.c.h.b16 %v3439
    %v7628 = vunpack.c.l.b16 %v3440
    %v7629 = vunpack.c.h.b16 %v3440
    %v7630 = vunpack.c.l.b16 %v3441
    %v7631 = vunpack.c.h.b16 %v3441
    %v7632 = vunpack.c.l.b16 %v3442
    %v7633 = vunpack.c.h.b16 %v3442
    %v7634 = vunpack.c.l.b16 %v3443
    %v7635 = vunpack.c.h.b16 %v3443
    %v7636 = vunpack.c.l.b16 %v3444
    %v7637 = vunpack.c.h.b16 %v3444
    %v7638 = vunpack.c.l.b16 %v3445
    %v7639 = vunpack.c.h.b16 %v3445
    %v7640 = vunpack.c.l.b16 %v3446
    %v7641 = vunpack.c.h.b16 %v3446
    %v7642 = vunpack.c.l.b16 %v3447
    %v7643 = vunpack.c.h.b16 %v3447
    %v7644 = vunpack.c.l.b16 %v3448
    %v7645 = vunpack.c.h.b16 %v3448
    %v7646 = vunpack.c.l.b16 %v3449
    %v7647 = vunpack.c.h.b16 %v3449
    %v7648 = vunpack.c.l.b16 %v3450
    %v7649 = vunpack.c.h.b16 %v3450
    %v7650 = vunpack.c.l.b16 %v3451
    %v7651 = vunpack.c.h.b16 %v3451
    %v7652 = vunpack.c.l.b16 %v3452
    %v7653 = vunpack.c.h.b16 %v3452
    %v7654 = vunpack.c.l.b16 %v3453
    %v7655 = vunpack.c.h.b16 %v3453
    %v7656 = vunpack.c.l.b16 %v3454
    %v7657 = vunpack.c.h.b16 %v3454
    %v7658 = vunpack.c.l.b16 %v3455
    %v7659 = vunpack.c.h.b16 %v3455
    %v7660 = vunpack.c.l.b16 %v3456
    %v7661 = vunpack.c.h.b16 %v3456
    %v7662 = vunpack.c.l.b16 %v3457
    %v7663 = vunpack.c.h.b16 %v3457
    %v7664 = vunpack.c.l.b16 %v3458
    %v7665 = vunpack.c.h.b16 %v3458
    %v7666 = vunpack.c.l.b16 %v3459
    %v7667 = vunpack.c.h.b16 %v3459
    %v7668 = vunpack.c.l.b16 %v3460
    %v7669 = vunpack.c.h.b16 %v3460
    %v7670 = vunpack.c.l.b16 %v3461
    %v7671 = vunpack.c.h.b16 %v3461
    %v7672 = vunpack.c.l.b16 %v3462
    %v7673 = vunpack.c.h.b16 %v3462
    %v7674 = vunpack.c.l.b16 %v3463
    %v7675 = vunpack.c.h.b16 %v3463
    %v7676 = vunpack.c.l.b16 %v3464
    %v7677 = vunpack.c.h.b16 %v3464
    %v7678 = vunpack.c.l.b16 %v3465
    %v7679 = vunpack.c.h.b16 %v3465
    %v7680 = vunpack.c.l.b16 %v3466
    %v7681 = vunpack.c.h.b16 %v3466
    %v7682 = vunpack.c.l.b16 %v3467
    %v7683 = vunpack.c.h.b16 %v3467
    %v7684 = vunpack.c.l.b16 %v3468
    %v7685 = vunpack.c.h.b16 %v3468
    %v7686 = vunpack.c.l.b16 %v3469
    %v7687 = vunpack.c.h.b16 %v3469
    %v7688 = vunpack.c.l.b16 %v3470
    %v7689 = vunpack.c.h.b16 %v3470
    %v7690 = vunpack.c.l.b16 %v3471
    %v7691 = vunpack.c.h.b16 %v3471
    %v7692 = vunpack.c.l.b16 %v3472
    %v7693 = vunpack.c.h.b16 %v3472
    %v7694 = vunpack.c.l.b16 %v3473
    %v7695 = vunpack.c.h.b16 %v3473
    %v7696 = vunpack.c.l.b16 %v3474
    %v7697 = vunpack.c.h.b16 %v3474
    %v7698 = vunpack.c.l.b16 %v3475
    %v7699 = vunpack.c.h.b16 %v3475
    %v7700 = vunpack.c.l.b16 %v3476
    %v7701 = vunpack.c.h.b16 %v3476
    %v7702 = vunpack.c.l.b16 %v3477
    %v7703 = vunpack.c.h.b16 %v3477
    %v7704 = vunpack.c.l.b16 %v3478
    %v7705 = vunpack.c.h.b16 %v3478
    %v7706 = vunpack.c.l.b16 %v3479
    %v7707 = vunpack.c.h.b16 %v3479
    %v7708 = vunpack.c.l.b16 %v3480
    %v7709 = vunpack.c.h.b16 %v3480
    %v7710 = vunpack.c.l.b16 %v3481
    %v7711 = vunpack.c.h.b16 %v3481
    %v7712 = vunpack.c.l.b16 %v3482
    %v7713 = vunpack.c.h.b16 %v3482
    %v7714 = vunpack.c.l.b16 %v3483
    %v7715 = vunpack.c.h.b16 %v3483
    %v7716 = vunpack.c.l.b16 %v3484
    %v7717 = vunpack.c.h.b16 %v3484
    %v7718 = vunpack.c.l.b16 %v3485
    %v7719 = vunpack.c.h.b16 %v3485
    %v7720 = vunpack.c.l.b16 %v3486
    %v7721 = vunpack.c.h.b16 %v3486
    %v7722 = vunpack.c.l.b16 %v3487
    %v7723 = vunpack.c.h.b16 %v3487
    %v7724 = vunpack.c.l.b16 %v3488
    %v7725 = vunpack.c.h.b16 %v3488
    %v7726 = vunpack.c.l.b16 %v3489
    %v7727 = vunpack.c.h.b16 %v3489
    %v7728 = vunpack.c.l.b16 %v3490
    %v7729 = vunpack.c.h.b16 %v3490
    %v7730 = vunpack.c.l.b16 %v3491
    %v7731 = vunpack.c.h.b16 %v3491
    %v7732 = vunpack.c.l.b16 %v3492
    %v7733 = vunpack.c.h.b16 %v3492
    %v7734 = vunpack.c.l.b16 %v3493
    %v7735 = vunpack.c.h.b16 %v3493
    %v7736 = vunpack.c.l.b16 %v3494
    %v7737 = vunpack.c.h.b16 %v3494
    %v7738 = vunpack.c.l.b16 %v3495
    %v7739 = vunpack.c.h.b16 %v3495
    %v7740 = vunpack.c.l.b16 %v3496
    %v7741 = vunpack.c.h.b16 %v3496
    %v7742 = vunpack.c.l.b16 %v3497
    %v7743 = vunpack.c.h.b16 %v3497
    %v7744 = vunpack.c.l.b16 %v3498
    %v7745 = vunpack.c.h.b16 %v3498
    %v7746 = vunpack.c.l.b16 %v3499
    %v7747 = vunpack.c.h.b16 %v3499
    %v7748 = vunpack.c.l.b16 %v3500
    %v7749 = vunpack.c.h.b16 %v3500
    %v7750 = vunpack.c.l.b16 %v3501
    %v7751 = vunpack.c.h.b16 %v3501
    %v7752 = vunpack.c.l.b16 %v3502
    %v7753 = vunpack.c.h.b16 %v3502
    %v7754 = vunpack.c.l.b16 %v3503
    %v7755 = vunpack.c.h.b16 %v3503
    %v7756 = vunpack.c.l.b16 %v3504
    %v7757 = vunpack.c.h.b16 %v3504
    %v7758 = vunpack.c.l.b16 %v3505
    %v7759 = vunpack.c.h.b16 %v3505
    %v7760 = vunpack.c.l.b16 %v3506
    %v7761 = vunpack.c.h.b16 %v3506
    %v7762 = vunpack.c.l.b16 %v3507
    %v7763 = vunpack.c.h.b16 %v3507
    %v7764 = vunpack.c.l.b16 %v3508
    %v7765 = vunpack.c.h.b16 %v3508
    %v7766 = vunpack.c.l.b16 %v3509
    %v7767 = vunpack.c.h.b16 %v3509
    %v7768 = vunpack.c.l.b16 %v3510
    %v7769 = vunpack.c.h.b16 %v3510
    %v7770 = vunpack.c.l.b16 %v3511
    %v7771 = vunpack.c.h.b16 %v3511
    %v7772 = vunpack.c.l.b16 %v3512
    %v7773 = vunpack.c.h.b16 %v3512
    %v7774 = vunpack.c.l.b16 %v3513
    %v7775 = vunpack.c.h.b16 %v3513
    %v7776 = vunpack.c.l.b16 %v3514
    %v7777 = vunpack.c.h.b16 %v3514
    %v7778 = vunpack.c.l.b16 %v3515
    %v7779 = vunpack.c.h.b16 %v3515
    %v7780 = vunpack.c.l.b16 %v3516
    %v7781 = vunpack.c.h.b16 %v3516
    %v7782 = vunpack.c.l.b16 %v3517
    %v7783 = vunpack.c.h.b16 %v3517
    %v7784 = vunpack.c.l.b16 %v3518
    %v7785 = vunpack.c.h.b16 %v3518
    %v7786 = vunpack.c.l.b16 %v3519
    %v7787 = vunpack.c.h.b16 %v3519
    %v7788 = vunpack.c.l.b16 %v3520
    %v7789 = vunpack.c.h.b16 %v3520
    %v7790 = vunpack.c.l.b16 %v3521
    %v7791 = vunpack.c.h.b16 %v3521
    %v7792 = vunpack.c.l.b16 %v3522
    %v7793 = vunpack.c.h.b16 %v3522
    %v7794 = vunpack.c.l.b16 %v3523
    %v7795 = vunpack.c.h.b16 %v3523
    %v7796 = vunpack.c.l.b16 %v3524
    %v7797 = vunpack.c.h.b16 %v3524
    %v7798 = vunpack.c.l.b16 %v3525
    %v7799 = vunpack.c.h.b16 %v3525
    %v7800 = vunpack.c.l.b16 %v3526
    %v7801 = vunpack.c.h.b16 %v3526
    %v7802 = vunpack.c.l.b16 %v3527
    %v7803 = vunpack.c.h.b16 %v3527
    %v7804 = vunpack.c.l.b16 %v3528
    %v7805 = vunpack.c.h.b16 %v3528
    %v7806 = vunpack.c.l.b16 %v3529
    %v7807 = vunpack.c.h.b16 %v3529
    %v7808 = vunpack.c.l.b16 %v3530
    %v7809 = vunpack.c.h.b16 %v3530
    %v7810 = vunpack.c.l.b16 %v3531
    %v7811 = vunpack.c.h.b16 %v3531
    %v7812 = vunpack.c.l.b16 %v3532
    %v7813 = vunpack.c.h.b16 %v3532
    %v7814 = vunpack.c.l.b16 %v3533
    %v7815 = vunpack.c.h.b16 %v3533
    %v7816 = vunpack.c.l.b16 %v3534
    %v7817 = vunpack.c.h.b16 %v3534
    %v7818 = vunpack.c.l.b16 %v3535
    %v7819 = vunpack.c.h.b16 %v3535
    %v7820 = vunpack.c.l.b16 %v3536
    %v7821 = vunpack.c.h.b16 %v3536
    %v7822 = vunpack.c.l.b16 %v3537
    %v7823 = vunpack.c.h.b16 %v3537
    %v7824 = vunpack.c.l.b16 %v3538
    %v7825 = vunpack.c.h.b16 %v3538
    %v7826 = vunpack.c.l.b16 %v3539
    %v7827 = vunpack.c.h.b16 %v3539
    %v7828 = vunpack.c.l.b16 %v3540
    %v7829 = vunpack.c.h.b16 %v3540
    %v7830 = vunpack.c.l.b16 %v3541
    %v7831 = vunpack.c.h.b16 %v3541
    %v7832 = vunpack.c.l.b16 %v3542
    %v7833 = vunpack.c.h.b16 %v3542
    %v7834 = vunpack.c.l.b16 %v3543
    %v7835 = vunpack.c.h.b16 %v3543
    %v7836 = vunpack.c.l.b16 %v3544
    %v7837 = vunpack.c.h.b16 %v3544
    %v7838 = vunpack.c.l.b16 %v3545
    %v7839 = vunpack.c.h.b16 %v3545
    %v7840 = vunpack.c.l.b16 %v3546
    %v7841 = vunpack.c.h.b16 %v3546
    %v7842 = vunpack.c.l.b16 %v3547
    %v7843 = vunpack.c.h.b16 %v3547
    %v7844 = vunpack.c.l.b16 %v3548
    %v7845 = vunpack.c.h.b16 %v3548
    %v7846 = vunpack.c.l.b16 %v3549
    %v7847 = vunpack.c.h.b16 %v3549
    %v7848 = vunpack.c.l.b16 %v3550
    %v7849 = vunpack.c.h.b16 %v3550
    %v7850 = vunpack.c.l.b16 %v3551
    %v7851 = vunpack.c.h.b16 %v3551
    %v7852 = vunpack.c.l.b16 %v3552
    %v7853 = vunpack.c.h.b16 %v3552
    %v7854 = vunpack.c.l.b16 %v3553
    %v7855 = vunpack.c.h.b16 %v3553
    %v7856 = vunpack.c.l.b16 %v3554
    %v7857 = vunpack.c.h.b16 %v3554
    %v7858 = vunpack.c.l.b16 %v3555
    %v7859 = vunpack.c.h.b16 %v3555
    %v7860 = vunpack.c.l.b16 %v3556
    %v7861 = vunpack.c.h.b16 %v3556
    %v7862 = vunpack.c.l.b16 %v3557
    %v7863 = vunpack.c.h.b16 %v3557
    %v7864 = vunpack.c.l.b16 %v3558
    %v7865 = vunpack.c.h.b16 %v3558
    %v7866 = vunpack.c.l.b16 %v3559
    %v7867 = vunpack.c.h.b16 %v3559
    %v7868 = vunpack.c.l.b16 %v3560
    %v7869 = vunpack.c.h.b16 %v3560
    %v7870 = vunpack.c.l.b16 %v3561
    %v7871 = vunpack.c.h.b16 %v3561
    %v7872 = vunpack.c.l.b16 %v3562
    %v7873 = vunpack.c.h.b16 %v3562
    %v7874 = vunpack.c.l.b16 %v3563
    %v7875 = vunpack.c.h.b16 %v3563
    %v7876 = vunpack.c.l.b16 %v3564
    %v7877 = vunpack.c.h.b16 %v3564
    %v7878 = vunpack.c.l.b16 %v3565
    %v7879 = vunpack.c.h.b16 %v3565
    %v7880 = vunpack.c.l.b16 %v3566
    %v7881 = vunpack.c.h.b16 %v3566
    %v7882 = vunpack.c.l.b16 %v3567
    %v7883 = vunpack.c.h.b16 %v3567
    %v7884 = vunpack.c.l.b16 %v3568
    %v7885 = vunpack.c.h.b16 %v3568
    %v7886 = vunpack.c.l.b16 %v3569
    %v7887 = vunpack.c.h.b16 %v3569
    %v7888 = vunpack.c.l.b16 %v3570
    %v7889 = vunpack.c.h.b16 %v3570
    %v7890 = vunpack.c.l.b16 %v3571
    %v7891 = vunpack.c.h.b16 %v3571
    %v7892 = vunpack.c.l.b16 %v3572
    %v7893 = vunpack.c.h.b16 %v3572
    %v7894 = vunpack.c.l.b16 %v3573
    %v7895 = vunpack.c.h.b16 %v3573
    %v7896 = vunpack.c.l.b16 %v3574
    %v7897 = vunpack.c.h.b16 %v3574
    %v7898 = vunpack.c.l.b16 %v3575
    %v7899 = vunpack.c.h.b16 %v3575
    %v7900 = vunpack.c.l.b16 %v3576
    %v7901 = vunpack.c.h.b16 %v3576
    %v7902 = vunpack.c.l.b16 %v3577
    %v7903 = vunpack.c.h.b16 %v3577
    %v7904 = vunpack.c.l.b16 %v3578
    %v7905 = vunpack.c.h.b16 %v3578
    %v7906 = vunpack.c.l.b16 %v3579
    %v7907 = vunpack.c.h.b16 %v3579
    %v7908 = vunpack.c.l.b16 %v3580
    %v7909 = vunpack.c.h.b16 %v3580
    %v7910 = vunpack.c.l.b16 %v3581
    %v7911 = vunpack.c.h.b16 %v3581
    %v7912 = vunpack.c.l.b16 %v3582
    %v7913 = vunpack.c.h.b16 %v3582
    %v7914 = vunpack.c.l.b16 %v3583
    %v7915 = vunpack.c.h.b16 %v3583
    %v7916 = vunpack.c.l.b16 %v3584
    %v7917 = vunpack.c.h.b16 %v3584
    %v7918 = vunpack.c.l.b16 %v3585
    %v7919 = vunpack.c.h.b16 %v3585
    %v7920 = vunpack.c.l.b16 %v3586
    %v7921 = vunpack.c.h.b16 %v3586
    %v7922 = vunpack.c.l.b16 %v3587
    %v7923 = vunpack.c.h.b16 %v3587
    %v7924 = vunpack.c.l.b16 %v3588
    %v7925 = vunpack.c.h.b16 %v3588
    %v7926 = vunpack.c.l.b16 %v3589
    %v7927 = vunpack.c.h.b16 %v3589
    %v7928 = vunpack.c.l.b16 %v3590
    %v7929 = vunpack.c.h.b16 %v3590
    %v7930 = vunpack.c.l.b16 %v3591
    %v7931 = vunpack.c.h.b16 %v3591
    %v7932 = vunpack.c.l.b16 %v3592
    %v7933 = vunpack.c.h.b16 %v3592
    %v7934 = vunpack.c.l.b16 %v3593
    %v7935 = vunpack.c.h.b16 %v3593
    %v7936 = vunpack.c.l.b16 %v3594
    %v7937 = vunpack.c.h.b16 %v3594
    %v7938 = vunpack.c.l.b16 %v3595
    %v7939 = vunpack.c.h.b16 %v3595
    %v7940 = vunpack.c.l.b16 %v3596
    %v7941 = vunpack.c.h.b16 %v3596
    %v7942 = vunpack.c.l.b16 %v3597
    %v7943 = vunpack.c.h.b16 %v3597
    %v7944 = vunpack.c.l.b16 %v3598
    %v7945 = vunpack.c.h.b16 %v3598
    %v7946 = vunpack.c.l.b16 %v3599
    %v7947 = vunpack.c.h.b16 %v3599
    %v7948 = vunpack.c.l.b16 %v3600
    %v7949 = vunpack.c.h.b16 %v3600
    %v7950 = vunpack.c.l.b16 %v3601
    %v7951 = vunpack.c.h.b16 %v3601
    %v7952 = vunpack.c.l.b16 %v3602
    %v7953 = vunpack.c.h.b16 %v3602
    %v7954 = vunpack.c.l.b16 %v3603
    %v7955 = vunpack.c.h.b16 %v3603
    %v7956 = vunpack.c.l.b16 %v3604
    %v7957 = vunpack.c.h.b16 %v3604
    %v7958 = vunpack.c.l.b16 %v3605
    %v7959 = vunpack.c.h.b16 %v3605
    %v7960 = vunpack.c.l.b16 %v3606
    %v7961 = vunpack.c.h.b16 %v3606
    %v7962 = vunpack.c.l.b16 %v3607
    %v7963 = vunpack.c.h.b16 %v3607
    %v7964 = vunpack.c.l.b16 %v3608
    %v7965 = vunpack.c.h.b16 %v3608
    %v7966 = vunpack.c.l.b16 %v3609
    %v7967 = vunpack.c.h.b16 %v3609
    %v7968 = vunpack.c.l.b16 %v3610
    %v7969 = vunpack.c.h.b16 %v3610
    %v7970 = vunpack.c.l.b16 %v3611
    %v7971 = vunpack.c.h.b16 %v3611
    %v7972 = vunpack.c.l.b16 %v3612
    %v7973 = vunpack.c.h.b16 %v3612
    %v7974 = vunpack.c.l.b16 %v3613
    %v7975 = vunpack.c.h.b16 %v3613
    %v7976 = vunpack.c.l.b16 %v3614
    %v7977 = vunpack.c.h.b16 %v3614
    %v7978 = vunpack.c.l.b16 %v3615
    %v7979 = vunpack.c.h.b16 %v3615
    %v7980 = vunpack.c.l.b16 %v3616
    %v7981 = vunpack.c.h.b16 %v3616
    %v7982 = vunpack.c.l.b16 %v3617
    %v7983 = vunpack.c.h.b16 %v3617
    %v7984 = vunpack.c.l.b16 %v3618
    %v7985 = vunpack.c.h.b16 %v3618
    %v7986 = vunpack.c.l.b16 %v3619
    %v7987 = vunpack.c.h.b16 %v3619
    %v7988 = vunpack.c.l.b16 %v3620
    %v7989 = vunpack.c.h.b16 %v3620
    %v7990 = vunpack.c.l.b16 %v3621
    %v7991 = vunpack.c.h.b16 %v3621
    %v7992 = vunpack.c.l.b16 %v3622
    %v7993 = vunpack.c.h.b16 %v3622
    %v7994 = vunpack.c.l.b16 %v3623
    %v7995 = vunpack.c.h.b16 %v3623
    %v7996 = vunpack.c.l.b16 %v3624
    %v7997 = vunpack.c.h.b16 %v3624
    %v7998 = vunpack.c.l.b16 %v3625
    %v7999 = vunpack.c.h.b16 %v3625
    %v8000 = vunpack.c.l.b16 %v3626
    %v8001 = vunpack.c.h.b16 %v3626
    %v8002 = vunpack.c.l.b16 %v3627
    %v8003 = vunpack.c.h.b16 %v3627
    %v8004 = vunpack.c.l.b16 %v3628
    %v8005 = vunpack.c.h.b16 %v3628
    %v8006 = vunpack.c.l.b16 %v3629
    %v8007 = vunpack.c.h.b16 %v3629
    %v8008 = vunpack.c.l.b16 %v3630
    %v8009 = vunpack.c.h.b16 %v3630
    %v8010 = vunpack.c.l.b16 %v3631
    %v8011 = vunpack.c.h.b16 %v3631
    %v8012 = vunpack.c.l.b16 %v3632
    %v8013 = vunpack.c.h.b16 %v3632
    %v8014 = vunpack.c.l.b16 %v3633
    %v8015 = vunpack.c.h.b16 %v3633
    %v8016 = vunpack.c.l.b16 %v3634
    %v8017 = vunpack.c.h.b16 %v3634
    %v8018 = vunpack.c.l.b16 %v3635
    %v8019 = vunpack.c.h.b16 %v3635
    %v8020 = vunpack.c.l.b16 %v3636
    %v8021 = vunpack.c.h.b16 %v3636
    %v8022 = vunpack.c.l.b16 %v3637
    %v8023 = vunpack.c.h.b16 %v3637
    %v8024 = vunpack.c.l.b16 %v3638
    %v8025 = vunpack.c.h.b16 %v3638
    %v8026 = vunpack.c.l.b16 %v3639
    %v8027 = vunpack.c.h.b16 %v3639
    %v8028 = vunpack.c.l.b16 %v3640
    %v8029 = vunpack.c.h.b16 %v3640
    %v8030 = vunpack.c.l.b16 %v3641
    %v8031 = vunpack.c.h.b16 %v3641
    %v8032 = vunpack.c.l.b16 %v3642
    %v8033 = vunpack.c.h.b16 %v3642
    %v8034 = vunpack.c.l.b16 %v3643
    %v8035 = vunpack.c.h.b16 %v3643
    %v8036 = vunpack.c.l.b16 %v3644
    %v8037 = vunpack.c.h.b16 %v3644
    %v8038 = vunpack.c.l.b16 %v3645
    %v8039 = vunpack.c.h.b16 %v3645
    %v8040 = vunpack.c.l.b16 %v3646
    %v8041 = vunpack.c.h.b16 %v3646
    %v8042 = vunpack.c.l.b16 %v3647
    %v8043 = vunpack.c.h.b16 %v3647
    %v8044 = vunpack.c.l.b16 %v3648
    %v8045 = vunpack.c.h.b16 %v3648
    %v8046 = vunpack.c.l.b16 %v3649
    %v8047 = vunpack.c.h.b16 %v3649
    %v8048 = vunpack.c.l.b16 %v3650
    %v8049 = vunpack.c.h.b16 %v3650
    %v8050 = vunpack.c.l.b16 %v3651
    %v8051 = vunpack.c.h.b16 %v3651
    %v8052 = vunpack.c.l.b16 %v3652
    %v8053 = vunpack.c.h.b16 %v3652
    %v8054 = vunpack.c.l.b16 %v3653
    %v8055 = vunpack.c.h.b16 %v3653
    %v8056 = vunpack.c.l.b16 %v3654
    %v8057 = vunpack.c.h.b16 %v3654
    %v8058 = vunpack.c.l.b16 %v3655
    %v8059 = vunpack.c.h.b16 %v3655
    %v8060 = vunpack.c.l.b16 %v3656
    %v8061 = vunpack.c.h.b16 %v3656
    %v8062 = vunpack.c.l.b16 %v3657
    %v8063 = vunpack.c.h.b16 %v3657
    %v8064 = vunpack.c.l.b16 %v3658
    %v8065 = vunpack.c.h.b16 %v3658
    %v8066 = vunpack.c.l.b16 %v3659
    %v8067 = vunpack.c.h.b16 %v3659
    %v8068 = vunpack.c.l.b16 %v3660
    %v8069 = vunpack.c.h.b16 %v3660
    %v8070 = vunpack.c.l.b16 %v3661
    %v8071 = vunpack.c.h.b16 %v3661
    %v8072 = vunpack.c.l.b16 %v3662
    %v8073 = vunpack.c.h.b16 %v3662
    %v8074 = vunpack.c.l.b16 %v3663
    %v8075 = vunpack.c.h.b16 %v3663
    %v8076 = vunpack.c.l.b16 %v3664
    %v8077 = vunpack.c.h.b16 %v3664
    %v8078 = vunpack.c.l.b16 %v3665
    %v8079 = vunpack.c.h.b16 %v3665
    %v8080 = vunpack.c.l.b16 %v3666
    %v8081 = vunpack.c.h.b16 %v3666
    %v8082 = vunpack.c.l.b16 %v3667
    %v8083 = vunpack.c.h.b16 %v3667
    %v8084 = vunpack.c.l.b16 %v3668
    %v8085 = vunpack.c.h.b16 %v3668
    %v8086 = vunpack.c.l.b16 %v3669
    %v8087 = vunpack.c.h.b16 %v3669
    %v8088 = vunpack.c.l.b16 %v3670
    %v8089 = vunpack.c.h.b16 %v3670
    %v8090 = vunpack.c.l.b16 %v3671
    %v8091 = vunpack.c.h.b16 %v3671
    %v8092 = vunpack.c.l.b16 %v3672
    %v8093 = vunpack.c.h.b16 %v3672
    %v8094 = vunpack.c.l.b16 %v3673
    %v8095 = vunpack.c.h.b16 %v3673
    %v8096 = vunpack.c.l.b16 %v3674
    %v8097 = vunpack.c.h.b16 %v3674
    %v8098 = vunpack.c.l.b16 %v3675
    %v8099 = vunpack.c.h.b16 %v3675
    %v8100 = vunpack.c.l.b16 %v3676
    %v8101 = vunpack.c.h.b16 %v3676
    %v8102 = vunpack.c.l.b16 %v3677
    %v8103 = vunpack.c.h.b16 %v3677
    %v8104 = vunpack.c.l.b16 %v3678
    %v8105 = vunpack.c.h.b16 %v3678
    %v8106 = vunpack.c.l.b16 %v3679
    %v8107 = vunpack.c.h.b16 %v3679
    %v8108 = vunpack.c.l.b16 %v3680
    %v8109 = vunpack.c.h.b16 %v3680
    %v8110 = vunpack.c.l.b16 %v3681
    %v8111 = vunpack.c.h.b16 %v3681
    %v8112 = vunpack.c.l.b16 %v3682
    %v8113 = vunpack.c.h.b16 %v3682
    %v8114 = vunpack.c.l.b16 %v3683
    %v8115 = vunpack.c.h.b16 %v3683
    %v8116 = vunpack.c.l.b16 %v3684
    %v8117 = vunpack.c.h.b16 %v3684
    %v8118 = vunpack.c.l.b16 %v3685
    %v8119 = vunpack.c.h.b16 %v3685
    %v8120 = vunpack.c.l.b16 %v3686
    %v8121 = vunpack.c.h.b16 %v3686
    %v8122 = vunpack.c.l.b16 %v3687
    %v8123 = vunpack.c.h.b16 %v3687
    %v8124 = vunpack.c.l.b16 %v3688
    %v8125 = vunpack.c.h.b16 %v3688
    %v8126 = vunpack.c.l.b16 %v3689
    %v8127 = vunpack.c.h.b16 %v3689
    %v8128 = vunpack.c.l.b16 %v3690
    %v8129 = vunpack.c.h.b16 %v3690
    %v8130 = vunpack.c.l.b16 %v3691
    %v8131 = vunpack.c.h.b16 %v3691
    %v8132 = vunpack.c.l.b16 %v3692
    %v8133 = vunpack.c.h.b16 %v3692
    %v8134 = vunpack.c.l.b16 %v3693
    %v8135 = vunpack.c.h.b16 %v3693
    %v8136 = vunpack.c.l.b16 %v3694
    %v8137 = vunpack.c.h.b16 %v3694
    %v8138 = vunpack.c.l.b16 %v3695
    %v8139 = vunpack.c.h.b16 %v3695
    %v8140 = vunpack.c.l.b16 %v3696
    %v8141 = vunpack.c.h.b16 %v3696
    %v8142 = vunpack.c.l.b16 %v3697
    %v8143 = vunpack.c.h.b16 %v3697
    %v8144 = vunpack.c.l.b16 %v3698
    %v8145 = vunpack.c.h.b16 %v3698
    %v8146 = vunpack.c.l.b16 %v3699
    %v8147 = vunpack.c.h.b16 %v3699
    %v8148 = vunpack.c.l.b16 %v3700
    %v8149 = vunpack.c.h.b16 %v3700
    %v8150 = vunpack.c.l.b16 %v3701
    %v8151 = vunpack.c.h.b16 %v3701
    %v8152 = vunpack.c.l.b16 %v3702
    %v8153 = vunpack.c.h.b16 %v3702
    %v8154 = vunpack.c.l.b16 %v3703
    %v8155 = vunpack.c.h.b16 %v3703
    %v8156 = vunpack.c.l.b16 %v3704
    %v8157 = vunpack.c.h.b16 %v3704
    %v8158 = vunpack.c.l.b16 %v3705
    %v8159 = vunpack.c.h.b16 %v3705
    %v8160 = vunpack.c.l.b16 %v3706
    %v8161 = vunpack.c.h.b16 %v3706
    %v8162 = vunpack.c.l.b16 %v3707
    %v8163 = vunpack.c.h.b16 %v3707
    %v8164 = vunpack.c.l.b16 %v3708
    %v8165 = vunpack.c.h.b16 %v3708
    %v8166 = vunpack.c.l.b16 %v3709
    %v8167 = vunpack.c.h.b16 %v3709
    %v8168 = vunpack.c.l.b16 %v3710
    %v8169 = vunpack.c.h.b16 %v3710
    %v8170 = vunpack.c.l.b16 %v3711
    %v8171 = vunpack.c.h.b16 %v3711
    %v8172 = vunpack.c.l.b16 %v3712
    %v8173 = vunpack.c.h.b16 %v3712
    %v8174 = vunpack.c.l.b16 %v3713
    %v8175 = vunpack.c.h.b16 %v3713
    %v8176 = vunpack.c.l.b16 %v3714
    %v8177 = vunpack.c.h.b16 %v3714
    %v8178 = vunpack.c.l.b16 %v3715
    %v8179 = vunpack.c.h.b16 %v3715
    %v8180 = vunpack.c.l.b16 %v3716
    %v8181 = vunpack.c.h.b16 %v3716
    %v8182 = vunpack.c.l.b16 %v3717
    %v8183 = vunpack.c.h.b16 %v3717
    %v8184 = vunpack.c.l.b16 %v3718
    %v8185 = vunpack.c.h.b16 %v3718
    %v8186 = vunpack.c.l.b16 %v3719
    %v8187 = vunpack.c.h.b16 %v3719
    %v8188 = vunpack.c.l.b16 %v3720
    %v8189 = vunpack.c.h.b16 %v3720
    %v8190 = vunpack.c.l.b16 %v3721
    %v8191 = vunpack.c.h.b16 %v3721
    %v8192 = vunpack.c.l.b16 %v3722
    %v8193 = vunpack.c.h.b16 %v3722
    %v8194 = vunpack.c.l.b16 %v3723
    %v8195 = vunpack.c.h.b16 %v3723
    %v8196 = vunpack.c.l.b16 %v3724
    %v8197 = vunpack.c.h.b16 %v3724
    %v8198 = vunpack.c.l.b16 %v3725
    %v8199 = vunpack.c.h.b16 %v3725
    %v8200 = vunpack.c.l.b16 %v3726
    %v8201 = vunpack.c.h.b16 %v3726
    %v8202 = vunpack.c.l.b16 %v3727
    %v8203 = vunpack.c.h.b16 %v3727
    %v8204 = vunpack.c.l.b16 %v3728
    %v8205 = vunpack.c.h.b16 %v3728
    %v8206 = vunpack.c.l.b16 %v3729
    %v8207 = vunpack.c.h.b16 %v3729
    %v8208 = vunpack.c.l.b16 %v3730
    %v8209 = vunpack.c.h.b16 %v3730
    %v8210 = vunpack.c.l.b16 %v3731
    %v8211 = vunpack.c.h.b16 %v3731
    %v8212 = vunpack.c.l.b16 %v3732
    %v8213 = vunpack.c.h.b16 %v3732
    %v8214 = vunpack.c.l.b16 %v3733
    %v8215 = vunpack.c.h.b16 %v3733
    %v8216 = vunpack.c.l.b16 %v3734
    %v8217 = vunpack.c.h.b16 %v3734
    %v8218 = vunpack.c.l.b16 %v3735
    %v8219 = vunpack.c.h.b16 %v3735
    %v8220 = vunpack.c.l.b16 %v3736
    %v8221 = vunpack.c.h.b16 %v3736
    %v8222 = vunpack.c.l.b16 %v3737
    %v8223 = vunpack.c.h.b16 %v3737
    %v8224 = vunpack.c.l.b16 %v3738
    %v8225 = vunpack.c.h.b16 %v3738
    %v8226 = vunpack.c.l.b16 %v3739
    %v8227 = vunpack.c.h.b16 %v3739
    %v8228 = vunpack.c.l.b16 %v3740
    %v8229 = vunpack.c.h.b16 %v3740
    %v8230 = vunpack.c.l.b16 %v3741
    %v8231 = vunpack.c.h.b16 %v3741
    %v8232 = vunpack.c.l.b16 %v3742
    %v8233 = vunpack.c.h.b16 %v3742
    %v8234 = vunpack.c.l.b16 %v3743
    %v8235 = vunpack.c.h.b16 %v3743
    %v8236 = vunpack.c.l.b16 %v3744
    %v8237 = vunpack.c.h.b16 %v3744
    %v8238 = vunpack.c.l.b16 %v3745
    %v8239 = vunpack.c.h.b16 %v3745
    %v8240 = vunpack.c.l.b16 %v3746
    %v8241 = vunpack.c.h.b16 %v3746
    %v8242 = vunpack.c.l.b16 %v3747
    %v8243 = vunpack.c.h.b16 %v3747
    %v8244 = vunpack.c.l.b16 %v3748
    %v8245 = vunpack.c.h.b16 %v3748
    %v8246 = vunpack.c.l.b16 %v3749
    %v8247 = vunpack.c.h.b16 %v3749
    %v8248 = vunpack.c.l.b16 %v3750
    %v8249 = vunpack.c.h.b16 %v3750
    %v8250 = vunpack.c.l.b16 %v3751
    %v8251 = vunpack.c.h.b16 %v3751
    %v8252 = vunpack.c.l.b16 %v3752
    %v8253 = vunpack.c.h.b16 %v3752
    %v8254 = vunpack.c.l.b16 %v3753
    %v8255 = vunpack.c.h.b16 %v3753
    %v8256 = vunpack.c.l.b16 %v3754
    %v8257 = vunpack.c.h.b16 %v3754
    %v8258 = vunpack.c.l.b16 %v3755
    %v8259 = vunpack.c.h.b16 %v3755
    %v8260 = vunpack.c.l.b16 %v3756
    %v8261 = vunpack.c.h.b16 %v3756
    %v8262 = vunpack.c.l.b16 %v3757
    %v8263 = vunpack.c.h.b16 %v3757
    %v8264 = vunpack.c.l.b16 %v3758
    %v8265 = vunpack.c.h.b16 %v3758
    %v8266 = vunpack.c.l.b16 %v3759
    %v8267 = vunpack.c.h.b16 %v3759
    %v8268 = vunpack.c.l.b16 %v3760
    %v8269 = vunpack.c.h.b16 %v3760
    %v8270 = vunpack.c.l.b16 %v3761
    %v8271 = vunpack.c.h.b16 %v3761
    %v8272 = vunpack.c.l.b16 %v3762
    %v8273 = vunpack.c.h.b16 %v3762
    %v8274 = vunpack.c.l.b16 %v3763
    %v8275 = vunpack.c.h.b16 %v3763
    %v8276 = vunpack.c.l.b16 %v3764
    %v8277 = vunpack.c.h.b16 %v3764
    %v8278 = vunpack.c.l.b16 %v3765
    %v8279 = vunpack.c.h.b16 %v3765
    %v8280 = vunpack.c.l.b16 %v3766
    %v8281 = vunpack.c.h.b16 %v3766
    %v8282 = vunpack.c.l.b16 %v3767
    %v8283 = vunpack.c.h.b16 %v3767
    %v8284 = vunpack.c.l.b16 %v3768
    %v8285 = vunpack.c.h.b16 %v3768
    %v8286 = vunpack.c.l.b16 %v3769
    %v8287 = vunpack.c.h.b16 %v3769
    %v8288 = vunpack.c.l.b16 %v3770
    %v8289 = vunpack.c.h.b16 %v3770
    %v8290 = vunpack.c.l.b16 %v3771
    %v8291 = vunpack.c.h.b16 %v3771
    %v8292 = vunpack.c.l.b16 %v3772
    %v8293 = vunpack.c.h.b16 %v3772
    %v8294 = vunpack.c.l.b16 %v3773
    %v8295 = vunpack.c.h.b16 %v3773
    %v8296 = vunpack.c.l.b16 %v3774
    %v8297 = vunpack.c.h.b16 %v3774
    %v8298 = vunpack.c.l.b16 %v3775
    %v8299 = vunpack.c.h.b16 %v3775
    %v8300 = vunpack.c.l.b16 %v3776
    %v8301 = vunpack.c.h.b16 %v3776
    %v8302 = vunpack.c.l.b16 %v3777
    %v8303 = vunpack.c.h.b16 %v3777
    %v8304 = vunpack.c.l.b16 %v3778
    %v8305 = vunpack.c.h.b16 %v3778
    %v8306 = vunpack.c.l.b16 %v3779
    %v8307 = vunpack.c.h.b16 %v3779
    %v8308 = vunpack.c.l.b16 %v3780
    %v8309 = vunpack.c.h.b16 %v3780
    %v8310 = vunpack.c.l.b16 %v3781
    %v8311 = vunpack.c.h.b16 %v3781
    %v8312 = vunpack.c.l.b16 %v3782
    %v8313 = vunpack.c.h.b16 %v3782
    %v8314 = vunpack.c.l.b16 %v3783
    %v8315 = vunpack.c.h.b16 %v3783
    %v8316 = vunpack.c.l.b16 %v3784
    %v8317 = vunpack.c.h.b16 %v3784
    %v8318 = vunpack.c.l.b16 %v3785
    %v8319 = vunpack.c.h.b16 %v3785
    %v8320 = vunpack.c.l.b16 %v3786
    %v8321 = vunpack.c.h.b16 %v3786
    %v8322 = vunpack.c.l.b16 %v3787
    %v8323 = vunpack.c.h.b16 %v3787
    %v8324 = vunpack.c.l.b16 %v3788
    %v8325 = vunpack.c.h.b16 %v3788
    %v8326 = vunpack.c.l.b16 %v3789
    %v8327 = vunpack.c.h.b16 %v3789
    %v8328 = vunpack.c.l.b16 %v3790
    %v8329 = vunpack.c.h.b16 %v3790
    %v8330 = vunpack.c.l.b16 %v3791
    %v8331 = vunpack.c.h.b16 %v3791
    %v8332 = vunpack.c.l.b16 %v3792
    %v8333 = vunpack.c.h.b16 %v3792
    %v8334 = vunpack.c.l.b16 %v3793
    %v8335 = vunpack.c.h.b16 %v3793
    %v8336 = vunpack.c.l.b16 %v3794
    %v8337 = vunpack.c.h.b16 %v3794
    %v8338 = vunpack.c.l.b16 %v3795
    %v8339 = vunpack.c.h.b16 %v3795
    %v8340 = vunpack.c.l.b16 %v3796
    %v8341 = vunpack.c.h.b16 %v3796
    %v8342 = vunpack.c.l.b16 %v3797
    %v8343 = vunpack.c.h.b16 %v3797
    %v8344 = vunpack.c.l.b16 %v3798
    %v8345 = vunpack.c.h.b16 %v3798
    %v8346 = vunpack.c.l.b16 %v3799
    %v8347 = vunpack.c.h.b16 %v3799
    %v8348 = vunpack.c.l.b16 %v3800
    %v8349 = vunpack.c.h.b16 %v3800
    %v8350 = vunpack.c.l.b16 %v3801
    %v8351 = vunpack.c.h.b16 %v3801
    %v8352 = vunpack.c.l.b16 %v3802
    %v8353 = vunpack.c.h.b16 %v3802
    %v8354 = vunpack.c.l.b16 %v3803
    %v8355 = vunpack.c.h.b16 %v3803
    %v8356 = vunpack.c.l.b16 %v3804
    %v8357 = vunpack.c.h.b16 %v3804
    %v8358 = vunpack.c.l.b16 %v3805
    %v8359 = vunpack.c.h.b16 %v3805
    %v8360 = vunpack.c.l.b16 %v3806
    %v8361 = vunpack.c.h.b16 %v3806
    %v8362 = vunpack.c.l.b16 %v3807
    %v8363 = vunpack.c.h.b16 %v3807
    %v8364 = vunpack.c.l.b16 %v3808
    %v8365 = vunpack.c.h.b16 %v3808
    %v8366 = vunpack.c.l.b16 %v3809
    %v8367 = vunpack.c.h.b16 %v3809
    %v8368 = vunpack.c.l.b16 %v3810
    %v8369 = vunpack.c.h.b16 %v3810
    %v8370 = vunpack.c.l.b16 %v3811
    %v8371 = vunpack.c.h.b16 %v3811
    %v8372 = vunpack.c.l.b16 %v3812
    %v8373 = vunpack.c.h.b16 %v3812
    %v8374 = vunpack.c.l.b16 %v3813
    %v8375 = vunpack.c.h.b16 %v3813
    %v8376 = vunpack.c.l.b16 %v3814
    %v8377 = vunpack.c.h.b16 %v3814
    %v8378 = vunpack.c.l.b16 %v3815
    %v8379 = vunpack.c.h.b16 %v3815
    %v8380 = vunpack.c.l.b16 %v3816
    %v8381 = vunpack.c.h.b16 %v3816
    %v8382 = vunpack.c.l.b16 %v3817
    %v8383 = vunpack.c.h.b16 %v3817
    %v8384 = vunpack.c.l.b16 %v3818
    %v8385 = vunpack.c.h.b16 %v3818
    %v8386 = vunpack.c.l.b16 %v3819
    %v8387 = vunpack.c.h.b16 %v3819
    %v8388 = vunpack.c.l.b16 %v3820
    %v8389 = vunpack.c.h.b16 %v3820
    %v8390 = vunpack.c.l.b16 %v3821
    %v8391 = vunpack.c.h.b16 %v3821
    %v8392 = vunpack.c.l.b16 %v3822
    %v8393 = vunpack.c.h.b16 %v3822
    %v8394 = vunpack.c.l.b16 %v3823
    %v8395 = vunpack.c.h.b16 %v3823
    %v8396 = vunpack.c.l.b16 %v3824
    %v8397 = vunpack.c.h.b16 %v3824
    %v8398 = vunpack.c.l.b16 %v3825
    %v8399 = vunpack.c.h.b16 %v3825
    %v8400 = vunpack.c.l.b16 %v3826
    %v8401 = vunpack.c.h.b16 %v3826
    %v8402 = vunpack.c.l.b16 %v3827
    %v8403 = vunpack.c.h.b16 %v3827
    %v8404 = vunpack.c.l.b16 %v3828
    %v8405 = vunpack.c.h.b16 %v3828
    %v8406 = vunpack.c.l.b16 %v3829
    %v8407 = vunpack.c.h.b16 %v3829
    %v8408 = vunpack.c.l.b16 %v3830
    %v8409 = vunpack.c.h.b16 %v3830
    %v8410 = vunpack.c.l.b16 %v3831
    %v8411 = vunpack.c.h.b16 %v3831
    %v8412 = vunpack.c.l.b16 %v3832
    %v8413 = vunpack.c.h.b16 %v3832
    %v8414 = vunpack.c.l.b16 %v3833
    %v8415 = vunpack.c.h.b16 %v3833
    %v8416 = vunpack.c.l.b16 %v3834
    %v8417 = vunpack.c.h.b16 %v3834
    %v8418 = vunpack.c.l.b16 %v3835
    %v8419 = vunpack.c.h.b16 %v3835
    %v8420 = vunpack.c.l.b16 %v3836
    %v8421 = vunpack.c.h.b16 %v3836
    %v8422 = vunpack.c.l.b16 %v3837
    %v8423 = vunpack.c.h.b16 %v3837
    %v8424 = vunpack.c.l.b16 %v3838
    %v8425 = vunpack.c.h.b16 %v3838
    %v8426 = vunpack.c.l.b16 %v3839
    %v8427 = vunpack.c.h.b16 %v3839
    %v8428 = vunpack.c.l.b16 %v3840
    %v8429 = vunpack.c.h.b16 %v3840
    %v8430 = vunpack.c.l.b16 %v3841
    %v8431 = vunpack.c.h.b16 %v3841
    %v8432 = vunpack.c.l.b16 %v3842
    %v8433 = vunpack.c.h.b16 %v3842
    %v8434 = vunpack.c.l.b16 %v3843
    %v8435 = vunpack.c.h.b16 %v3843
    %v8436 = vunpack.c.l.b16 %v3844
    %v8437 = vunpack.c.h.b16 %v3844
    %v8438 = vunpack.c.l.b16 %v3845
    %v8439 = vunpack.c.h.b16 %v3845
    %v8440 = vunpack.c.l.b16 %v3846
    %v8441 = vunpack.c.h.b16 %v3846
    %v8442 = vunpack.c.l.b16 %v3847
    %v8443 = vunpack.c.h.b16 %v3847
    %v8444 = vunpack.c.l.b16 %v3848
    %v8445 = vunpack.c.h.b16 %v3848
    %v8446 = vunpack.c.l.b16 %v3849
    %v8447 = vunpack.c.h.b16 %v3849
    %v8448 = vunpack.c.l.b16 %v3850
    %v8449 = vunpack.c.h.b16 %v3850
    %v8450 = vunpack.c.l.b16 %v3851
    %v8451 = vunpack.c.h.b16 %v3851
    %v8452 = vunpack.c.l.b16 %v3852
    %v8453 = vunpack.c.h.b16 %v3852
    %v8454 = vunpack.c.l.b16 %v3853
    %v8455 = vunpack.c.h.b16 %v3853
    %v8456 = vunpack.c.l.b16 %v3854
    %v8457 = vunpack.c.h.b16 %v3854
    %v8458 = vunpack.c.l.b16 %v3855
    %v8459 = vunpack.c.h.b16 %v3855
    %v8460 = vunpack.c.l.b16 %v3856
    %v8461 = vunpack.c.h.b16 %v3856
    %v8462 = vunpack.c.l.b16 %v3857
    %v8463 = vunpack.c.h.b16 %v3857
    %v8464 = vunpack.c.l.b16 %v3858
    %v8465 = vunpack.c.h.b16 %v3858
    %v8466 = vunpack.c.l.b16 %v3859
    %v8467 = vunpack.c.h.b16 %v3859
    %v8468 = vunpack.c.l.b16 %v3860
    %v8469 = vunpack.c.h.b16 %v3860
    %v8470 = vunpack.c.l.b16 %v3861
    %v8471 = vunpack.c.h.b16 %v3861
    %v8472 = vunpack.c.l.b16 %v3862
    %v8473 = vunpack.c.h.b16 %v3862
    %v8474 = vunpack.c.l.b16 %v3863
    %v8475 = vunpack.c.h.b16 %v3863
    %v8476 = vunpack.c.l.b16 %v3864
    %v8477 = vunpack.c.h.b16 %v3864
    %v8478 = vunpack.c.l.b16 %v3865
    %v8479 = vunpack.c.h.b16 %v3865
    %v8480 = vunpack.c.l.b16 %v3866
    %v8481 = vunpack.c.h.b16 %v3866
    %v8482 = vunpack.c.l.b16 %v3867
    %v8483 = vunpack.c.h.b16 %v3867
    %v8484 = vunpack.c.l.b16 %v3868
    %v8485 = vunpack.c.h.b16 %v3868
    %v8486 = vunpack.c.l.b16 %v3869
    %v8487 = vunpack.c.h.b16 %v3869
    %v8488 = vunpack.c.l.b16 %v3870
    %v8489 = vunpack.c.h.b16 %v3870
    %v8490 = vunpack.c.l.b16 %v3871
    %v8491 = vunpack.c.h.b16 %v3871
    %v8492 = vunpack.c.l.b16 %v3872
    %v8493 = vunpack.c.h.b16 %v3872
    %v8494 = vunpack.c.l.b16 %v3873
    %v8495 = vunpack.c.h.b16 %v3873
    %v8496 = vunpack.c.l.b16 %v3874
    %v8497 = vunpack.c.h.b16 %v3874
    %v8498 = vunpack.c.l.b16 %v3875
    %v8499 = vunpack.c.h.b16 %v3875
    %v8500 = vunpack.c.l.b16 %v3876
    %v8501 = vunpack.c.h.b16 %v3876
    %v8502 = vunpack.c.l.b16 %v3877
    %v8503 = vunpack.c.h.b16 %v3877
    %v8504 = vunpack.c.l.b16 %v3878
    %v8505 = vunpack.c.h.b16 %v3878
    %v8506 = vunpack.c.l.b16 %v3879
    %v8507 = vunpack.c.h.b16 %v3879
    %v8508 = vunpack.c.l.b16 %v3880
    %v8509 = vunpack.c.h.b16 %v3880
    %v8510 = vunpack.c.l.b16 %v3881
    %v8511 = vunpack.c.h.b16 %v3881
    %v8512 = vunpack.c.l.b16 %v3882
    %v8513 = vunpack.c.h.b16 %v3882
    %v8514 = vunpack.c.l.b16 %v3883
    %v8515 = vunpack.c.h.b16 %v3883
    %v8516 = vunpack.c.l.b16 %v3884
    %v8517 = vunpack.c.h.b16 %v3884
    %v8518 = vunpack.c.l.b16 %v3885
    %v8519 = vunpack.c.h.b16 %v3885
    %v8520 = vunpack.c.l.b16 %v3886
    %v8521 = vunpack.c.h.b16 %v3886
    %v8522 = vunpack.c.l.b16 %v3887
    %v8523 = vunpack.c.h.b16 %v3887
    %v8524 = vunpack.c.l.b16 %v3888
    %v8525 = vunpack.c.h.b16 %v3888
    %v8526 = vunpack.c.l.b16 %v3889
    %v8527 = vunpack.c.h.b16 %v3889
    %v8528 = vunpack.c.l.b16 %v3890
    %v8529 = vunpack.c.h.b16 %v3890
    %v8530 = vunpack.c.l.b16 %v3891
    %v8531 = vunpack.c.h.b16 %v3891
    %v8532 = vunpack.c.l.b16 %v3892
    %v8533 = vunpack.c.h.b16 %v3892
    %v8534 = vunpack.c.l.b16 %v3893
    %v8535 = vunpack.c.h.b16 %v3893
    %v8536 = vunpack.c.l.b16 %v3894
    %v8537 = vunpack.c.h.b16 %v3894
    %v8538 = vunpack.c.l.b16 %v3895
    %v8539 = vunpack.c.h.b16 %v3895
    %v8540 = vunpack.c.l.b16 %v3896
    %v8541 = vunpack.c.h.b16 %v3896
    %v8542 = vunpack.c.l.b16 %v3897
    %v8543 = vunpack.c.h.b16 %v3897
    %v8544 = vunpack.c.l.b16 %v3898
    %v8545 = vunpack.c.h.b16 %v3898
    %v8546 = vunpack.c.l.b16 %v3899
    %v8547 = vunpack.c.h.b16 %v3899
    %v8548 = vunpack.c.l.b16 %v3900
    %v8549 = vunpack.c.h.b16 %v3900
    %v8550 = vunpack.c.l.b16 %v3901
    %v8551 = vunpack.c.h.b16 %v3901
    %v8552 = vunpack.c.l.b16 %v3902
    %v8553 = vunpack.c.h.b16 %v3902
    %v8554 = vunpack.c.l.b16 %v3903
    %v8555 = vunpack.c.h.b16 %v3903
    %v8556 = vunpack.c.l.b16 %v3904
    %v8557 = vunpack.c.h.b16 %v3904
    %v8558 = vunpack.c.l.b16 %v3905
    %v8559 = vunpack.c.h.b16 %v3905
    %v8560 = vunpack.c.l.b16 %v3906
    %v8561 = vunpack.c.h.b16 %v3906
    %v8562 = vunpack.c.l.b16 %v3907
    %v8563 = vunpack.c.h.b16 %v3907
    %v8564 = vunpack.c.l.b16 %v3908
    %v8565 = vunpack.c.h.b16 %v3908
    %v8566 = vunpack.c.l.b16 %v3909
    %v8567 = vunpack.c.h.b16 %v3909
    %v8568 = vunpack.c.l.b16 %v3910
    %v8569 = vunpack.c.h.b16 %v3910
    %v8570 = vunpack.c.l.b16 %v3911
    %v8571 = vunpack.c.h.b16 %v3911
    %v8572 = vunpack.c.l.b16 %v3912
    %v8573 = vunpack.c.h.b16 %v3912
    %v8574 = vunpack.c.l.b16 %v3913
    %v8575 = vunpack.c.h.b16 %v3913
    %v8576 = vpack.c.b16 %v5528, %v5504
    %v8577 = vpack.c.b16 %v5529, %v5505
    %v8578 = vpack.c.b16 %v5530, %v5506
    %v8579 = vpack.c.b16 %v5531, %v5507
    %v8580 = vpack.c.b16 %v5532, %v5508
    %v8581 = vpack.c.b16 %v5533, %v5509
    %v8582 = vpack.c.b16 %v5534, %v5510
    %v8583 = vpack.c.b16 %v5535, %v5511
    %v8584 = vpack.c.b16 %v5536, %v5512
    %v8585 = vpack.c.b16 %v5537, %v5513
    %v8586 = vpack.c.b16 %v5538, %v5514
    %v8587 = vpack.c.b16 %v5539, %v5515
    %v8588 = vpack.c.b16 %v5540, %v5516
    %v8589 = vpack.c.b16 %v5541, %v5517
    %v8590 = vpack.c.b16 %v5542, %v5518
    %v8591 = vpack.c.b16 %v5543, %v5519
    %v8592 = vpack.c.b16 %v5544, %v5520
    %v8593 = vpack.c.b16 %v5545, %v5521
    %v8594 = vpack.c.b16 %v5546, %v5522
    %v8595 = vpack.c.b16 %v5547, %v5523
    %v8596 = vpack.c.b16 %v5548, %v5524
    %v8597 = vpack.c.b16 %v5549, %v5525
    %v8598 = vpack.c.b16 %v5550, %v5526
    %v8599 = vpack.c.b16 %v5551, %v5527
    %v8600 = vpack.c.b16 %v5576, %v5552
    %v8601 = vpack.c.b16 %v5577, %v5553
    %v8602 = vpack.c.b16 %v5578, %v5554
    %v8603 = vpack.c.b16 %v5579, %v5555
    %v8604 = vpack.c.b16 %v5580, %v5556
    %v8605 = vpack.c.b16 %v5581, %v5557
    %v8606 = vpack.c.b16 %v5582, %v5558
    %v8607 = vpack.c.b16 %v5583, %v5559
    %v8608 = vpack.c.b16 %v5584, %v5560
    %v8609 = vpack.c.b16 %v5585, %v5561
    %v8610 = vpack.c.b16 %v5586, %v5562
    %v8611 = vpack.c.b16 %v5587, %v5563
    %v8612 = vpack.c.b16 %v5588, %v5564
    %v8613 = vpack.c.b16 %v5589, %v5565
    %v8614 = vpack.c.b16 %v5590, %v5566
    %v8615 = vpack.c.b16 %v5591, %v5567
    %v8616 = vpack.c.b16 %v5592, %v5568
    %v8617 = vpack.c.b16 %v5593, %v5569
    %v8618 = vpack.c.b16 %v5594, %v5570
    %v8619 = vpack.c.b16 %v5595, %v5571
    %v8620 = vpack.c.b16 %v5596, %v5572
    %v8621 = vpack.c.b16 %v5597, %v5573
    %v8622 = vpack.c.b16 %v5598, %v5574
    %v8623 = vpack.c.b16 %v5599, %v5575
    %v8624 = vpack.c.b16 %v5624, %v5600
    %v8625 = vpack.c.b16 %v5625, %v5601
    %v8626 = vpack.c.b16 %v5626, %v5602
    %v8627 = vpack.c.b16 %v5627, %v5603
    %v8628 = vpack.c.b16 %v5628, %v5604
    %v8629 = vpack.c.b16 %v5629, %v5605
    %v8630 = vpack.c.b16 %v5630, %v5606
    %v8631 = vpack.c.b16 %v5631, %v5607
    %v8632 = vpack.c.b16 %v5632, %v5608
    %v8633 = vpack.c.b16 %v5633, %v5609
    %v8634 = vpack.c.b16 %v5634, %v5610
    %v8635 = vpack.c.b16 %v5635, %v5611
    %v8636 = vpack.c.b16 %v5636, %v5612
    %v8637 = vpack.c.b16 %v5637, %v5613
    %v8638 = vpack.c.b16 %v5638, %v5614
    %v8639 = vpack.c.b16 %v5639, %v5615
    %v8640 = vpack.c.b16 %v5640, %v5616
    %v8641 = vpack.c.b16 %v5641, %v5617
    %v8642 = vpack.c.b16 %v5642, %v5618
    %v8643 = vpack.c.b16 %v5643, %v5619
    %v8644 = vpack.c.b16 %v5644, %v5620
    %v8645 = vpack.c.b16 %v5645, %v5621
    %v8646 = vpack.c.b16 %v5646, %v5622
    %v8647 = vpack.c.b16 %v5647, %v5623
    %v8648 = vpack.c.b16 %v5672, %v5648
    %v8649 = vpack.c.b16 %v5673, %v5649
    %v8650 = vpack.c.b16 %v5674, %v5650
    %v8651 = vpack.c.b16 %v5675, %v5651
    %v8652 = vpack.c.b16 %v5676, %v5652
    %v8653 = vpack.c.b16 %v5677, %v5653
    %v8654 = vpack.c.b16 %v5678, %v5654
    %v8655 = vpack.c.b16 %v5679, %v5655
    %v8656 = vpack.c.b16 %v5680, %v5656
    %v8657 = vpack.c.b16 %v5681, %v5657
    %v8658 = vpack.c.b16 %v5682, %v5658
    %v8659 = vpack.c.b16 %v5683, %v5659
    %v8660 = vpack.c.b16 %v5684, %v5660
    %v8661 = vpack.c.b16 %v5685, %v5661
    %v8662 = vpack.c.b16 %v5686, %v5662
    %v8663 = vpack.c.b16 %v5687, %v5663
    %v8664 = vpack.c.b16 %v5688, %v5664
    %v8665 = vpack.c.b16 %v5689, %v5665
    %v8666 = vpack.c.b16 %v5690, %v5666
    %v8667 = vpack.c.b16 %v5691, %v5667
    %v8668 = vpack.c.b16 %v5692, %v5668
    %v8669 = vpack.c.b16 %v5693, %v5669
    %v8670 = vpack.c.b16 %v5694, %v5670
    %v8671 = vpack.c.b16 %v5695, %v5671
    %v8672 = vpack.c.b16 %v5720, %v5696
    %v8673 = vpack.c.b16 %v5721, %v5697
    %v8674 = vpack.c.b16 %v5722, %v5698
    %v8675 = vpack.c.b16 %v5723, %v5699
    %v8676 = vpack.c.b16 %v5724, %v5700
    %v8677 = vpack.c.b16 %v5725, %v5701
    %v8678 = vpack.c.b16 %v5726, %v5702
    %v8679 = vpack.c.b16 %v5727, %v5703
    %v8680 = vpack.c.b16 %v5728, %v5704
    %v8681 = vpack.c.b16 %v5729, %v5705
    %v8682 = vpack.c.b16 %v5730, %v5706
    %v8683 = vpack.c.b16 %v5731, %v5707
    %v8684 = vpack.c.b16 %v5732, %v5708
    %v8685 = vpack.c.b16 %v5733, %v5709
    %v8686 = vpack.c.b16 %v5734, %v5710
    %v8687 = vpack.c.b16 %v5735, %v5711
    %v8688 = vpack.c.b16 %v5736, %v5712
    %v8689 = vpack.c.b16 %v5737, %v5713
    %v8690 = vpack.c.b16 %v5738, %v5714
    %v8691 = vpack.c.b16 %v5739, %v5715
    %v8692 = vpack.c.b16 %v5740, %v5716
    %v8693 = vpack.c.b16 %v5741, %v5717
    %v8694 = vpack.c.b16 %v5742, %v5718
    %v8695 = vpack.c.b16 %v5743, %v5719
    %v8696 = vpack.c.b16 %v5768, %v5744
    %v8697 = vpack.c.b16 %v5769, %v5745
    %v8698 = vpack.c.b16 %v5770, %v5746
    %v8699 = vpack.c.b16 %v5771, %v5747
    %v8700 = vpack.c.b16 %v5772, %v5748
    %v8701 = vpack.c.b16 %v5773, %v5749
    %v8702 = vpack.c.b16 %v5774, %v5750
    %v8703 = vpack.c.b16 %v5775, %v5751
    %v8704 = vpack.c.b16 %v5776, %v5752
    %v8705 = vpack.c.b16 %v5777, %v5753
    %v8706 = vpack.c.b16 %v5778, %v5754
    %v8707 = vpack.c.b16 %v5779, %v5755
    %v8708 = vpack.c.b16 %v5780, %v5756
    %v8709 = vpack.c.b16 %v5781, %v5757
    %v8710 = vpack.c.b16 %v5782, %v5758
    %v8711 = vpack.c.b16 %v5783, %v5759
    %v8712 = vpack.c.b16 %v5784, %v5760
    %v8713 = vpack.c.b16 %v5785, %v5761
    %v8714 = vpack.c.b16 %v5786, %v5762
    %v8715 = vpack.c.b16 %v5787, %v5763
    %v8716 = vpack.c.b16 %v5788, %v5764
    %v8717 = vpack.c.b16 %v5789, %v5765
    %v8718 = vpack.c.b16 %v5790, %v5766
    %v8719 = vpack.c.b16 %v5791, %v5767
    %v8720 = vpack.c.b16 %v5816, %v5792
    %v8721 = vpack.c.b16 %v5817, %v5793
    %v8722 = vpack.c.b16 %v5818, %v5794
    %v8723 = vpack.c.b16 %v5819, %v5795
    %v8724 = vpack.c.b16 %v5820, %v5796
    %v8725 = vpack.c.b16 %v5821, %v5797
    %v8726 = vpack.c.b16 %v5822, %v5798
    %v8727 = vpack.c.b16 %v5823, %v5799
    %v8728 = vpack.c.b16 %v5824, %v5800
    %v8729 = vpack.c.b16 %v5825, %v5801
    %v8730 = vpack.c.b16 %v5826, %v5802
    %v8731 = vpack.c.b16 %v5827, %v5803
    %v8732 = vpack.c.b16 %v5828, %v5804
    %v8733 = vpack.c.b16 %v5829, %v5805
    %v8734 = vpack.c.b16 %v5830, %v5806
    %v8735 = vpack.c.b16 %v5831, %v5807
    %v8736 = vpack.c.b16 %v5832, %v5808
    %v8737 = vpack.c.b16 %v5833, %v5809
    %v8738 = vpack.c.b16 %v5834, %v5810
    %v8739 = vpack.c.b16 %v5835, %v5811
    %v8740 = vpack.c.b16 %v5836, %v5812
    %v8741 = vpack.c.b16 %v5837, %v5813
    %v8742 = vpack.c.b16 %v5838, %v5814
    %v8743 = vpack.c.b16 %v5839, %v5815
    %v8744 = vpack.c.b16 %v5864, %v5840
    %v8745 = vpack.c.b16 %v5865, %v5841
    %v8746 = vpack.c.b16 %v5866, %v5842
    %v8747 = vpack.c.b16 %v5867, %v5843
    %v8748 = vpack.c.b16 %v5868, %v5844
    %v8749 = vpack.c.b16 %v5869, %v5845
    %v8750 = vpack.c.b16 %v5870, %v5846
    %v8751 = vpack.c.b16 %v5871, %v5847
    %v8752 = vpack.c.b16 %v5872, %v5848
    %v8753 = vpack.c.b16 %v5873, %v5849
    %v8754 = vpack.c.b16 %v5874, %v5850
    %v8755 = vpack.c.b16 %v5875, %v5851
    %v8756 = vpack.c.b16 %v5876, %v5852
    %v8757 = vpack.c.b16 %v5877, %v5853
    %v8758 = vpack.c.b16 %v5878, %v5854
    %v8759 = vpack.c.b16 %v5879, %v5855
    %v8760 = vpack.c.b16 %v5880, %v5856
    %v8761 = vpack.c.b16 %v5881, %v5857
    %v8762 = vpack.c.b16 %v5882, %v5858
    %v8763 = vpack.c.b16 %v5883, %v5859
    %v8764 = vpack.c.b16 %v5884, %v5860
    %v8765 = vpack.c.b16 %v5885, %v5861
    %v8766 = vpack.c.b16 %v5886, %v5862
    %v8767 = vpack.c.b16 %v5887, %v5863
    %v8768 = vpack.c.b16 %v5912, %v5888
    %v8769 = vpack.c.b16 %v5913, %v5889
    %v8770 = vpack.c.b16 %v5914, %v5890
    %v8771 = vpack.c.b16 %v5915, %v5891
    %v8772 = vpack.c.b16 %v5916, %v5892
    %v8773 = vpack.c.b16 %v5917, %v5893
    %v8774 = vpack.c.b16 %v5918, %v5894
    %v8775 = vpack.c.b16 %v5919, %v5895
    %v8776 = vpack.c.b16 %v5920, %v5896
    %v8777 = vpack.c.b16 %v5921, %v5897
    %v8778 = vpack.c.b16 %v5922, %v5898
    %v8779 = vpack.c.b16 %v5923, %v5899
    %v8780 = vpack.c.b16 %v5924, %v5900
    %v8781 = vpack.c.b16 %v5925, %v5901
    %v8782 = vpack.c.b16 %v5926, %v5902
    %v8783 = vpack.c.b16 %v5927, %v5903
    %v8784 = vpack.c.b16 %v5928, %v5904
    %v8785 = vpack.c.b16 %v5929, %v5905
    %v8786 = vpack.c.b16 %v5930, %v5906
    %v8787 = vpack.c.b16 %v5931, %v5907
    %v8788 = vpack.c.b16 %v5932, %v5908
    %v8789 = vpack.c.b16 %v5933, %v5909
    %v8790 = vpack.c.b16 %v5934, %v5910
    %v8791 = vpack.c.b16 %v5935, %v5911
    %v8792 = vpack.c.b16 %v5960, %v5936
    %v8793 = vpack.c.b16 %v5961, %v5937
    %v8794 = vpack.c.b16 %v5962, %v5938
    %v8795 = vpack.c.b16 %v5963, %v5939
    %v8796 = vpack.c.b16 %v5964, %v5940
    %v8797 = vpack.c.b16 %v5965, %v5941
    %v8798 = vpack.c.b16 %v5966, %v5942
    %v8799 = vpack.c.b16 %v5967, %v5943
    %v8800 = vpack.c.b16 %v5968, %v5944
    %v8801 = vpack.c.b16 %v5969, %v5945
    %v8802 = vpack.c.b16 %v5970, %v5946
    %v8803 = vpack.c.b16 %v5971, %v5947
    %v8804 = vpack.c.b16 %v5972, %v5948
    %v8805 = vpack.c.b16 %v5973, %v5949
    %v8806 = vpack.c.b16 %v5974, %v5950
    %v8807 = vpack.c.b16 %v5975, %v5951
    %v8808 = vpack.c.b16 %v5976, %v5952
    %v8809 = vpack.c.b16 %v5977, %v5953
    %v8810 = vpack.c.b16 %v5978, %v5954
    %v8811 = vpack.c.b16 %v5979, %v5955
    %v8812 = vpack.c.b16 %v5980, %v5956
    %v8813 = vpack.c.b16 %v5981, %v5957
    %v8814 = vpack.c.b16 %v5982, %v5958
    %v8815 = vpack.c.b16 %v5983, %v5959
    %v8816 = vpack.c.b16 %v6008, %v5984
    %v8817 = vpack.c.b16 %v6009, %v5985
    %v8818 = vpack.c.b16 %v6010, %v5986
    %v8819 = vpack.c.b16 %v6011, %v5987
    %v8820 = vpack.c.b16 %v6012, %v5988
    %v8821 = vpack.c.b16 %v6013, %v5989
    %v8822 = vpack.c.b16 %v6014, %v5990
    %v8823 = vpack.c.b16 %v6015, %v5991
    %v8824 = vpack.c.b16 %v6016, %v5992
    %v8825 = vpack.c.b16 %v6017, %v5993
    %v8826 = vpack.c.b16 %v6018, %v5994
    %v8827 = vpack.c.b16 %v6019, %v5995
    %v8828 = vpack.c.b16 %v6020, %v5996
    %v8829 = vpack.c.b16 %v6021, %v5997
    %v8830 = vpack.c.b16 %v6022, %v5998
    %v8831 = vpack.c.b16 %v6023, %v5999
    %v8832 = vpack.c.b16 %v6024, %v6000
    %v8833 = vpack.c.b16 %v6025, %v6001
    %v8834 = vpack.c.b16 %v6026, %v6002
    %v8835 = vpack.c.b16 %v6027, %v6003
    %v8836 = vpack.c.b16 %v6028, %v6004
    %v8837 = vpack.c.b16 %v6029, %v6005
    %v8838 = vpack.c.b16 %v6030, %v6006
    %v8839 = vpack.c.b16 %v6031, %v6007
    %v8840 = vpack.c.b16 %v6056, %v6032
    %v8841 = vpack.c.b16 %v6057, %v6033
    %v8842 = vpack.c.b16 %v6058, %v6034
    %v8843 = vpack.c.b16 %v6059, %v6035
    %v8844 = vpack.c.b16 %v6060, %v6036
    %v8845 = vpack.c.b16 %v6061, %v6037
    %v8846 = vpack.c.b16 %v6062, %v6038
    %v8847 = vpack.c.b16 %v6063, %v6039
    %v8848 = vpack.c.b16 %v6064, %v6040
    %v8849 = vpack.c.b16 %v6065, %v6041
    %v8850 = vpack.c.b16 %v6066, %v6042
    %v8851 = vpack.c.b16 %v6067, %v6043
    %v8852 = vpack.c.b16 %v6068, %v6044
    %v8853 = vpack.c.b16 %v6069, %v6045
    %v8854 = vpack.c.b16 %v6070, %v6046
    %v8855 = vpack.c.b16 %v6071, %v6047
    %v8856 = vpack.c.b16 %v6072, %v6048
    %v8857 = vpack.c.b16 %v6073, %v6049
    %v8858 = vpack.c.b16 %v6074, %v6050
    %v8859 = vpack.c.b16 %v6075, %v6051
    %v8860 = vpack.c.b16 %v6076, %v6052
    %v8861 = vpack.c.b16 %v6077, %v6053
    %v8862 = vpack.c.b16 %v6078, %v6054
    %v8863 = vpack.c.b16 %v6079, %v6055
    %v8864 = vpack.c.b16 %v6104, %v6080
    %v8865 = vpack.c.b16 %v6105, %v6081
    %v8866 = vpack.c.b16 %v6106, %v6082
    %v8867 = vpack.c.b16 %v6107, %v6083
    %v8868 = vpack.c.b16 %v6108, %v6084
    %v8869 = vpack.c.b16 %v6109, %v6085
    %v8870 = vpack.c.b16 %v6110, %v6086
    %v8871 = vpack.c.b16 %v6111, %v6087
    %v8872 = vpack.c.b16 %v6112, %v6088
    %v8873 = vpack.c.b16 %v6113, %v6089
    %v8874 = vpack.c.b16 %v6114, %v6090
    %v8875 = vpack.c.b16 %v6115, %v6091
    %v8876 = vpack.c.b16 %v6116, %v6092
    %v8877 = vpack.c.b16 %v6117, %v6093
    %v8878 = vpack.c.b16 %v6118, %v6094
    %v8879 = vpack.c.b16 %v6119, %v6095
    %v8880 = vpack.c.b16 %v6120, %v6096
    %v8881 = vpack.c.b16 %v6121, %v6097
    %v8882 = vpack.c.b16 %v6122, %v6098
    %v8883 = vpack.c.b16 %v6123, %v6099
    %v8884 = vpack.c.b16 %v6124, %v6100
    %v8885 = vpack.c.b16 %v6125, %v6101
    %v8886 = vpack.c.b16 %v6126, %v6102
    %v8887 = vpack.c.b16 %v6127, %v6103
    %v8888 = vpack.c.b16 %v6152, %v6128
    %v8889 = vpack.c.b16 %v6153, %v6129
    %v8890 = vpack.c.b16 %v6154, %v6130
    %v8891 = vpack.c.b16 %v6155, %v6131
    %v8892 = vpack.c.b16 %v6156, %v6132
    %v8893 = vpack.c.b16 %v6157, %v6133
    %v8894 = vpack.c.b16 %v6158, %v6134
    %v8895 = vpack.c.b16 %v6159, %v6135
    %v8896 = vpack.c.b16 %v6160, %v6136
    %v8897 = vpack.c.b16 %v6161, %v6137
    %v8898 = vpack.c.b16 %v6162, %v6138
    %v8899 = vpack.c.b16 %v6163, %v6139
    %v8900 = vpack.c.b16 %v6164, %v6140
    %v8901 = vpack.c.b16 %v6165, %v6141
    %v8902 = vpack.c.b16 %v6166, %v6142
    %v8903 = vpack.c.b16 %v6167, %v6143
    %v8904 = vpack.c.b16 %v6168, %v6144
    %v8905 = vpack.c.b16 %v6169, %v6145
    %v8906 = vpack.c.b16 %v6170, %v6146
    %v8907 = vpack.c.b16 %v6171, %v6147
    %v8908 = vpack.c.b16 %v6172, %v6148
    %v8909 = vpack.c.b16 %v6173, %v6149
    %v8910 = vpack.c.b16 %v6174, %v6150
    %v8911 = vpack.c.b16 %v6175, %v6151
    %v8912 = vpack.c.b16 %v6200, %v6176
    %v8913 = vpack.c.b16 %v6201, %v6177
    %v8914 = vpack.c.b16 %v6202, %v6178
    %v8915 = vpack.c.b16 %v6203, %v6179
    %v8916 = vpack.c.b16 %v6204, %v6180
    %v8917 = vpack.c.b16 %v6205, %v6181
    %v8918 = vpack.c.b16 %v6206, %v6182
    %v8919 = vpack.c.b16 %v6207, %v6183
    %v8920 = vpack.c.b16 %v6208, %v6184
    %v8921 = vpack.c.b16 %v6209, %v6185
    %v8922 = vpack.c.b16 %v6210, %v6186
    %v8923 = vpack.c.b16 %v6211, %v6187
    %v8924 = vpack.c.b16 %v6212, %v6188
    %v8925 = vpack.c.b16 %v6213, %v6189
    %v8926 = vpack.c.b16 %v6214, %v6190
    %v8927 = vpack.c.b16 %v6215, %v6191
    %v8928 = vpack.c.b16 %v6216, %v6192
    %v8929 = vpack.c.b16 %v6217, %v6193
    %v8930 = vpack.c.b16 %v6218, %v6194
    %v8931 = vpack.c.b16 %v6219, %v6195
    %v8932 = vpack.c.b16 %v6220, %v6196
    %v8933 = vpack.c.b16 %v6221, %v6197
    %v8934 = vpack.c.b16 %v6222, %v6198
    %v8935 = vpack.c.b16 %v6223, %v6199
    %v8936 = vpack.c.b16 %v6248, %v6224
    %v8937 = vpack.c.b16 %v6249, %v6225
    %v8938 = vpack.c.b16 %v6250, %v6226
    %v8939 = vpack.c.b16 %v6251, %v6227
    %v8940 = vpack.c.b16 %v6252, %v6228
    %v8941 = vpack.c.b16 %v6253, %v6229
    %v8942 = vpack.c.b16 %v6254, %v6230
    %v8943 = vpack.c.b16 %v6255, %v6231
    %v8944 = vpack.c.b16 %v6256, %v6232
    %v8945 = vpack.c.b16 %v6257, %v6233
    %v8946 = vpack.c.b16 %v6258, %v6234
    %v8947 = vpack.c.b16 %v6259, %v6235
    %v8948 = vpack.c.b16 %v6260, %v6236
    %v8949 = vpack.c.b16 %v6261, %v6237
    %v8950 = vpack.c.b16 %v6262, %v6238
    %v8951 = vpack.c.b16 %v6263, %v6239
    %v8952 = vpack.c.b16 %v6264, %v6240
    %v8953 = vpack.c.b16 %v6265, %v6241
    %v8954 = vpack.c.b16 %v6266, %v6242
    %v8955 = vpack.c.b16 %v6267, %v6243
    %v8956 = vpack.c.b16 %v6268, %v6244
    %v8957 = vpack.c.b16 %v6269, %v6245
    %v8958 = vpack.c.b16 %v6270, %v6246
    %v8959 = vpack.c.b16 %v6271, %v6247
    %v8960 = vpack.c.b16 %v6296, %v6272
    %v8961 = vpack.c.b16 %v6297, %v6273
    %v8962 = vpack.c.b16 %v6298, %v6274
    %v8963 = vpack.c.b16 %v6299, %v6275
    %v8964 = vpack.c.b16 %v6300, %v6276
    %v8965 = vpack.c.b16 %v6301, %v6277
    %v8966 = vpack.c.b16 %v6302, %v6278
    %v8967 = vpack.c.b16 %v6303, %v6279
    %v8968 = vpack.c.b16 %v6304, %v6280
    %v8969 = vpack.c.b16 %v6305, %v6281
    %v8970 = vpack.c.b16 %v6306, %v6282
    %v8971 = vpack.c.b16 %v6307, %v6283
    %v8972 = vpack.c.b16 %v6308, %v6284
    %v8973 = vpack.c.b16 %v6309, %v6285
    %v8974 = vpack.c.b16 %v6310, %v6286
    %v8975 = vpack.c.b16 %v6311, %v6287
    %v8976 = vpack.c.b16 %v6312, %v6288
    %v8977 = vpack.c.b16 %v6313, %v6289
    %v8978 = vpack.c.b16 %v6314, %v6290
    %v8979 = vpack.c.b16 %v6315, %v6291
    %v8980 = vpack.c.b16 %v6316, %v6292
    %v8981 = vpack.c.b16 %v6317, %v6293
    %v8982 = vpack.c.b16 %v6318, %v6294
    %v8983 = vpack.c.b16 %v6319, %v6295
    %v8984 = vpack.c.b16 %v6344, %v6320
    %v8985 = vpack.c.b16 %v6345, %v6321
    %v8986 = vpack.c.b16 %v6346, %v6322
    %v8987 = vpack.c.b16 %v6347, %v6323
    %v8988 = vpack.c.b16 %v6348, %v6324
    %v8989 = vpack.c.b16 %v6349, %v6325
    %v8990 = vpack.c.b16 %v6350, %v6326
    %v8991 = vpack.c.b16 %v6351, %v6327
    %v8992 = vpack.c.b16 %v6352, %v6328
    %v8993 = vpack.c.b16 %v6353, %v6329
    %v8994 = vpack.c.b16 %v6354, %v6330
    %v8995 = vpack.c.b16 %v6355, %v6331
    %v8996 = vpack.c.b16 %v6356, %v6332
    %v8997 = vpack.c.b16 %v6357, %v6333
    %v8998 = vpack.c.b16 %v6358, %v6334
    %v8999 = vpack.c.b16 %v6359, %v6335
    %v9000 = vpack.c.b16 %v6360, %v6336
    %v9001 = vpack.c.b16 %v6361, %v6337
    %v9002 = vpack.c.b16 %v6362, %v6338
    %v9003 = vpack.c.b16 %v6363, %v6339
    %v9004 = vpack.c.b16 %v6364, %v6340
    %v9005 = vpack.c.b16 %v6365, %v6341
    %v9006 = vpack.c.b16 %v6366, %v6342
    %v9007 = vpack.c.b16 %v6367, %v6343
    %v9008 = vpack.c.b16 %v6392, %v6368
    %v9009 = vpack.c.b16 %v6393, %v6369
    %v9010 = vpack.c.b16 %v6394, %v6370
    %v9011 = vpack.c.b16 %v6395, %v6371
    %v9012 = vpack.c.b16 %v6396, %v6372
    %v9013 = vpack.c.b16 %v6397, %v6373
    %v9014 = vpack.c.b16 %v6398, %v6374
    %v9015 = vpack.c.b16 %v6399, %v6375
    %v9016 = vpack.c.b16 %v6400, %v6376
    %v9017 = vpack.c.b16 %v6401, %v6377
    %v9018 = vpack.c.b16 %v6402, %v6378
    %v9019 = vpack.c.b16 %v6403, %v6379
    %v9020 = vpack.c.b16 %v6404, %v6380
    %v9021 = vpack.c.b16 %v6405, %v6381
    %v9022 = vpack.c.b16 %v6406, %v6382
    %v9023 = vpack.c.b16 %v6407, %v6383
    %v9024 = vpack.c.b16 %v6408, %v6384
    %v9025 = vpack.c.b16 %v6409, %v6385
    %v9026 = vpack.c.b16 %v6410, %v6386
    %v9027 = vpack.c.b16 %v6411, %v6387
    %v9028 = vpack.c.b16 %v6412, %v6388
    %v9029 = vpack.c.b16 %v6413, %v6389
    %v9030 = vpack.c.b16 %v6414, %v6390
    %v9031 = vpack.c.b16 %v6415, %v6391
    %v9032 = vpack.c.b16 %v6440, %v6416
    %v9033 = vpack.c.b16 %v6441, %v6417
    %v9034 = vpack.c.b16 %v6442, %v6418
    %v9035 = vpack.c.b16 %v6443, %v6419
    %v9036 = vpack.c.b16 %v6444, %v6420
    %v9037 = vpack.c.b16 %v6445, %v6421
    %v9038 = vpack.c.b16 %v6446, %v6422
    %v9039 = vpack.c.b16 %v6447, %v6423
    %v9040 = vpack.c.b16 %v6448, %v6424
    %v9041 = vpack.c.b16 %v6449, %v6425
    %v9042 = vpack.c.b16 %v6450, %v6426
    %v9043 = vpack.c.b16 %v6451, %v6427
    %v9044 = vpack.c.b16 %v6452, %v6428
    %v9045 = vpack.c.b16 %v6453, %v6429
    %v9046 = vpack.c.b16 %v6454, %v6430
    %v9047 = vpack.c.b16 %v6455, %v6431
    %v9048 = vpack.c.b16 %v6456, %v6432
    %v9049 = vpack.c.b16 %v6457, %v6433
    %v9050 = vpack.c.b16 %v6458, %v6434
    %v9051 = vpack.c.b16 %v6459, %v6435
    %v9052 = vpack.c.b16 %v6460, %v6436
    %v9053 = vpack.c.b16 %v6461, %v6437
    %v9054 = vpack.c.b16 %v6462, %v6438
    %v9055 = vpack.c.b16 %v6463, %v6439
    %v9056 = vpack.c.b16 %v6488, %v6464
    %v9057 = vpack.c.b16 %v6489, %v6465
    %v9058 = vpack.c.b16 %v6490, %v6466
    %v9059 = vpack.c.b16 %v6491, %v6467
    %v9060 = vpack.c.b16 %v6492, %v6468
    %v9061 = vpack.c.b16 %v6493, %v6469
    %v9062 = vpack.c.b16 %v6494, %v6470
    %v9063 = vpack.c.b16 %v6495, %v6471
    %v9064 = vpack.c.b16 %v6496, %v6472
    %v9065 = vpack.c.b16 %v6497, %v6473
    %v9066 = vpack.c.b16 %v6498, %v6474
    %v9067 = vpack.c.b16 %v6499, %v6475
    %v9068 = vpack.c.b16 %v6500, %v6476
    %v9069 = vpack.c.b16 %v6501, %v6477
    %v9070 = vpack.c.b16 %v6502, %v6478
    %v9071 = vpack.c.b16 %v6503, %v6479
    %v9072 = vpack.c.b16 %v6504, %v6480
    %v9073 = vpack.c.b16 %v6505, %v6481
    %v9074 = vpack.c.b16 %v6506, %v6482
    %v9075 = vpack.c.b16 %v6507, %v6483
    %v9076 = vpack.c.b16 %v6508, %v6484
    %v9077 = vpack.c.b16 %v6509, %v6485
    %v9078 = vpack.c.b16 %v6510, %v6486
    %v9079 = vpack.c.b16 %v6511, %v6487
    %v9080 = vpack.c.b16 %v6536, %v6512
    %v9081 = vpack.c.b16 %v6537, %v6513
    %v9082 = vpack.c.b16 %v6538, %v6514
    %v9083 = vpack.c.b16 %v6539, %v6515
    %v9084 = vpack.c.b16 %v6540, %v6516
    %v9085 = vpack.c.b16 %v6541, %v6517
    %v9086 = vpack.c.b16 %v6542, %v6518
    %v9087 = vpack.c.b16 %v6543, %v6519
    %v9088 = vpack.c.b16 %v6544, %v6520
    %v9089 = vpack.c.b16 %v6545, %v6521
    %v9090 = vpack.c.b16 %v6546, %v6522
    %v9091 = vpack.c.b16 %v6547, %v6523
    %v9092 = vpack.c.b16 %v6548, %v6524
    %v9093 = vpack.c.b16 %v6549, %v6525
    %v9094 = vpack.c.b16 %v6550, %v6526
    %v9095 = vpack.c.b16 %v6551, %v6527
    %v9096 = vpack.c.b16 %v6552, %v6528
    %v9097 = vpack.c.b16 %v6553, %v6529
    %v9098 = vpack.c.b16 %v6554, %v6530
    %v9099 = vpack.c.b16 %v6555, %v6531
    %v9100 = vpack.c.b16 %v6556, %v6532
    %v9101 = vpack.c.b16 %v6557, %v6533
    %v9102 = vpack.c.b16 %v6558, %v6534
    %v9103 = vpack.c.b16 %v6559, %v6535
    %v9104 = vpack.c.b16 %v6584, %v6560
    %v9105 = vpack.c.b16 %v6585, %v6561
    %v9106 = vpack.c.b16 %v6586, %v6562
    %v9107 = vpack.c.b16 %v6587, %v6563
    %v9108 = vpack.c.b16 %v6588, %v6564
    %v9109 = vpack.c.b16 %v6589, %v6565
    %v9110 = vpack.c.b16 %v6590, %v6566
    %v9111 = vpack.c.b16 %v6591, %v6567
    %v9112 = vpack.c.b16 %v6592, %v6568
    %v9113 = vpack.c.b16 %v6593, %v6569
    %v9114 = vpack.c.b16 %v6594, %v6570
    %v9115 = vpack.c.b16 %v6595, %v6571
    %v9116 = vpack.c.b16 %v6596, %v6572
    %v9117 = vpack.c.b16 %v6597, %v6573
    %v9118 = vpack.c.b16 %v6598, %v6574
    %v9119 = vpack.c.b16 %v6599, %v6575
    %v9120 = vpack.c.b16 %v6600, %v6576
    %v9121 = vpack.c.b16 %v6601, %v6577
    %v9122 = vpack.c.b16 %v6602, %v6578
    %v9123 = vpack.c.b16 %v6603, %v6579
    %v9124 = vpack.c.b16 %v6604, %v6580
    %v9125 = vpack.c.b16 %v6605, %v6581
    %v9126 = vpack.c.b16 %v6606, %v6582
    %v9127 = vpack.c.b16 %v6607, %v6583
    %v9128 = vpack.c.b16 %v6632, %v6608
    %v9129 = vpack.c.b16 %v6633, %v6609
    %v9130 = vpack.c.b16 %v6634, %v6610
    %v9131 = vpack.c.b16 %v6635, %v6611
    %v9132 = vpack.c.b16 %v6636, %v6612
    %v9133 = vpack.c.b16 %v6637, %v6613
    %v9134 = vpack.c.b16 %v6638, %v6614
    %v9135 = vpack.c.b16 %v6639, %v6615
    %v9136 = vpack.c.b16 %v6640, %v6616
    %v9137 = vpack.c.b16 %v6641, %v6617
    %v9138 = vpack.c.b16 %v6642, %v6618
    %v9139 = vpack.c.b16 %v6643, %v6619
    %v9140 = vpack.c.b16 %v6644, %v6620
    %v9141 = vpack.c.b16 %v6645, %v6621
    %v9142 = vpack.c.b16 %v6646, %v6622
    %v9143 = vpack.c.b16 %v6647, %v6623
    %v9144 = vpack.c.b16 %v6648, %v6624
    %v9145 = vpack.c.b16 %v6649, %v6625
    %v9146 = vpack.c.b16 %v6650, %v6626
    %v9147 = vpack.c.b16 %v6651, %v6627
    %v9148 = vpack.c.b16 %v6652, %v6628
    %v9149 = vpack.c.b16 %v6653, %v6629
    %v9150 = vpack.c.b16 %v6654, %v6630
    %v9151 = vpack.c.b16 %v6655, %v6631
    %v9152 = vpack.c.b16 %v6680, %v6656
    %v9153 = vpack.c.b16 %v6681, %v6657
    %v9154 = vpack.c.b16 %v6682, %v6658
    %v9155 = vpack.c.b16 %v6683, %v6659
    %v9156 = vpack.c.b16 %v6684, %v6660
    %v9157 = vpack.c.b16 %v6685, %v6661
    %v9158 = vpack.c.b16 %v6686, %v6662
    %v9159 = vpack.c.b16 %v6687, %v6663
    %v9160 = vpack.c.b16 %v6688, %v6664
    %v9161 = vpack.c.b16 %v6689, %v6665
    %v9162 = vpack.c.b16 %v6690, %v6666
    %v9163 = vpack.c.b16 %v6691, %v6667
    %v9164 = vpack.c.b16 %v6692, %v6668
    %v9165 = vpack.c.b16 %v6693, %v6669
    %v9166 = vpack.c.b16 %v6694, %v6670
    %v9167 = vpack.c.b16 %v6695, %v6671
    %v9168 = vpack.c.b16 %v6696, %v6672
    %v9169 = vpack.c.b16 %v6697, %v6673
    %v9170 = vpack.c.b16 %v6698, %v6674
    %v9171 = vpack.c.b16 %v6699, %v6675
    %v9172 = vpack.c.b16 %v6700, %v6676
    %v9173 = vpack.c.b16 %v6701, %v6677
    %v9174 = vpack.c.b16 %v6702, %v6678
    %v9175 = vpack.c.b16 %v6703, %v6679
    %v9176 = vpack.c.b16 %v6728, %v6704
    %v9177 = vpack.c.b16 %v6729, %v6705
    %v9178 = vpack.c.b16 %v6730, %v6706
    %v9179 = vpack.c.b16 %v6731, %v6707
    %v9180 = vpack.c.b16 %v6732, %v6708
    %v9181 = vpack.c.b16 %v6733, %v6709
    %v9182 = vpack.c.b16 %v6734, %v6710
    %v9183 = vpack.c.b16 %v6735, %v6711
    %v9184 = vpack.c.b16 %v6736, %v6712
    %v9185 = vpack.c.b16 %v6737, %v6713
    %v9186 = vpack.c.b16 %v6738, %v6714
    %v9187 = vpack.c.b16 %v6739, %v6715
    %v9188 = vpack.c.b16 %v6740, %v6716
    %v9189 = vpack.c.b16 %v6741, %v6717
    %v9190 = vpack.c.b16 %v6742, %v6718
    %v9191 = vpack.c.b16 %v6743, %v6719
    %v9192 = vpack.c.b16 %v6744, %v6720
    %v9193 = vpack.c.b16 %v6745, %v6721
    %v9194 = vpack.c.b16 %v6746, %v6722
    %v9195 = vpack.c.b16 %v6747, %v6723
    %v9196 = vpack.c.b16 %v6748, %v6724
    %v9197 = vpack.c.b16 %v6749, %v6725
    %v9198 = vpack.c.b16 %v6750, %v6726
    %v9199 = vpack.c.b16 %v6751, %v6727
    %v9200 = vpack.c.b16 %v6776, %v6752
    %v9201 = vpack.c.b16 %v6777, %v6753
    %v9202 = vpack.c.b16 %v6778, %v6754
    %v9203 = vpack.c.b16 %v6779, %v6755
    %v9204 = vpack.c.b16 %v6780, %v6756
    %v9205 = vpack.c.b16 %v6781, %v6757
    %v9206 = vpack.c.b16 %v6782, %v6758
    %v9207 = vpack.c.b16 %v6783, %v6759
    %v9208 = vpack.c.b16 %v6784, %v6760
    %v9209 = vpack.c.b16 %v6785, %v6761
    %v9210 = vpack.c.b16 %v6786, %v6762
    %v9211 = vpack.c.b16 %v6787, %v6763
    %v9212 = vpack.c.b16 %v6788, %v6764
    %v9213 = vpack.c.b16 %v6789, %v6765
    %v9214 = vpack.c.b16 %v6790, %v6766
    %v9215 = vpack.c.b16 %v6791, %v6767
    %v9216 = vpack.c.b16 %v6792, %v6768
    %v9217 = vpack.c.b16 %v6793, %v6769
    %v9218 = vpack.c.b16 %v6794, %v6770
    %v9219 = vpack.c.b16 %v6795, %v6771
    %v9220 = vpack.c.b16 %v6796, %v6772
    %v9221 = vpack.c.b16 %v6797, %v6773
    %v9222 = vpack.c.b16 %v6798, %v6774
    %v9223 = vpack.c.b16 %v6799, %v6775
    %v9224 = vpack.c.b16 %v6824, %v6800
    %v9225 = vpack.c.b16 %v6825, %v6801
    %v9226 = vpack.c.b16 %v6826, %v6802
    %v9227 = vpack.c.b16 %v6827, %v6803
    %v9228 = vpack.c.b16 %v6828, %v6804
    %v9229 = vpack.c.b16 %v6829, %v6805
    %v9230 = vpack.c.b16 %v6830, %v6806
    %v9231 = vpack.c.b16 %v6831, %v6807
    %v9232 = vpack.c.b16 %v6832, %v6808
    %v9233 = vpack.c.b16 %v6833, %v6809
    %v9234 = vpack.c.b16 %v6834, %v6810
    %v9235 = vpack.c.b16 %v6835, %v6811
    %v9236 = vpack.c.b16 %v6836, %v6812
    %v9237 = vpack.c.b16 %v6837, %v6813
    %v9238 = vpack.c.b16 %v6838, %v6814
    %v9239 = vpack.c.b16 %v6839, %v6815
    %v9240 = vpack.c.b16 %v6840, %v6816
    %v9241 = vpack.c.b16 %v6841, %v6817
    %v9242 = vpack.c.b16 %v6842, %v6818
    %v9243 = vpack.c.b16 %v6843, %v6819
    %v9244 = vpack.c.b16 %v6844, %v6820
    %v9245 = vpack.c.b16 %v6845, %v6821
    %v9246 = vpack.c.b16 %v6846, %v6822
    %v9247 = vpack.c.b16 %v6847, %v6823
    %v9248 = vpack.c.b16 %v6872, %v6848
    %v9249 = vpack.c.b16 %v6873, %v6849
    %v9250 = vpack.c.b16 %v6874, %v6850
    %v9251 = vpack.c.b16 %v6875, %v6851
    %v9252 = vpack.c.b16 %v6876, %v6852
    %v9253 = vpack.c.b16 %v6877, %v6853
    %v9254 = vpack.c.b16 %v6878, %v6854
    %v9255 = vpack.c.b16 %v6879, %v6855
    %v9256 = vpack.c.b16 %v6880, %v6856
    %v9257 = vpack.c.b16 %v6881, %v6857
    %v9258 = vpack.c.b16 %v6882, %v6858
    %v9259 = vpack.c.b16 %v6883, %v6859
    %v9260 = vpack.c.b16 %v6884, %v6860
    %v9261 = vpack.c.b16 %v6885, %v6861
    %v9262 = vpack.c.b16 %v6886, %v6862
    %v9263 = vpack.c.b16 %v6887, %v6863
    %v9264 = vpack.c.b16 %v6888, %v6864
    %v9265 = vpack.c.b16 %v6889, %v6865
    %v9266 = vpack.c.b16 %v6890, %v6866
    %v9267 = vpack.c.b16 %v6891, %v6867
    %v9268 = vpack.c.b16 %v6892, %v6868
    %v9269 = vpack.c.b16 %v6893, %v6869
    %v9270 = vpack.c.b16 %v6894, %v6870
    %v9271 = vpack.c.b16 %v6895, %v6871
    %v9272 = vpack.c.b16 %v6920, %v6896
    %v9273 = vpack.c.b16 %v6921, %v6897
    %v9274 = vpack.c.b16 %v6922, %v6898
    %v9275 = vpack.c.b16 %v6923, %v6899
    %v9276 = vpack.c.b16 %v6924, %v6900
    %v9277 = vpack.c.b16 %v6925, %v6901
    %v9278 = vpack.c.b16 %v6926, %v6902
    %v9279 = vpack.c.b16 %v6927, %v6903
    %v9280 = vpack.c.b16 %v6928, %v6904
    %v9281 = vpack.c.b16 %v6929, %v6905
    %v9282 = vpack.c.b16 %v6930, %v6906
    %v9283 = vpack.c.b16 %v6931, %v6907
    %v9284 = vpack.c.b16 %v6932, %v6908
    %v9285 = vpack.c.b16 %v6933, %v6909
    %v9286 = vpack.c.b16 %v6934, %v6910
    %v9287 = vpack.c.b16 %v6935, %v6911
    %v9288 = vpack.c.b16 %v6936, %v6912
    %v9289 = vpack.c.b16 %v6937, %v6913
    %v9290 = vpack.c.b16 %v6938, %v6914
    %v9291 = vpack.c.b16 %v6939, %v6915
    %v9292 = vpack.c.b16 %v6940, %v6916
    %v9293 = vpack.c.b16 %v6941, %v6917
    %v9294 = vpack.c.b16 %v6942, %v6918
    %v9295 = vpack.c.b16 %v6943, %v6919
    %v9296 = vpack.c.b16 %v6968, %v6944
    %v9297 = vpack.c.b16 %v6969, %v6945
    %v9298 = vpack.c.b16 %v6970, %v6946
    %v9299 = vpack.c.b16 %v6971, %v6947
    %v9300 = vpack.c.b16 %v6972, %v6948
    %v9301 = vpack.c.b16 %v6973, %v6949
    %v9302 = vpack.c.b16 %v6974, %v6950
    %v9303 = vpack.c.b16 %v6975, %v6951
    %v9304 = vpack.c.b16 %v6976, %v6952
    %v9305 = vpack.c.b16 %v6977, %v6953
    %v9306 = vpack.c.b16 %v6978, %v6954
    %v9307 = vpack.c.b16 %v6979, %v6955
    %v9308 = vpack.c.b16 %v6980, %v6956
    %v9309 = vpack.c.b16 %v6981, %v6957
    %v9310 = vpack.c.b16 %v6982, %v6958
    %v9311 = vpack.c.b16 %v6983, %v6959
    %v9312 = vpack.c.b16 %v6984, %v6960
    %v9313 = vpack.c.b16 %v6985, %v6961
    %v9314 = vpack.c.b16 %v6986, %v6962
    %v9315 = vpack.c.b16 %v6987, %v6963
    %v9316 = vpack.c.b16 %v6988, %v6964
    %v9317 = vpack.c.b16 %v6989, %v6965
    %v9318 = vpack.c.b16 %v6990, %v6966
    %v9319 = vpack.c.b16 %v6991, %v6967
    %v9320 = vpack.c.b16 %v7016, %v6992
    %v9321 = vpack.c.b16 %v7017, %v6993
    %v9322 = vpack.c.b16 %v7018, %v6994
    %v9323 = vpack.c.b16 %v7019, %v6995
    %v9324 = vpack.c.b16 %v7020, %v6996
    %v9325 = vpack.c.b16 %v7021, %v6997
    %v9326 = vpack.c.b16 %v7022, %v6998
    %v9327 = vpack.c.b16 %v7023, %v6999
    %v9328 = vpack.c.b16 %v7024, %v7000
    %v9329 = vpack.c.b16 %v7025, %v7001
    %v9330 = vpack.c.b16 %v7026, %v7002
    %v9331 = vpack.c.b16 %v7027, %v7003
    %v9332 = vpack.c.b16 %v7028, %v7004
    %v9333 = vpack.c.b16 %v7029, %v7005
    %v9334 = vpack.c.b16 %v7030, %v7006
    %v9335 = vpack.c.b16 %v7031, %v7007
    %v9336 = vpack.c.b16 %v7032, %v7008
    %v9337 = vpack.c.b16 %v7033, %v7009
    %v9338 = vpack.c.b16 %v7034, %v7010
    %v9339 = vpack.c.b16 %v7035, %v7011
    %v9340 = vpack.c.b16 %v7036, %v7012
    %v9341 = vpack.c.b16 %v7037, %v7013
    %v9342 = vpack.c.b16 %v7038, %v7014
    %v9343 = vpack.c.b16 %v7039, %v7015
    %v9344 = vpack.c.b16 %v7064, %v7040
    %v9345 = vpack.c.b16 %v7065, %v7041
    %v9346 = vpack.c.b16 %v7066, %v7042
    %v9347 = vpack.c.b16 %v7067, %v7043
    %v9348 = vpack.c.b16 %v7068, %v7044
    %v9349 = vpack.c.b16 %v7069, %v7045
    %v9350 = vpack.c.b16 %v7070, %v7046
    %v9351 = vpack.c.b16 %v7071, %v7047
    %v9352 = vpack.c.b16 %v7072, %v7048
    %v9353 = vpack.c.b16 %v7073, %v7049
    %v9354 = vpack.c.b16 %v7074, %v7050
    %v9355 = vpack.c.b16 %v7075, %v7051
    %v9356 = vpack.c.b16 %v7076, %v7052
    %v9357 = vpack.c.b16 %v7077, %v7053
    %v9358 = vpack.c.b16 %v7078, %v7054
    %v9359 = vpack.c.b16 %v7079, %v7055
    %v9360 = vpack.c.b16 %v7080, %v7056
    %v9361 = vpack.c.b16 %v7081, %v7057
    %v9362 = vpack.c.b16 %v7082, %v7058
    %v9363 = vpack.c.b16 %v7083, %v7059
    %v9364 = vpack.c.b16 %v7084, %v7060
    %v9365 = vpack.c.b16 %v7085, %v7061
    %v9366 = vpack.c.b16 %v7086, %v7062
    %v9367 = vpack.c.b16 %v7087, %v7063
    %v9368 = vpack.c.b16 %v7112, %v7088
    %v9369 = vpack.c.b16 %v7113, %v7089
    %v9370 = vpack.c.b16 %v7114, %v7090
    %v9371 = vpack.c.b16 %v7115, %v7091
    %v9372 = vpack.c.b16 %v7116, %v7092
    %v9373 = vpack.c.b16 %v7117, %v7093
    %v9374 = vpack.c.b16 %v7118, %v7094
    %v9375 = vpack.c.b16 %v7119, %v7095
    %v9376 = vpack.c.b16 %v7120, %v7096
    %v9377 = vpack.c.b16 %v7121, %v7097
    %v9378 = vpack.c.b16 %v7122, %v7098
    %v9379 = vpack.c.b16 %v7123, %v7099
    %v9380 = vpack.c.b16 %v7124, %v7100
    %v9381 = vpack.c.b16 %v7125, %v7101
    %v9382 = vpack.c.b16 %v7126, %v7102
    %v9383 = vpack.c.b16 %v7127, %v7103
    %v9384 = vpack.c.b16 %v7128, %v7104
    %v9385 = vpack.c.b16 %v7129, %v7105
    %v9386 = vpack.c.b16 %v7130, %v7106
    %v9387 = vpack.c.b16 %v7131, %v7107
    %v9388 = vpack.c.b16 %v7132, %v7108
    %v9389 = vpack.c.b16 %v7133, %v7109
    %v9390 = vpack.c.b16 %v7134, %v7110
    %v9391 = vpack.c.b16 %v7135, %v7111
    %v9392 = vpack.c.b16 %v7160, %v7136
    %v9393 = vpack.c.b16 %v7161, %v7137
    %v9394 = vpack.c.b16 %v7162, %v7138
    %v9395 = vpack.c.b16 %v7163, %v7139
    %v9396 = vpack.c.b16 %v7164, %v7140
    %v9397 = vpack.c.b16 %v7165, %v7141
    %v9398 = vpack.c.b16 %v7166, %v7142
    %v9399 = vpack.c.b16 %v7167, %v7143
    %v9400 = vpack.c.b16 %v7168, %v7144
    %v9401 = vpack.c.b16 %v7169, %v7145
    %v9402 = vpack.c.b16 %v7170, %v7146
    %v9403 = vpack.c.b16 %v7171, %v7147
    %v9404 = vpack.c.b16 %v7172, %v7148
    %v9405 = vpack.c.b16 %v7173, %v7149
    %v9406 = vpack.c.b16 %v7174, %v7150
    %v9407 = vpack.c.b16 %v7175, %v7151
    %v9408 = vpack.c.b16 %v7176, %v7152
    %v9409 = vpack.c.b16 %v7177, %v7153
    %v9410 = vpack.c.b16 %v7178, %v7154
    %v9411 = vpack.c.b16 %v7179, %v7155
    %v9412 = vpack.c.b16 %v7180, %v7156
    %v9413 = vpack.c.b16 %v7181, %v7157
    %v9414 = vpack.c.b16 %v7182, %v7158
    %v9415 = vpack.c.b16 %v7183, %v7159
    %v9416 = vpack.c.b16 %v7208, %v7184
    %v9417 = vpack.c.b16 %v7209, %v7185
    %v9418 = vpack.c.b16 %v7210, %v7186
    %v9419 = vpack.c.b16 %v7211, %v7187
    %v9420 = vpack.c.b16 %v7212, %v7188
    %v9421 = vpack.c.b16 %v7213, %v7189
    %v9422 = vpack.c.b16 %v7214, %v7190
    %v9423 = vpack.c.b16 %v7215, %v7191
    %v9424 = vpack.c.b16 %v7216, %v7192
    %v9425 = vpack.c.b16 %v7217, %v7193
    %v9426 = vpack.c.b16 %v7218, %v7194
    %v9427 = vpack.c.b16 %v7219, %v7195
    %v9428 = vpack.c.b16 %v7220, %v7196
    %v9429 = vpack.c.b16 %v7221, %v7197
    %v9430 = vpack.c.b16 %v7222, %v7198
    %v9431 = vpack.c.b16 %v7223, %v7199
    %v9432 = vpack.c.b16 %v7224, %v7200
    %v9433 = vpack.c.b16 %v7225, %v7201
    %v9434 = vpack.c.b16 %v7226, %v7202
    %v9435 = vpack.c.b16 %v7227, %v7203
    %v9436 = vpack.c.b16 %v7228, %v7204
    %v9437 = vpack.c.b16 %v7229, %v7205
    %v9438 = vpack.c.b16 %v7230, %v7206
    %v9439 = vpack.c.b16 %v7231, %v7207
    %v9440 = vpack.c.b16 %v7256, %v7232
    %v9441 = vpack.c.b16 %v7257, %v7233
    %v9442 = vpack.c.b16 %v7258, %v7234
    %v9443 = vpack.c.b16 %v7259, %v7235
    %v9444 = vpack.c.b16 %v7260, %v7236
    %v9445 = vpack.c.b16 %v7261, %v7237
    %v9446 = vpack.c.b16 %v7262, %v7238
    %v9447 = vpack.c.b16 %v7263, %v7239
    %v9448 = vpack.c.b16 %v7264, %v7240
    %v9449 = vpack.c.b16 %v7265, %v7241
    %v9450 = vpack.c.b16 %v7266, %v7242
    %v9451 = vpack.c.b16 %v7267, %v7243
    %v9452 = vpack.c.b16 %v7268, %v7244
    %v9453 = vpack.c.b16 %v7269, %v7245
    %v9454 = vpack.c.b16 %v7270, %v7246
    %v9455 = vpack.c.b16 %v7271, %v7247
    %v9456 = vpack.c.b16 %v7272, %v7248
    %v9457 = vpack.c.b16 %v7273, %v7249
    %v9458 = vpack.c.b16 %v7274, %v7250
    %v9459 = vpack.c.b16 %v7275, %v7251
    %v9460 = vpack.c.b16 %v7276, %v7252
    %v9461 = vpack.c.b16 %v7277, %v7253
    %v9462 = vpack.c.b16 %v7278, %v7254
    %v9463 = vpack.c.b16 %v7279, %v7255
    %v9464 = vpack.c.b16 %v7304, %v7280
    %v9465 = vpack.c.b16 %v7305, %v7281
    %v9466 = vpack.c.b16 %v7306, %v7282
    %v9467 = vpack.c.b16 %v7307, %v7283
    %v9468 = vpack.c.b16 %v7308, %v7284
    %v9469 = vpack.c.b16 %v7309, %v7285
    %v9470 = vpack.c.b16 %v7310, %v7286
    %v9471 = vpack.c.b16 %v7311, %v7287
    %v9472 = vpack.c.b16 %v7312, %v7288
    %v9473 = vpack.c.b16 %v7313, %v7289
    %v9474 = vpack.c.b16 %v7314, %v7290
    %v9475 = vpack.c.b16 %v7315, %v7291
    %v9476 = vpack.c.b16 %v7316, %v7292
    %v9477 = vpack.c.b16 %v7317, %v7293
    %v9478 = vpack.c.b16 %v7318, %v7294
    %v9479 = vpack.c.b16 %v7319, %v7295
    %v9480 = vpack.c.b16 %v7320, %v7296
    %v9481 = vpack.c.b16 %v7321, %v7297
    %v9482 = vpack.c.b16 %v7322, %v7298
    %v9483 = vpack.c.b16 %v7323, %v7299
    %v9484 = vpack.c.b16 %v7324, %v7300
    %v9485 = vpack.c.b16 %v7325, %v7301
    %v9486 = vpack.c.b16 %v7326, %v7302
    %v9487 = vpack.c.b16 %v7327, %v7303
    %v9488 = vpack.c.b16 %v7352, %v7328
    %v9489 = vpack.c.b16 %v7353, %v7329
    %v9490 = vpack.c.b16 %v7354, %v7330
    %v9491 = vpack.c.b16 %v7355, %v7331
    %v9492 = vpack.c.b16 %v7356, %v7332
    %v9493 = vpack.c.b16 %v7357, %v7333
    %v9494 = vpack.c.b16 %v7358, %v7334
    %v9495 = vpack.c.b16 %v7359, %v7335
    %v9496 = vpack.c.b16 %v7360, %v7336
    %v9497 = vpack.c.b16 %v7361, %v7337
    %v9498 = vpack.c.b16 %v7362, %v7338
    %v9499 = vpack.c.b16 %v7363, %v7339
    %v9500 = vpack.c.b16 %v7364, %v7340
    %v9501 = vpack.c.b16 %v7365, %v7341
    %v9502 = vpack.c.b16 %v7366, %v7342
    %v9503 = vpack.c.b16 %v7367, %v7343
    %v9504 = vpack.c.b16 %v7368, %v7344
    %v9505 = vpack.c.b16 %v7369, %v7345
    %v9506 = vpack.c.b16 %v7370, %v7346
    %v9507 = vpack.c.b16 %v7371, %v7347
    %v9508 = vpack.c.b16 %v7372, %v7348
    %v9509 = vpack.c.b16 %v7373, %v7349
    %v9510 = vpack.c.b16 %v7374, %v7350
    %v9511 = vpack.c.b16 %v7375, %v7351
    %v9512 = vpack.c.b16 %v7400, %v7376
    %v9513 = vpack.c.b16 %v7401, %v7377
    %v9514 = vpack.c.b16 %v7402, %v7378
    %v9515 = vpack.c.b16 %v7403, %v7379
    %v9516 = vpack.c.b16 %v7404, %v7380
    %v9517 = vpack.c.b16 %v7405, %v7381
    %v9518 = vpack.c.b16 %v7406, %v7382
    %v9519 = vpack.c.b16 %v7407, %v7383
    %v9520 = vpack.c.b16 %v7408, %v7384
    %v9521 = vpack.c.b16 %v7409, %v7385
    %v9522 = vpack.c.b16 %v7410, %v7386
    %v9523 = vpack.c.b16 %v7411, %v7387
    %v9524 = vpack.c.b16 %v7412, %v7388
    %v9525 = vpack.c.b16 %v7413, %v7389
    %v9526 = vpack.c.b16 %v7414, %v7390
    %v9527 = vpack.c.b16 %v7415, %v7391
    %v9528 = vpack.c.b16 %v7416, %v7392
    %v9529 = vpack.c.b16 %v7417, %v7393
    %v9530 = vpack.c.b16 %v7418, %v7394
    %v9531 = vpack.c.b16 %v7419, %v7395
    %v9532 = vpack.c.b16 %v7420, %v7396
    %v9533 = vpack.c.b16 %v7421, %v7397
    %v9534 = vpack.c.b16 %v7422, %v7398
    %v9535 = vpack.c.b16 %v7423, %v7399
    %v9536 = vpack.c.b16 %v7448, %v7424
    %v9537 = vpack.c.b16 %v7449, %v7425
    %v9538 = vpack.c.b16 %v7450, %v7426
    %v9539 = vpack.c.b16 %v7451, %v7427
    %v9540 = vpack.c.b16 %v7452, %v7428
    %v9541 = vpack.c.b16 %v7453, %v7429
    %v9542 = vpack.c.b16 %v7454, %v7430
    %v9543 = vpack.c.b16 %v7455, %v7431
    %v9544 = vpack.c.b16 %v7456, %v7432
    %v9545 = vpack.c.b16 %v7457, %v7433
    %v9546 = vpack.c.b16 %v7458, %v7434
    %v9547 = vpack.c.b16 %v7459, %v7435
    %v9548 = vpack.c.b16 %v7460, %v7436
    %v9549 = vpack.c.b16 %v7461, %v7437
    %v9550 = vpack.c.b16 %v7462, %v7438
    %v9551 = vpack.c.b16 %v7463, %v7439
    %v9552 = vpack.c.b16 %v7464, %v7440
    %v9553 = vpack.c.b16 %v7465, %v7441
    %v9554 = vpack.c.b16 %v7466, %v7442
    %v9555 = vpack.c.b16 %v7467, %v7443
    %v9556 = vpack.c.b16 %v7468, %v7444
    %v9557 = vpack.c.b16 %v7469, %v7445
    %v9558 = vpack.c.b16 %v7470, %v7446
    %v9559 = vpack.c.b16 %v7471, %v7447
    %v9560 = vpack.c.b16 %v7496, %v7472
    %v9561 = vpack.c.b16 %v7497, %v7473
    %v9562 = vpack.c.b16 %v7498, %v7474
    %v9563 = vpack.c.b16 %v7499, %v7475
    %v9564 = vpack.c.b16 %v7500, %v7476
    %v9565 = vpack.c.b16 %v7501, %v7477
    %v9566 = vpack.c.b16 %v7502, %v7478
    %v9567 = vpack.c.b16 %v7503, %v7479
    %v9568 = vpack.c.b16 %v7504, %v7480
    %v9569 = vpack.c.b16 %v7505, %v7481
    %v9570 = vpack.c.b16 %v7506, %v7482
    %v9571 = vpack.c.b16 %v7507, %v7483
    %v9572 = vpack.c.b16 %v7508, %v7484
    %v9573 = vpack.c.b16 %v7509, %v7485
    %v9574 = vpack.c.b16 %v7510, %v7486
    %v9575 = vpack.c.b16 %v7511, %v7487
    %v9576 = vpack.c.b16 %v7512, %v7488
    %v9577 = vpack.c.b16 %v7513, %v7489
    %v9578 = vpack.c.b16 %v7514, %v7490
    %v9579 = vpack.c.b16 %v7515, %v7491
    %v9580 = vpack.c.b16 %v7516, %v7492
    %v9581 = vpack.c.b16 %v7517, %v7493
    %v9582 = vpack.c.b16 %v7518, %v7494
    %v9583 = vpack.c.b16 %v7519, %v7495
    %v9584 = vpack.c.b16 %v7544, %v7520
    %v9585 = vpack.c.b16 %v7545, %v7521
    %v9586 = vpack.c.b16 %v7546, %v7522
    %v9587 = vpack.c.b16 %v7547, %v7523
    %v9588 = vpack.c.b16 %v7548, %v7524
    %v9589 = vpack.c.b16 %v7549, %v7525
    %v9590 = vpack.c.b16 %v7550, %v7526
    %v9591 = vpack.c.b16 %v7551, %v7527
    %v9592 = vpack.c.b16 %v7552, %v7528
    %v9593 = vpack.c.b16 %v7553, %v7529
    %v9594 = vpack.c.b16 %v7554, %v7530
    %v9595 = vpack.c.b16 %v7555, %v7531
    %v9596 = vpack.c.b16 %v7556, %v7532
    %v9597 = vpack.c.b16 %v7557, %v7533
    %v9598 = vpack.c.b16 %v7558, %v7534
    %v9599 = vpack.c.b16 %v7559, %v7535
    %v9600 = vpack.c.b16 %v7560, %v7536
    %v9601 = vpack.c.b16 %v7561, %v7537
    %v9602 = vpack.c.b16 %v7562, %v7538
    %v9603 = vpack.c.b16 %v7563, %v7539
    %v9604 = vpack.c.b16 %v7564, %v7540
    %v9605 = vpack.c.b16 %v7565, %v7541
    %v9606 = vpack.c.b16 %v7566, %v7542
    %v9607 = vpack.c.b16 %v7567, %v7543
    %v9608 = vpack.c.b16 %v7592, %v7568
    %v9609 = vpack.c.b16 %v7593, %v7569
    %v9610 = vpack.c.b16 %v7594, %v7570
    %v9611 = vpack.c.b16 %v7595, %v7571
    %v9612 = vpack.c.b16 %v7596, %v7572
    %v9613 = vpack.c.b16 %v7597, %v7573
    %v9614 = vpack.c.b16 %v7598, %v7574
    %v9615 = vpack.c.b16 %v7599, %v7575
    %v9616 = vpack.c.b16 %v7600, %v7576
    %v9617 = vpack.c.b16 %v7601, %v7577
    %v9618 = vpack.c.b16 %v7602, %v7578
    %v9619 = vpack.c.b16 %v7603, %v7579
    %v9620 = vpack.c.b16 %v7604, %v7580
    %v9621 = vpack.c.b16 %v7605, %v7581
    %v9622 = vpack.c.b16 %v7606, %v7582
    %v9623 = vpack.c.b16 %v7607, %v7583
    %v9624 = vpack.c.b16 %v7608, %v7584
    %v9625 = vpack.c.b16 %v7609, %v7585
    %v9626 = vpack.c.b16 %v7610, %v7586
    %v9627 = vpack.c.b16 %v7611, %v7587
    %v9628 = vpack.c.b16 %v7612, %v7588
    %v9629 = vpack.c.b16 %v7613, %v7589
    %v9630 = vpack.c.b16 %v7614, %v7590
    %v9631 = vpack.c.b16 %v7615, %v7591
    %v9632 = vpack.c.b16 %v7640, %v7616
    %v9633 = vpack.c.b16 %v7641, %v7617
    %v9634 = vpack.c.b16 %v7642, %v7618
    %v9635 = vpack.c.b16 %v7643, %v7619
    %v9636 = vpack.c.b16 %v7644, %v7620
    %v9637 = vpack.c.b16 %v7645, %v7621
    %v9638 = vpack.c.b16 %v7646, %v7622
    %v9639 = vpack.c.b16 %v7647, %v7623
    %v9640 = vpack.c.b16 %v7648, %v7624
    %v9641 = vpack.c.b16 %v7649, %v7625
    %v9642 = vpack.c.b16 %v7650, %v7626
    %v9643 = vpack.c.b16 %v7651, %v7627
    %v9644 = vpack.c.b16 %v7652, %v7628
    %v9645 = vpack.c.b16 %v7653, %v7629
    %v9646 = vpack.c.b16 %v7654, %v7630
    %v9647 = vpack.c.b16 %v7655, %v7631
    %v9648 = vpack.c.b16 %v7656, %v7632
    %v9649 = vpack.c.b16 %v7657, %v7633
    %v9650 = vpack.c.b16 %v7658, %v7634
    %v9651 = vpack.c.b16 %v7659, %v7635
    %v9652 = vpack.c.b16 %v7660, %v7636
    %v9653 = vpack.c.b16 %v7661, %v7637
    %v9654 = vpack.c.b16 %v7662, %v7638
    %v9655 = vpack.c.b16 %v7663, %v7639
    %v9656 = vpack.c.b16 %v7688, %v7664
    %v9657 = vpack.c.b16 %v7689, %v7665
    %v9658 = vpack.c.b16 %v7690, %v7666
    %v9659 = vpack.c.b16 %v7691, %v7667
    %v9660 = vpack.c.b16 %v7692, %v7668
    %v9661 = vpack.c.b16 %v7693, %v7669
    %v9662 = vpack.c.b16 %v7694, %v7670
    %v9663 = vpack.c.b16 %v7695, %v7671
    %v9664 = vpack.c.b16 %v7696, %v7672
    %v9665 = vpack.c.b16 %v7697, %v7673
    %v9666 = vpack.c.b16 %v7698, %v7674
    %v9667 = vpack.c.b16 %v7699, %v7675
    %v9668 = vpack.c.b16 %v7700, %v7676
    %v9669 = vpack.c.b16 %v7701, %v7677
    %v9670 = vpack.c.b16 %v7702, %v7678
    %v9671 = vpack.c.b16 %v7703, %v7679
    %v9672 = vpack.c.b16 %v7704, %v7680
    %v9673 = vpack.c.b16 %v7705, %v7681
    %v9674 = vpack.c.b16 %v7706, %v7682
    %v9675 = vpack.c.b16 %v7707, %v7683
    %v9676 = vpack.c.b16 %v7708, %v7684
    %v9677 = vpack.c.b16 %v7709, %v7685
    %v9678 = vpack.c.b16 %v7710, %v7686
    %v9679 = vpack.c.b16 %v7711, %v7687
    %v9680 = vpack.c.b16 %v7736, %v7712
    %v9681 = vpack.c.b16 %v7737, %v7713
    %v9682 = vpack.c.b16 %v7738, %v7714
    %v9683 = vpack.c.b16 %v7739, %v7715
    %v9684 = vpack.c.b16 %v7740, %v7716
    %v9685 = vpack.c.b16 %v7741, %v7717
    %v9686 = vpack.c.b16 %v7742, %v7718
    %v9687 = vpack.c.b16 %v7743, %v7719
    %v9688 = vpack.c.b16 %v7744, %v7720
    %v9689 = vpack.c.b16 %v7745, %v7721
    %v9690 = vpack.c.b16 %v7746, %v7722
    %v9691 = vpack.c.b16 %v7747, %v7723
    %v9692 = vpack.c.b16 %v7748, %v7724
    %v9693 = vpack.c.b16 %v7749, %v7725
    %v9694 = vpack.c.b16 %v7750, %v7726
    %v9695 = vpack.c.b16 %v7751, %v7727
    %v9696 = vpack.c.b16 %v7752, %v7728
    %v9697 = vpack.c.b16 %v7753, %v7729
    %v9698 = vpack.c.b16 %v7754, %v7730
    %v9699 = vpack.c.b16 %v7755, %v7731
    %v9700 = vpack.c.b16 %v7756, %v7732
    %v9701 = vpack.c.b16 %v7757, %v7733
    %v9702 = vpack.c.b16 %v7758, %v7734
    %v9703 = vpack.c.b16 %v7759, %v7735
    %v9704 = vpack.c.b16 %v7784, %v7760
    %v9705 = vpack.c.b16 %v7785, %v7761
    %v9706 = vpack.c.b16 %v7786, %v7762
    %v9707 = vpack.c.b16 %v7787, %v7763
    %v9708 = vpack.c.b16 %v7788, %v7764
    %v9709 = vpack.c.b16 %v7789, %v7765
    %v9710 = vpack.c.b16 %v7790, %v7766
    %v9711 = vpack.c.b16 %v7791, %v7767
    %v9712 = vpack.c.b16 %v7792, %v7768
    %v9713 = vpack.c.b16 %v7793, %v7769
    %v9714 = vpack.c.b16 %v7794, %v7770
    %v9715 = vpack.c.b16 %v7795, %v7771
    %v9716 = vpack.c.b16 %v7796, %v7772
    %v9717 = vpack.c.b16 %v7797, %v7773
    %v9718 = vpack.c.b16 %v7798, %v7774
    %v9719 = vpack.c.b16 %v7799, %v7775
    %v9720 = vpack.c.b16 %v7800, %v7776
    %v9721 = vpack.c.b16 %v7801, %v7777
    %v9722 = vpack.c.b16 %v7802, %v7778
    %v9723 = vpack.c.b16 %v7803, %v7779
    %v9724 = vpack.c.b16 %v7804, %v7780
    %v9725 = vpack.c.b16 %v7805, %v7781
    %v9726 = vpack.c.b16 %v7806, %v7782
    %v9727 = vpack.c.b16 %v7807, %v7783
    %v9728 = vpack.c.b16 %v7832, %v7808
    %v9729 = vpack.c.b16 %v7833, %v7809
    %v9730 = vpack.c.b16 %v7834, %v7810
    %v9731 = vpack.c.b16 %v7835, %v7811
    %v9732 = vpack.c.b16 %v7836, %v7812
    %v9733 = vpack.c.b16 %v7837, %v7813
    %v9734 = vpack.c.b16 %v7838, %v7814
    %v9735 = vpack.c.b16 %v7839, %v7815
    %v9736 = vpack.c.b16 %v7840, %v7816
    %v9737 = vpack.c.b16 %v7841, %v7817
    %v9738 = vpack.c.b16 %v7842, %v7818
    %v9739 = vpack.c.b16 %v7843, %v7819
    %v9740 = vpack.c.b16 %v7844, %v7820
    %v9741 = vpack.c.b16 %v7845, %v7821
    %v9742 = vpack.c.b16 %v7846, %v7822
    %v9743 = vpack.c.b16 %v7847, %v7823
    %v9744 = vpack.c.b16 %v7848, %v7824
    %v9745 = vpack.c.b16 %v7849, %v7825
    %v9746 = vpack.c.b16 %v7850, %v7826
    %v9747 = vpack.c.b16 %v7851, %v7827
    %v9748 = vpack.c.b16 %v7852, %v7828
    %v9749 = vpack.c.b16 %v7853, %v7829
    %v9750 = vpack.c.b16 %v7854, %v7830
    %v9751 = vpack.c.b16 %v7855, %v7831
    %v9752 = vpack.c.b16 %v7880, %v7856
    %v9753 = vpack.c.b16 %v7881, %v7857
    %v9754 = vpack.c.b16 %v7882, %v7858
    %v9755 = vpack.c.b16 %v7883, %v7859
    %v9756 = vpack.c.b16 %v7884, %v7860
    %v9757 = vpack.c.b16 %v7885, %v7861
    %v9758 = vpack.c.b16 %v7886, %v7862
    %v9759 = vpack.c.b16 %v7887, %v7863
    %v9760 = vpack.c.b16 %v7888, %v7864
    %v9761 = vpack.c.b16 %v7889, %v7865
    %v9762 = vpack.c.b16 %v7890, %v7866
    %v9763 = vpack.c.b16 %v7891, %v7867
    %v9764 = vpack.c.b16 %v7892, %v7868
    %v9765 = vpack.c.b16 %v7893, %v7869
    %v9766 = vpack.c.b16 %v7894, %v7870
    %v9767 = vpack.c.b16 %v7895, %v7871
    %v9768 = vpack.c.b16 %v7896, %v7872
    %v9769 = vpack.c.b16 %v7897, %v7873
    %v9770 = vpack.c.b16 %v7898, %v7874
    %v9771 = vpack.c.b16 %v7899, %v7875
    %v9772 = vpack.c.b16 %v7900, %v7876
    %v9773 = vpack.c.b16 %v7901, %v7877
    %v9774 = vpack.c.b16 %v7902, %v7878
    %v9775 = vpack.c.b16 %v7903, %v7879
    %v9776 = vpack.c.b16 %v7928, %v7904
    %v9777 = vpack.c.b16 %v7929, %v7905
    %v9778 = vpack.c.b16 %v7930, %v7906
    %v9779 = vpack.c.b16 %v7931, %v7907
    %v9780 = vpack.c.b16 %v7932, %v7908
    %v9781 = vpack.c.b16 %v7933, %v7909
    %v9782 = vpack.c.b16 %v7934, %v7910
    %v9783 = vpack.c.b16 %v7935, %v7911
    %v9784 = vpack.c.b16 %v7936, %v7912
    %v9785 = vpack.c.b16 %v7937, %v7913
    %v9786 = vpack.c.b16 %v7938, %v7914
    %v9787 = vpack.c.b16 %v7939, %v7915
    %v9788 = vpack.c.b16 %v7940, %v7916
    %v9789 = vpack.c.b16 %v7941, %v7917
    %v9790 = vpack.c.b16 %v7942, %v7918
    %v9791 = vpack.c.b16 %v7943, %v7919
    %v9792 = vpack.c.b16 %v7944, %v7920
    %v9793 = vpack.c.b16 %v7945, %v7921
    %v9794 = vpack.c.b16 %v7946, %v7922
    %v9795 = vpack.c.b16 %v7947, %v7923
    %v9796 = vpack.c.b16 %v7948, %v7924
    %v9797 = vpack.c.b16 %v7949, %v7925
    %v9798 = vpack.c.b16 %v7950, %v7926
    %v9799 = vpack.c.b16 %v7951, %v7927
    %v9800 = vpack.c.b16 %v7976, %v7952
    %v9801 = vpack.c.b16 %v7977, %v7953
    %v9802 = vpack.c.b16 %v7978, %v7954
    %v9803 = vpack.c.b16 %v7979, %v7955
    %v9804 = vpack.c.b16 %v7980, %v7956
    %v9805 = vpack.c.b16 %v7981, %v7957
    %v9806 = vpack.c.b16 %v7982, %v7958
    %v9807 = vpack.c.b16 %v7983, %v7959
    %v9808 = vpack.c.b16 %v7984, %v7960
    %v9809 = vpack.c.b16 %v7985, %v7961
    %v9810 = vpack.c.b16 %v7986, %v7962
    %v9811 = vpack.c.b16 %v7987, %v7963
    %v9812 = vpack.c.b16 %v7988, %v7964
    %v9813 = vpack.c.b16 %v7989, %v7965
    %v9814 = vpack.c.b16 %v7990, %v7966
    %v9815 = vpack.c.b16 %v7991, %v7967
    %v9816 = vpack.c.b16 %v7992, %v7968
    %v9817 = vpack.c.b16 %v7993, %v7969
    %v9818 = vpack.c.b16 %v7994, %v7970
    %v9819 = vpack.c.b16 %v7995, %v7971
    %v9820 = vpack.c.b16 %v7996, %v7972
    %v9821 = vpack.c.b16 %v7997, %v7973
    %v9822 = vpack.c.b16 %v7998, %v7974
    %v9823 = vpack.c.b16 %v7999, %v7975
    %v9824 = vpack.c.b16 %v8024, %v8000
    %v9825 = vpack.c.b16 %v8025, %v8001
    %v9826 = vpack.c.b16 %v8026, %v8002
    %v9827 = vpack.c.b16 %v8027, %v8003
    %v9828 = vpack.c.b16 %v8028, %v8004
    %v9829 = vpack.c.b16 %v8029, %v8005
    %v9830 = vpack.c.b16 %v8030, %v8006
    %v9831 = vpack.c.b16 %v8031, %v8007
    %v9832 = vpack.c.b16 %v8032, %v8008
    %v9833 = vpack.c.b16 %v8033, %v8009
    %v9834 = vpack.c.b16 %v8034, %v8010
    %v9835 = vpack.c.b16 %v8035, %v8011
    %v9836 = vpack.c.b16 %v8036, %v8012
    %v9837 = vpack.c.b16 %v8037, %v8013
    %v9838 = vpack.c.b16 %v8038, %v8014
    %v9839 = vpack.c.b16 %v8039, %v8015
    %v9840 = vpack.c.b16 %v8040, %v8016
    %v9841 = vpack.c.b16 %v8041, %v8017
    %v9842 = vpack.c.b16 %v8042, %v8018
    %v9843 = vpack.c.b16 %v8043, %v8019
    %v9844 = vpack.c.b16 %v8044, %v8020
    %v9845 = vpack.c.b16 %v8045, %v8021
    %v9846 = vpack.c.b16 %v8046, %v8022
    %v9847 = vpack.c.b16 %v8047, %v8023
    %v9848 = vpack.c.b16 %v8072, %v8048
    %v9849 = vpack.c.b16 %v8073, %v8049
    %v9850 = vpack.c.b16 %v8074, %v8050
    %v9851 = vpack.c.b16 %v8075, %v8051
    %v9852 = vpack.c.b16 %v8076, %v8052
    %v9853 = vpack.c.b16 %v8077, %v8053
    %v9854 = vpack.c.b16 %v8078, %v8054
    %v9855 = vpack.c.b16 %v8079, %v8055
    %v9856 = vpack.c.b16 %v8080, %v8056
    %v9857 = vpack.c.b16 %v8081, %v8057
    %v9858 = vpack.c.b16 %v8082, %v8058
    %v9859 = vpack.c.b16 %v8083, %v8059
    %v9860 = vpack.c.b16 %v8084, %v8060
    %v9861 = vpack.c.b16 %v8085, %v8061
    %v9862 = vpack.c.b16 %v8086, %v8062
    %v9863 = vpack.c.b16 %v8087, %v8063
    %v9864 = vpack.c.b16 %v8088, %v8064
    %v9865 = vpack.c.b16 %v8089, %v8065
    %v9866 = vpack.c.b16 %v8090, %v8066
    %v9867 = vpack.c.b16 %v8091, %v8067
    %v9868 = vpack.c.b16 %v8092, %v8068
    %v9869 = vpack.c.b16 %v8093, %v8069
    %v9870 = vpack.c.b16 %v8094, %v8070
    %v9871 = vpack.c.b16 %v8095, %v8071
    %v9872 = vpack.c.b16 %v8120, %v8096
    %v9873 = vpack.c.b16 %v8121, %v8097
    %v9874 = vpack.c.b16 %v8122, %v8098
    %v9875 = vpack.c.b16 %v8123, %v8099
    %v9876 = vpack.c.b16 %v8124, %v8100
    %v9877 = vpack.c.b16 %v8125, %v8101
    %v9878 = vpack.c.b16 %v8126, %v8102
    %v9879 = vpack.c.b16 %v8127, %v8103
    %v9880 = vpack.c.b16 %v8128, %v8104
    %v9881 = vpack.c.b16 %v8129, %v8105
    %v9882 = vpack.c.b16 %v8130, %v8106
    %v9883 = vpack.c.b16 %v8131, %v8107
    %v9884 = vpack.c.b16 %v8132, %v8108
    %v9885 = vpack.c.b16 %v8133, %v8109
    %v9886 = vpack.c.b16 %v8134, %v8110
    %v9887 = vpack.c.b16 %v8135, %v8111
    %v9888 = vpack.c.b16 %v8136, %v8112
    %v9889 = vpack.c.b16 %v8137, %v8113
    %v9890 = vpack.c.b16 %v8138, %v8114
    %v9891 = vpack.c.b16 %v8139, %v8115
    %v9892 = vpack.c.b16 %v8140, %v8116
    %v9893 = vpack.c.b16 %v8141, %v8117
    %v9894 = vpack.c.b16 %v8142, %v8118
    %v9895 = vpack.c.b16 %v8143, %v8119
    %v9896 = vpack.c.b16 %v8168, %v8144
    %v9897 = vpack.c.b16 %v8169, %v8145
    %v9898 = vpack.c.b16 %v8170, %v8146
    %v9899 = vpack.c.b16 %v8171, %v8147
    %v9900 = vpack.c.b16 %v8172, %v8148
    %v9901 = vpack.c.b16 %v8173, %v8149
    %v9902 = vpack.c.b16 %v8174, %v8150
    %v9903 = vpack.c.b16 %v8175, %v8151
    %v9904 = vpack.c.b16 %v8176, %v8152
    %v9905 = vpack.c.b16 %v8177, %v8153
    %v9906 = vpack.c.b16 %v8178, %v8154
    %v9907 = vpack.c.b16 %v8179, %v8155
    %v9908 = vpack.c.b16 %v8180, %v8156
    %v9909 = vpack.c.b16 %v8181, %v8157
    %v9910 = vpack.c.b16 %v8182, %v8158
    %v9911 = vpack.c.b16 %v8183, %v8159
    %v9912 = vpack.c.b16 %v8184, %v8160
    %v9913 = vpack.c.b16 %v8185, %v8161
    %v9914 = vpack.c.b16 %v8186, %v8162
    %v9915 = vpack.c.b16 %v8187, %v8163
    %v9916 = vpack.c.b16 %v8188, %v8164
    %v9917 = vpack.c.b16 %v8189, %v8165
    %v9918 = vpack.c.b16 %v8190, %v8166
    %v9919 = vpack.c.b16 %v8191, %v8167
    %v9920 = vpack.c.b16 %v8216, %v8192
    %v9921 = vpack.c.b16 %v8217, %v8193
    %v9922 = vpack.c.b16 %v8218, %v8194
    %v9923 = vpack.c.b16 %v8219, %v8195
    %v9924 = vpack.c.b16 %v8220, %v8196
    %v9925 = vpack.c.b16 %v8221, %v8197
    %v9926 = vpack.c.b16 %v8222, %v8198
    %v9927 = vpack.c.b16 %v8223, %v8199
    %v9928 = vpack.c.b16 %v8224, %v8200
    %v9929 = vpack.c.b16 %v8225, %v8201
    %v9930 = vpack.c.b16 %v8226, %v8202
    %v9931 = vpack.c.b16 %v8227, %v8203
    %v9932 = vpack.c.b16 %v8228, %v8204
    %v9933 = vpack.c.b16 %v8229, %v8205
    %v9934 = vpack.c.b16 %v8230, %v8206
    %v9935 = vpack.c.b16 %v8231, %v8207
    %v9936 = vpack.c.b16 %v8232, %v8208
    %v9937 = vpack.c.b16 %v8233, %v8209
    %v9938 = vpack.c.b16 %v8234, %v8210
    %v9939 = vpack.c.b16 %v8235, %v8211
    %v9940 = vpack.c.b16 %v8236, %v8212
    %v9941 = vpack.c.b16 %v8237, %v8213
    %v9942 = vpack.c.b16 %v8238, %v8214
    %v9943 = vpack.c.b16 %v8239, %v8215
    %v9944 = vpack.c.b16 %v8264, %v8240
    %v9945 = vpack.c.b16 %v8265, %v8241
    %v9946 = vpack.c.b16 %v8266, %v8242
    %v9947 = vpack.c.b16 %v8267, %v8243
    %v9948 = vpack.c.b16 %v8268, %v8244
    %v9949 = vpack.c.b16 %v8269, %v8245
    %v9950 = vpack.c.b16 %v8270, %v8246
    %v9951 = vpack.c.b16 %v8271, %v8247
    %v9952 = vpack.c.b16 %v8272, %v8248
    %v9953 = vpack.c.b16 %v8273, %v8249
    %v9954 = vpack.c.b16 %v8274, %v8250
    %v9955 = vpack.c.b16 %v8275, %v8251
    %v9956 = vpack.c.b16 %v8276, %v8252
    %v9957 = vpack.c.b16 %v8277, %v8253
    %v9958 = vpack.c.b16 %v8278, %v8254
    %v9959 = vpack.c.b16 %v8279, %v8255
    %v9960 = vpack.c.b16 %v8280, %v8256
    %v9961 = vpack.c.b16 %v8281, %v8257
    %v9962 = vpack.c.b16 %v8282, %v8258
    %v9963 = vpack.c.b16 %v8283, %v8259
    %v9964 = vpack.c.b16 %v8284, %v8260
    %v9965 = vpack.c.b16 %v8285, %v8261
    %v9966 = vpack.c.b16 %v8286, %v8262
    %v9967 = vpack.c.b16 %v8287, %v8263
    %v9968 = vpack.c.b16 %v8312, %v8288
    %v9969 = vpack.c.b16 %v8313, %v8289
    %v9970 = vpack.c.b16 %v8314, %v8290
    %v9971 = vpack.c.b16 %v8315, %v8291
    %v9972 = vpack.c.b16 %v8316, %v8292
    %v9973 = vpack.c.b16 %v8317, %v8293
    %v9974 = vpack.c.b16 %v8318, %v8294
    %v9975 = vpack.c.b16 %v8319, %v8295
    %v9976 = vpack.c.b16 %v8320, %v8296
    %v9977 = vpack.c.b16 %v8321, %v8297
    %v9978 = vpack.c.b16 %v8322, %v8298
    %v9979 = vpack.c.b16 %v8323, %v8299
    %v9980 = vpack.c.b16 %v8324, %v8300
    %v9981 = vpack.c.b16 %v8325, %v8301
    %v9982 = vpack.c.b16 %v8326, %v8302
    %v9983 = vpack.c.b16 %v8327, %v8303
    %v9984 = vpack.c.b16 %v8328, %v8304
    %v9985 = vpack.c.b16 %v8329, %v8305
    %v9986 = vpack.c.b16 %v8330, %v8306
    %v9987 = vpack.c.b16 %v8331, %v8307
    %v9988 = vpack.c.b16 %v8332, %v8308
    %v9989 = vpack.c.b16 %v8333, %v8309
    %v9990 = vpack.c.b16 %v8334, %v8310
    %v9991 = vpack.c.b16 %v8335, %v8311
    %v9992 = vpack.c.b16 %v8360, %v8336
    %v9993 = vpack.c.b16 %v8361, %v8337
    %v9994 = vpack.c.b16 %v8362, %v8338
    %v9995 = vpack.c.b16 %v8363, %v8339
    %v9996 = vpack.c.b16 %v8364, %v8340
    %v9997 = vpack.c.b16 %v8365, %v8341
    %v9998 = vpack.c.b16 %v8366, %v8342
    %v9999 = vpack.c.b16 %v8367, %v8343
    %v10000 = vpack.c.b16 %v8368, %v8344
    %v10001 = vpack.c.b16 %v8369, %v8345
    %v10002 = vpack.c.b16 %v8370, %v8346
    %v10003 = vpack.c.b16 %v8371, %v8347
    %v10004 = vpack.c.b16 %v8372, %v8348
    %v10005 = vpack.c.b16 %v8373, %v8349
    %v10006 = vpack.c.b16 %v8374, %v8350
    %v10007 = vpack.c.b16 %v8375, %v8351
    %v10008 = vpack.c.b16 %v8376, %v8352
    %v10009 = vpack.c.b16 %v8377, %v8353
    %v10010 = vpack.c.b16 %v8378, %v8354
    %v10011 = vpack.c.b16 %v8379, %v8355
    %v10012 = vpack.c.b16 %v8380, %v8356
    %v10013 = vpack.c.b16 %v8381, %v8357
    %v10014 = vpack.c.b16 %v8382, %v8358
    %v10015 = vpack.c.b16 %v8383, %v8359
    %v10016 = vpack.c.b16 %v8408, %v8384
    %v10017 = vpack.c.b16 %v8409, %v8385
    %v10018 = vpack.c.b16 %v8410, %v8386
    %v10019 = vpack.c.b16 %v8411, %v8387
    %v10020 = vpack.c.b16 %v8412, %v8388
    %v10021 = vpack.c.b16 %v8413, %v8389
    %v10022 = vpack.c.b16 %v8414, %v8390
    %v10023 = vpack.c.b16 %v8415, %v8391
    %v10024 = vpack.c.b16 %v8416, %v8392
    %v10025 = vpack.c.b16 %v8417, %v8393
    %v10026 = vpack.c.b16 %v8418, %v8394
    %v10027 = vpack.c.b16 %v8419, %v8395
    %v10028 = vpack.c.b16 %v8420, %v8396
    %v10029 = vpack.c.b16 %v8421, %v8397
    %v10030 = vpack.c.b16 %v8422, %v8398
    %v10031 = vpack.c.b16 %v8423, %v8399
    %v10032 = vpack.c.b16 %v8424, %v8400
    %v10033 = vpack.c.b16 %v8425, %v8401
    %v10034 = vpack.c.b16 %v8426, %v8402
    %v10035 = vpack.c.b16 %v8427, %v8403
    %v10036 = vpack.c.b16 %v8428, %v8404
    %v10037 = vpack.c.b16 %v8429, %v8405
    %v10038 = vpack.c.b16 %v8430, %v8406
    %v10039 = vpack.c.b16 %v8431, %v8407
    %v10040 = vpack.c.b16 %v8456, %v8432
    %v10041 = vpack.c.b16 %v8457, %v8433
    %v10042 = vpack.c.b16 %v8458, %v8434
    %v10043 = vpack.c.b16 %v8459, %v8435
    %v10044 = vpack.c.b16 %v8460, %v8436
    %v10045 = vpack.c.b16 %v8461, %v8437
    %v10046 = vpack.c.b16 %v8462, %v8438
    %v10047 = vpack.c.b16 %v8463, %v8439
    %v10048 = vpack.c.b16 %v8464, %v8440
    %v10049 = vpack.c.b16 %v8465, %v8441
    %v10050 = vpack.c.b16 %v8466, %v8442
    %v10051 = vpack.c.b16 %v8467, %v8443
    %v10052 = vpack.c.b16 %v8468, %v8444
    %v10053 = vpack.c.b16 %v8469, %v8445
    %v10054 = vpack.c.b16 %v8470, %v8446
    %v10055 = vpack.c.b16 %v8471, %v8447
    %v10056 = vpack.c.b16 %v8472, %v8448
    %v10057 = vpack.c.b16 %v8473, %v8449
    %v10058 = vpack.c.b16 %v8474, %v8450
    %v10059 = vpack.c.b16 %v8475, %v8451
    %v10060 = vpack.c.b16 %v8476, %v8452
    %v10061 = vpack.c.b16 %v8477, %v8453
    %v10062 = vpack.c.b16 %v8478, %v8454
    %v10063 = vpack.c.b16 %v8479, %v8455
    %v10064 = vpack.c.b16 %v8504, %v8480
    %v10065 = vpack.c.b16 %v8505, %v8481
    %v10066 = vpack.c.b16 %v8506, %v8482
    %v10067 = vpack.c.b16 %v8507, %v8483
    %v10068 = vpack.c.b16 %v8508, %v8484
    %v10069 = vpack.c.b16 %v8509, %v8485
    %v10070 = vpack.c.b16 %v8510, %v8486
    %v10071 = vpack.c.b16 %v8511, %v8487
    %v10072 = vpack.c.b16 %v8512, %v8488
    %v10073 = vpack.c.b16 %v8513, %v8489
    %v10074 = vpack.c.b16 %v8514, %v8490
    %v10075 = vpack.c.b16 %v8515, %v8491
    %v10076 = vpack.c.b16 %v8516, %v8492
    %v10077 = vpack.c.b16 %v8517, %v8493
    %v10078 = vpack.c.b16 %v8518, %v8494
    %v10079 = vpack.c.b16 %v8519, %v8495
    %v10080 = vpack.c.b16 %v8520, %v8496
    %v10081 = vpack.c.b16 %v8521, %v8497
    %v10082 = vpack.c.b16 %v8522, %v8498
    %v10083 = vpack.c.b16 %v8523, %v8499
    %v10084 = vpack.c.b16 %v8524, %v8500
    %v10085 = vpack.c.b16 %v8525, %v8501
    %v10086 = vpack.c.b16 %v8526, %v8502
    %v10087 = vpack.c.b16 %v8527, %v8503
    %v10088 = vpack.c.b16 %v8552, %v8528
    %v10089 = vpack.c.b16 %v8553, %v8529
    %v10090 = vpack.c.b16 %v8554, %v8530
    %v10091 = vpack.c.b16 %v8555, %v8531
    %v10092 = vpack.c.b16 %v8556, %v8532
    %v10093 = vpack.c.b16 %v8557, %v8533
    %v10094 = vpack.c.b16 %v8558, %v8534
    %v10095 = vpack.c.b16 %v8559, %v8535
    %v10096 = vpack.c.b16 %v8560, %v8536
    %v10097 = vpack.c.b16 %v8561, %v8537
    %v10098 = vpack.c.b16 %v8562, %v8538
    %v10099 = vpack.c.b16 %v8563, %v8539
    %v10100 = vpack.c.b16 %v8564, %v8540
    %v10101 = vpack.c.b16 %v8565, %v8541
    %v10102 = vpack.c.b16 %v8566, %v8542
    %v10103 = vpack.c.b16 %v8567, %v8543
    %v10104 = vpack.c.b16 %v8568, %v8544
    %v10105 = vpack.c.b16 %v8569, %v8545
    %v10106 = vpack.c.b16 %v8570, %v8546
    %v10107 = vpack.c.b16 %v8571, %v8547
    %v10108 = vpack.c.b16 %v8572, %v8548
    %v10109 = vpack.c.b16 %v8573, %v8549
    %v10110 = vpack.c.b16 %v8574, %v8550
    %v10111 = vpack.c.b16 %v8575, %v8551
    %11648 = vmatpush.bf16.msra.mxu0 %v8744
    %11649 = vmatpush.bf16.msra.mxu0 %v8720
    %11650 = vmatpush.bf16.msra.mxu0 %v8696
    %11651 = vmatpush.bf16.msra.mxu0 %v8672
    %11652 = vmatpush.bf16.msra.mxu0 %v8648
    %11653 = vmatpush.bf16.msra.mxu0 %v8624
    %11654 = vmatpush.bf16.msra.mxu0 %v8600
    %11655 = vmatpush.bf16.msra.mxu0 %v8576
    %11656 = vmatmul.bf16.gmra.mxu0 %v2370
    %v11657 = vpop.f32.mrf.mxu0
    %v11658 = vadd.f32 %v3920, %v11657
    %v11659 = vpop.f32.mrf.mxu0
    %11660 = vdwg.mxu0
    %11661 = vmatpush.bf16.msra.mxu0 %v8936
    %11662 = vmatpush.bf16.msra.mxu0 %v8912
    %11663 = vmatpush.bf16.msra.mxu0 %v8888
    %11664 = vmatpush.bf16.msra.mxu0 %v8864
    %11665 = vmatpush.bf16.msra.mxu0 %v8840
    %11666 = vmatpush.bf16.msra.mxu0 %v8816
    %11667 = vmatpush.bf16.msra.mxu0 %v8792
    %11668 = vmatpush.bf16.msra.mxu0 %v8768
    %11669 = vmatmul.bf16.gmra.mxu0 %v2371
    %v11670 = vpop.f32.mrf.mxu0
    %v11671 = vadd.f32 %v11658, %v11670
    %v11672 = vpop.f32.mrf.mxu0
    %11673 = vdwg.mxu0
    %11674 = vmatpush.bf16.msra.mxu0 %v9128
    %11675 = vmatpush.bf16.msra.mxu0 %v9104
    %11676 = vmatpush.bf16.msra.mxu0 %v9080
    %11677 = vmatpush.bf16.msra.mxu0 %v9056
    %11678 = vmatpush.bf16.msra.mxu0 %v9032
    %11679 = vmatpush.bf16.msra.mxu0 %v9008
    %11680 = vmatpush.bf16.msra.mxu0 %v8984
    %11681 = vmatpush.bf16.msra.mxu0 %v8960
    %11682 = vmatmul.bf16.gmra.mxu0 %v2372
    %v11683 = vpop.f32.mrf.mxu0
    %v11684 = vadd.f32 %v11671, %v11683
    %v11685 = vpop.f32.mrf.mxu0
    %11686 = vdwg.mxu0
    %11687 = vmatpush.bf16.msra.mxu0 %v9320
    %11688 = vmatpush.bf16.msra.mxu0 %v9296
    %11689 = vmatpush.bf16.msra.mxu0 %v9272
    %11690 = vmatpush.bf16.msra.mxu0 %v9248
    %11691 = vmatpush.bf16.msra.mxu0 %v9224
    %11692 = vmatpush.bf16.msra.mxu0 %v9200
    %11693 = vmatpush.bf16.msra.mxu0 %v9176
    %11694 = vmatpush.bf16.msra.mxu0 %v9152
    %11695 = vmatmul.bf16.gmra.mxu0 %v2373
    %v11696 = vpop.f32.mrf.mxu0
    %v11697 = vadd.f32 %v11684, %v11696
    %v11698 = vpop.f32.mrf.mxu0
    %11699 = vdwg.mxu0
    %11700 = vmatpush.bf16.msra.mxu0 %v9512
    %11701 = vmatpush.bf16.msra.mxu0 %v9488
    %11702 = vmatpush.bf16.msra.mxu0 %v9464
    %11703 = vmatpush.bf16.msra.mxu0 %v9440
    %11704 = vmatpush.bf16.msra.mxu0 %v9416
    %11705 = vmatpush.bf16.msra.mxu0 %v9392
    %11706 = vmatpush.bf16.msra.mxu0 %v9368
    %11707 = vmatpush.bf16.msra.mxu0 %v9344
    %11708 = vmatmul.bf16.gmra.mxu0 %v2374
    %v11709 = vpop.f32.mrf.mxu0
    %v11710 = vadd.f32 %v11697, %v11709
    %v11711 = vpop.f32.mrf.mxu0
    %11712 = vdwg.mxu0
    %11713 = vmatpush.bf16.msra.mxu0 %v9704
    %11714 = vmatpush.bf16.msra.mxu0 %v9680
    %11715 = vmatpush.bf16.msra.mxu0 %v9656
    %11716 = vmatpush.bf16.msra.mxu0 %v9632
    %11717 = vmatpush.bf16.msra.mxu0 %v9608
    %11718 = vmatpush.bf16.msra.mxu0 %v9584
    %11719 = vmatpush.bf16.msra.mxu0 %v9560
    %11720 = vmatpush.bf16.msra.mxu0 %v9536
    %11721 = vmatmul.bf16.gmra.mxu0 %v2375
    %v11722 = vpop.f32.mrf.mxu0
    %v11723 = vadd.f32 %v11710, %v11722
    %v11724 = vpop.f32.mrf.mxu0
    %11725 = vdwg.mxu0
    %11726 = vmatpush.bf16.msra.mxu0 %v9896
    %11727 = vmatpush.bf16.msra.mxu0 %v9872
    %11728 = vmatpush.bf16.msra.mxu0 %v9848
    %11729 = vmatpush.bf16.msra.mxu0 %v9824
    %11730 = vmatpush.bf16.msra.mxu0 %v9800
    %11731 = vmatpush.bf16.msra.mxu0 %v9776
    %11732 = vmatpush.bf16.msra.mxu0 %v9752
    %11733 = vmatpush.bf16.msra.mxu0 %v9728
    %11734 = vmatmul.bf16.gmra.mxu0 %v2376
    %v11735 = vpop.f32.mrf.mxu0
    %v11736 = vadd.f32 %v11723, %v11735
    %v11737 = vpop.f32.mrf.mxu0
    %11738 = vdwg.mxu0
    %11739 = vmatpush.bf16.msra.mxu0 %v10088
    %11740 = vmatpush.bf16.msra.mxu0 %v10064
    %11741 = vmatpush.bf16.msra.mxu0 %v10040
    %11742 = vmatpush.bf16.msra.mxu0 %v10016
    %11743 = vmatpush.bf16.msra.mxu0 %v9992
    %11744 = vmatpush.bf16.msra.mxu0 %v9968
    %11745 = vmatpush.bf16.msra.mxu0 %v9944
    %11746 = vmatpush.bf16.msra.mxu0 %v9920
    %11747 = vmatmul.bf16.gmra.mxu0 %v2377
    %v11748 = vpop.f32.mrf.mxu0
    %v11749 = vadd.f32 %v11736, %v11748
    %v11750 = vpop.f32.mrf.mxu0
    %11751 = vdwg.mxu0
    %11752 = vmatpush.bf16.msra.mxu0 %v8745
    %11753 = vmatpush.bf16.msra.mxu0 %v8721
    %11754 = vmatpush.bf16.msra.mxu0 %v8697
    %11755 = vmatpush.bf16.msra.mxu0 %v8673
    %11756 = vmatpush.bf16.msra.mxu0 %v8649
    %11757 = vmatpush.bf16.msra.mxu0 %v8625
    %11758 = vmatpush.bf16.msra.mxu0 %v8601
    %11759 = vmatpush.bf16.msra.mxu0 %v8577
    %11760 = vmatmul.bf16.gmra.mxu0 %v2370
    %v11761 = vpop.f32.mrf.mxu0
    %v11762 = vadd.f32 %v3921, %v11761
    %v11763 = vpop.f32.mrf.mxu0
    %11764 = vdwg.mxu0
    %11765 = vmatpush.bf16.msra.mxu0 %v8937
    %11766 = vmatpush.bf16.msra.mxu0 %v8913
    %11767 = vmatpush.bf16.msra.mxu0 %v8889
    %11768 = vmatpush.bf16.msra.mxu0 %v8865
    %11769 = vmatpush.bf16.msra.mxu0 %v8841
    %11770 = vmatpush.bf16.msra.mxu0 %v8817
    %11771 = vmatpush.bf16.msra.mxu0 %v8793
    %11772 = vmatpush.bf16.msra.mxu0 %v8769
    %11773 = vmatmul.bf16.gmra.mxu0 %v2371
    %v11774 = vpop.f32.mrf.mxu0
    %v11775 = vadd.f32 %v11762, %v11774
    %v11776 = vpop.f32.mrf.mxu0
    %11777 = vdwg.mxu0
    %11778 = vmatpush.bf16.msra.mxu0 %v9129
    %11779 = vmatpush.bf16.msra.mxu0 %v9105
    %11780 = vmatpush.bf16.msra.mxu0 %v9081
    %11781 = vmatpush.bf16.msra.mxu0 %v9057
    %11782 = vmatpush.bf16.msra.mxu0 %v9033
    %11783 = vmatpush.bf16.msra.mxu0 %v9009
    %11784 = vmatpush.bf16.msra.mxu0 %v8985
    %11785 = vmatpush.bf16.msra.mxu0 %v8961
    %11786 = vmatmul.bf16.gmra.mxu0 %v2372
    %v11787 = vpop.f32.mrf.mxu0
    %v11788 = vadd.f32 %v11775, %v11787
    %v11789 = vpop.f32.mrf.mxu0
    %11790 = vdwg.mxu0
    %11791 = vmatpush.bf16.msra.mxu0 %v9321
    %11792 = vmatpush.bf16.msra.mxu0 %v9297
    %11793 = vmatpush.bf16.msra.mxu0 %v9273
    %11794 = vmatpush.bf16.msra.mxu0 %v9249
    %11795 = vmatpush.bf16.msra.mxu0 %v9225
    %11796 = vmatpush.bf16.msra.mxu0 %v9201
    %11797 = vmatpush.bf16.msra.mxu0 %v9177
    %11798 = vmatpush.bf16.msra.mxu0 %v9153
    %11799 = vmatmul.bf16.gmra.mxu0 %v2373
    %v11800 = vpop.f32.mrf.mxu0
    %v11801 = vadd.f32 %v11788, %v11800
    %v11802 = vpop.f32.mrf.mxu0
    %11803 = vdwg.mxu0
    %11804 = vmatpush.bf16.msra.mxu0 %v9513
    %11805 = vmatpush.bf16.msra.mxu0 %v9489
    %11806 = vmatpush.bf16.msra.mxu0 %v9465
    %11807 = vmatpush.bf16.msra.mxu0 %v9441
    %11808 = vmatpush.bf16.msra.mxu0 %v9417
    %11809 = vmatpush.bf16.msra.mxu0 %v9393
    %11810 = vmatpush.bf16.msra.mxu0 %v9369
    %11811 = vmatpush.bf16.msra.mxu0 %v9345
    %11812 = vmatmul.bf16.gmra.mxu0 %v2374
    %v11813 = vpop.f32.mrf.mxu0
    %v11814 = vadd.f32 %v11801, %v11813
    %v11815 = vpop.f32.mrf.mxu0
    %11816 = vdwg.mxu0
    %11817 = vmatpush.bf16.msra.mxu0 %v9705
    %11818 = vmatpush.bf16.msra.mxu0 %v9681
    %11819 = vmatpush.bf16.msra.mxu0 %v9657
    %11820 = vmatpush.bf16.msra.mxu0 %v9633
    %11821 = vmatpush.bf16.msra.mxu0 %v9609
    %11822 = vmatpush.bf16.msra.mxu0 %v9585
    %11823 = vmatpush.bf16.msra.mxu0 %v9561
    %11824 = vmatpush.bf16.msra.mxu0 %v9537
    %11825 = vmatmul.bf16.gmra.mxu0 %v2375
    %v11826 = vpop.f32.mrf.mxu0
    %v11827 = vadd.f32 %v11814, %v11826
    %v11828 = vpop.f32.mrf.mxu0
    %11829 = vdwg.mxu0
    %11830 = vmatpush.bf16.msra.mxu0 %v9897
    %11831 = vmatpush.bf16.msra.mxu0 %v9873
    %11832 = vmatpush.bf16.msra.mxu0 %v9849
    %11833 = vmatpush.bf16.msra.mxu0 %v9825
    %11834 = vmatpush.bf16.msra.mxu0 %v9801
    %11835 = vmatpush.bf16.msra.mxu0 %v9777
    %11836 = vmatpush.bf16.msra.mxu0 %v9753
    %11837 = vmatpush.bf16.msra.mxu0 %v9729
    %11838 = vmatmul.bf16.gmra.mxu0 %v2376
    %v11839 = vpop.f32.mrf.mxu0
    %v11840 = vadd.f32 %v11827, %v11839
    %v11841 = vpop.f32.mrf.mxu0
    %11842 = vdwg.mxu0
    %11843 = vmatpush.bf16.msra.mxu0 %v10089
    %11844 = vmatpush.bf16.msra.mxu0 %v10065
    %11845 = vmatpush.bf16.msra.mxu0 %v10041
    %11846 = vmatpush.bf16.msra.mxu0 %v10017
    %11847 = vmatpush.bf16.msra.mxu0 %v9993
    %11848 = vmatpush.bf16.msra.mxu0 %v9969
    %11849 = vmatpush.bf16.msra.mxu0 %v9945
    %11850 = vmatpush.bf16.msra.mxu0 %v9921
    %11851 = vmatmul.bf16.gmra.mxu0 %v2377
    %v11852 = vpop.f32.mrf.mxu0
    %v11853 = vadd.f32 %v11840, %v11852
    %v11854 = vpop.f32.mrf.mxu0
    %11855 = vdwg.mxu0
    %11856 = vmatpush.bf16.msra.mxu0 %v8746
    %11857 = vmatpush.bf16.msra.mxu0 %v8722
    %11858 = vmatpush.bf16.msra.mxu0 %v8698
    %11859 = vmatpush.bf16.msra.mxu0 %v8674
    %11860 = vmatpush.bf16.msra.mxu0 %v8650
    %11861 = vmatpush.bf16.msra.mxu0 %v8626
    %11862 = vmatpush.bf16.msra.mxu0 %v8602
    %11863 = vmatpush.bf16.msra.mxu0 %v8578
    %11864 = vmatmul.bf16.gmra.mxu0 %v2370
    %v11865 = vpop.f32.mrf.mxu0
    %v11866 = vadd.f32 %v3922, %v11865
    %v11867 = vpop.f32.mrf.mxu0
    %11868 = vdwg.mxu0
    %11869 = vmatpush.bf16.msra.mxu0 %v8938
    %11870 = vmatpush.bf16.msra.mxu0 %v8914
    %11871 = vmatpush.bf16.msra.mxu0 %v8890
    %11872 = vmatpush.bf16.msra.mxu0 %v8866
    %11873 = vmatpush.bf16.msra.mxu0 %v8842
    %11874 = vmatpush.bf16.msra.mxu0 %v8818
    %11875 = vmatpush.bf16.msra.mxu0 %v8794
    %11876 = vmatpush.bf16.msra.mxu0 %v8770
    %11877 = vmatmul.bf16.gmra.mxu0 %v2371
    %v11878 = vpop.f32.mrf.mxu0
    %v11879 = vadd.f32 %v11866, %v11878
    %v11880 = vpop.f32.mrf.mxu0
    %11881 = vdwg.mxu0
    %11882 = vmatpush.bf16.msra.mxu0 %v9130
    %11883 = vmatpush.bf16.msra.mxu0 %v9106
    %11884 = vmatpush.bf16.msra.mxu0 %v9082
    %11885 = vmatpush.bf16.msra.mxu0 %v9058
    %11886 = vmatpush.bf16.msra.mxu0 %v9034
    %11887 = vmatpush.bf16.msra.mxu0 %v9010
    %11888 = vmatpush.bf16.msra.mxu0 %v8986
    %11889 = vmatpush.bf16.msra.mxu0 %v8962
    %11890 = vmatmul.bf16.gmra.mxu0 %v2372
    %v11891 = vpop.f32.mrf.mxu0
    %v11892 = vadd.f32 %v11879, %v11891
    %v11893 = vpop.f32.mrf.mxu0
    %11894 = vdwg.mxu0
    %11895 = vmatpush.bf16.msra.mxu0 %v9322
    %11896 = vmatpush.bf16.msra.mxu0 %v9298
    %11897 = vmatpush.bf16.msra.mxu0 %v9274
    %11898 = vmatpush.bf16.msra.mxu0 %v9250
    %11899 = vmatpush.bf16.msra.mxu0 %v9226
    %11900 = vmatpush.bf16.msra.mxu0 %v9202
    %11901 = vmatpush.bf16.msra.mxu0 %v9178
    %11902 = vmatpush.bf16.msra.mxu0 %v9154
    %11903 = vmatmul.bf16.gmra.mxu0 %v2373
    %v11904 = vpop.f32.mrf.mxu0
    %v11905 = vadd.f32 %v11892, %v11904
    %v11906 = vpop.f32.mrf.mxu0
    %11907 = vdwg.mxu0
    %11908 = vmatpush.bf16.msra.mxu0 %v9514
    %11909 = vmatpush.bf16.msra.mxu0 %v9490
    %11910 = vmatpush.bf16.msra.mxu0 %v9466
    %11911 = vmatpush.bf16.msra.mxu0 %v9442
    %11912 = vmatpush.bf16.msra.mxu0 %v9418
    %11913 = vmatpush.bf16.msra.mxu0 %v9394
    %11914 = vmatpush.bf16.msra.mxu0 %v9370
    %11915 = vmatpush.bf16.msra.mxu0 %v9346
    %11916 = vmatmul.bf16.gmra.mxu0 %v2374
    %v11917 = vpop.f32.mrf.mxu0
    %v11918 = vadd.f32 %v11905, %v11917
    %v11919 = vpop.f32.mrf.mxu0
    %11920 = vdwg.mxu0
    %11921 = vmatpush.bf16.msra.mxu0 %v9706
    %11922 = vmatpush.bf16.msra.mxu0 %v9682
    %11923 = vmatpush.bf16.msra.mxu0 %v9658
    %11924 = vmatpush.bf16.msra.mxu0 %v9634
    %11925 = vmatpush.bf16.msra.mxu0 %v9610
    %11926 = vmatpush.bf16.msra.mxu0 %v9586
    %11927 = vmatpush.bf16.msra.mxu0 %v9562
    %11928 = vmatpush.bf16.msra.mxu0 %v9538
    %11929 = vmatmul.bf16.gmra.mxu0 %v2375
    %v11930 = vpop.f32.mrf.mxu0
    %v11931 = vadd.f32 %v11918, %v11930
    %v11932 = vpop.f32.mrf.mxu0
    %11933 = vdwg.mxu0
    %11934 = vmatpush.bf16.msra.mxu0 %v9898
    %11935 = vmatpush.bf16.msra.mxu0 %v9874
    %11936 = vmatpush.bf16.msra.mxu0 %v9850
    %11937 = vmatpush.bf16.msra.mxu0 %v9826
    %11938 = vmatpush.bf16.msra.mxu0 %v9802
    %11939 = vmatpush.bf16.msra.mxu0 %v9778
    %11940 = vmatpush.bf16.msra.mxu0 %v9754
    %11941 = vmatpush.bf16.msra.mxu0 %v9730
    %11942 = vmatmul.bf16.gmra.mxu0 %v2376
    %v11943 = vpop.f32.mrf.mxu0
    %v11944 = vadd.f32 %v11931, %v11943
    %v11945 = vpop.f32.mrf.mxu0
    %11946 = vdwg.mxu0
    %11947 = vmatpush.bf16.msra.mxu0 %v10090
    %11948 = vmatpush.bf16.msra.mxu0 %v10066
    %11949 = vmatpush.bf16.msra.mxu0 %v10042
    %11950 = vmatpush.bf16.msra.mxu0 %v10018
    %11951 = vmatpush.bf16.msra.mxu0 %v9994
    %11952 = vmatpush.bf16.msra.mxu0 %v9970
    %11953 = vmatpush.bf16.msra.mxu0 %v9946
    %11954 = vmatpush.bf16.msra.mxu0 %v9922
    %11955 = vmatmul.bf16.gmra.mxu0 %v2377
    %v11956 = vpop.f32.mrf.mxu0
    %v11957 = vadd.f32 %v11944, %v11956
    %v11958 = vpop.f32.mrf.mxu0
    %11959 = vdwg.mxu0
    %11960 = vmatpush.bf16.msra.mxu0 %v8747
    %11961 = vmatpush.bf16.msra.mxu0 %v8723
    %11962 = vmatpush.bf16.msra.mxu0 %v8699
    %11963 = vmatpush.bf16.msra.mxu0 %v8675
    %11964 = vmatpush.bf16.msra.mxu0 %v8651
    %11965 = vmatpush.bf16.msra.mxu0 %v8627
    %11966 = vmatpush.bf16.msra.mxu0 %v8603
    %11967 = vmatpush.bf16.msra.mxu0 %v8579
    %11968 = vmatmul.bf16.gmra.mxu0 %v2370
    %v11969 = vpop.f32.mrf.mxu0
    %v11970 = vadd.f32 %v3923, %v11969
    %v11971 = vpop.f32.mrf.mxu0
    %11972 = vdwg.mxu0
    %11973 = vmatpush.bf16.msra.mxu0 %v8939
    %11974 = vmatpush.bf16.msra.mxu0 %v8915
    %11975 = vmatpush.bf16.msra.mxu0 %v8891
    %11976 = vmatpush.bf16.msra.mxu0 %v8867
    %11977 = vmatpush.bf16.msra.mxu0 %v8843
    %11978 = vmatpush.bf16.msra.mxu0 %v8819
    %11979 = vmatpush.bf16.msra.mxu0 %v8795
    %11980 = vmatpush.bf16.msra.mxu0 %v8771
    %11981 = vmatmul.bf16.gmra.mxu0 %v2371
    %v11982 = vpop.f32.mrf.mxu0
    %v11983 = vadd.f32 %v11970, %v11982
    %v11984 = vpop.f32.mrf.mxu0
    %11985 = vdwg.mxu0
    %11986 = vmatpush.bf16.msra.mxu0 %v9131
    %11987 = vmatpush.bf16.msra.mxu0 %v9107
    %11988 = vmatpush.bf16.msra.mxu0 %v9083
    %11989 = vmatpush.bf16.msra.mxu0 %v9059
    %11990 = vmatpush.bf16.msra.mxu0 %v9035
    %11991 = vmatpush.bf16.msra.mxu0 %v9011
    %11992 = vmatpush.bf16.msra.mxu0 %v8987
    %11993 = vmatpush.bf16.msra.mxu0 %v8963
    %11994 = vmatmul.bf16.gmra.mxu0 %v2372
    %v11995 = vpop.f32.mrf.mxu0
    %v11996 = vadd.f32 %v11983, %v11995
    %v11997 = vpop.f32.mrf.mxu0
    %11998 = vdwg.mxu0
    %11999 = vmatpush.bf16.msra.mxu0 %v9323
    %12000 = vmatpush.bf16.msra.mxu0 %v9299
    %12001 = vmatpush.bf16.msra.mxu0 %v9275
    %12002 = vmatpush.bf16.msra.mxu0 %v9251
    %12003 = vmatpush.bf16.msra.mxu0 %v9227
    %12004 = vmatpush.bf16.msra.mxu0 %v9203
    %12005 = vmatpush.bf16.msra.mxu0 %v9179
    %12006 = vmatpush.bf16.msra.mxu0 %v9155
    %12007 = vmatmul.bf16.gmra.mxu0 %v2373
    %v12008 = vpop.f32.mrf.mxu0
    %v12009 = vadd.f32 %v11996, %v12008
    %v12010 = vpop.f32.mrf.mxu0
    %12011 = vdwg.mxu0
    %12012 = vmatpush.bf16.msra.mxu0 %v9515
    %12013 = vmatpush.bf16.msra.mxu0 %v9491
    %12014 = vmatpush.bf16.msra.mxu0 %v9467
    %12015 = vmatpush.bf16.msra.mxu0 %v9443
    %12016 = vmatpush.bf16.msra.mxu0 %v9419
    %12017 = vmatpush.bf16.msra.mxu0 %v9395
    %12018 = vmatpush.bf16.msra.mxu0 %v9371
    %12019 = vmatpush.bf16.msra.mxu0 %v9347
    %12020 = vmatmul.bf16.gmra.mxu0 %v2374
    %v12021 = vpop.f32.mrf.mxu0
    %v12022 = vadd.f32 %v12009, %v12021
    %v12023 = vpop.f32.mrf.mxu0
    %12024 = vdwg.mxu0
    %12025 = vmatpush.bf16.msra.mxu0 %v9707
    %12026 = vmatpush.bf16.msra.mxu0 %v9683
    %12027 = vmatpush.bf16.msra.mxu0 %v9659
    %12028 = vmatpush.bf16.msra.mxu0 %v9635
    %12029 = vmatpush.bf16.msra.mxu0 %v9611
    %12030 = vmatpush.bf16.msra.mxu0 %v9587
    %12031 = vmatpush.bf16.msra.mxu0 %v9563
    %12032 = vmatpush.bf16.msra.mxu0 %v9539
    %12033 = vmatmul.bf16.gmra.mxu0 %v2375
    %v12034 = vpop.f32.mrf.mxu0
    %v12035 = vadd.f32 %v12022, %v12034
    %v12036 = vpop.f32.mrf.mxu0
    %12037 = vdwg.mxu0
    %12038 = vmatpush.bf16.msra.mxu0 %v9899
    %12039 = vmatpush.bf16.msra.mxu0 %v9875
    %12040 = vmatpush.bf16.msra.mxu0 %v9851
    %12041 = vmatpush.bf16.msra.mxu0 %v9827
    %12042 = vmatpush.bf16.msra.mxu0 %v9803
    %12043 = vmatpush.bf16.msra.mxu0 %v9779
    %12044 = vmatpush.bf16.msra.mxu0 %v9755
    %12045 = vmatpush.bf16.msra.mxu0 %v9731
    %12046 = vmatmul.bf16.gmra.mxu0 %v2376
    %v12047 = vpop.f32.mrf.mxu0
    %v12048 = vadd.f32 %v12035, %v12047
    %v12049 = vpop.f32.mrf.mxu0
    %12050 = vdwg.mxu0
    %12051 = vmatpush.bf16.msra.mxu0 %v10091
    %12052 = vmatpush.bf16.msra.mxu0 %v10067
    %12053 = vmatpush.bf16.msra.mxu0 %v10043
    %12054 = vmatpush.bf16.msra.mxu0 %v10019
    %12055 = vmatpush.bf16.msra.mxu0 %v9995
    %12056 = vmatpush.bf16.msra.mxu0 %v9971
    %12057 = vmatpush.bf16.msra.mxu0 %v9947
    %12058 = vmatpush.bf16.msra.mxu0 %v9923
    %12059 = vmatmul.bf16.gmra.mxu0 %v2377
    %v12060 = vpop.f32.mrf.mxu0
    %v12061 = vadd.f32 %v12048, %v12060
    %v12062 = vpop.f32.mrf.mxu0
    %12063 = vdwg.mxu0
    %12064 = vmatpush.bf16.msra.mxu0 %v8748
    %12065 = vmatpush.bf16.msra.mxu0 %v8724
    %12066 = vmatpush.bf16.msra.mxu0 %v8700
    %12067 = vmatpush.bf16.msra.mxu0 %v8676
    %12068 = vmatpush.bf16.msra.mxu0 %v8652
    %12069 = vmatpush.bf16.msra.mxu0 %v8628
    %12070 = vmatpush.bf16.msra.mxu0 %v8604
    %12071 = vmatpush.bf16.msra.mxu0 %v8580
    %12072 = vmatmul.bf16.gmra.mxu0 %v2370
    %v12073 = vpop.f32.mrf.mxu0
    %v12074 = vadd.f32 %v3924, %v12073
    %v12075 = vpop.f32.mrf.mxu0
    %12076 = vdwg.mxu0
    %12077 = vmatpush.bf16.msra.mxu0 %v8940
    %12078 = vmatpush.bf16.msra.mxu0 %v8916
    %12079 = vmatpush.bf16.msra.mxu0 %v8892
    %12080 = vmatpush.bf16.msra.mxu0 %v8868
    %12081 = vmatpush.bf16.msra.mxu0 %v8844
    %12082 = vmatpush.bf16.msra.mxu0 %v8820
    %12083 = vmatpush.bf16.msra.mxu0 %v8796
    %12084 = vmatpush.bf16.msra.mxu0 %v8772
    %12085 = vmatmul.bf16.gmra.mxu0 %v2371
    %v12086 = vpop.f32.mrf.mxu0
    %v12087 = vadd.f32 %v12074, %v12086
    %v12088 = vpop.f32.mrf.mxu0
    %12089 = vdwg.mxu0
    %12090 = vmatpush.bf16.msra.mxu0 %v9132
    %12091 = vmatpush.bf16.msra.mxu0 %v9108
    %12092 = vmatpush.bf16.msra.mxu0 %v9084
    %12093 = vmatpush.bf16.msra.mxu0 %v9060
    %12094 = vmatpush.bf16.msra.mxu0 %v9036
    %12095 = vmatpush.bf16.msra.mxu0 %v9012
    %12096 = vmatpush.bf16.msra.mxu0 %v8988
    %12097 = vmatpush.bf16.msra.mxu0 %v8964
    %12098 = vmatmul.bf16.gmra.mxu0 %v2372
    %v12099 = vpop.f32.mrf.mxu0
    %v12100 = vadd.f32 %v12087, %v12099
    %v12101 = vpop.f32.mrf.mxu0
    %12102 = vdwg.mxu0
    %12103 = vmatpush.bf16.msra.mxu0 %v9324
    %12104 = vmatpush.bf16.msra.mxu0 %v9300
    %12105 = vmatpush.bf16.msra.mxu0 %v9276
    %12106 = vmatpush.bf16.msra.mxu0 %v9252
    %12107 = vmatpush.bf16.msra.mxu0 %v9228
    %12108 = vmatpush.bf16.msra.mxu0 %v9204
    %12109 = vmatpush.bf16.msra.mxu0 %v9180
    %12110 = vmatpush.bf16.msra.mxu0 %v9156
    %12111 = vmatmul.bf16.gmra.mxu0 %v2373
    %v12112 = vpop.f32.mrf.mxu0
    %v12113 = vadd.f32 %v12100, %v12112
    %v12114 = vpop.f32.mrf.mxu0
    %12115 = vdwg.mxu0
    %12116 = vmatpush.bf16.msra.mxu0 %v9516
    %12117 = vmatpush.bf16.msra.mxu0 %v9492
    %12118 = vmatpush.bf16.msra.mxu0 %v9468
    %12119 = vmatpush.bf16.msra.mxu0 %v9444
    %12120 = vmatpush.bf16.msra.mxu0 %v9420
    %12121 = vmatpush.bf16.msra.mxu0 %v9396
    %12122 = vmatpush.bf16.msra.mxu0 %v9372
    %12123 = vmatpush.bf16.msra.mxu0 %v9348
    %12124 = vmatmul.bf16.gmra.mxu0 %v2374
    %v12125 = vpop.f32.mrf.mxu0
    %v12126 = vadd.f32 %v12113, %v12125
    %v12127 = vpop.f32.mrf.mxu0
    %12128 = vdwg.mxu0
    %12129 = vmatpush.bf16.msra.mxu0 %v9708
    %12130 = vmatpush.bf16.msra.mxu0 %v9684
    %12131 = vmatpush.bf16.msra.mxu0 %v9660
    %12132 = vmatpush.bf16.msra.mxu0 %v9636
    %12133 = vmatpush.bf16.msra.mxu0 %v9612
    %12134 = vmatpush.bf16.msra.mxu0 %v9588
    %12135 = vmatpush.bf16.msra.mxu0 %v9564
    %12136 = vmatpush.bf16.msra.mxu0 %v9540
    %12137 = vmatmul.bf16.gmra.mxu0 %v2375
    %v12138 = vpop.f32.mrf.mxu0
    %v12139 = vadd.f32 %v12126, %v12138
    %v12140 = vpop.f32.mrf.mxu0
    %12141 = vdwg.mxu0
    %12142 = vmatpush.bf16.msra.mxu0 %v9900
    %12143 = vmatpush.bf16.msra.mxu0 %v9876
    %12144 = vmatpush.bf16.msra.mxu0 %v9852
    %12145 = vmatpush.bf16.msra.mxu0 %v9828
    %12146 = vmatpush.bf16.msra.mxu0 %v9804
    %12147 = vmatpush.bf16.msra.mxu0 %v9780
    %12148 = vmatpush.bf16.msra.mxu0 %v9756
    %12149 = vmatpush.bf16.msra.mxu0 %v9732
    %12150 = vmatmul.bf16.gmra.mxu0 %v2376
    %v12151 = vpop.f32.mrf.mxu0
    %v12152 = vadd.f32 %v12139, %v12151
    %v12153 = vpop.f32.mrf.mxu0
    %12154 = vdwg.mxu0
    %12155 = vmatpush.bf16.msra.mxu0 %v10092
    %12156 = vmatpush.bf16.msra.mxu0 %v10068
    %12157 = vmatpush.bf16.msra.mxu0 %v10044
    %12158 = vmatpush.bf16.msra.mxu0 %v10020
    %12159 = vmatpush.bf16.msra.mxu0 %v9996
    %12160 = vmatpush.bf16.msra.mxu0 %v9972
    %12161 = vmatpush.bf16.msra.mxu0 %v9948
    %12162 = vmatpush.bf16.msra.mxu0 %v9924
    %12163 = vmatmul.bf16.gmra.mxu0 %v2377
    %v12164 = vpop.f32.mrf.mxu0
    %v12165 = vadd.f32 %v12152, %v12164
    %v12166 = vpop.f32.mrf.mxu0
    %12167 = vdwg.mxu0
    %12168 = vmatpush.bf16.msra.mxu0 %v8749
    %12169 = vmatpush.bf16.msra.mxu0 %v8725
    %12170 = vmatpush.bf16.msra.mxu0 %v8701
    %12171 = vmatpush.bf16.msra.mxu0 %v8677
    %12172 = vmatpush.bf16.msra.mxu0 %v8653
    %12173 = vmatpush.bf16.msra.mxu0 %v8629
    %12174 = vmatpush.bf16.msra.mxu0 %v8605
    %12175 = vmatpush.bf16.msra.mxu0 %v8581
    %12176 = vmatmul.bf16.gmra.mxu0 %v2370
    %v12177 = vpop.f32.mrf.mxu0
    %v12178 = vadd.f32 %v3925, %v12177
    %v12179 = vpop.f32.mrf.mxu0
    %12180 = vdwg.mxu0
    %12181 = vmatpush.bf16.msra.mxu0 %v8941
    %12182 = vmatpush.bf16.msra.mxu0 %v8917
    %12183 = vmatpush.bf16.msra.mxu0 %v8893
    %12184 = vmatpush.bf16.msra.mxu0 %v8869
    %12185 = vmatpush.bf16.msra.mxu0 %v8845
    %12186 = vmatpush.bf16.msra.mxu0 %v8821
    %12187 = vmatpush.bf16.msra.mxu0 %v8797
    %12188 = vmatpush.bf16.msra.mxu0 %v8773
    %12189 = vmatmul.bf16.gmra.mxu0 %v2371
    %v12190 = vpop.f32.mrf.mxu0
    %v12191 = vadd.f32 %v12178, %v12190
    %v12192 = vpop.f32.mrf.mxu0
    %12193 = vdwg.mxu0
    %12194 = vmatpush.bf16.msra.mxu0 %v9133
    %12195 = vmatpush.bf16.msra.mxu0 %v9109
    %12196 = vmatpush.bf16.msra.mxu0 %v9085
    %12197 = vmatpush.bf16.msra.mxu0 %v9061
    %12198 = vmatpush.bf16.msra.mxu0 %v9037
    %12199 = vmatpush.bf16.msra.mxu0 %v9013
    %12200 = vmatpush.bf16.msra.mxu0 %v8989
    %12201 = vmatpush.bf16.msra.mxu0 %v8965
    %12202 = vmatmul.bf16.gmra.mxu0 %v2372
    %v12203 = vpop.f32.mrf.mxu0
    %v12204 = vadd.f32 %v12191, %v12203
    %v12205 = vpop.f32.mrf.mxu0
    %12206 = vdwg.mxu0
    %12207 = vmatpush.bf16.msra.mxu0 %v9325
    %12208 = vmatpush.bf16.msra.mxu0 %v9301
    %12209 = vmatpush.bf16.msra.mxu0 %v9277
    %12210 = vmatpush.bf16.msra.mxu0 %v9253
    %12211 = vmatpush.bf16.msra.mxu0 %v9229
    %12212 = vmatpush.bf16.msra.mxu0 %v9205
    %12213 = vmatpush.bf16.msra.mxu0 %v9181
    %12214 = vmatpush.bf16.msra.mxu0 %v9157
    %12215 = vmatmul.bf16.gmra.mxu0 %v2373
    %v12216 = vpop.f32.mrf.mxu0
    %v12217 = vadd.f32 %v12204, %v12216
    %v12218 = vpop.f32.mrf.mxu0
    %12219 = vdwg.mxu0
    %12220 = vmatpush.bf16.msra.mxu0 %v9517
    %12221 = vmatpush.bf16.msra.mxu0 %v9493
    %12222 = vmatpush.bf16.msra.mxu0 %v9469
    %12223 = vmatpush.bf16.msra.mxu0 %v9445
    %12224 = vmatpush.bf16.msra.mxu0 %v9421
    %12225 = vmatpush.bf16.msra.mxu0 %v9397
    %12226 = vmatpush.bf16.msra.mxu0 %v9373
    %12227 = vmatpush.bf16.msra.mxu0 %v9349
    %12228 = vmatmul.bf16.gmra.mxu0 %v2374
    %v12229 = vpop.f32.mrf.mxu0
    %v12230 = vadd.f32 %v12217, %v12229
    %v12231 = vpop.f32.mrf.mxu0
    %12232 = vdwg.mxu0
    %12233 = vmatpush.bf16.msra.mxu0 %v9709
    %12234 = vmatpush.bf16.msra.mxu0 %v9685
    %12235 = vmatpush.bf16.msra.mxu0 %v9661
    %12236 = vmatpush.bf16.msra.mxu0 %v9637
    %12237 = vmatpush.bf16.msra.mxu0 %v9613
    %12238 = vmatpush.bf16.msra.mxu0 %v9589
    %12239 = vmatpush.bf16.msra.mxu0 %v9565
    %12240 = vmatpush.bf16.msra.mxu0 %v9541
    %12241 = vmatmul.bf16.gmra.mxu0 %v2375
    %v12242 = vpop.f32.mrf.mxu0
    %v12243 = vadd.f32 %v12230, %v12242
    %v12244 = vpop.f32.mrf.mxu0
    %12245 = vdwg.mxu0
    %12246 = vmatpush.bf16.msra.mxu0 %v9901
    %12247 = vmatpush.bf16.msra.mxu0 %v9877
    %12248 = vmatpush.bf16.msra.mxu0 %v9853
    %12249 = vmatpush.bf16.msra.mxu0 %v9829
    %12250 = vmatpush.bf16.msra.mxu0 %v9805
    %12251 = vmatpush.bf16.msra.mxu0 %v9781
    %12252 = vmatpush.bf16.msra.mxu0 %v9757
    %12253 = vmatpush.bf16.msra.mxu0 %v9733
    %12254 = vmatmul.bf16.gmra.mxu0 %v2376
    %v12255 = vpop.f32.mrf.mxu0
    %v12256 = vadd.f32 %v12243, %v12255
    %v12257 = vpop.f32.mrf.mxu0
    %12258 = vdwg.mxu0
    %12259 = vmatpush.bf16.msra.mxu0 %v10093
    %12260 = vmatpush.bf16.msra.mxu0 %v10069
    %12261 = vmatpush.bf16.msra.mxu0 %v10045
    %12262 = vmatpush.bf16.msra.mxu0 %v10021
    %12263 = vmatpush.bf16.msra.mxu0 %v9997
    %12264 = vmatpush.bf16.msra.mxu0 %v9973
    %12265 = vmatpush.bf16.msra.mxu0 %v9949
    %12266 = vmatpush.bf16.msra.mxu0 %v9925
    %12267 = vmatmul.bf16.gmra.mxu0 %v2377
    %v12268 = vpop.f32.mrf.mxu0
    %v12269 = vadd.f32 %v12256, %v12268
    %v12270 = vpop.f32.mrf.mxu0
    %12271 = vdwg.mxu0
    %12272 = vmatpush.bf16.msra.mxu0 %v8750
    %12273 = vmatpush.bf16.msra.mxu0 %v8726
    %12274 = vmatpush.bf16.msra.mxu0 %v8702
    %12275 = vmatpush.bf16.msra.mxu0 %v8678
    %12276 = vmatpush.bf16.msra.mxu0 %v8654
    %12277 = vmatpush.bf16.msra.mxu0 %v8630
    %12278 = vmatpush.bf16.msra.mxu0 %v8606
    %12279 = vmatpush.bf16.msra.mxu0 %v8582
    %12280 = vmatmul.bf16.gmra.mxu0 %v2370
    %v12281 = vpop.f32.mrf.mxu0
    %v12282 = vadd.f32 %v3926, %v12281
    %v12283 = vpop.f32.mrf.mxu0
    %12284 = vdwg.mxu0
    %12285 = vmatpush.bf16.msra.mxu0 %v8942
    %12286 = vmatpush.bf16.msra.mxu0 %v8918
    %12287 = vmatpush.bf16.msra.mxu0 %v8894
    %12288 = vmatpush.bf16.msra.mxu0 %v8870
    %12289 = vmatpush.bf16.msra.mxu0 %v8846
    %12290 = vmatpush.bf16.msra.mxu0 %v8822
    %12291 = vmatpush.bf16.msra.mxu0 %v8798
    %12292 = vmatpush.bf16.msra.mxu0 %v8774
    %12293 = vmatmul.bf16.gmra.mxu0 %v2371
    %v12294 = vpop.f32.mrf.mxu0
    %v12295 = vadd.f32 %v12282, %v12294
    %v12296 = vpop.f32.mrf.mxu0
    %12297 = vdwg.mxu0
    %12298 = vmatpush.bf16.msra.mxu0 %v9134
    %12299 = vmatpush.bf16.msra.mxu0 %v9110
    %12300 = vmatpush.bf16.msra.mxu0 %v9086
    %12301 = vmatpush.bf16.msra.mxu0 %v9062
    %12302 = vmatpush.bf16.msra.mxu0 %v9038
    %12303 = vmatpush.bf16.msra.mxu0 %v9014
    %12304 = vmatpush.bf16.msra.mxu0 %v8990
    %12305 = vmatpush.bf16.msra.mxu0 %v8966
    %12306 = vmatmul.bf16.gmra.mxu0 %v2372
    %v12307 = vpop.f32.mrf.mxu0
    %v12308 = vadd.f32 %v12295, %v12307
    %v12309 = vpop.f32.mrf.mxu0
    %12310 = vdwg.mxu0
    %12311 = vmatpush.bf16.msra.mxu0 %v9326
    %12312 = vmatpush.bf16.msra.mxu0 %v9302
    %12313 = vmatpush.bf16.msra.mxu0 %v9278
    %12314 = vmatpush.bf16.msra.mxu0 %v9254
    %12315 = vmatpush.bf16.msra.mxu0 %v9230
    %12316 = vmatpush.bf16.msra.mxu0 %v9206
    %12317 = vmatpush.bf16.msra.mxu0 %v9182
    %12318 = vmatpush.bf16.msra.mxu0 %v9158
    %12319 = vmatmul.bf16.gmra.mxu0 %v2373
    %v12320 = vpop.f32.mrf.mxu0
    %v12321 = vadd.f32 %v12308, %v12320
    %v12322 = vpop.f32.mrf.mxu0
    %12323 = vdwg.mxu0
    %12324 = vmatpush.bf16.msra.mxu0 %v9518
    %12325 = vmatpush.bf16.msra.mxu0 %v9494
    %12326 = vmatpush.bf16.msra.mxu0 %v9470
    %12327 = vmatpush.bf16.msra.mxu0 %v9446
    %12328 = vmatpush.bf16.msra.mxu0 %v9422
    %12329 = vmatpush.bf16.msra.mxu0 %v9398
    %12330 = vmatpush.bf16.msra.mxu0 %v9374
    %12331 = vmatpush.bf16.msra.mxu0 %v9350
    %12332 = vmatmul.bf16.gmra.mxu0 %v2374
    %v12333 = vpop.f32.mrf.mxu0
    %v12334 = vadd.f32 %v12321, %v12333
    %v12335 = vpop.f32.mrf.mxu0
    %12336 = vdwg.mxu0
    %12337 = vmatpush.bf16.msra.mxu0 %v9710
    %12338 = vmatpush.bf16.msra.mxu0 %v9686
    %12339 = vmatpush.bf16.msra.mxu0 %v9662
    %12340 = vmatpush.bf16.msra.mxu0 %v9638
    %12341 = vmatpush.bf16.msra.mxu0 %v9614
    %12342 = vmatpush.bf16.msra.mxu0 %v9590
    %12343 = vmatpush.bf16.msra.mxu0 %v9566
    %12344 = vmatpush.bf16.msra.mxu0 %v9542
    %12345 = vmatmul.bf16.gmra.mxu0 %v2375
    %v12346 = vpop.f32.mrf.mxu0
    %v12347 = vadd.f32 %v12334, %v12346
    %v12348 = vpop.f32.mrf.mxu0
    %12349 = vdwg.mxu0
    %12350 = vmatpush.bf16.msra.mxu0 %v9902
    %12351 = vmatpush.bf16.msra.mxu0 %v9878
    %12352 = vmatpush.bf16.msra.mxu0 %v9854
    %12353 = vmatpush.bf16.msra.mxu0 %v9830
    %12354 = vmatpush.bf16.msra.mxu0 %v9806
    %12355 = vmatpush.bf16.msra.mxu0 %v9782
    %12356 = vmatpush.bf16.msra.mxu0 %v9758
    %12357 = vmatpush.bf16.msra.mxu0 %v9734
    %12358 = vmatmul.bf16.gmra.mxu0 %v2376
    %v12359 = vpop.f32.mrf.mxu0
    %v12360 = vadd.f32 %v12347, %v12359
    %v12361 = vpop.f32.mrf.mxu0
    %12362 = vdwg.mxu0
    %12363 = vmatpush.bf16.msra.mxu0 %v10094
    %12364 = vmatpush.bf16.msra.mxu0 %v10070
    %12365 = vmatpush.bf16.msra.mxu0 %v10046
    %12366 = vmatpush.bf16.msra.mxu0 %v10022
    %12367 = vmatpush.bf16.msra.mxu0 %v9998
    %12368 = vmatpush.bf16.msra.mxu0 %v9974
    %12369 = vmatpush.bf16.msra.mxu0 %v9950
    %12370 = vmatpush.bf16.msra.mxu0 %v9926
    %12371 = vmatmul.bf16.gmra.mxu0 %v2377
    %v12372 = vpop.f32.mrf.mxu0
    %v12373 = vadd.f32 %v12360, %v12372
    %v12374 = vpop.f32.mrf.mxu0
    %12375 = vdwg.mxu0
    %12376 = vmatpush.bf16.msra.mxu0 %v8751
    %12377 = vmatpush.bf16.msra.mxu0 %v8727
    %12378 = vmatpush.bf16.msra.mxu0 %v8703
    %12379 = vmatpush.bf16.msra.mxu0 %v8679
    %12380 = vmatpush.bf16.msra.mxu0 %v8655
    %12381 = vmatpush.bf16.msra.mxu0 %v8631
    %12382 = vmatpush.bf16.msra.mxu0 %v8607
    %12383 = vmatpush.bf16.msra.mxu0 %v8583
    %12384 = vmatmul.bf16.gmra.mxu0 %v2370
    %v12385 = vpop.f32.mrf.mxu0
    %v12386 = vadd.f32 %v3927, %v12385
    %v12387 = vpop.f32.mrf.mxu0
    %12388 = vdwg.mxu0
    %12389 = vmatpush.bf16.msra.mxu0 %v8943
    %12390 = vmatpush.bf16.msra.mxu0 %v8919
    %12391 = vmatpush.bf16.msra.mxu0 %v8895
    %12392 = vmatpush.bf16.msra.mxu0 %v8871
    %12393 = vmatpush.bf16.msra.mxu0 %v8847
    %12394 = vmatpush.bf16.msra.mxu0 %v8823
    %12395 = vmatpush.bf16.msra.mxu0 %v8799
    %12396 = vmatpush.bf16.msra.mxu0 %v8775
    %12397 = vmatmul.bf16.gmra.mxu0 %v2371
    %v12398 = vpop.f32.mrf.mxu0
    %v12399 = vadd.f32 %v12386, %v12398
    %v12400 = vpop.f32.mrf.mxu0
    %12401 = vdwg.mxu0
    %12402 = vmatpush.bf16.msra.mxu0 %v9135
    %12403 = vmatpush.bf16.msra.mxu0 %v9111
    %12404 = vmatpush.bf16.msra.mxu0 %v9087
    %12405 = vmatpush.bf16.msra.mxu0 %v9063
    %12406 = vmatpush.bf16.msra.mxu0 %v9039
    %12407 = vmatpush.bf16.msra.mxu0 %v9015
    %12408 = vmatpush.bf16.msra.mxu0 %v8991
    %12409 = vmatpush.bf16.msra.mxu0 %v8967
    %12410 = vmatmul.bf16.gmra.mxu0 %v2372
    %v12411 = vpop.f32.mrf.mxu0
    %v12412 = vadd.f32 %v12399, %v12411
    %v12413 = vpop.f32.mrf.mxu0
    %12414 = vdwg.mxu0
    %12415 = vmatpush.bf16.msra.mxu0 %v9327
    %12416 = vmatpush.bf16.msra.mxu0 %v9303
    %12417 = vmatpush.bf16.msra.mxu0 %v9279
    %12418 = vmatpush.bf16.msra.mxu0 %v9255
    %12419 = vmatpush.bf16.msra.mxu0 %v9231
    %12420 = vmatpush.bf16.msra.mxu0 %v9207
    %12421 = vmatpush.bf16.msra.mxu0 %v9183
    %12422 = vmatpush.bf16.msra.mxu0 %v9159
    %12423 = vmatmul.bf16.gmra.mxu0 %v2373
    %v12424 = vpop.f32.mrf.mxu0
    %v12425 = vadd.f32 %v12412, %v12424
    %v12426 = vpop.f32.mrf.mxu0
    %12427 = vdwg.mxu0
    %12428 = vmatpush.bf16.msra.mxu0 %v9519
    %12429 = vmatpush.bf16.msra.mxu0 %v9495
    %12430 = vmatpush.bf16.msra.mxu0 %v9471
    %12431 = vmatpush.bf16.msra.mxu0 %v9447
    %12432 = vmatpush.bf16.msra.mxu0 %v9423
    %12433 = vmatpush.bf16.msra.mxu0 %v9399
    %12434 = vmatpush.bf16.msra.mxu0 %v9375
    %12435 = vmatpush.bf16.msra.mxu0 %v9351
    %12436 = vmatmul.bf16.gmra.mxu0 %v2374
    %v12437 = vpop.f32.mrf.mxu0
    %v12438 = vadd.f32 %v12425, %v12437
    %v12439 = vpop.f32.mrf.mxu0
    %12440 = vdwg.mxu0
    %12441 = vmatpush.bf16.msra.mxu0 %v9711
    %12442 = vmatpush.bf16.msra.mxu0 %v9687
    %12443 = vmatpush.bf16.msra.mxu0 %v9663
    %12444 = vmatpush.bf16.msra.mxu0 %v9639
    %12445 = vmatpush.bf16.msra.mxu0 %v9615
    %12446 = vmatpush.bf16.msra.mxu0 %v9591
    %12447 = vmatpush.bf16.msra.mxu0 %v9567
    %12448 = vmatpush.bf16.msra.mxu0 %v9543
    %12449 = vmatmul.bf16.gmra.mxu0 %v2375
    %v12450 = vpop.f32.mrf.mxu0
    %v12451 = vadd.f32 %v12438, %v12450
    %v12452 = vpop.f32.mrf.mxu0
    %12453 = vdwg.mxu0
    %12454 = vmatpush.bf16.msra.mxu0 %v9903
    %12455 = vmatpush.bf16.msra.mxu0 %v9879
    %12456 = vmatpush.bf16.msra.mxu0 %v9855
    %12457 = vmatpush.bf16.msra.mxu0 %v9831
    %12458 = vmatpush.bf16.msra.mxu0 %v9807
    %12459 = vmatpush.bf16.msra.mxu0 %v9783
    %12460 = vmatpush.bf16.msra.mxu0 %v9759
    %12461 = vmatpush.bf16.msra.mxu0 %v9735
    %12462 = vmatmul.bf16.gmra.mxu0 %v2376
    %v12463 = vpop.f32.mrf.mxu0
    %v12464 = vadd.f32 %v12451, %v12463
    %v12465 = vpop.f32.mrf.mxu0
    %12466 = vdwg.mxu0
    %12467 = vmatpush.bf16.msra.mxu0 %v10095
    %12468 = vmatpush.bf16.msra.mxu0 %v10071
    %12469 = vmatpush.bf16.msra.mxu0 %v10047
    %12470 = vmatpush.bf16.msra.mxu0 %v10023
    %12471 = vmatpush.bf16.msra.mxu0 %v9999
    %12472 = vmatpush.bf16.msra.mxu0 %v9975
    %12473 = vmatpush.bf16.msra.mxu0 %v9951
    %12474 = vmatpush.bf16.msra.mxu0 %v9927
    %12475 = vmatmul.bf16.gmra.mxu0 %v2377
    %v12476 = vpop.f32.mrf.mxu0
    %v12477 = vadd.f32 %v12464, %v12476
    %v12478 = vpop.f32.mrf.mxu0
    %12479 = vdwg.mxu0
    %12480 = vmatpush.bf16.msra.mxu0 %v8752
    %12481 = vmatpush.bf16.msra.mxu0 %v8728
    %12482 = vmatpush.bf16.msra.mxu0 %v8704
    %12483 = vmatpush.bf16.msra.mxu0 %v8680
    %12484 = vmatpush.bf16.msra.mxu0 %v8656
    %12485 = vmatpush.bf16.msra.mxu0 %v8632
    %12486 = vmatpush.bf16.msra.mxu0 %v8608
    %12487 = vmatpush.bf16.msra.mxu0 %v8584
    %12488 = vmatmul.bf16.gmra.mxu0 %v2370
    %v12489 = vpop.f32.mrf.mxu0
    %v12490 = vadd.f32 %v3928, %v12489
    %v12491 = vpop.f32.mrf.mxu0
    %12492 = vdwg.mxu0
    %12493 = vmatpush.bf16.msra.mxu0 %v8944
    %12494 = vmatpush.bf16.msra.mxu0 %v8920
    %12495 = vmatpush.bf16.msra.mxu0 %v8896
    %12496 = vmatpush.bf16.msra.mxu0 %v8872
    %12497 = vmatpush.bf16.msra.mxu0 %v8848
    %12498 = vmatpush.bf16.msra.mxu0 %v8824
    %12499 = vmatpush.bf16.msra.mxu0 %v8800
    %12500 = vmatpush.bf16.msra.mxu0 %v8776
    %12501 = vmatmul.bf16.gmra.mxu0 %v2371
    %v12502 = vpop.f32.mrf.mxu0
    %v12503 = vadd.f32 %v12490, %v12502
    %v12504 = vpop.f32.mrf.mxu0
    %12505 = vdwg.mxu0
    %12506 = vmatpush.bf16.msra.mxu0 %v9136
    %12507 = vmatpush.bf16.msra.mxu0 %v9112
    %12508 = vmatpush.bf16.msra.mxu0 %v9088
    %12509 = vmatpush.bf16.msra.mxu0 %v9064
    %12510 = vmatpush.bf16.msra.mxu0 %v9040
    %12511 = vmatpush.bf16.msra.mxu0 %v9016
    %12512 = vmatpush.bf16.msra.mxu0 %v8992
    %12513 = vmatpush.bf16.msra.mxu0 %v8968
    %12514 = vmatmul.bf16.gmra.mxu0 %v2372
    %v12515 = vpop.f32.mrf.mxu0
    %v12516 = vadd.f32 %v12503, %v12515
    %v12517 = vpop.f32.mrf.mxu0
    %12518 = vdwg.mxu0
    %12519 = vmatpush.bf16.msra.mxu0 %v9328
    %12520 = vmatpush.bf16.msra.mxu0 %v9304
    %12521 = vmatpush.bf16.msra.mxu0 %v9280
    %12522 = vmatpush.bf16.msra.mxu0 %v9256
    %12523 = vmatpush.bf16.msra.mxu0 %v9232
    %12524 = vmatpush.bf16.msra.mxu0 %v9208
    %12525 = vmatpush.bf16.msra.mxu0 %v9184
    %12526 = vmatpush.bf16.msra.mxu0 %v9160
    %12527 = vmatmul.bf16.gmra.mxu0 %v2373
    %v12528 = vpop.f32.mrf.mxu0
    %v12529 = vadd.f32 %v12516, %v12528
    %v12530 = vpop.f32.mrf.mxu0
    %12531 = vdwg.mxu0
    %12532 = vmatpush.bf16.msra.mxu0 %v9520
    %12533 = vmatpush.bf16.msra.mxu0 %v9496
    %12534 = vmatpush.bf16.msra.mxu0 %v9472
    %12535 = vmatpush.bf16.msra.mxu0 %v9448
    %12536 = vmatpush.bf16.msra.mxu0 %v9424
    %12537 = vmatpush.bf16.msra.mxu0 %v9400
    %12538 = vmatpush.bf16.msra.mxu0 %v9376
    %12539 = vmatpush.bf16.msra.mxu0 %v9352
    %12540 = vmatmul.bf16.gmra.mxu0 %v2374
    %v12541 = vpop.f32.mrf.mxu0
    %v12542 = vadd.f32 %v12529, %v12541
    %v12543 = vpop.f32.mrf.mxu0
    %12544 = vdwg.mxu0
    %12545 = vmatpush.bf16.msra.mxu0 %v9712
    %12546 = vmatpush.bf16.msra.mxu0 %v9688
    %12547 = vmatpush.bf16.msra.mxu0 %v9664
    %12548 = vmatpush.bf16.msra.mxu0 %v9640
    %12549 = vmatpush.bf16.msra.mxu0 %v9616
    %12550 = vmatpush.bf16.msra.mxu0 %v9592
    %12551 = vmatpush.bf16.msra.mxu0 %v9568
    %12552 = vmatpush.bf16.msra.mxu0 %v9544
    %12553 = vmatmul.bf16.gmra.mxu0 %v2375
    %v12554 = vpop.f32.mrf.mxu0
    %v12555 = vadd.f32 %v12542, %v12554
    %v12556 = vpop.f32.mrf.mxu0
    %12557 = vdwg.mxu0
    %12558 = vmatpush.bf16.msra.mxu0 %v9904
    %12559 = vmatpush.bf16.msra.mxu0 %v9880
    %12560 = vmatpush.bf16.msra.mxu0 %v9856
    %12561 = vmatpush.bf16.msra.mxu0 %v9832
    %12562 = vmatpush.bf16.msra.mxu0 %v9808
    %12563 = vmatpush.bf16.msra.mxu0 %v9784
    %12564 = vmatpush.bf16.msra.mxu0 %v9760
    %12565 = vmatpush.bf16.msra.mxu0 %v9736
    %12566 = vmatmul.bf16.gmra.mxu0 %v2376
    %v12567 = vpop.f32.mrf.mxu0
    %v12568 = vadd.f32 %v12555, %v12567
    %v12569 = vpop.f32.mrf.mxu0
    %12570 = vdwg.mxu0
    %12571 = vmatpush.bf16.msra.mxu0 %v10096
    %12572 = vmatpush.bf16.msra.mxu0 %v10072
    %12573 = vmatpush.bf16.msra.mxu0 %v10048
    %12574 = vmatpush.bf16.msra.mxu0 %v10024
    %12575 = vmatpush.bf16.msra.mxu0 %v10000
    %12576 = vmatpush.bf16.msra.mxu0 %v9976
    %12577 = vmatpush.bf16.msra.mxu0 %v9952
    %12578 = vmatpush.bf16.msra.mxu0 %v9928
    %12579 = vmatmul.bf16.gmra.mxu0 %v2377
    %v12580 = vpop.f32.mrf.mxu0
    %v12581 = vadd.f32 %v12568, %v12580
    %v12582 = vpop.f32.mrf.mxu0
    %12583 = vdwg.mxu0
    %12584 = vmatpush.bf16.msra.mxu0 %v8753
    %12585 = vmatpush.bf16.msra.mxu0 %v8729
    %12586 = vmatpush.bf16.msra.mxu0 %v8705
    %12587 = vmatpush.bf16.msra.mxu0 %v8681
    %12588 = vmatpush.bf16.msra.mxu0 %v8657
    %12589 = vmatpush.bf16.msra.mxu0 %v8633
    %12590 = vmatpush.bf16.msra.mxu0 %v8609
    %12591 = vmatpush.bf16.msra.mxu0 %v8585
    %12592 = vmatmul.bf16.gmra.mxu0 %v2370
    %v12593 = vpop.f32.mrf.mxu0
    %v12594 = vadd.f32 %v3929, %v12593
    %v12595 = vpop.f32.mrf.mxu0
    %12596 = vdwg.mxu0
    %12597 = vmatpush.bf16.msra.mxu0 %v8945
    %12598 = vmatpush.bf16.msra.mxu0 %v8921
    %12599 = vmatpush.bf16.msra.mxu0 %v8897
    %12600 = vmatpush.bf16.msra.mxu0 %v8873
    %12601 = vmatpush.bf16.msra.mxu0 %v8849
    %12602 = vmatpush.bf16.msra.mxu0 %v8825
    %12603 = vmatpush.bf16.msra.mxu0 %v8801
    %12604 = vmatpush.bf16.msra.mxu0 %v8777
    %12605 = vmatmul.bf16.gmra.mxu0 %v2371
    %v12606 = vpop.f32.mrf.mxu0
    %v12607 = vadd.f32 %v12594, %v12606
    %v12608 = vpop.f32.mrf.mxu0
    %12609 = vdwg.mxu0
    %12610 = vmatpush.bf16.msra.mxu0 %v9137
    %12611 = vmatpush.bf16.msra.mxu0 %v9113
    %12612 = vmatpush.bf16.msra.mxu0 %v9089
    %12613 = vmatpush.bf16.msra.mxu0 %v9065
    %12614 = vmatpush.bf16.msra.mxu0 %v9041
    %12615 = vmatpush.bf16.msra.mxu0 %v9017
    %12616 = vmatpush.bf16.msra.mxu0 %v8993
    %12617 = vmatpush.bf16.msra.mxu0 %v8969
    %12618 = vmatmul.bf16.gmra.mxu0 %v2372
    %v12619 = vpop.f32.mrf.mxu0
    %v12620 = vadd.f32 %v12607, %v12619
    %v12621 = vpop.f32.mrf.mxu0
    %12622 = vdwg.mxu0
    %12623 = vmatpush.bf16.msra.mxu0 %v9329
    %12624 = vmatpush.bf16.msra.mxu0 %v9305
    %12625 = vmatpush.bf16.msra.mxu0 %v9281
    %12626 = vmatpush.bf16.msra.mxu0 %v9257
    %12627 = vmatpush.bf16.msra.mxu0 %v9233
    %12628 = vmatpush.bf16.msra.mxu0 %v9209
    %12629 = vmatpush.bf16.msra.mxu0 %v9185
    %12630 = vmatpush.bf16.msra.mxu0 %v9161
    %12631 = vmatmul.bf16.gmra.mxu0 %v2373
    %v12632 = vpop.f32.mrf.mxu0
    %v12633 = vadd.f32 %v12620, %v12632
    %v12634 = vpop.f32.mrf.mxu0
    %12635 = vdwg.mxu0
    %12636 = vmatpush.bf16.msra.mxu0 %v9521
    %12637 = vmatpush.bf16.msra.mxu0 %v9497
    %12638 = vmatpush.bf16.msra.mxu0 %v9473
    %12639 = vmatpush.bf16.msra.mxu0 %v9449
    %12640 = vmatpush.bf16.msra.mxu0 %v9425
    %12641 = vmatpush.bf16.msra.mxu0 %v9401
    %12642 = vmatpush.bf16.msra.mxu0 %v9377
    %12643 = vmatpush.bf16.msra.mxu0 %v9353
    %12644 = vmatmul.bf16.gmra.mxu0 %v2374
    %v12645 = vpop.f32.mrf.mxu0
    %v12646 = vadd.f32 %v12633, %v12645
    %v12647 = vpop.f32.mrf.mxu0
    %12648 = vdwg.mxu0
    %12649 = vmatpush.bf16.msra.mxu0 %v9713
    %12650 = vmatpush.bf16.msra.mxu0 %v9689
    %12651 = vmatpush.bf16.msra.mxu0 %v9665
    %12652 = vmatpush.bf16.msra.mxu0 %v9641
    %12653 = vmatpush.bf16.msra.mxu0 %v9617
    %12654 = vmatpush.bf16.msra.mxu0 %v9593
    %12655 = vmatpush.bf16.msra.mxu0 %v9569
    %12656 = vmatpush.bf16.msra.mxu0 %v9545
    %12657 = vmatmul.bf16.gmra.mxu0 %v2375
    %v12658 = vpop.f32.mrf.mxu0
    %v12659 = vadd.f32 %v12646, %v12658
    %v12660 = vpop.f32.mrf.mxu0
    %12661 = vdwg.mxu0
    %12662 = vmatpush.bf16.msra.mxu0 %v9905
    %12663 = vmatpush.bf16.msra.mxu0 %v9881
    %12664 = vmatpush.bf16.msra.mxu0 %v9857
    %12665 = vmatpush.bf16.msra.mxu0 %v9833
    %12666 = vmatpush.bf16.msra.mxu0 %v9809
    %12667 = vmatpush.bf16.msra.mxu0 %v9785
    %12668 = vmatpush.bf16.msra.mxu0 %v9761
    %12669 = vmatpush.bf16.msra.mxu0 %v9737
    %12670 = vmatmul.bf16.gmra.mxu0 %v2376
    %v12671 = vpop.f32.mrf.mxu0
    %v12672 = vadd.f32 %v12659, %v12671
    %v12673 = vpop.f32.mrf.mxu0
    %12674 = vdwg.mxu0
    %12675 = vmatpush.bf16.msra.mxu0 %v10097
    %12676 = vmatpush.bf16.msra.mxu0 %v10073
    %12677 = vmatpush.bf16.msra.mxu0 %v10049
    %12678 = vmatpush.bf16.msra.mxu0 %v10025
    %12679 = vmatpush.bf16.msra.mxu0 %v10001
    %12680 = vmatpush.bf16.msra.mxu0 %v9977
    %12681 = vmatpush.bf16.msra.mxu0 %v9953
    %12682 = vmatpush.bf16.msra.mxu0 %v9929
    %12683 = vmatmul.bf16.gmra.mxu0 %v2377
    %v12684 = vpop.f32.mrf.mxu0
    %v12685 = vadd.f32 %v12672, %v12684
    %v12686 = vpop.f32.mrf.mxu0
    %12687 = vdwg.mxu0
    %12688 = vmatpush.bf16.msra.mxu0 %v8754
    %12689 = vmatpush.bf16.msra.mxu0 %v8730
    %12690 = vmatpush.bf16.msra.mxu0 %v8706
    %12691 = vmatpush.bf16.msra.mxu0 %v8682
    %12692 = vmatpush.bf16.msra.mxu0 %v8658
    %12693 = vmatpush.bf16.msra.mxu0 %v8634
    %12694 = vmatpush.bf16.msra.mxu0 %v8610
    %12695 = vmatpush.bf16.msra.mxu0 %v8586
    %12696 = vmatmul.bf16.gmra.mxu0 %v2370
    %v12697 = vpop.f32.mrf.mxu0
    %v12698 = vadd.f32 %v3930, %v12697
    %v12699 = vpop.f32.mrf.mxu0
    %12700 = vdwg.mxu0
    %12701 = vmatpush.bf16.msra.mxu0 %v8946
    %12702 = vmatpush.bf16.msra.mxu0 %v8922
    %12703 = vmatpush.bf16.msra.mxu0 %v8898
    %12704 = vmatpush.bf16.msra.mxu0 %v8874
    %12705 = vmatpush.bf16.msra.mxu0 %v8850
    %12706 = vmatpush.bf16.msra.mxu0 %v8826
    %12707 = vmatpush.bf16.msra.mxu0 %v8802
    %12708 = vmatpush.bf16.msra.mxu0 %v8778
    %12709 = vmatmul.bf16.gmra.mxu0 %v2371
    %v12710 = vpop.f32.mrf.mxu0
    %v12711 = vadd.f32 %v12698, %v12710
    %v12712 = vpop.f32.mrf.mxu0
    %12713 = vdwg.mxu0
    %12714 = vmatpush.bf16.msra.mxu0 %v9138
    %12715 = vmatpush.bf16.msra.mxu0 %v9114
    %12716 = vmatpush.bf16.msra.mxu0 %v9090
    %12717 = vmatpush.bf16.msra.mxu0 %v9066
    %12718 = vmatpush.bf16.msra.mxu0 %v9042
    %12719 = vmatpush.bf16.msra.mxu0 %v9018
    %12720 = vmatpush.bf16.msra.mxu0 %v8994
    %12721 = vmatpush.bf16.msra.mxu0 %v8970
    %12722 = vmatmul.bf16.gmra.mxu0 %v2372
    %v12723 = vpop.f32.mrf.mxu0
    %v12724 = vadd.f32 %v12711, %v12723
    %v12725 = vpop.f32.mrf.mxu0
    %12726 = vdwg.mxu0
    %12727 = vmatpush.bf16.msra.mxu0 %v9330
    %12728 = vmatpush.bf16.msra.mxu0 %v9306
    %12729 = vmatpush.bf16.msra.mxu0 %v9282
    %12730 = vmatpush.bf16.msra.mxu0 %v9258
    %12731 = vmatpush.bf16.msra.mxu0 %v9234
    %12732 = vmatpush.bf16.msra.mxu0 %v9210
    %12733 = vmatpush.bf16.msra.mxu0 %v9186
    %12734 = vmatpush.bf16.msra.mxu0 %v9162
    %12735 = vmatmul.bf16.gmra.mxu0 %v2373
    %v12736 = vpop.f32.mrf.mxu0
    %v12737 = vadd.f32 %v12724, %v12736
    %v12738 = vpop.f32.mrf.mxu0
    %12739 = vdwg.mxu0
    %12740 = vmatpush.bf16.msra.mxu0 %v9522
    %12741 = vmatpush.bf16.msra.mxu0 %v9498
    %12742 = vmatpush.bf16.msra.mxu0 %v9474
    %12743 = vmatpush.bf16.msra.mxu0 %v9450
    %12744 = vmatpush.bf16.msra.mxu0 %v9426
    %12745 = vmatpush.bf16.msra.mxu0 %v9402
    %12746 = vmatpush.bf16.msra.mxu0 %v9378
    %12747 = vmatpush.bf16.msra.mxu0 %v9354
    %12748 = vmatmul.bf16.gmra.mxu0 %v2374
    %v12749 = vpop.f32.mrf.mxu0
    %v12750 = vadd.f32 %v12737, %v12749
    %v12751 = vpop.f32.mrf.mxu0
    %12752 = vdwg.mxu0
    %12753 = vmatpush.bf16.msra.mxu0 %v9714
    %12754 = vmatpush.bf16.msra.mxu0 %v9690
    %12755 = vmatpush.bf16.msra.mxu0 %v9666
    %12756 = vmatpush.bf16.msra.mxu0 %v9642
    %12757 = vmatpush.bf16.msra.mxu0 %v9618
    %12758 = vmatpush.bf16.msra.mxu0 %v9594
    %12759 = vmatpush.bf16.msra.mxu0 %v9570
    %12760 = vmatpush.bf16.msra.mxu0 %v9546
    %12761 = vmatmul.bf16.gmra.mxu0 %v2375
    %v12762 = vpop.f32.mrf.mxu0
    %v12763 = vadd.f32 %v12750, %v12762
    %v12764 = vpop.f32.mrf.mxu0
    %12765 = vdwg.mxu0
    %12766 = vmatpush.bf16.msra.mxu0 %v9906
    %12767 = vmatpush.bf16.msra.mxu0 %v9882
    %12768 = vmatpush.bf16.msra.mxu0 %v9858
    %12769 = vmatpush.bf16.msra.mxu0 %v9834
    %12770 = vmatpush.bf16.msra.mxu0 %v9810
    %12771 = vmatpush.bf16.msra.mxu0 %v9786
    %12772 = vmatpush.bf16.msra.mxu0 %v9762
    %12773 = vmatpush.bf16.msra.mxu0 %v9738
    %12774 = vmatmul.bf16.gmra.mxu0 %v2376
    %v12775 = vpop.f32.mrf.mxu0
    %v12776 = vadd.f32 %v12763, %v12775
    %v12777 = vpop.f32.mrf.mxu0
    %12778 = vdwg.mxu0
    %12779 = vmatpush.bf16.msra.mxu0 %v10098
    %12780 = vmatpush.bf16.msra.mxu0 %v10074
    %12781 = vmatpush.bf16.msra.mxu0 %v10050
    %12782 = vmatpush.bf16.msra.mxu0 %v10026
    %12783 = vmatpush.bf16.msra.mxu0 %v10002
    %12784 = vmatpush.bf16.msra.mxu0 %v9978
    %12785 = vmatpush.bf16.msra.mxu0 %v9954
    %12786 = vmatpush.bf16.msra.mxu0 %v9930
    %12787 = vmatmul.bf16.gmra.mxu0 %v2377
    %v12788 = vpop.f32.mrf.mxu0
    %v12789 = vadd.f32 %v12776, %v12788
    %v12790 = vpop.f32.mrf.mxu0
    %12791 = vdwg.mxu0
    %12792 = vmatpush.bf16.msra.mxu0 %v8755
    %12793 = vmatpush.bf16.msra.mxu0 %v8731
    %12794 = vmatpush.bf16.msra.mxu0 %v8707
    %12795 = vmatpush.bf16.msra.mxu0 %v8683
    %12796 = vmatpush.bf16.msra.mxu0 %v8659
    %12797 = vmatpush.bf16.msra.mxu0 %v8635
    %12798 = vmatpush.bf16.msra.mxu0 %v8611
    %12799 = vmatpush.bf16.msra.mxu0 %v8587
    %12800 = vmatmul.bf16.gmra.mxu0 %v2370
    %v12801 = vpop.f32.mrf.mxu0
    %v12802 = vadd.f32 %v3931, %v12801
    %v12803 = vpop.f32.mrf.mxu0
    %12804 = vdwg.mxu0
    %12805 = vmatpush.bf16.msra.mxu0 %v8947
    %12806 = vmatpush.bf16.msra.mxu0 %v8923
    %12807 = vmatpush.bf16.msra.mxu0 %v8899
    %12808 = vmatpush.bf16.msra.mxu0 %v8875
    %12809 = vmatpush.bf16.msra.mxu0 %v8851
    %12810 = vmatpush.bf16.msra.mxu0 %v8827
    %12811 = vmatpush.bf16.msra.mxu0 %v8803
    %12812 = vmatpush.bf16.msra.mxu0 %v8779
    %12813 = vmatmul.bf16.gmra.mxu0 %v2371
    %v12814 = vpop.f32.mrf.mxu0
    %v12815 = vadd.f32 %v12802, %v12814
    %v12816 = vpop.f32.mrf.mxu0
    %12817 = vdwg.mxu0
    %12818 = vmatpush.bf16.msra.mxu0 %v9139
    %12819 = vmatpush.bf16.msra.mxu0 %v9115
    %12820 = vmatpush.bf16.msra.mxu0 %v9091
    %12821 = vmatpush.bf16.msra.mxu0 %v9067
    %12822 = vmatpush.bf16.msra.mxu0 %v9043
    %12823 = vmatpush.bf16.msra.mxu0 %v9019
    %12824 = vmatpush.bf16.msra.mxu0 %v8995
    %12825 = vmatpush.bf16.msra.mxu0 %v8971
    %12826 = vmatmul.bf16.gmra.mxu0 %v2372
    %v12827 = vpop.f32.mrf.mxu0
    %v12828 = vadd.f32 %v12815, %v12827
    %v12829 = vpop.f32.mrf.mxu0
    %12830 = vdwg.mxu0
    %12831 = vmatpush.bf16.msra.mxu0 %v9331
    %12832 = vmatpush.bf16.msra.mxu0 %v9307
    %12833 = vmatpush.bf16.msra.mxu0 %v9283
    %12834 = vmatpush.bf16.msra.mxu0 %v9259
    %12835 = vmatpush.bf16.msra.mxu0 %v9235
    %12836 = vmatpush.bf16.msra.mxu0 %v9211
    %12837 = vmatpush.bf16.msra.mxu0 %v9187
    %12838 = vmatpush.bf16.msra.mxu0 %v9163
    %12839 = vmatmul.bf16.gmra.mxu0 %v2373
    %v12840 = vpop.f32.mrf.mxu0
    %v12841 = vadd.f32 %v12828, %v12840
    %v12842 = vpop.f32.mrf.mxu0
    %12843 = vdwg.mxu0
    %12844 = vmatpush.bf16.msra.mxu0 %v9523
    %12845 = vmatpush.bf16.msra.mxu0 %v9499
    %12846 = vmatpush.bf16.msra.mxu0 %v9475
    %12847 = vmatpush.bf16.msra.mxu0 %v9451
    %12848 = vmatpush.bf16.msra.mxu0 %v9427
    %12849 = vmatpush.bf16.msra.mxu0 %v9403
    %12850 = vmatpush.bf16.msra.mxu0 %v9379
    %12851 = vmatpush.bf16.msra.mxu0 %v9355
    %12852 = vmatmul.bf16.gmra.mxu0 %v2374
    %v12853 = vpop.f32.mrf.mxu0
    %v12854 = vadd.f32 %v12841, %v12853
    %v12855 = vpop.f32.mrf.mxu0
    %12856 = vdwg.mxu0
    %12857 = vmatpush.bf16.msra.mxu0 %v9715
    %12858 = vmatpush.bf16.msra.mxu0 %v9691
    %12859 = vmatpush.bf16.msra.mxu0 %v9667
    %12860 = vmatpush.bf16.msra.mxu0 %v9643
    %12861 = vmatpush.bf16.msra.mxu0 %v9619
    %12862 = vmatpush.bf16.msra.mxu0 %v9595
    %12863 = vmatpush.bf16.msra.mxu0 %v9571
    %12864 = vmatpush.bf16.msra.mxu0 %v9547
    %12865 = vmatmul.bf16.gmra.mxu0 %v2375
    %v12866 = vpop.f32.mrf.mxu0
    %v12867 = vadd.f32 %v12854, %v12866
    %v12868 = vpop.f32.mrf.mxu0
    %12869 = vdwg.mxu0
    %12870 = vmatpush.bf16.msra.mxu0 %v9907
    %12871 = vmatpush.bf16.msra.mxu0 %v9883
    %12872 = vmatpush.bf16.msra.mxu0 %v9859
    %12873 = vmatpush.bf16.msra.mxu0 %v9835
    %12874 = vmatpush.bf16.msra.mxu0 %v9811
    %12875 = vmatpush.bf16.msra.mxu0 %v9787
    %12876 = vmatpush.bf16.msra.mxu0 %v9763
    %12877 = vmatpush.bf16.msra.mxu0 %v9739
    %12878 = vmatmul.bf16.gmra.mxu0 %v2376
    %v12879 = vpop.f32.mrf.mxu0
    %v12880 = vadd.f32 %v12867, %v12879
    %v12881 = vpop.f32.mrf.mxu0
    %12882 = vdwg.mxu0
    %12883 = vmatpush.bf16.msra.mxu0 %v10099
    %12884 = vmatpush.bf16.msra.mxu0 %v10075
    %12885 = vmatpush.bf16.msra.mxu0 %v10051
    %12886 = vmatpush.bf16.msra.mxu0 %v10027
    %12887 = vmatpush.bf16.msra.mxu0 %v10003
    %12888 = vmatpush.bf16.msra.mxu0 %v9979
    %12889 = vmatpush.bf16.msra.mxu0 %v9955
    %12890 = vmatpush.bf16.msra.mxu0 %v9931
    %12891 = vmatmul.bf16.gmra.mxu0 %v2377
    %v12892 = vpop.f32.mrf.mxu0
    %v12893 = vadd.f32 %v12880, %v12892
    %v12894 = vpop.f32.mrf.mxu0
    %12895 = vdwg.mxu0
    %12896 = vmatpush.bf16.msra.mxu0 %v8756
    %12897 = vmatpush.bf16.msra.mxu0 %v8732
    %12898 = vmatpush.bf16.msra.mxu0 %v8708
    %12899 = vmatpush.bf16.msra.mxu0 %v8684
    %12900 = vmatpush.bf16.msra.mxu0 %v8660
    %12901 = vmatpush.bf16.msra.mxu0 %v8636
    %12902 = vmatpush.bf16.msra.mxu0 %v8612
    %12903 = vmatpush.bf16.msra.mxu0 %v8588
    %12904 = vmatmul.bf16.gmra.mxu0 %v2370
    %v12905 = vpop.f32.mrf.mxu0
    %v12906 = vadd.f32 %v3932, %v12905
    %v12907 = vpop.f32.mrf.mxu0
    %12908 = vdwg.mxu0
    %12909 = vmatpush.bf16.msra.mxu0 %v8948
    %12910 = vmatpush.bf16.msra.mxu0 %v8924
    %12911 = vmatpush.bf16.msra.mxu0 %v8900
    %12912 = vmatpush.bf16.msra.mxu0 %v8876
    %12913 = vmatpush.bf16.msra.mxu0 %v8852
    %12914 = vmatpush.bf16.msra.mxu0 %v8828
    %12915 = vmatpush.bf16.msra.mxu0 %v8804
    %12916 = vmatpush.bf16.msra.mxu0 %v8780
    %12917 = vmatmul.bf16.gmra.mxu0 %v2371
    %v12918 = vpop.f32.mrf.mxu0
    %v12919 = vadd.f32 %v12906, %v12918
    %v12920 = vpop.f32.mrf.mxu0
    %12921 = vdwg.mxu0
    %12922 = vmatpush.bf16.msra.mxu0 %v9140
    %12923 = vmatpush.bf16.msra.mxu0 %v9116
    %12924 = vmatpush.bf16.msra.mxu0 %v9092
    %12925 = vmatpush.bf16.msra.mxu0 %v9068
    %12926 = vmatpush.bf16.msra.mxu0 %v9044
    %12927 = vmatpush.bf16.msra.mxu0 %v9020
    %12928 = vmatpush.bf16.msra.mxu0 %v8996
    %12929 = vmatpush.bf16.msra.mxu0 %v8972
    %12930 = vmatmul.bf16.gmra.mxu0 %v2372
    %v12931 = vpop.f32.mrf.mxu0
    %v12932 = vadd.f32 %v12919, %v12931
    %v12933 = vpop.f32.mrf.mxu0
    %12934 = vdwg.mxu0
    %12935 = vmatpush.bf16.msra.mxu0 %v9332
    %12936 = vmatpush.bf16.msra.mxu0 %v9308
    %12937 = vmatpush.bf16.msra.mxu0 %v9284
    %12938 = vmatpush.bf16.msra.mxu0 %v9260
    %12939 = vmatpush.bf16.msra.mxu0 %v9236
    %12940 = vmatpush.bf16.msra.mxu0 %v9212
    %12941 = vmatpush.bf16.msra.mxu0 %v9188
    %12942 = vmatpush.bf16.msra.mxu0 %v9164
    %12943 = vmatmul.bf16.gmra.mxu0 %v2373
    %v12944 = vpop.f32.mrf.mxu0
    %v12945 = vadd.f32 %v12932, %v12944
    %v12946 = vpop.f32.mrf.mxu0
    %12947 = vdwg.mxu0
    %12948 = vmatpush.bf16.msra.mxu0 %v9524
    %12949 = vmatpush.bf16.msra.mxu0 %v9500
    %12950 = vmatpush.bf16.msra.mxu0 %v9476
    %12951 = vmatpush.bf16.msra.mxu0 %v9452
    %12952 = vmatpush.bf16.msra.mxu0 %v9428
    %12953 = vmatpush.bf16.msra.mxu0 %v9404
    %12954 = vmatpush.bf16.msra.mxu0 %v9380
    %12955 = vmatpush.bf16.msra.mxu0 %v9356
    %12956 = vmatmul.bf16.gmra.mxu0 %v2374
    %v12957 = vpop.f32.mrf.mxu0
    %v12958 = vadd.f32 %v12945, %v12957
    %v12959 = vpop.f32.mrf.mxu0
    %12960 = vdwg.mxu0
    %12961 = vmatpush.bf16.msra.mxu0 %v9716
    %12962 = vmatpush.bf16.msra.mxu0 %v9692
    %12963 = vmatpush.bf16.msra.mxu0 %v9668
    %12964 = vmatpush.bf16.msra.mxu0 %v9644
    %12965 = vmatpush.bf16.msra.mxu0 %v9620
    %12966 = vmatpush.bf16.msra.mxu0 %v9596
    %12967 = vmatpush.bf16.msra.mxu0 %v9572
    %12968 = vmatpush.bf16.msra.mxu0 %v9548
    %12969 = vmatmul.bf16.gmra.mxu0 %v2375
    %v12970 = vpop.f32.mrf.mxu0
    %v12971 = vadd.f32 %v12958, %v12970
    %v12972 = vpop.f32.mrf.mxu0
    %12973 = vdwg.mxu0
    %12974 = vmatpush.bf16.msra.mxu0 %v9908
    %12975 = vmatpush.bf16.msra.mxu0 %v9884
    %12976 = vmatpush.bf16.msra.mxu0 %v9860
    %12977 = vmatpush.bf16.msra.mxu0 %v9836
    %12978 = vmatpush.bf16.msra.mxu0 %v9812
    %12979 = vmatpush.bf16.msra.mxu0 %v9788
    %12980 = vmatpush.bf16.msra.mxu0 %v9764
    %12981 = vmatpush.bf16.msra.mxu0 %v9740
    %12982 = vmatmul.bf16.gmra.mxu0 %v2376
    %v12983 = vpop.f32.mrf.mxu0
    %v12984 = vadd.f32 %v12971, %v12983
    %v12985 = vpop.f32.mrf.mxu0
    %12986 = vdwg.mxu0
    %12987 = vmatpush.bf16.msra.mxu0 %v10100
    %12988 = vmatpush.bf16.msra.mxu0 %v10076
    %12989 = vmatpush.bf16.msra.mxu0 %v10052
    %12990 = vmatpush.bf16.msra.mxu0 %v10028
    %12991 = vmatpush.bf16.msra.mxu0 %v10004
    %12992 = vmatpush.bf16.msra.mxu0 %v9980
    %12993 = vmatpush.bf16.msra.mxu0 %v9956
    %12994 = vmatpush.bf16.msra.mxu0 %v9932
    %12995 = vmatmul.bf16.gmra.mxu0 %v2377
    %v12996 = vpop.f32.mrf.mxu0
    %v12997 = vadd.f32 %v12984, %v12996
    %v12998 = vpop.f32.mrf.mxu0
    %12999 = vdwg.mxu0
    %13000 = vmatpush.bf16.msra.mxu0 %v8757
    %13001 = vmatpush.bf16.msra.mxu0 %v8733
    %13002 = vmatpush.bf16.msra.mxu0 %v8709
    %13003 = vmatpush.bf16.msra.mxu0 %v8685
    %13004 = vmatpush.bf16.msra.mxu0 %v8661
    %13005 = vmatpush.bf16.msra.mxu0 %v8637
    %13006 = vmatpush.bf16.msra.mxu0 %v8613
    %13007 = vmatpush.bf16.msra.mxu0 %v8589
    %13008 = vmatmul.bf16.gmra.mxu0 %v2370
    %v13009 = vpop.f32.mrf.mxu0
    %v13010 = vadd.f32 %v3933, %v13009
    %v13011 = vpop.f32.mrf.mxu0
    %13012 = vdwg.mxu0
    %13013 = vmatpush.bf16.msra.mxu0 %v8949
    %13014 = vmatpush.bf16.msra.mxu0 %v8925
    %13015 = vmatpush.bf16.msra.mxu0 %v8901
    %13016 = vmatpush.bf16.msra.mxu0 %v8877
    %13017 = vmatpush.bf16.msra.mxu0 %v8853
    %13018 = vmatpush.bf16.msra.mxu0 %v8829
    %13019 = vmatpush.bf16.msra.mxu0 %v8805
    %13020 = vmatpush.bf16.msra.mxu0 %v8781
    %13021 = vmatmul.bf16.gmra.mxu0 %v2371
    %v13022 = vpop.f32.mrf.mxu0
    %v13023 = vadd.f32 %v13010, %v13022
    %v13024 = vpop.f32.mrf.mxu0
    %13025 = vdwg.mxu0
    %13026 = vmatpush.bf16.msra.mxu0 %v9141
    %13027 = vmatpush.bf16.msra.mxu0 %v9117
    %13028 = vmatpush.bf16.msra.mxu0 %v9093
    %13029 = vmatpush.bf16.msra.mxu0 %v9069
    %13030 = vmatpush.bf16.msra.mxu0 %v9045
    %13031 = vmatpush.bf16.msra.mxu0 %v9021
    %13032 = vmatpush.bf16.msra.mxu0 %v8997
    %13033 = vmatpush.bf16.msra.mxu0 %v8973
    %13034 = vmatmul.bf16.gmra.mxu0 %v2372
    %v13035 = vpop.f32.mrf.mxu0
    %v13036 = vadd.f32 %v13023, %v13035
    %v13037 = vpop.f32.mrf.mxu0
    %13038 = vdwg.mxu0
    %13039 = vmatpush.bf16.msra.mxu0 %v9333
    %13040 = vmatpush.bf16.msra.mxu0 %v9309
    %13041 = vmatpush.bf16.msra.mxu0 %v9285
    %13042 = vmatpush.bf16.msra.mxu0 %v9261
    %13043 = vmatpush.bf16.msra.mxu0 %v9237
    %13044 = vmatpush.bf16.msra.mxu0 %v9213
    %13045 = vmatpush.bf16.msra.mxu0 %v9189
    %13046 = vmatpush.bf16.msra.mxu0 %v9165
    %13047 = vmatmul.bf16.gmra.mxu0 %v2373
    %v13048 = vpop.f32.mrf.mxu0
    %v13049 = vadd.f32 %v13036, %v13048
    %v13050 = vpop.f32.mrf.mxu0
    %13051 = vdwg.mxu0
    %13052 = vmatpush.bf16.msra.mxu0 %v9525
    %13053 = vmatpush.bf16.msra.mxu0 %v9501
    %13054 = vmatpush.bf16.msra.mxu0 %v9477
    %13055 = vmatpush.bf16.msra.mxu0 %v9453
    %13056 = vmatpush.bf16.msra.mxu0 %v9429
    %13057 = vmatpush.bf16.msra.mxu0 %v9405
    %13058 = vmatpush.bf16.msra.mxu0 %v9381
    %13059 = vmatpush.bf16.msra.mxu0 %v9357
    %13060 = vmatmul.bf16.gmra.mxu0 %v2374
    %v13061 = vpop.f32.mrf.mxu0
    %v13062 = vadd.f32 %v13049, %v13061
    %v13063 = vpop.f32.mrf.mxu0
    %13064 = vdwg.mxu0
    %13065 = vmatpush.bf16.msra.mxu0 %v9717
    %13066 = vmatpush.bf16.msra.mxu0 %v9693
    %13067 = vmatpush.bf16.msra.mxu0 %v9669
    %13068 = vmatpush.bf16.msra.mxu0 %v9645
    %13069 = vmatpush.bf16.msra.mxu0 %v9621
    %13070 = vmatpush.bf16.msra.mxu0 %v9597
    %13071 = vmatpush.bf16.msra.mxu0 %v9573
    %13072 = vmatpush.bf16.msra.mxu0 %v9549
    %13073 = vmatmul.bf16.gmra.mxu0 %v2375
    %v13074 = vpop.f32.mrf.mxu0
    %v13075 = vadd.f32 %v13062, %v13074
    %v13076 = vpop.f32.mrf.mxu0
    %13077 = vdwg.mxu0
    %13078 = vmatpush.bf16.msra.mxu0 %v9909
    %13079 = vmatpush.bf16.msra.mxu0 %v9885
    %13080 = vmatpush.bf16.msra.mxu0 %v9861
    %13081 = vmatpush.bf16.msra.mxu0 %v9837
    %13082 = vmatpush.bf16.msra.mxu0 %v9813
    %13083 = vmatpush.bf16.msra.mxu0 %v9789
    %13084 = vmatpush.bf16.msra.mxu0 %v9765
    %13085 = vmatpush.bf16.msra.mxu0 %v9741
    %13086 = vmatmul.bf16.gmra.mxu0 %v2376
    %v13087 = vpop.f32.mrf.mxu0
    %v13088 = vadd.f32 %v13075, %v13087
    %v13089 = vpop.f32.mrf.mxu0
    %13090 = vdwg.mxu0
    %13091 = vmatpush.bf16.msra.mxu0 %v10101
    %13092 = vmatpush.bf16.msra.mxu0 %v10077
    %13093 = vmatpush.bf16.msra.mxu0 %v10053
    %13094 = vmatpush.bf16.msra.mxu0 %v10029
    %13095 = vmatpush.bf16.msra.mxu0 %v10005
    %13096 = vmatpush.bf16.msra.mxu0 %v9981
    %13097 = vmatpush.bf16.msra.mxu0 %v9957
    %13098 = vmatpush.bf16.msra.mxu0 %v9933
    %13099 = vmatmul.bf16.gmra.mxu0 %v2377
    %v13100 = vpop.f32.mrf.mxu0
    %v13101 = vadd.f32 %v13088, %v13100
    %v13102 = vpop.f32.mrf.mxu0
    %13103 = vdwg.mxu0
    %13104 = vmatpush.bf16.msra.mxu0 %v8758
    %13105 = vmatpush.bf16.msra.mxu0 %v8734
    %13106 = vmatpush.bf16.msra.mxu0 %v8710
    %13107 = vmatpush.bf16.msra.mxu0 %v8686
    %13108 = vmatpush.bf16.msra.mxu0 %v8662
    %13109 = vmatpush.bf16.msra.mxu0 %v8638
    %13110 = vmatpush.bf16.msra.mxu0 %v8614
    %13111 = vmatpush.bf16.msra.mxu0 %v8590
    %13112 = vmatmul.bf16.gmra.mxu0 %v2370
    %v13113 = vpop.f32.mrf.mxu0
    %v13114 = vadd.f32 %v3934, %v13113
    %v13115 = vpop.f32.mrf.mxu0
    %13116 = vdwg.mxu0
    %13117 = vmatpush.bf16.msra.mxu0 %v8950
    %13118 = vmatpush.bf16.msra.mxu0 %v8926
    %13119 = vmatpush.bf16.msra.mxu0 %v8902
    %13120 = vmatpush.bf16.msra.mxu0 %v8878
    %13121 = vmatpush.bf16.msra.mxu0 %v8854
    %13122 = vmatpush.bf16.msra.mxu0 %v8830
    %13123 = vmatpush.bf16.msra.mxu0 %v8806
    %13124 = vmatpush.bf16.msra.mxu0 %v8782
    %13125 = vmatmul.bf16.gmra.mxu0 %v2371
    %v13126 = vpop.f32.mrf.mxu0
    %v13127 = vadd.f32 %v13114, %v13126
    %v13128 = vpop.f32.mrf.mxu0
    %13129 = vdwg.mxu0
    %13130 = vmatpush.bf16.msra.mxu0 %v9142
    %13131 = vmatpush.bf16.msra.mxu0 %v9118
    %13132 = vmatpush.bf16.msra.mxu0 %v9094
    %13133 = vmatpush.bf16.msra.mxu0 %v9070
    %13134 = vmatpush.bf16.msra.mxu0 %v9046
    %13135 = vmatpush.bf16.msra.mxu0 %v9022
    %13136 = vmatpush.bf16.msra.mxu0 %v8998
    %13137 = vmatpush.bf16.msra.mxu0 %v8974
    %13138 = vmatmul.bf16.gmra.mxu0 %v2372
    %v13139 = vpop.f32.mrf.mxu0
    %v13140 = vadd.f32 %v13127, %v13139
    %v13141 = vpop.f32.mrf.mxu0
    %13142 = vdwg.mxu0
    %13143 = vmatpush.bf16.msra.mxu0 %v9334
    %13144 = vmatpush.bf16.msra.mxu0 %v9310
    %13145 = vmatpush.bf16.msra.mxu0 %v9286
    %13146 = vmatpush.bf16.msra.mxu0 %v9262
    %13147 = vmatpush.bf16.msra.mxu0 %v9238
    %13148 = vmatpush.bf16.msra.mxu0 %v9214
    %13149 = vmatpush.bf16.msra.mxu0 %v9190
    %13150 = vmatpush.bf16.msra.mxu0 %v9166
    %13151 = vmatmul.bf16.gmra.mxu0 %v2373
    %v13152 = vpop.f32.mrf.mxu0
    %v13153 = vadd.f32 %v13140, %v13152
    %v13154 = vpop.f32.mrf.mxu0
    %13155 = vdwg.mxu0
    %13156 = vmatpush.bf16.msra.mxu0 %v9526
    %13157 = vmatpush.bf16.msra.mxu0 %v9502
    %13158 = vmatpush.bf16.msra.mxu0 %v9478
    %13159 = vmatpush.bf16.msra.mxu0 %v9454
    %13160 = vmatpush.bf16.msra.mxu0 %v9430
    %13161 = vmatpush.bf16.msra.mxu0 %v9406
    %13162 = vmatpush.bf16.msra.mxu0 %v9382
    %13163 = vmatpush.bf16.msra.mxu0 %v9358
    %13164 = vmatmul.bf16.gmra.mxu0 %v2374
    %v13165 = vpop.f32.mrf.mxu0
    %v13166 = vadd.f32 %v13153, %v13165
    %v13167 = vpop.f32.mrf.mxu0
    %13168 = vdwg.mxu0
    %13169 = vmatpush.bf16.msra.mxu0 %v9718
    %13170 = vmatpush.bf16.msra.mxu0 %v9694
    %13171 = vmatpush.bf16.msra.mxu0 %v9670
    %13172 = vmatpush.bf16.msra.mxu0 %v9646
    %13173 = vmatpush.bf16.msra.mxu0 %v9622
    %13174 = vmatpush.bf16.msra.mxu0 %v9598
    %13175 = vmatpush.bf16.msra.mxu0 %v9574
    %13176 = vmatpush.bf16.msra.mxu0 %v9550
    %13177 = vmatmul.bf16.gmra.mxu0 %v2375
    %v13178 = vpop.f32.mrf.mxu0
    %v13179 = vadd.f32 %v13166, %v13178
    %v13180 = vpop.f32.mrf.mxu0
    %13181 = vdwg.mxu0
    %13182 = vmatpush.bf16.msra.mxu0 %v9910
    %13183 = vmatpush.bf16.msra.mxu0 %v9886
    %13184 = vmatpush.bf16.msra.mxu0 %v9862
    %13185 = vmatpush.bf16.msra.mxu0 %v9838
    %13186 = vmatpush.bf16.msra.mxu0 %v9814
    %13187 = vmatpush.bf16.msra.mxu0 %v9790
    %13188 = vmatpush.bf16.msra.mxu0 %v9766
    %13189 = vmatpush.bf16.msra.mxu0 %v9742
    %13190 = vmatmul.bf16.gmra.mxu0 %v2376
    %v13191 = vpop.f32.mrf.mxu0
    %v13192 = vadd.f32 %v13179, %v13191
    %v13193 = vpop.f32.mrf.mxu0
    %13194 = vdwg.mxu0
    %13195 = vmatpush.bf16.msra.mxu0 %v10102
    %13196 = vmatpush.bf16.msra.mxu0 %v10078
    %13197 = vmatpush.bf16.msra.mxu0 %v10054
    %13198 = vmatpush.bf16.msra.mxu0 %v10030
    %13199 = vmatpush.bf16.msra.mxu0 %v10006
    %13200 = vmatpush.bf16.msra.mxu0 %v9982
    %13201 = vmatpush.bf16.msra.mxu0 %v9958
    %13202 = vmatpush.bf16.msra.mxu0 %v9934
    %13203 = vmatmul.bf16.gmra.mxu0 %v2377
    %v13204 = vpop.f32.mrf.mxu0
    %v13205 = vadd.f32 %v13192, %v13204
    %v13206 = vpop.f32.mrf.mxu0
    %13207 = vdwg.mxu0
    %13208 = vmatpush.bf16.msra.mxu0 %v8759
    %13209 = vmatpush.bf16.msra.mxu0 %v8735
    %13210 = vmatpush.bf16.msra.mxu0 %v8711
    %13211 = vmatpush.bf16.msra.mxu0 %v8687
    %13212 = vmatpush.bf16.msra.mxu0 %v8663
    %13213 = vmatpush.bf16.msra.mxu0 %v8639
    %13214 = vmatpush.bf16.msra.mxu0 %v8615
    %13215 = vmatpush.bf16.msra.mxu0 %v8591
    %13216 = vmatmul.bf16.gmra.mxu0 %v2370
    %v13217 = vpop.f32.mrf.mxu0
    %v13218 = vadd.f32 %v3935, %v13217
    %v13219 = vpop.f32.mrf.mxu0
    %13220 = vdwg.mxu0
    %13221 = vmatpush.bf16.msra.mxu0 %v8951
    %13222 = vmatpush.bf16.msra.mxu0 %v8927
    %13223 = vmatpush.bf16.msra.mxu0 %v8903
    %13224 = vmatpush.bf16.msra.mxu0 %v8879
    %13225 = vmatpush.bf16.msra.mxu0 %v8855
    %13226 = vmatpush.bf16.msra.mxu0 %v8831
    %13227 = vmatpush.bf16.msra.mxu0 %v8807
    %13228 = vmatpush.bf16.msra.mxu0 %v8783
    %13229 = vmatmul.bf16.gmra.mxu0 %v2371
    %v13230 = vpop.f32.mrf.mxu0
    %v13231 = vadd.f32 %v13218, %v13230
    %v13232 = vpop.f32.mrf.mxu0
    %13233 = vdwg.mxu0
    %13234 = vmatpush.bf16.msra.mxu0 %v9143
    %13235 = vmatpush.bf16.msra.mxu0 %v9119
    %13236 = vmatpush.bf16.msra.mxu0 %v9095
    %13237 = vmatpush.bf16.msra.mxu0 %v9071
    %13238 = vmatpush.bf16.msra.mxu0 %v9047
    %13239 = vmatpush.bf16.msra.mxu0 %v9023
    %13240 = vmatpush.bf16.msra.mxu0 %v8999
    %13241 = vmatpush.bf16.msra.mxu0 %v8975
    %13242 = vmatmul.bf16.gmra.mxu0 %v2372
    %v13243 = vpop.f32.mrf.mxu0
    %v13244 = vadd.f32 %v13231, %v13243
    %v13245 = vpop.f32.mrf.mxu0
    %13246 = vdwg.mxu0
    %13247 = vmatpush.bf16.msra.mxu0 %v9335
    %13248 = vmatpush.bf16.msra.mxu0 %v9311
    %13249 = vmatpush.bf16.msra.mxu0 %v9287
    %13250 = vmatpush.bf16.msra.mxu0 %v9263
    %13251 = vmatpush.bf16.msra.mxu0 %v9239
    %13252 = vmatpush.bf16.msra.mxu0 %v9215
    %13253 = vmatpush.bf16.msra.mxu0 %v9191
    %13254 = vmatpush.bf16.msra.mxu0 %v9167
    %13255 = vmatmul.bf16.gmra.mxu0 %v2373
    %v13256 = vpop.f32.mrf.mxu0
    %v13257 = vadd.f32 %v13244, %v13256
    %v13258 = vpop.f32.mrf.mxu0
    %13259 = vdwg.mxu0
    %13260 = vmatpush.bf16.msra.mxu0 %v9527
    %13261 = vmatpush.bf16.msra.mxu0 %v9503
    %13262 = vmatpush.bf16.msra.mxu0 %v9479
    %13263 = vmatpush.bf16.msra.mxu0 %v9455
    %13264 = vmatpush.bf16.msra.mxu0 %v9431
    %13265 = vmatpush.bf16.msra.mxu0 %v9407
    %13266 = vmatpush.bf16.msra.mxu0 %v9383
    %13267 = vmatpush.bf16.msra.mxu0 %v9359
    %13268 = vmatmul.bf16.gmra.mxu0 %v2374
    %v13269 = vpop.f32.mrf.mxu0
    %v13270 = vadd.f32 %v13257, %v13269
    %v13271 = vpop.f32.mrf.mxu0
    %13272 = vdwg.mxu0
    %13273 = vmatpush.bf16.msra.mxu0 %v9719
    %13274 = vmatpush.bf16.msra.mxu0 %v9695
    %13275 = vmatpush.bf16.msra.mxu0 %v9671
    %13276 = vmatpush.bf16.msra.mxu0 %v9647
    %13277 = vmatpush.bf16.msra.mxu0 %v9623
    %13278 = vmatpush.bf16.msra.mxu0 %v9599
    %13279 = vmatpush.bf16.msra.mxu0 %v9575
    %13280 = vmatpush.bf16.msra.mxu0 %v9551
    %13281 = vmatmul.bf16.gmra.mxu0 %v2375
    %v13282 = vpop.f32.mrf.mxu0
    %v13283 = vadd.f32 %v13270, %v13282
    %v13284 = vpop.f32.mrf.mxu0
    %13285 = vdwg.mxu0
    %13286 = vmatpush.bf16.msra.mxu0 %v9911
    %13287 = vmatpush.bf16.msra.mxu0 %v9887
    %13288 = vmatpush.bf16.msra.mxu0 %v9863
    %13289 = vmatpush.bf16.msra.mxu0 %v9839
    %13290 = vmatpush.bf16.msra.mxu0 %v9815
    %13291 = vmatpush.bf16.msra.mxu0 %v9791
    %13292 = vmatpush.bf16.msra.mxu0 %v9767
    %13293 = vmatpush.bf16.msra.mxu0 %v9743
    %13294 = vmatmul.bf16.gmra.mxu0 %v2376
    %v13295 = vpop.f32.mrf.mxu0
    %v13296 = vadd.f32 %v13283, %v13295
    %v13297 = vpop.f32.mrf.mxu0
    %13298 = vdwg.mxu0
    %13299 = vmatpush.bf16.msra.mxu0 %v10103
    %13300 = vmatpush.bf16.msra.mxu0 %v10079
    %13301 = vmatpush.bf16.msra.mxu0 %v10055
    %13302 = vmatpush.bf16.msra.mxu0 %v10031
    %13303 = vmatpush.bf16.msra.mxu0 %v10007
    %13304 = vmatpush.bf16.msra.mxu0 %v9983
    %13305 = vmatpush.bf16.msra.mxu0 %v9959
    %13306 = vmatpush.bf16.msra.mxu0 %v9935
    %13307 = vmatmul.bf16.gmra.mxu0 %v2377
    %v13308 = vpop.f32.mrf.mxu0
    %v13309 = vadd.f32 %v13296, %v13308
    %v13310 = vpop.f32.mrf.mxu0
    %13311 = vdwg.mxu0
    %13312 = vmatpush.bf16.msra.mxu0 %v8760
    %13313 = vmatpush.bf16.msra.mxu0 %v8736
    %13314 = vmatpush.bf16.msra.mxu0 %v8712
    %13315 = vmatpush.bf16.msra.mxu0 %v8688
    %13316 = vmatpush.bf16.msra.mxu0 %v8664
    %13317 = vmatpush.bf16.msra.mxu0 %v8640
    %13318 = vmatpush.bf16.msra.mxu0 %v8616
    %13319 = vmatpush.bf16.msra.mxu0 %v8592
    %13320 = vmatmul.bf16.gmra.mxu0 %v2370
    %v13321 = vpop.f32.mrf.mxu0
    %v13322 = vadd.f32 %v3936, %v13321
    %v13323 = vpop.f32.mrf.mxu0
    %13324 = vdwg.mxu0
    %13325 = vmatpush.bf16.msra.mxu0 %v8952
    %13326 = vmatpush.bf16.msra.mxu0 %v8928
    %13327 = vmatpush.bf16.msra.mxu0 %v8904
    %13328 = vmatpush.bf16.msra.mxu0 %v8880
    %13329 = vmatpush.bf16.msra.mxu0 %v8856
    %13330 = vmatpush.bf16.msra.mxu0 %v8832
    %13331 = vmatpush.bf16.msra.mxu0 %v8808
    %13332 = vmatpush.bf16.msra.mxu0 %v8784
    %13333 = vmatmul.bf16.gmra.mxu0 %v2371
    %v13334 = vpop.f32.mrf.mxu0
    %v13335 = vadd.f32 %v13322, %v13334
    %v13336 = vpop.f32.mrf.mxu0
    %13337 = vdwg.mxu0
    %13338 = vmatpush.bf16.msra.mxu0 %v9144
    %13339 = vmatpush.bf16.msra.mxu0 %v9120
    %13340 = vmatpush.bf16.msra.mxu0 %v9096
    %13341 = vmatpush.bf16.msra.mxu0 %v9072
    %13342 = vmatpush.bf16.msra.mxu0 %v9048
    %13343 = vmatpush.bf16.msra.mxu0 %v9024
    %13344 = vmatpush.bf16.msra.mxu0 %v9000
    %13345 = vmatpush.bf16.msra.mxu0 %v8976
    %13346 = vmatmul.bf16.gmra.mxu0 %v2372
    %v13347 = vpop.f32.mrf.mxu0
    %v13348 = vadd.f32 %v13335, %v13347
    %v13349 = vpop.f32.mrf.mxu0
    %13350 = vdwg.mxu0
    %13351 = vmatpush.bf16.msra.mxu0 %v9336
    %13352 = vmatpush.bf16.msra.mxu0 %v9312
    %13353 = vmatpush.bf16.msra.mxu0 %v9288
    %13354 = vmatpush.bf16.msra.mxu0 %v9264
    %13355 = vmatpush.bf16.msra.mxu0 %v9240
    %13356 = vmatpush.bf16.msra.mxu0 %v9216
    %13357 = vmatpush.bf16.msra.mxu0 %v9192
    %13358 = vmatpush.bf16.msra.mxu0 %v9168
    %13359 = vmatmul.bf16.gmra.mxu0 %v2373
    %v13360 = vpop.f32.mrf.mxu0
    %v13361 = vadd.f32 %v13348, %v13360
    %v13362 = vpop.f32.mrf.mxu0
    %13363 = vdwg.mxu0
    %13364 = vmatpush.bf16.msra.mxu0 %v9528
    %13365 = vmatpush.bf16.msra.mxu0 %v9504
    %13366 = vmatpush.bf16.msra.mxu0 %v9480
    %13367 = vmatpush.bf16.msra.mxu0 %v9456
    %13368 = vmatpush.bf16.msra.mxu0 %v9432
    %13369 = vmatpush.bf16.msra.mxu0 %v9408
    %13370 = vmatpush.bf16.msra.mxu0 %v9384
    %13371 = vmatpush.bf16.msra.mxu0 %v9360
    %13372 = vmatmul.bf16.gmra.mxu0 %v2374
    %v13373 = vpop.f32.mrf.mxu0
    %v13374 = vadd.f32 %v13361, %v13373
    %v13375 = vpop.f32.mrf.mxu0
    %13376 = vdwg.mxu0
    %13377 = vmatpush.bf16.msra.mxu0 %v9720
    %13378 = vmatpush.bf16.msra.mxu0 %v9696
    %13379 = vmatpush.bf16.msra.mxu0 %v9672
    %13380 = vmatpush.bf16.msra.mxu0 %v9648
    %13381 = vmatpush.bf16.msra.mxu0 %v9624
    %13382 = vmatpush.bf16.msra.mxu0 %v9600
    %13383 = vmatpush.bf16.msra.mxu0 %v9576
    %13384 = vmatpush.bf16.msra.mxu0 %v9552
    %13385 = vmatmul.bf16.gmra.mxu0 %v2375
    %v13386 = vpop.f32.mrf.mxu0
    %v13387 = vadd.f32 %v13374, %v13386
    %v13388 = vpop.f32.mrf.mxu0
    %13389 = vdwg.mxu0
    %13390 = vmatpush.bf16.msra.mxu0 %v9912
    %13391 = vmatpush.bf16.msra.mxu0 %v9888
    %13392 = vmatpush.bf16.msra.mxu0 %v9864
    %13393 = vmatpush.bf16.msra.mxu0 %v9840
    %13394 = vmatpush.bf16.msra.mxu0 %v9816
    %13395 = vmatpush.bf16.msra.mxu0 %v9792
    %13396 = vmatpush.bf16.msra.mxu0 %v9768
    %13397 = vmatpush.bf16.msra.mxu0 %v9744
    %13398 = vmatmul.bf16.gmra.mxu0 %v2376
    %v13399 = vpop.f32.mrf.mxu0
    %v13400 = vadd.f32 %v13387, %v13399
    %v13401 = vpop.f32.mrf.mxu0
    %13402 = vdwg.mxu0
    %13403 = vmatpush.bf16.msra.mxu0 %v10104
    %13404 = vmatpush.bf16.msra.mxu0 %v10080
    %13405 = vmatpush.bf16.msra.mxu0 %v10056
    %13406 = vmatpush.bf16.msra.mxu0 %v10032
    %13407 = vmatpush.bf16.msra.mxu0 %v10008
    %13408 = vmatpush.bf16.msra.mxu0 %v9984
    %13409 = vmatpush.bf16.msra.mxu0 %v9960
    %13410 = vmatpush.bf16.msra.mxu0 %v9936
    %13411 = vmatmul.bf16.gmra.mxu0 %v2377
    %v13412 = vpop.f32.mrf.mxu0
    %v13413 = vadd.f32 %v13400, %v13412
    %v13414 = vpop.f32.mrf.mxu0
    %13415 = vdwg.mxu0
    %13416 = vmatpush.bf16.msra.mxu0 %v8761
    %13417 = vmatpush.bf16.msra.mxu0 %v8737
    %13418 = vmatpush.bf16.msra.mxu0 %v8713
    %13419 = vmatpush.bf16.msra.mxu0 %v8689
    %13420 = vmatpush.bf16.msra.mxu0 %v8665
    %13421 = vmatpush.bf16.msra.mxu0 %v8641
    %13422 = vmatpush.bf16.msra.mxu0 %v8617
    %13423 = vmatpush.bf16.msra.mxu0 %v8593
    %13424 = vmatmul.bf16.gmra.mxu0 %v2370
    %v13425 = vpop.f32.mrf.mxu0
    %v13426 = vadd.f32 %v3937, %v13425
    %v13427 = vpop.f32.mrf.mxu0
    %13428 = vdwg.mxu0
    %13429 = vmatpush.bf16.msra.mxu0 %v8953
    %13430 = vmatpush.bf16.msra.mxu0 %v8929
    %13431 = vmatpush.bf16.msra.mxu0 %v8905
    %13432 = vmatpush.bf16.msra.mxu0 %v8881
    %13433 = vmatpush.bf16.msra.mxu0 %v8857
    %13434 = vmatpush.bf16.msra.mxu0 %v8833
    %13435 = vmatpush.bf16.msra.mxu0 %v8809
    %13436 = vmatpush.bf16.msra.mxu0 %v8785
    %13437 = vmatmul.bf16.gmra.mxu0 %v2371
    %v13438 = vpop.f32.mrf.mxu0
    %v13439 = vadd.f32 %v13426, %v13438
    %v13440 = vpop.f32.mrf.mxu0
    %13441 = vdwg.mxu0
    %13442 = vmatpush.bf16.msra.mxu0 %v9145
    %13443 = vmatpush.bf16.msra.mxu0 %v9121
    %13444 = vmatpush.bf16.msra.mxu0 %v9097
    %13445 = vmatpush.bf16.msra.mxu0 %v9073
    %13446 = vmatpush.bf16.msra.mxu0 %v9049
    %13447 = vmatpush.bf16.msra.mxu0 %v9025
    %13448 = vmatpush.bf16.msra.mxu0 %v9001
    %13449 = vmatpush.bf16.msra.mxu0 %v8977
    %13450 = vmatmul.bf16.gmra.mxu0 %v2372
    %v13451 = vpop.f32.mrf.mxu0
    %v13452 = vadd.f32 %v13439, %v13451
    %v13453 = vpop.f32.mrf.mxu0
    %13454 = vdwg.mxu0
    %13455 = vmatpush.bf16.msra.mxu0 %v9337
    %13456 = vmatpush.bf16.msra.mxu0 %v9313
    %13457 = vmatpush.bf16.msra.mxu0 %v9289
    %13458 = vmatpush.bf16.msra.mxu0 %v9265
    %13459 = vmatpush.bf16.msra.mxu0 %v9241
    %13460 = vmatpush.bf16.msra.mxu0 %v9217
    %13461 = vmatpush.bf16.msra.mxu0 %v9193
    %13462 = vmatpush.bf16.msra.mxu0 %v9169
    %13463 = vmatmul.bf16.gmra.mxu0 %v2373
    %v13464 = vpop.f32.mrf.mxu0
    %v13465 = vadd.f32 %v13452, %v13464
    %v13466 = vpop.f32.mrf.mxu0
    %13467 = vdwg.mxu0
    %13468 = vmatpush.bf16.msra.mxu0 %v9529
    %13469 = vmatpush.bf16.msra.mxu0 %v9505
    %13470 = vmatpush.bf16.msra.mxu0 %v9481
    %13471 = vmatpush.bf16.msra.mxu0 %v9457
    %13472 = vmatpush.bf16.msra.mxu0 %v9433
    %13473 = vmatpush.bf16.msra.mxu0 %v9409
    %13474 = vmatpush.bf16.msra.mxu0 %v9385
    %13475 = vmatpush.bf16.msra.mxu0 %v9361
    %13476 = vmatmul.bf16.gmra.mxu0 %v2374
    %v13477 = vpop.f32.mrf.mxu0
    %v13478 = vadd.f32 %v13465, %v13477
    %v13479 = vpop.f32.mrf.mxu0
    %13480 = vdwg.mxu0
    %13481 = vmatpush.bf16.msra.mxu0 %v9721
    %13482 = vmatpush.bf16.msra.mxu0 %v9697
    %13483 = vmatpush.bf16.msra.mxu0 %v9673
    %13484 = vmatpush.bf16.msra.mxu0 %v9649
    %13485 = vmatpush.bf16.msra.mxu0 %v9625
    %13486 = vmatpush.bf16.msra.mxu0 %v9601
    %13487 = vmatpush.bf16.msra.mxu0 %v9577
    %13488 = vmatpush.bf16.msra.mxu0 %v9553
    %13489 = vmatmul.bf16.gmra.mxu0 %v2375
    %v13490 = vpop.f32.mrf.mxu0
    %v13491 = vadd.f32 %v13478, %v13490
    %v13492 = vpop.f32.mrf.mxu0
    %13493 = vdwg.mxu0
    %13494 = vmatpush.bf16.msra.mxu0 %v9913
    %13495 = vmatpush.bf16.msra.mxu0 %v9889
    %13496 = vmatpush.bf16.msra.mxu0 %v9865
    %13497 = vmatpush.bf16.msra.mxu0 %v9841
    %13498 = vmatpush.bf16.msra.mxu0 %v9817
    %13499 = vmatpush.bf16.msra.mxu0 %v9793
    %13500 = vmatpush.bf16.msra.mxu0 %v9769
    %13501 = vmatpush.bf16.msra.mxu0 %v9745
    %13502 = vmatmul.bf16.gmra.mxu0 %v2376
    %v13503 = vpop.f32.mrf.mxu0
    %v13504 = vadd.f32 %v13491, %v13503
    %v13505 = vpop.f32.mrf.mxu0
    %13506 = vdwg.mxu0
    %13507 = vmatpush.bf16.msra.mxu0 %v10105
    %13508 = vmatpush.bf16.msra.mxu0 %v10081
    %13509 = vmatpush.bf16.msra.mxu0 %v10057
    %13510 = vmatpush.bf16.msra.mxu0 %v10033
    %13511 = vmatpush.bf16.msra.mxu0 %v10009
    %13512 = vmatpush.bf16.msra.mxu0 %v9985
    %13513 = vmatpush.bf16.msra.mxu0 %v9961
    %13514 = vmatpush.bf16.msra.mxu0 %v9937
    %13515 = vmatmul.bf16.gmra.mxu0 %v2377
    %v13516 = vpop.f32.mrf.mxu0
    %v13517 = vadd.f32 %v13504, %v13516
    %v13518 = vpop.f32.mrf.mxu0
    %13519 = vdwg.mxu0
    %13520 = vmatpush.bf16.msra.mxu0 %v8762
    %13521 = vmatpush.bf16.msra.mxu0 %v8738
    %13522 = vmatpush.bf16.msra.mxu0 %v8714
    %13523 = vmatpush.bf16.msra.mxu0 %v8690
    %13524 = vmatpush.bf16.msra.mxu0 %v8666
    %13525 = vmatpush.bf16.msra.mxu0 %v8642
    %13526 = vmatpush.bf16.msra.mxu0 %v8618
    %13527 = vmatpush.bf16.msra.mxu0 %v8594
    %13528 = vmatmul.bf16.gmra.mxu0 %v2370
    %v13529 = vpop.f32.mrf.mxu0
    %v13530 = vadd.f32 %v3938, %v13529
    %v13531 = vpop.f32.mrf.mxu0
    %13532 = vdwg.mxu0
    %13533 = vmatpush.bf16.msra.mxu0 %v8954
    %13534 = vmatpush.bf16.msra.mxu0 %v8930
    %13535 = vmatpush.bf16.msra.mxu0 %v8906
    %13536 = vmatpush.bf16.msra.mxu0 %v8882
    %13537 = vmatpush.bf16.msra.mxu0 %v8858
    %13538 = vmatpush.bf16.msra.mxu0 %v8834
    %13539 = vmatpush.bf16.msra.mxu0 %v8810
    %13540 = vmatpush.bf16.msra.mxu0 %v8786
    %13541 = vmatmul.bf16.gmra.mxu0 %v2371
    %v13542 = vpop.f32.mrf.mxu0
    %v13543 = vadd.f32 %v13530, %v13542
    %v13544 = vpop.f32.mrf.mxu0
    %13545 = vdwg.mxu0
    %13546 = vmatpush.bf16.msra.mxu0 %v9146
    %13547 = vmatpush.bf16.msra.mxu0 %v9122
    %13548 = vmatpush.bf16.msra.mxu0 %v9098
    %13549 = vmatpush.bf16.msra.mxu0 %v9074
    %13550 = vmatpush.bf16.msra.mxu0 %v9050
    %13551 = vmatpush.bf16.msra.mxu0 %v9026
    %13552 = vmatpush.bf16.msra.mxu0 %v9002
    %13553 = vmatpush.bf16.msra.mxu0 %v8978
    %13554 = vmatmul.bf16.gmra.mxu0 %v2372
    %v13555 = vpop.f32.mrf.mxu0
    %v13556 = vadd.f32 %v13543, %v13555
    %v13557 = vpop.f32.mrf.mxu0
    %13558 = vdwg.mxu0
    %13559 = vmatpush.bf16.msra.mxu0 %v9338
    %13560 = vmatpush.bf16.msra.mxu0 %v9314
    %13561 = vmatpush.bf16.msra.mxu0 %v9290
    %13562 = vmatpush.bf16.msra.mxu0 %v9266
    %13563 = vmatpush.bf16.msra.mxu0 %v9242
    %13564 = vmatpush.bf16.msra.mxu0 %v9218
    %13565 = vmatpush.bf16.msra.mxu0 %v9194
    %13566 = vmatpush.bf16.msra.mxu0 %v9170
    %13567 = vmatmul.bf16.gmra.mxu0 %v2373
    %v13568 = vpop.f32.mrf.mxu0
    %v13569 = vadd.f32 %v13556, %v13568
    %v13570 = vpop.f32.mrf.mxu0
    %13571 = vdwg.mxu0
    %13572 = vmatpush.bf16.msra.mxu0 %v9530
    %13573 = vmatpush.bf16.msra.mxu0 %v9506
    %13574 = vmatpush.bf16.msra.mxu0 %v9482
    %13575 = vmatpush.bf16.msra.mxu0 %v9458
    %13576 = vmatpush.bf16.msra.mxu0 %v9434
    %13577 = vmatpush.bf16.msra.mxu0 %v9410
    %13578 = vmatpush.bf16.msra.mxu0 %v9386
    %13579 = vmatpush.bf16.msra.mxu0 %v9362
    %13580 = vmatmul.bf16.gmra.mxu0 %v2374
    %v13581 = vpop.f32.mrf.mxu0
    %v13582 = vadd.f32 %v13569, %v13581
    %v13583 = vpop.f32.mrf.mxu0
    %13584 = vdwg.mxu0
    %13585 = vmatpush.bf16.msra.mxu0 %v9722
    %13586 = vmatpush.bf16.msra.mxu0 %v9698
    %13587 = vmatpush.bf16.msra.mxu0 %v9674
    %13588 = vmatpush.bf16.msra.mxu0 %v9650
    %13589 = vmatpush.bf16.msra.mxu0 %v9626
    %13590 = vmatpush.bf16.msra.mxu0 %v9602
    %13591 = vmatpush.bf16.msra.mxu0 %v9578
    %13592 = vmatpush.bf16.msra.mxu0 %v9554
    %13593 = vmatmul.bf16.gmra.mxu0 %v2375
    %v13594 = vpop.f32.mrf.mxu0
    %v13595 = vadd.f32 %v13582, %v13594
    %v13596 = vpop.f32.mrf.mxu0
    %13597 = vdwg.mxu0
    %13598 = vmatpush.bf16.msra.mxu0 %v9914
    %13599 = vmatpush.bf16.msra.mxu0 %v9890
    %13600 = vmatpush.bf16.msra.mxu0 %v9866
    %13601 = vmatpush.bf16.msra.mxu0 %v9842
    %13602 = vmatpush.bf16.msra.mxu0 %v9818
    %13603 = vmatpush.bf16.msra.mxu0 %v9794
    %13604 = vmatpush.bf16.msra.mxu0 %v9770
    %13605 = vmatpush.bf16.msra.mxu0 %v9746
    %13606 = vmatmul.bf16.gmra.mxu0 %v2376
    %v13607 = vpop.f32.mrf.mxu0
    %v13608 = vadd.f32 %v13595, %v13607
    %v13609 = vpop.f32.mrf.mxu0
    %13610 = vdwg.mxu0
    %13611 = vmatpush.bf16.msra.mxu0 %v10106
    %13612 = vmatpush.bf16.msra.mxu0 %v10082
    %13613 = vmatpush.bf16.msra.mxu0 %v10058
    %13614 = vmatpush.bf16.msra.mxu0 %v10034
    %13615 = vmatpush.bf16.msra.mxu0 %v10010
    %13616 = vmatpush.bf16.msra.mxu0 %v9986
    %13617 = vmatpush.bf16.msra.mxu0 %v9962
    %13618 = vmatpush.bf16.msra.mxu0 %v9938
    %13619 = vmatmul.bf16.gmra.mxu0 %v2377
    %v13620 = vpop.f32.mrf.mxu0
    %v13621 = vadd.f32 %v13608, %v13620
    %v13622 = vpop.f32.mrf.mxu0
    %13623 = vdwg.mxu0
    %13624 = vmatpush.bf16.msra.mxu0 %v8763
    %13625 = vmatpush.bf16.msra.mxu0 %v8739
    %13626 = vmatpush.bf16.msra.mxu0 %v8715
    %13627 = vmatpush.bf16.msra.mxu0 %v8691
    %13628 = vmatpush.bf16.msra.mxu0 %v8667
    %13629 = vmatpush.bf16.msra.mxu0 %v8643
    %13630 = vmatpush.bf16.msra.mxu0 %v8619
    %13631 = vmatpush.bf16.msra.mxu0 %v8595
    %13632 = vmatmul.bf16.gmra.mxu0 %v2370
    %v13633 = vpop.f32.mrf.mxu0
    %v13634 = vadd.f32 %v3939, %v13633
    %v13635 = vpop.f32.mrf.mxu0
    %13636 = vdwg.mxu0
    %13637 = vmatpush.bf16.msra.mxu0 %v8955
    %13638 = vmatpush.bf16.msra.mxu0 %v8931
    %13639 = vmatpush.bf16.msra.mxu0 %v8907
    %13640 = vmatpush.bf16.msra.mxu0 %v8883
    %13641 = vmatpush.bf16.msra.mxu0 %v8859
    %13642 = vmatpush.bf16.msra.mxu0 %v8835
    %13643 = vmatpush.bf16.msra.mxu0 %v8811
    %13644 = vmatpush.bf16.msra.mxu0 %v8787
    %13645 = vmatmul.bf16.gmra.mxu0 %v2371
    %v13646 = vpop.f32.mrf.mxu0
    %v13647 = vadd.f32 %v13634, %v13646
    %v13648 = vpop.f32.mrf.mxu0
    %13649 = vdwg.mxu0
    %13650 = vmatpush.bf16.msra.mxu0 %v9147
    %13651 = vmatpush.bf16.msra.mxu0 %v9123
    %13652 = vmatpush.bf16.msra.mxu0 %v9099
    %13653 = vmatpush.bf16.msra.mxu0 %v9075
    %13654 = vmatpush.bf16.msra.mxu0 %v9051
    %13655 = vmatpush.bf16.msra.mxu0 %v9027
    %13656 = vmatpush.bf16.msra.mxu0 %v9003
    %13657 = vmatpush.bf16.msra.mxu0 %v8979
    %13658 = vmatmul.bf16.gmra.mxu0 %v2372
    %v13659 = vpop.f32.mrf.mxu0
    %v13660 = vadd.f32 %v13647, %v13659
    %v13661 = vpop.f32.mrf.mxu0
    %13662 = vdwg.mxu0
    %13663 = vmatpush.bf16.msra.mxu0 %v9339
    %13664 = vmatpush.bf16.msra.mxu0 %v9315
    %13665 = vmatpush.bf16.msra.mxu0 %v9291
    %13666 = vmatpush.bf16.msra.mxu0 %v9267
    %13667 = vmatpush.bf16.msra.mxu0 %v9243
    %13668 = vmatpush.bf16.msra.mxu0 %v9219
    %13669 = vmatpush.bf16.msra.mxu0 %v9195
    %13670 = vmatpush.bf16.msra.mxu0 %v9171
    %13671 = vmatmul.bf16.gmra.mxu0 %v2373
    %v13672 = vpop.f32.mrf.mxu0
    %v13673 = vadd.f32 %v13660, %v13672
    %v13674 = vpop.f32.mrf.mxu0
    %13675 = vdwg.mxu0
    %13676 = vmatpush.bf16.msra.mxu0 %v9531
    %13677 = vmatpush.bf16.msra.mxu0 %v9507
    %13678 = vmatpush.bf16.msra.mxu0 %v9483
    %13679 = vmatpush.bf16.msra.mxu0 %v9459
    %13680 = vmatpush.bf16.msra.mxu0 %v9435
    %13681 = vmatpush.bf16.msra.mxu0 %v9411
    %13682 = vmatpush.bf16.msra.mxu0 %v9387
    %13683 = vmatpush.bf16.msra.mxu0 %v9363
    %13684 = vmatmul.bf16.gmra.mxu0 %v2374
    %v13685 = vpop.f32.mrf.mxu0
    %v13686 = vadd.f32 %v13673, %v13685
    %v13687 = vpop.f32.mrf.mxu0
    %13688 = vdwg.mxu0
    %13689 = vmatpush.bf16.msra.mxu0 %v9723
    %13690 = vmatpush.bf16.msra.mxu0 %v9699
    %13691 = vmatpush.bf16.msra.mxu0 %v9675
    %13692 = vmatpush.bf16.msra.mxu0 %v9651
    %13693 = vmatpush.bf16.msra.mxu0 %v9627
    %13694 = vmatpush.bf16.msra.mxu0 %v9603
    %13695 = vmatpush.bf16.msra.mxu0 %v9579
    %13696 = vmatpush.bf16.msra.mxu0 %v9555
    %13697 = vmatmul.bf16.gmra.mxu0 %v2375
    %v13698 = vpop.f32.mrf.mxu0
    %v13699 = vadd.f32 %v13686, %v13698
    %v13700 = vpop.f32.mrf.mxu0
    %13701 = vdwg.mxu0
    %13702 = vmatpush.bf16.msra.mxu0 %v9915
    %13703 = vmatpush.bf16.msra.mxu0 %v9891
    %13704 = vmatpush.bf16.msra.mxu0 %v9867
    %13705 = vmatpush.bf16.msra.mxu0 %v9843
    %13706 = vmatpush.bf16.msra.mxu0 %v9819
    %13707 = vmatpush.bf16.msra.mxu0 %v9795
    %13708 = vmatpush.bf16.msra.mxu0 %v9771
    %13709 = vmatpush.bf16.msra.mxu0 %v9747
    %13710 = vmatmul.bf16.gmra.mxu0 %v2376
    %v13711 = vpop.f32.mrf.mxu0
    %v13712 = vadd.f32 %v13699, %v13711
    %v13713 = vpop.f32.mrf.mxu0
    %13714 = vdwg.mxu0
    %13715 = vmatpush.bf16.msra.mxu0 %v10107
    %13716 = vmatpush.bf16.msra.mxu0 %v10083
    %13717 = vmatpush.bf16.msra.mxu0 %v10059
    %13718 = vmatpush.bf16.msra.mxu0 %v10035
    %13719 = vmatpush.bf16.msra.mxu0 %v10011
    %13720 = vmatpush.bf16.msra.mxu0 %v9987
    %13721 = vmatpush.bf16.msra.mxu0 %v9963
    %13722 = vmatpush.bf16.msra.mxu0 %v9939
    %13723 = vmatmul.bf16.gmra.mxu0 %v2377
    %v13724 = vpop.f32.mrf.mxu0
    %v13725 = vadd.f32 %v13712, %v13724
    %v13726 = vpop.f32.mrf.mxu0
    %13727 = vdwg.mxu0
    %13728 = vmatpush.bf16.msra.mxu0 %v8764
    %13729 = vmatpush.bf16.msra.mxu0 %v8740
    %13730 = vmatpush.bf16.msra.mxu0 %v8716
    %13731 = vmatpush.bf16.msra.mxu0 %v8692
    %13732 = vmatpush.bf16.msra.mxu0 %v8668
    %13733 = vmatpush.bf16.msra.mxu0 %v8644
    %13734 = vmatpush.bf16.msra.mxu0 %v8620
    %13735 = vmatpush.bf16.msra.mxu0 %v8596
    %13736 = vmatmul.bf16.gmra.mxu0 %v2370
    %v13737 = vpop.f32.mrf.mxu0
    %v13738 = vadd.f32 %v3940, %v13737
    %v13739 = vpop.f32.mrf.mxu0
    %13740 = vdwg.mxu0
    %13741 = vmatpush.bf16.msra.mxu0 %v8956
    %13742 = vmatpush.bf16.msra.mxu0 %v8932
    %13743 = vmatpush.bf16.msra.mxu0 %v8908
    %13744 = vmatpush.bf16.msra.mxu0 %v8884
    %13745 = vmatpush.bf16.msra.mxu0 %v8860
    %13746 = vmatpush.bf16.msra.mxu0 %v8836
    %13747 = vmatpush.bf16.msra.mxu0 %v8812
    %13748 = vmatpush.bf16.msra.mxu0 %v8788
    %13749 = vmatmul.bf16.gmra.mxu0 %v2371
    %v13750 = vpop.f32.mrf.mxu0
    %v13751 = vadd.f32 %v13738, %v13750
    %v13752 = vpop.f32.mrf.mxu0
    %13753 = vdwg.mxu0
    %13754 = vmatpush.bf16.msra.mxu0 %v9148
    %13755 = vmatpush.bf16.msra.mxu0 %v9124
    %13756 = vmatpush.bf16.msra.mxu0 %v9100
    %13757 = vmatpush.bf16.msra.mxu0 %v9076
    %13758 = vmatpush.bf16.msra.mxu0 %v9052
    %13759 = vmatpush.bf16.msra.mxu0 %v9028
    %13760 = vmatpush.bf16.msra.mxu0 %v9004
    %13761 = vmatpush.bf16.msra.mxu0 %v8980
    %13762 = vmatmul.bf16.gmra.mxu0 %v2372
    %v13763 = vpop.f32.mrf.mxu0
    %v13764 = vadd.f32 %v13751, %v13763
    %v13765 = vpop.f32.mrf.mxu0
    %13766 = vdwg.mxu0
    %13767 = vmatpush.bf16.msra.mxu0 %v9340
    %13768 = vmatpush.bf16.msra.mxu0 %v9316
    %13769 = vmatpush.bf16.msra.mxu0 %v9292
    %13770 = vmatpush.bf16.msra.mxu0 %v9268
    %13771 = vmatpush.bf16.msra.mxu0 %v9244
    %13772 = vmatpush.bf16.msra.mxu0 %v9220
    %13773 = vmatpush.bf16.msra.mxu0 %v9196
    %13774 = vmatpush.bf16.msra.mxu0 %v9172
    %13775 = vmatmul.bf16.gmra.mxu0 %v2373
    %v13776 = vpop.f32.mrf.mxu0
    %v13777 = vadd.f32 %v13764, %v13776
    %v13778 = vpop.f32.mrf.mxu0
    %13779 = vdwg.mxu0
    %13780 = vmatpush.bf16.msra.mxu0 %v9532
    %13781 = vmatpush.bf16.msra.mxu0 %v9508
    %13782 = vmatpush.bf16.msra.mxu0 %v9484
    %13783 = vmatpush.bf16.msra.mxu0 %v9460
    %13784 = vmatpush.bf16.msra.mxu0 %v9436
    %13785 = vmatpush.bf16.msra.mxu0 %v9412
    %13786 = vmatpush.bf16.msra.mxu0 %v9388
    %13787 = vmatpush.bf16.msra.mxu0 %v9364
    %13788 = vmatmul.bf16.gmra.mxu0 %v2374
    %v13789 = vpop.f32.mrf.mxu0
    %v13790 = vadd.f32 %v13777, %v13789
    %v13791 = vpop.f32.mrf.mxu0
    %13792 = vdwg.mxu0
    %13793 = vmatpush.bf16.msra.mxu0 %v9724
    %13794 = vmatpush.bf16.msra.mxu0 %v9700
    %13795 = vmatpush.bf16.msra.mxu0 %v9676
    %13796 = vmatpush.bf16.msra.mxu0 %v9652
    %13797 = vmatpush.bf16.msra.mxu0 %v9628
    %13798 = vmatpush.bf16.msra.mxu0 %v9604
    %13799 = vmatpush.bf16.msra.mxu0 %v9580
    %13800 = vmatpush.bf16.msra.mxu0 %v9556
    %13801 = vmatmul.bf16.gmra.mxu0 %v2375
    %v13802 = vpop.f32.mrf.mxu0
    %v13803 = vadd.f32 %v13790, %v13802
    %v13804 = vpop.f32.mrf.mxu0
    %13805 = vdwg.mxu0
    %13806 = vmatpush.bf16.msra.mxu0 %v9916
    %13807 = vmatpush.bf16.msra.mxu0 %v9892
    %13808 = vmatpush.bf16.msra.mxu0 %v9868
    %13809 = vmatpush.bf16.msra.mxu0 %v9844
    %13810 = vmatpush.bf16.msra.mxu0 %v9820
    %13811 = vmatpush.bf16.msra.mxu0 %v9796
    %13812 = vmatpush.bf16.msra.mxu0 %v9772
    %13813 = vmatpush.bf16.msra.mxu0 %v9748
    %13814 = vmatmul.bf16.gmra.mxu0 %v2376
    %v13815 = vpop.f32.mrf.mxu0
    %v13816 = vadd.f32 %v13803, %v13815
    %v13817 = vpop.f32.mrf.mxu0
    %13818 = vdwg.mxu0
    %13819 = vmatpush.bf16.msra.mxu0 %v10108
    %13820 = vmatpush.bf16.msra.mxu0 %v10084
    %13821 = vmatpush.bf16.msra.mxu0 %v10060
    %13822 = vmatpush.bf16.msra.mxu0 %v10036
    %13823 = vmatpush.bf16.msra.mxu0 %v10012
    %13824 = vmatpush.bf16.msra.mxu0 %v9988
    %13825 = vmatpush.bf16.msra.mxu0 %v9964
    %13826 = vmatpush.bf16.msra.mxu0 %v9940
    %13827 = vmatmul.bf16.gmra.mxu0 %v2377
    %v13828 = vpop.f32.mrf.mxu0
    %v13829 = vadd.f32 %v13816, %v13828
    %v13830 = vpop.f32.mrf.mxu0
    %13831 = vdwg.mxu0
    %13832 = vmatpush.bf16.msra.mxu0 %v8765
    %13833 = vmatpush.bf16.msra.mxu0 %v8741
    %13834 = vmatpush.bf16.msra.mxu0 %v8717
    %13835 = vmatpush.bf16.msra.mxu0 %v8693
    %13836 = vmatpush.bf16.msra.mxu0 %v8669
    %13837 = vmatpush.bf16.msra.mxu0 %v8645
    %13838 = vmatpush.bf16.msra.mxu0 %v8621
    %13839 = vmatpush.bf16.msra.mxu0 %v8597
    %13840 = vmatmul.bf16.gmra.mxu0 %v2370
    %v13841 = vpop.f32.mrf.mxu0
    %v13842 = vadd.f32 %v3941, %v13841
    %v13843 = vpop.f32.mrf.mxu0
    %13844 = vdwg.mxu0
    %13845 = vmatpush.bf16.msra.mxu0 %v8957
    %13846 = vmatpush.bf16.msra.mxu0 %v8933
    %13847 = vmatpush.bf16.msra.mxu0 %v8909
    %13848 = vmatpush.bf16.msra.mxu0 %v8885
    %13849 = vmatpush.bf16.msra.mxu0 %v8861
    %13850 = vmatpush.bf16.msra.mxu0 %v8837
    %13851 = vmatpush.bf16.msra.mxu0 %v8813
    %13852 = vmatpush.bf16.msra.mxu0 %v8789
    %13853 = vmatmul.bf16.gmra.mxu0 %v2371
    %v13854 = vpop.f32.mrf.mxu0
    %v13855 = vadd.f32 %v13842, %v13854
    %v13856 = vpop.f32.mrf.mxu0
    %13857 = vdwg.mxu0
    %13858 = vmatpush.bf16.msra.mxu0 %v9149
    %13859 = vmatpush.bf16.msra.mxu0 %v9125
    %13860 = vmatpush.bf16.msra.mxu0 %v9101
    %13861 = vmatpush.bf16.msra.mxu0 %v9077
    %13862 = vmatpush.bf16.msra.mxu0 %v9053
    %13863 = vmatpush.bf16.msra.mxu0 %v9029
    %13864 = vmatpush.bf16.msra.mxu0 %v9005
    %13865 = vmatpush.bf16.msra.mxu0 %v8981
    %13866 = vmatmul.bf16.gmra.mxu0 %v2372
    %v13867 = vpop.f32.mrf.mxu0
    %v13868 = vadd.f32 %v13855, %v13867
    %v13869 = vpop.f32.mrf.mxu0
    %13870 = vdwg.mxu0
    %13871 = vmatpush.bf16.msra.mxu0 %v9341
    %13872 = vmatpush.bf16.msra.mxu0 %v9317
    %13873 = vmatpush.bf16.msra.mxu0 %v9293
    %13874 = vmatpush.bf16.msra.mxu0 %v9269
    %13875 = vmatpush.bf16.msra.mxu0 %v9245
    %13876 = vmatpush.bf16.msra.mxu0 %v9221
    %13877 = vmatpush.bf16.msra.mxu0 %v9197
    %13878 = vmatpush.bf16.msra.mxu0 %v9173
    %13879 = vmatmul.bf16.gmra.mxu0 %v2373
    %v13880 = vpop.f32.mrf.mxu0
    %v13881 = vadd.f32 %v13868, %v13880
    %v13882 = vpop.f32.mrf.mxu0
    %13883 = vdwg.mxu0
    %13884 = vmatpush.bf16.msra.mxu0 %v9533
    %13885 = vmatpush.bf16.msra.mxu0 %v9509
    %13886 = vmatpush.bf16.msra.mxu0 %v9485
    %13887 = vmatpush.bf16.msra.mxu0 %v9461
    %13888 = vmatpush.bf16.msra.mxu0 %v9437
    %13889 = vmatpush.bf16.msra.mxu0 %v9413
    %13890 = vmatpush.bf16.msra.mxu0 %v9389
    %13891 = vmatpush.bf16.msra.mxu0 %v9365
    %13892 = vmatmul.bf16.gmra.mxu0 %v2374
    %v13893 = vpop.f32.mrf.mxu0
    %v13894 = vadd.f32 %v13881, %v13893
    %v13895 = vpop.f32.mrf.mxu0
    %13896 = vdwg.mxu0
    %13897 = vmatpush.bf16.msra.mxu0 %v9725
    %13898 = vmatpush.bf16.msra.mxu0 %v9701
    %13899 = vmatpush.bf16.msra.mxu0 %v9677
    %13900 = vmatpush.bf16.msra.mxu0 %v9653
    %13901 = vmatpush.bf16.msra.mxu0 %v9629
    %13902 = vmatpush.bf16.msra.mxu0 %v9605
    %13903 = vmatpush.bf16.msra.mxu0 %v9581
    %13904 = vmatpush.bf16.msra.mxu0 %v9557
    %13905 = vmatmul.bf16.gmra.mxu0 %v2375
    %v13906 = vpop.f32.mrf.mxu0
    %v13907 = vadd.f32 %v13894, %v13906
    %v13908 = vpop.f32.mrf.mxu0
    %13909 = vdwg.mxu0
    %13910 = vmatpush.bf16.msra.mxu0 %v9917
    %13911 = vmatpush.bf16.msra.mxu0 %v9893
    %13912 = vmatpush.bf16.msra.mxu0 %v9869
    %13913 = vmatpush.bf16.msra.mxu0 %v9845
    %13914 = vmatpush.bf16.msra.mxu0 %v9821
    %13915 = vmatpush.bf16.msra.mxu0 %v9797
    %13916 = vmatpush.bf16.msra.mxu0 %v9773
    %13917 = vmatpush.bf16.msra.mxu0 %v9749
    %13918 = vmatmul.bf16.gmra.mxu0 %v2376
    %v13919 = vpop.f32.mrf.mxu0
    %v13920 = vadd.f32 %v13907, %v13919
    %v13921 = vpop.f32.mrf.mxu0
    %13922 = vdwg.mxu0
    %13923 = vmatpush.bf16.msra.mxu0 %v10109
    %13924 = vmatpush.bf16.msra.mxu0 %v10085
    %13925 = vmatpush.bf16.msra.mxu0 %v10061
    %13926 = vmatpush.bf16.msra.mxu0 %v10037
    %13927 = vmatpush.bf16.msra.mxu0 %v10013
    %13928 = vmatpush.bf16.msra.mxu0 %v9989
    %13929 = vmatpush.bf16.msra.mxu0 %v9965
    %13930 = vmatpush.bf16.msra.mxu0 %v9941
    %13931 = vmatmul.bf16.gmra.mxu0 %v2377
    %v13932 = vpop.f32.mrf.mxu0
    %v13933 = vadd.f32 %v13920, %v13932
    %v13934 = vpop.f32.mrf.mxu0
    %13935 = vdwg.mxu0
    %13936 = vmatpush.bf16.msra.mxu0 %v8766
    %13937 = vmatpush.bf16.msra.mxu0 %v8742
    %13938 = vmatpush.bf16.msra.mxu0 %v8718
    %13939 = vmatpush.bf16.msra.mxu0 %v8694
    %13940 = vmatpush.bf16.msra.mxu0 %v8670
    %13941 = vmatpush.bf16.msra.mxu0 %v8646
    %13942 = vmatpush.bf16.msra.mxu0 %v8622
    %13943 = vmatpush.bf16.msra.mxu0 %v8598
    %13944 = vmatmul.bf16.gmra.mxu0 %v2370
    %v13945 = vpop.f32.mrf.mxu0
    %v13946 = vadd.f32 %v3942, %v13945
    %v13947 = vpop.f32.mrf.mxu0
    %13948 = vdwg.mxu0
    %13949 = vmatpush.bf16.msra.mxu0 %v8958
    %13950 = vmatpush.bf16.msra.mxu0 %v8934
    %13951 = vmatpush.bf16.msra.mxu0 %v8910
    %13952 = vmatpush.bf16.msra.mxu0 %v8886
    %13953 = vmatpush.bf16.msra.mxu0 %v8862
    %13954 = vmatpush.bf16.msra.mxu0 %v8838
    %13955 = vmatpush.bf16.msra.mxu0 %v8814
    %13956 = vmatpush.bf16.msra.mxu0 %v8790
    %13957 = vmatmul.bf16.gmra.mxu0 %v2371
    %v13958 = vpop.f32.mrf.mxu0
    %v13959 = vadd.f32 %v13946, %v13958
    %v13960 = vpop.f32.mrf.mxu0
    %13961 = vdwg.mxu0
    %13962 = vmatpush.bf16.msra.mxu0 %v9150
    %13963 = vmatpush.bf16.msra.mxu0 %v9126
    %13964 = vmatpush.bf16.msra.mxu0 %v9102
    %13965 = vmatpush.bf16.msra.mxu0 %v9078
    %13966 = vmatpush.bf16.msra.mxu0 %v9054
    %13967 = vmatpush.bf16.msra.mxu0 %v9030
    %13968 = vmatpush.bf16.msra.mxu0 %v9006
    %13969 = vmatpush.bf16.msra.mxu0 %v8982
    %13970 = vmatmul.bf16.gmra.mxu0 %v2372
    %v13971 = vpop.f32.mrf.mxu0
    %v13972 = vadd.f32 %v13959, %v13971
    %v13973 = vpop.f32.mrf.mxu0
    %13974 = vdwg.mxu0
    %13975 = vmatpush.bf16.msra.mxu0 %v9342
    %13976 = vmatpush.bf16.msra.mxu0 %v9318
    %13977 = vmatpush.bf16.msra.mxu0 %v9294
    %13978 = vmatpush.bf16.msra.mxu0 %v9270
    %13979 = vmatpush.bf16.msra.mxu0 %v9246
    %13980 = vmatpush.bf16.msra.mxu0 %v9222
    %13981 = vmatpush.bf16.msra.mxu0 %v9198
    %13982 = vmatpush.bf16.msra.mxu0 %v9174
    %13983 = vmatmul.bf16.gmra.mxu0 %v2373
    %v13984 = vpop.f32.mrf.mxu0
    %v13985 = vadd.f32 %v13972, %v13984
    %v13986 = vpop.f32.mrf.mxu0
    %13987 = vdwg.mxu0
    %13988 = vmatpush.bf16.msra.mxu0 %v9534
    %13989 = vmatpush.bf16.msra.mxu0 %v9510
    %13990 = vmatpush.bf16.msra.mxu0 %v9486
    %13991 = vmatpush.bf16.msra.mxu0 %v9462
    %13992 = vmatpush.bf16.msra.mxu0 %v9438
    %13993 = vmatpush.bf16.msra.mxu0 %v9414
    %13994 = vmatpush.bf16.msra.mxu0 %v9390
    %13995 = vmatpush.bf16.msra.mxu0 %v9366
    %13996 = vmatmul.bf16.gmra.mxu0 %v2374
    %v13997 = vpop.f32.mrf.mxu0
    %v13998 = vadd.f32 %v13985, %v13997
    %v13999 = vpop.f32.mrf.mxu0
    %14000 = vdwg.mxu0
    %14001 = vmatpush.bf16.msra.mxu0 %v9726
    %14002 = vmatpush.bf16.msra.mxu0 %v9702
    %14003 = vmatpush.bf16.msra.mxu0 %v9678
    %14004 = vmatpush.bf16.msra.mxu0 %v9654
    %14005 = vmatpush.bf16.msra.mxu0 %v9630
    %14006 = vmatpush.bf16.msra.mxu0 %v9606
    %14007 = vmatpush.bf16.msra.mxu0 %v9582
    %14008 = vmatpush.bf16.msra.mxu0 %v9558
    %14009 = vmatmul.bf16.gmra.mxu0 %v2375
    %v14010 = vpop.f32.mrf.mxu0
    %v14011 = vadd.f32 %v13998, %v14010
    %v14012 = vpop.f32.mrf.mxu0
    %14013 = vdwg.mxu0
    %14014 = vmatpush.bf16.msra.mxu0 %v9918
    %14015 = vmatpush.bf16.msra.mxu0 %v9894
    %14016 = vmatpush.bf16.msra.mxu0 %v9870
    %14017 = vmatpush.bf16.msra.mxu0 %v9846
    %14018 = vmatpush.bf16.msra.mxu0 %v9822
    %14019 = vmatpush.bf16.msra.mxu0 %v9798
    %14020 = vmatpush.bf16.msra.mxu0 %v9774
    %14021 = vmatpush.bf16.msra.mxu0 %v9750
    %14022 = vmatmul.bf16.gmra.mxu0 %v2376
    %v14023 = vpop.f32.mrf.mxu0
    %v14024 = vadd.f32 %v14011, %v14023
    %v14025 = vpop.f32.mrf.mxu0
    %14026 = vdwg.mxu0
    %14027 = vmatpush.bf16.msra.mxu0 %v10110
    %14028 = vmatpush.bf16.msra.mxu0 %v10086
    %14029 = vmatpush.bf16.msra.mxu0 %v10062
    %14030 = vmatpush.bf16.msra.mxu0 %v10038
    %14031 = vmatpush.bf16.msra.mxu0 %v10014
    %14032 = vmatpush.bf16.msra.mxu0 %v9990
    %14033 = vmatpush.bf16.msra.mxu0 %v9966
    %14034 = vmatpush.bf16.msra.mxu0 %v9942
    %14035 = vmatmul.bf16.gmra.mxu0 %v2377
    %v14036 = vpop.f32.mrf.mxu0
    %v14037 = vadd.f32 %v14024, %v14036
    %v14038 = vpop.f32.mrf.mxu0
    %14039 = vdwg.mxu0
    %14040 = vmatpush.bf16.msra.mxu0 %v8767
    %14041 = vmatpush.bf16.msra.mxu0 %v8743
    %14042 = vmatpush.bf16.msra.mxu0 %v8719
    %14043 = vmatpush.bf16.msra.mxu0 %v8695
    %14044 = vmatpush.bf16.msra.mxu0 %v8671
    %14045 = vmatpush.bf16.msra.mxu0 %v8647
    %14046 = vmatpush.bf16.msra.mxu0 %v8623
    %14047 = vmatpush.bf16.msra.mxu0 %v8599
    %14048 = vmatmul.bf16.gmra.mxu0 %v2370
    %v14049 = vpop.f32.mrf.mxu0
    %v14050 = vadd.f32 %v3943, %v14049
    %v14051 = vpop.f32.mrf.mxu0
    %14052 = vdwg.mxu0
    %14053 = vmatpush.bf16.msra.mxu0 %v8959
    %14054 = vmatpush.bf16.msra.mxu0 %v8935
    %14055 = vmatpush.bf16.msra.mxu0 %v8911
    %14056 = vmatpush.bf16.msra.mxu0 %v8887
    %14057 = vmatpush.bf16.msra.mxu0 %v8863
    %14058 = vmatpush.bf16.msra.mxu0 %v8839
    %14059 = vmatpush.bf16.msra.mxu0 %v8815
    %14060 = vmatpush.bf16.msra.mxu0 %v8791
    %14061 = vmatmul.bf16.gmra.mxu0 %v2371
    %v14062 = vpop.f32.mrf.mxu0
    %v14063 = vadd.f32 %v14050, %v14062
    %v14064 = vpop.f32.mrf.mxu0
    %14065 = vdwg.mxu0
    %14066 = vmatpush.bf16.msra.mxu0 %v9151
    %14067 = vmatpush.bf16.msra.mxu0 %v9127
    %14068 = vmatpush.bf16.msra.mxu0 %v9103
    %14069 = vmatpush.bf16.msra.mxu0 %v9079
    %14070 = vmatpush.bf16.msra.mxu0 %v9055
    %14071 = vmatpush.bf16.msra.mxu0 %v9031
    %14072 = vmatpush.bf16.msra.mxu0 %v9007
    %14073 = vmatpush.bf16.msra.mxu0 %v8983
    %14074 = vmatmul.bf16.gmra.mxu0 %v2372
    %v14075 = vpop.f32.mrf.mxu0
    %v14076 = vadd.f32 %v14063, %v14075
    %v14077 = vpop.f32.mrf.mxu0
    %14078 = vdwg.mxu0
    %14079 = vmatpush.bf16.msra.mxu0 %v9343
    %14080 = vmatpush.bf16.msra.mxu0 %v9319
    %14081 = vmatpush.bf16.msra.mxu0 %v9295
    %14082 = vmatpush.bf16.msra.mxu0 %v9271
    %14083 = vmatpush.bf16.msra.mxu0 %v9247
    %14084 = vmatpush.bf16.msra.mxu0 %v9223
    %14085 = vmatpush.bf16.msra.mxu0 %v9199
    %14086 = vmatpush.bf16.msra.mxu0 %v9175
    %14087 = vmatmul.bf16.gmra.mxu0 %v2373
    %v14088 = vpop.f32.mrf.mxu0
    %v14089 = vadd.f32 %v14076, %v14088
    %v14090 = vpop.f32.mrf.mxu0
    %14091 = vdwg.mxu0
    %14092 = vmatpush.bf16.msra.mxu0 %v9535
    %14093 = vmatpush.bf16.msra.mxu0 %v9511
    %14094 = vmatpush.bf16.msra.mxu0 %v9487
    %14095 = vmatpush.bf16.msra.mxu0 %v9463
    %14096 = vmatpush.bf16.msra.mxu0 %v9439
    %14097 = vmatpush.bf16.msra.mxu0 %v9415
    %14098 = vmatpush.bf16.msra.mxu0 %v9391
    %14099 = vmatpush.bf16.msra.mxu0 %v9367
    %14100 = vmatmul.bf16.gmra.mxu0 %v2374
    %v14101 = vpop.f32.mrf.mxu0
    %v14102 = vadd.f32 %v14089, %v14101
    %v14103 = vpop.f32.mrf.mxu0
    %14104 = vdwg.mxu0
    %14105 = vmatpush.bf16.msra.mxu0 %v9727
    %14106 = vmatpush.bf16.msra.mxu0 %v9703
    %14107 = vmatpush.bf16.msra.mxu0 %v9679
    %14108 = vmatpush.bf16.msra.mxu0 %v9655
    %14109 = vmatpush.bf16.msra.mxu0 %v9631
    %14110 = vmatpush.bf16.msra.mxu0 %v9607
    %14111 = vmatpush.bf16.msra.mxu0 %v9583
    %14112 = vmatpush.bf16.msra.mxu0 %v9559
    %14113 = vmatmul.bf16.gmra.mxu0 %v2375
    %v14114 = vpop.f32.mrf.mxu0
    %v14115 = vadd.f32 %v14102, %v14114
    %v14116 = vpop.f32.mrf.mxu0
    %14117 = vdwg.mxu0
    %14118 = vmatpush.bf16.msra.mxu0 %v9919
    %14119 = vmatpush.bf16.msra.mxu0 %v9895
    %14120 = vmatpush.bf16.msra.mxu0 %v9871
    %14121 = vmatpush.bf16.msra.mxu0 %v9847
    %14122 = vmatpush.bf16.msra.mxu0 %v9823
    %14123 = vmatpush.bf16.msra.mxu0 %v9799
    %14124 = vmatpush.bf16.msra.mxu0 %v9775
    %14125 = vmatpush.bf16.msra.mxu0 %v9751
    %14126 = vmatmul.bf16.gmra.mxu0 %v2376
    %v14127 = vpop.f32.mrf.mxu0
    %v14128 = vadd.f32 %v14115, %v14127
    %v14129 = vpop.f32.mrf.mxu0
    %14130 = vdwg.mxu0
    %14131 = vmatpush.bf16.msra.mxu0 %v10111
    %14132 = vmatpush.bf16.msra.mxu0 %v10087
    %14133 = vmatpush.bf16.msra.mxu0 %v10063
    %14134 = vmatpush.bf16.msra.mxu0 %v10039
    %14135 = vmatpush.bf16.msra.mxu0 %v10015
    %14136 = vmatpush.bf16.msra.mxu0 %v9991
    %14137 = vmatpush.bf16.msra.mxu0 %v9967
    %14138 = vmatpush.bf16.msra.mxu0 %v9943
    %14139 = vmatmul.bf16.gmra.mxu0 %v2377
    %v14140 = vpop.f32.mrf.mxu0
    %v14141 = vadd.f32 %v14128, %v14140
    %v14142 = vpop.f32.mrf.mxu0
    %14143 = vdwg.mxu0
    %v14144 = vtanh.pop %v11749
    %v14145 = vtanh.pop %v11853
    %v14146 = vtanh.pop %v11957
    %v14147 = vtanh.pop %v12061
    %v14148 = vtanh.pop %v12165
    %v14149 = vtanh.pop %v12269
    %v14150 = vtanh.pop %v12373
    %v14151 = vtanh.pop %v12477
    %v14152 = vtanh.pop %v12581
    %v14153 = vtanh.pop %v12685
    %v14154 = vtanh.pop %v12789
    %v14155 = vtanh.pop %v12893
    %v14156 = vtanh.pop %v12997
    %v14157 = vtanh.pop %v13101
    %v14158 = vtanh.pop %v13205
    %v14159 = vtanh.pop %v13309
    %v14160 = vtanh.pop %v13413
    %v14161 = vtanh.pop %v13517
    %v14162 = vtanh.pop %v13621
    %v14163 = vtanh.pop %v13725
    %v14164 = vtanh.pop %v13829
    %v14165 = vtanh.pop %v13933
    %v14166 = vtanh.pop %v14037
    %v14167 = vtanh.pop %v14141
    %14168 = vst [vmem:[#allocation14] sm:$0xff] %v14144
    %14169 = vst [vmem:[#allocation14 + $0x8] sm:$0xff] %v14145
    %14170 = vst [vmem:[#allocation14 + $0x10] sm:$0xff] %v14146
    %14171 = vst [vmem:[#allocation14 + $0x18] sm:$0xff] %v14147
    %14172 = vst [vmem:[#allocation14 + $0x20] sm:$0xff] %v14148
    %14173 = vst [vmem:[#allocation14 + $0x28] sm:$0xff] %v14149
    %14174 = vst [vmem:[#allocation14 + $0x30] sm:$0xff] %v14150
    %14175 = vst [vmem:[#allocation14 + $0x38] sm:$0xff] %v14151
    %14176 = vst [vmem:[#allocation14 + $0x40] sm:$0xff] %v14152
    %14177 = vst [vmem:[#allocation14 + $0x48] sm:$0xff] %v14153
    %14178 = vst [vmem:[#allocation14 + $0x50] sm:$0xff] %v14154
    %14179 = vst [vmem:[#allocation14 + $0x58] sm:$0xff] %v14155
    %14180 = vst [vmem:[#allocation14 + $0x60] sm:$0xff] %v14156
    %14181 = vst [vmem:[#allocation14 + $0x68] sm:$0xff] %v14157
    %14182 = vst [vmem:[#allocation14 + $0x70] sm:$0xff] %v14158
    %14183 = vst [vmem:[#allocation14 + $0x78] sm:$0xff] %v14159
    %14184 = vst [vmem:[#allocation14 + $0x80] sm:$0xff] %v14160
    %14185 = vst [vmem:[#allocation14 + $0x88] sm:$0xff] %v14161
    %14186 = vst [vmem:[#allocation14 + $0x90] sm:$0xff] %v14162
    %14187 = vst [vmem:[#allocation14 + $0x98] sm:$0xff] %v14163
    %14188 = vst [vmem:[#allocation14 + $0xa0] sm:$0xff] %v14164
    %14189 = vst [vmem:[#allocation14 + $0xa8] sm:$0xff] %v14165
    %14190 = vst [vmem:[#allocation14 + $0xb0] sm:$0xff] %v14166
    %14191 = vst [vmem:[#allocation14 + $0xb8] sm:$0xff] %v14167
    // Predicated region
    $region58: #{tpu_custom_call.1} parent=1 // pred_check
      _
    $region59: #{tpu_custom_call.1} parent=1 // pred_check_branch
      %14193 = sbr.rel (0) target = $region61
    $region60: #{tpu_custom_call.1} parent=1 // pred_region
      %14195 = vsyncadd [#allocation4], 0
      %s14197 = sshll.u32 [#allocation14], 4
      %s14198 = int_to_ptr.vmem [resolvable:$true] %s14197
      %s14199 = sshll.u32 %s7, 4
      %s14200 = int_to_ptr.hbm [resolvable:$true] %s14199
      %14202 = dma.vmem_to_hbm [thread:$0]  %s14198, 3072, %s14200, [#allocation4]
    $region61: #{tpu_custom_call.1} parent=1 // pred_fallthru
      _
    // Predicated region
    $region62: #{tpu_custom_call.1} parent=1 // pred_check
      _
    $region63: #{tpu_custom_call.1} parent=1 // pred_check_branch
      %14204 = sbr.rel (0) target = $region65
    $region64: #{tpu_custom_call.1} parent=1 // pred_region
      %14206 = dma.done [#allocation4], 3072
    $region65: #{tpu_custom_call.1} parent=1 // pred_fallthru
      _
    %14207 = vsyncpa [#allocation3], 1
    %14208 = vsyncpa [#allocation6], 1
    %14209 = vsyncpa [#allocation9], 1
    %14210 = vsyncpa [#allocation12], 1
    %14211 = vsyncpa [#allocation4], 1

</llo_original>
